<compile_context>
chip_gen: v7x
topology: tpu7x:2x2x1
jax: 0.10.0
libtpu: 0.0.40
codegen_flags: <defaults>
</compile_context>

<pallas_src>
import functools
import math

import jax
import jax.numpy as jnp
import numpy as np
from jax.experimental import pallas as pl
from jax.experimental.pallas import tpu as pltpu

TARGET_TM = 512  # target raster rows per tile (tm = toh * Wp)


def _round_up(a, b):
    return (a + b - 1) // b * b


# ----------------------------- Pallas kernels ------------------------------ #

def _conv_bias_absmax_kernel(x_ref, w_ref, qb_ref, mask_ref, out_ref, amax_ref,
                             acc_ref, *, kh, kw, wp, tm, nrt):
    """Implicit-GEMM conv tile: KH*KW shifted bf16 matmuls, f32 scratch accumulator,
    qbias add, bf16 store, masked per-tile |max| (lane-dense (8, tn) block)."""
    khkw = kh * kw
    row0 = 0 if nrt == 1 else pl.program_id(2) * tm   # tm is a multiple of 32

    for idx in range(khkw):                       # static loop over the KH*KW shifts
        off = (idx // kw) * wp + (idx % kw)
        if nrt == 1:
            a = x_ref[0, pl.ds(off, tm), :]       # fully static slice of resident slab
        else:
            # Keep the dynamic slice start 8-aligned; absorb the static remainder
            # with a value-level shift.
            off_al = (off // 8) * 8
            rem = off - off_al
            start = pl.multiple_of(row0 + off_al, 8)
            a = x_ref[0, pl.ds(start, tm + 8), :]
            a = a[rem:rem + tm, :]
        d = jnp.dot(a, w_ref[idx], preferred_element_type=jnp.float32)
        if idx == 0:
            acc_ref[...] = d
        else:
            acc_ref[...] += d

    acc = acc_ref[...] + qb_ref[...]              # (1, tn) broadcast over the tile
    out_ref[...] = acc[jnp.newaxis].astype(out_ref.dtype)

    # |max| over valid raster positions only (garbage over-compute columns, padded
    # rows and stride-skipped positions are zeroed by the precomputed mask).
    lane_max = jnp.max(jnp.abs(acc) * mask_ref[...], axis=0, keepdims=True)
    amax_ref[...] = jnp.broadcast_to(lane_max, amax_ref.shape)


def _quantize_kernel(x_ref, inv_ref, q_ref):
    """Symmetric per-tensor requantization: clip(round(x * (127/amax)), -127, 127)."""
    inv = inv_ref[0]                               # scalar from SMEM (precomputed 1/scale)
    q = jnp.round(x_ref[...].astype(jnp.float32) * inv)
    q_ref[...] = jnp.clip(q, -127.0, 127.0).astype(jnp.int8)


# ------------------------------ pallas_call wrappers ----------------------- #

def _conv_vmem_limit(m2_pad, cin_pad, tm, tn, khkw):
    x2 = 2 * m2_pad * cin_pad * 2          # double-buffered bf16 slab
    wgt = 2 * khkw * cin_pad * tn * 2
    qb = 2 * 8 * tn * 4
    mask = 2 * tm * 128 * 4                # (tm, 1) pads to full lanes
    out = 2 * tm * tn * 2
    amax = 2 * 8 * tn * 4
    acc = tm * tn * 4
    total = x2 + wgt + qb + mask + out + amax + acc
    return min(64 << 20, max(32 << 20, int(total * 1.25) + (2 << 20)))


def _conv_fused(x2, w_mat, qbias, colmask, *, tm, tn, nrt, kh, kw, wp, out_dtype):
    b_sz, m2_pad, cin_pad = x2.shape
    cout_pad = w_mat.shape[2]
    n_tiles = cout_pad // tn
    m_out_pad = nrt * tm
    kernel = functools.partial(_conv_bias_absmax_kernel,
                               kh=kh, kw=kw, wp=wp, tm=tm, nrt=nrt)
    return pl.pallas_call(
        kernel,
        out_shape=(jax.ShapeDtypeStruct((b_sz, m_out_pad, cout_pad), out_dtype),
                   jax.ShapeDtypeStruct((b_sz * nrt * 8, cout_pad), jnp.float32)),
        grid=(b_sz, n_tiles, nrt),
        in_specs=[
            # activation slab: resident across Cout / row tiles of a batch element
            pl.BlockSpec((1, m2_pad, cin_pad), lambda b, n, t: (b, 0, 0)),
            # per-shift weight matrices (KH*KW, Cin_pad, tn)
            pl.BlockSpec((kh * kw, cin_pad, tn), lambda b, n, t: (0, 0, n)),
            # quantized bias
            pl.BlockSpec((1, tn), lambda b, n, t: (0, n)),
            # raster-validity mask
            pl.BlockSpec((tm, 1), lambda b, n, t: (t, 0)),
        ],
        out_specs=(
            pl.BlockSpec((1, tm, tn), lambda b, n, t: (b, t, n)),
            pl.BlockSpec((8, tn), lambda b, n, t: (b * nrt + t, n)),
        ),
        scratch_shapes=[pltpu.VMEM((tm, tn), jnp.float32)],
        compiler_params=pltpu.CompilerParams(
            dimension_semantics=("parallel", "parallel", "arbitrary"),
            vmem_limit_bytes=_conv_vmem_limit(m2_pad, cin_pad, tm, tn, kh * kw)),
    )(x2, w_mat, qbias, colmask)


def _requantize(conv_flat, inv_scale, tq):
    m_tot, c_pad = conv_flat.shape
    vmem = min(64 << 20,
               max(32 << 20,
                   int((2 * tq * c_pad * conv_flat.dtype.itemsize
                        + 2 * tq * c_pad) * 1.5) + (2 << 20)))
    return pl.pallas_call(
        _quantize_kernel,
        out_shape=jax.ShapeDtypeStruct((m_tot, c_pad), jnp.int8),
        grid=(m_tot // tq,),
        in_specs=[pl.BlockSpec((tq, c_pad), lambda i: (i, 0)),
                  pl.BlockSpec(memory_space=pltpu.MemorySpace.SMEM)],
        out_specs=pl.BlockSpec((tq, c_pad), lambda i: (i, 0)),
        compiler_params=pltpu.CompilerParams(
            dimension_semantics=("parallel",), vmem_limit_bytes=vmem),
    )(conv_flat, inv_scale)


# ------------------------------ JAX glue ----------------------------------- #

def quantize_symmetric(t):
    """quantize_tensor(..., symmetric=True, per_channel=False): int8 repr kept as f32."""
    amax = jnp.max(jnp.abs(t))
    scale = jnp.maximum(amax, 1e-8) / 127.0
    q = jnp.clip(jnp.round(t / scale), -127.0, 127.0)
    return q, scale  # zero_point == 0


@functools.partial(jax.jit, static_argnames=("stride", "padding"))
def quantized_conv2d_forward(x_q, x_scale, x_zp, qweight, w_scale, bias,
                             stride=1, padding=1):
    """Forward of QuantizedConv2d (symmetric=True, per_channel=False, estimate=False).

    x_q:      (B, Cin, H, W)  quantized input values (stored as float32)
    qweight:  (Cout, Cin, KH, KW) quantized weight values (stored as float32)
    Returns (q_tensor NCHW as int8, out_scale, out_zero_point).
    """
    B, Cin, H, W = x_q.shape
    Cout, _, KH, KW = qweight.shape
    s, p = int(stride), int(padding)
    OH = (H + 2 * p - KH) // s + 1
    OW = (W + 2 * p - KW) // s + 1
    Hp, Wp = H + 2 * p, W + 2 * p
    OH_r = Hp - KH + 1                       # stride-1 raster extent (superset of outputs)

    cin_pad = _round_up(Cin, 128)
    cout_pad = _round_up(Cout, 128)

    # Cout tile (resident weight when it fits; tiled otherwise).
    tn = cout_pad
    if cout_pad > 512:
        for cand in (512, 384, 256, 128):
            if cout_pad % cand == 0:
                tn = cand
                break

    # Raster-row tile: tm = toh * Wp, kept a multiple of 32 for bf16/int8 layouts.
    unit = 32 // math.gcd(Wp, 32)
    toh = max(unit, (TARGET_TM // Wp) // unit * unit)
    toh = min(toh, _round_up(OH_r, unit))
    ohp_r = _round_up(OH_r, toh)
    nrt = ohp_r // toh
    tm = toh * Wp
    m_out_pad = ohp_r * Wp

    # Slab length: worst-case shifted access (+8 slack for the aligned-load path).
    m2_pad = _round_up(m_out_pad + (KH - 1) * Wp + KW + 8, 32)

    # Activation: (x - zp) exact small integers -> bf16, NCHW -> NHWC raster slab.
    xz = (x_q.astype(jnp.float32) - x_zp).astype(jnp.bfloat16)
    xz = jnp.transpose(xz, (0, 2, 3, 1))
    xz = jnp.pad(xz, ((0, 0), (p, p), (p, p), (0, cin_pad - Cin)))
    x2 = xz.reshape(B, Hp * Wp, cin_pad)
    x2 = jnp.pad(x2, ((0, 0), (0, m2_pad - Hp * Wp), (0, 0)))

    # Weight: (Cout, Cin, KH, KW) -> (KH*KW, Cin_pad, Cout_pad) bf16.
    w_mat = jnp.transpose(qweight, (2, 3, 1, 0)).reshape(KH * KW, Cin, Cout)
    w_mat = jnp.pad(w_mat, ((0, 0), (0, cin_pad - Cin),
                            (0, cout_pad - Cout))).astype(jnp.bfloat16)

    # qbias = round(bias / (w_scale * x_scale))   (per-tensor scales -> scalar)
    qbias = jnp.round(bias / (w_scale * x_scale)).astype(jnp.float32)
    qbias = jnp.pad(qbias, (0, cout_pad - Cout)).reshape(1, cout_pad)

    # Static raster-validity mask (1.0 where the raster position is a real output).
    rr = np.arange(ohp_r)[:, None]
    cc = np.arange(Wp)[None, :]
    valid = ((rr % s == 0) & (rr // s < OH) & (cc % s == 0) & (cc // s < OW))
    colmask = jnp.asarray(valid.reshape(m_out_pad, 1).astype(np.float32))

    conv_out, amax_tiles = _conv_fused(
        x2, w_mat, qbias, colmask,
        tm=tm, tn=tn, nrt=nrt, kh=KH, kw=KW, wp=Wp, out_dtype=jnp.bfloat16)

    # Global abs-max from the lane-dense per-tile maxima (tiny reduction in XLA).
    amax = jnp.max(amax_tiles)
    safe_amax = jnp.maximum(amax, 1e-8)
    requant_scale = safe_amax / 127.0
    inv_scale = (127.0 / safe_amax).reshape(1)

    conv_flat = conv_out.reshape(B * m_out_pad, cout_pad)
    q_flat = _requantize(conv_flat, inv_scale, tm)

    # Drop over-computed columns / padded rows / stride-skipped positions, NCHW.
    q_raster = q_flat.reshape(B, ohp_r, Wp, cout_pad)
    q_nhwc = q_raster[:, : (OH - 1) * s + 1: s, : (OW - 1) * s + 1: s, :Cout]
    q_nchw = jnp.transpose(q_nhwc, (0, 3, 1, 2))

    out_scale = requant_scale * x_scale * w_scale
    out_zp = jnp.zeros((), jnp.float32)
    return q_nchw, out_scale, out_zp


# --------------------------------- main ------------------------------------ #

if __name__ == "__main__":
    key = jax.random.PRNGKey(0)
    kx, kw, kb = jax.random.split(key, 3)

    B, Cin, H, W = 2, 4, 16, 16
    Cout, KH, KW = 8, 3, 3
    stride, padding = 1, 1

    x = jax.random.normal(kx, (B, Cin, H, W), jnp.float32)
    weight = jax.random.normal(kw, (Cout, Cin, KH, KW), jnp.float32) * 0.1
    bias = jax.random.normal(kb, (Cout,), jnp.float32) * 0.5

    # __init__: qweight = quantize_tensor(weight, symmetric=True, per_channel=False)
    qw, w_scale = quantize_symmetric(weight)

    # Build the input Qtensor (asymmetric uint8-style per-tensor quantization).
    x_min, x_max = jnp.min(x), jnp.max(x)
    x_scale = (x_max - x_min) / 255.0
    x_zp = jnp.round(-x_min / x_scale)
    x_q = jnp.clip(jnp.round(x / x_scale) + x_zp, 0.0, 255.0)

    q_out, out_scale, out_zp = quantized_conv2d_forward(
        x_q, x_scale, x_zp, qw, w_scale, bias, stride=stride, padding=padding)
    q_out = jax.block_until_ready(q_out)

    # Pure-JAX reference of the same forward for a sanity check.
    xz = x_q - x_zp
    conv_ref = jax.lax.conv_general_dilated(
        xz, qw, window_strides=(stride, stride),
        padding=((padding, padding), (padding, padding)),
        dimension_numbers=("NCHW", "OIHW", "NCHW"),
        precision=jax.lax.Precision.HIGHEST)
    conv_ref = conv_ref + jnp.round(bias / (w_scale * x_scale))[None, :, None, None]
    amax_r = jnp.max(jnp.abs(conv_ref))
    scale_r = jnp.maximum(amax_r, 1e-8) / 127.0
    q_ref = jnp.clip(jnp.round(conv_ref / scale_r), -127.0, 127.0)

    assert q_out.shape == (B, Cout, H, W)
    assert q_out.dtype == jnp.int8
    diff = np.max(np.abs(np.asarray(q_out, dtype=np.float32) - np.asarray(q_ref)))
    assert diff <= 1.0, f"max |diff| = {diff}"
    assert np.isfinite(float(out_scale))

    print("KERNEL_OK")
</pallas_src>

<mosaic_0001>
module attributes {stable_mosaic.version = 11 : i64} {
  func.func @_quantize_kernel(%arg0: i32, %arg1: memref<288x128xbf16, #tpu.memory_space<vmem>>, %arg2: memref<1xf32, #tpu.memory_space<smem>>, %arg3: memref<288x128xi8, #tpu.memory_space<vmem>>) attributes {dimension_semantics = [#tpu.dimension_semantics<parallel>], iteration_bounds = array<i64: 2>, scalar_prefetch = 0 : i64, scratch_operands = 0 : i64, tpu.core_type = #tpu.core_type<tc>, window_params = [{transform_indices = @transform_0, window_bounds = array<i64: 288, 128>}, {transform_indices = @transform_1, window_bounds = array<i64: 1>}, {transform_indices = @transform_2, window_bounds = array<i64: 288, 128>}]} {
    %c0 = arith.constant 0 : index
    %0 = memref.load %arg2[%c0] : memref<1xf32, #tpu.memory_space<smem>>
    %c0_0 = arith.constant 0 : index
    %c0_1 = arith.constant 0 : index
    %1 = vector.load %arg1[%c0_0, %c0_1] : memref<288x128xbf16, #tpu.memory_space<vmem>>, vector<288x128xbf16>
    %2 = arith.extf %1 : vector<288x128xbf16> to vector<288x128xf32>
    %3 = vector.broadcast %0 : f32 to vector<288x128xf32>
    %4 = arith.mulf %2, %3 : vector<288x128xf32>
    %5 = math.roundeven %4 : vector<288x128xf32>
    %cst = arith.constant -1.270000e+02 : f32
    %cst_2 = arith.constant 1.270000e+02 : f32
    %6 = vector.broadcast %cst : f32 to vector<288x128xf32>
    %7 = arith.maximumf %6, %5 : vector<288x128xf32>
    %8 = vector.broadcast %cst_2 : f32 to vector<288x128xf32>
    %9 = arith.minimumf %8, %7 : vector<288x128xf32>
    %10 = arith.fptosi %9 : vector<288x128xf32> to vector<288x128xi8>
    %c0_3 = arith.constant 0 : index
    %c0_4 = arith.constant 0 : index
    %11 = vector.load %arg3[%c0_3, %c0_4] : memref<288x128xi8, #tpu.memory_space<vmem>>, vector<288x128xi8>
    tpu.vector_store %arg3[%c0_3, %c0_4], %10 {strides = array<i32>} : memref<288x128xi8, #tpu.memory_space<vmem>>, vector<288x128xi8>,
    return
  }
  func.func @transform_0(%arg0: i32) -> (i32, i32) {
    %c0_i32 = arith.constant 0 : i32
    %c0_i32_0 = arith.constant 0 : i32
    return %arg0, %c0_i32 : i32, i32
  }
  func.func @transform_1(%arg0: i32) -> i32 {
    %c0_i32 = arith.constant 0 : i32
    %c0_i32_0 = arith.constant 0 : i32
    return %c0_i32 : i32
  }
  func.func @transform_2(%arg0: i32) -> (i32, i32) {
    %c0_i32 = arith.constant 0 : i32
    %c0_i32_0 = arith.constant 0 : i32
    return %arg0, %c0_i32 : i32, i32
  }
}

module attributes {stable_mosaic.version = 11 : i64} {
  func.func @_conv_bias_absmax_kernel(%arg0: i32, %arg1: i32, %arg2: i32, %arg3: memref<1x352x128xbf16, #tpu.memory_space<vmem>>, %arg4: memref<9x128x128xbf16, #tpu.memory_space<vmem>>, %arg5: memref<1x128xf32, #tpu.memory_space<vmem>>, %arg6: memref<288x1xf32, #tpu.memory_space<vmem>>, %arg7: memref<1x288x128xbf16, #tpu.memory_space<vmem>>, %arg8: memref<8x128xf32, #tpu.memory_space<vmem>>, %arg9: memref<288x128xf32, #tpu.memory_space<vmem>>) attributes {dimension_semantics = [#tpu.dimension_semantics<parallel>, #tpu.dimension_semantics<parallel>, #tpu.dimension_semantics<arbitrary>], iteration_bounds = array<i64: 2, 1, 1>, scalar_prefetch = 0 : i64, scratch_operands = 1 : i64, tpu.core_type = #tpu.core_type<tc>, window_params = [{transform_indices = @transform_0, window_bounds = array<i64: 1, 352, 128>}, {transform_indices = @transform_1, window_bounds = array<i64: 9, 128, 128>}, {transform_indices = @transform_2, window_bounds = array<i64: 1, 128>}, {transform_indices = @transform_3, window_bounds = array<i64: 288, 1>}, {transform_indices = @transform_4, window_bounds = array<i64: 1, 288, 128>}, {transform_indices = @transform_5, window_bounds = array<i64: 8, 128>}]} {
    %c0 = arith.constant 0 : index
    %c0_0 = arith.constant 0 : index
    %c0_1 = arith.constant 0 : index
    %0 = vector.load %arg3[%c0, %c0_0, %c0_1] : memref<1x352x128xbf16, #tpu.memory_space<vmem>>, vector<1x288x128xbf16>
    %1 = vector.shape_cast %0 : vector<1x288x128xbf16> to vector<288x128xbf16>
    %c0_2 = arith.constant 0 : index
    %c0_3 = arith.constant 0 : index
    %c0_4 = arith.constant 0 : index
    %2 = vector.load %arg4[%c0_2, %c0_3, %c0_4] : memref<9x128x128xbf16, #tpu.memory_space<vmem>>, vector<1x128x128xbf16>
    %3 = vector.shape_cast %2 : vector<1x128x128xbf16> to vector<128x128xbf16>
    %cst = arith.constant dense<0.000000e+00> : vector<288x128xf32>
    %4 = tpu.matmul %1, %3, %cst {dimension_numbers = #tpu.dot_dimension_numbers<[1], [0], [0], [1], [0, 0, 1, 1], [], []>} : vector<288x128xbf16>, vector<128x128xbf16>, vector<288x128xf32> -> vector<288x128xf32>
    %c0_5 = arith.constant 0 : index
    %c0_6 = arith.constant 0 : index
    %5 = vector.load %arg9[%c0_5, %c0_6] : memref<288x128xf32, #tpu.memory_space<vmem>>, vector<288x128xf32>
    tpu.vector_store %arg9[%c0_5, %c0_6], %4 {strides = array<i32>} : memref<288x128xf32, #tpu.memory_space<vmem>>, vector<288x128xf32>,
    %c0_7 = arith.constant 0 : index
    %c1 = arith.constant 1 : index
    %c0_8 = arith.constant 0 : index
    %6 = vector.load %arg3[%c0_7, %c1, %c0_8] : memref<1x352x128xbf16, #tpu.memory_space<vmem>>, vector<1x288x128xbf16>
    %7 = vector.shape_cast %6 : vector<1x288x128xbf16> to vector<288x128xbf16>
    %c1_9 = arith.constant 1 : index
    %c0_10 = arith.constant 0 : index
    %c0_11 = arith.constant 0 : index
    %8 = vector.load %arg4[%c1_9, %c0_10, %c0_11] : memref<9x128x128xbf16, #tpu.memory_space<vmem>>, vector<1x128x128xbf16>
    %9 = vector.shape_cast %8 : vector<1x128x128xbf16> to vector<128x128xbf16>
    %cst_12 = arith.constant dense<0.000000e+00> : vector<288x128xf32>
    %10 = tpu.matmul %7, %9, %cst_12 {dimension_numbers = #tpu.dot_dimension_numbers<[1], [0], [0], [1], [0, 0, 1, 1], [], []>} : vector<288x128xbf16>, vector<128x128xbf16>, vector<288x128xf32> -> vector<288x128xf32>
    %c0_13 = arith.constant 0 : index
    %c0_14 = arith.constant 0 : index
    %11 = vector.load %arg9[%c0_13, %c0_14] : memref<288x128xf32, #tpu.memory_space<vmem>>, vector<288x128xf32>
    %12 = arith.addf %11, %10 : vector<288x128xf32>
    %c0_15 = arith.constant 0 : index
    %c0_16 = arith.constant 0 : index
    %13 = vector.load %arg9[%c0_15, %c0_16] : memref<288x128xf32, #tpu.memory_space<vmem>>, vector<288x128xf32>
    tpu.vector_store %arg9[%c0_15, %c0_16], %12 {strides = array<i32>} : memref<288x128xf32, #tpu.memory_space<vmem>>, vector<288x128xf32>,
    %c0_17 = arith.constant 0 : index
    %c2 = arith.constant 2 : index
    %c0_18 = arith.constant 0 : index
    %14 = vector.load %arg3[%c0_17, %c2, %c0_18] : memref<1x352x128xbf16, #tpu.memory_space<vmem>>, vector<1x288x128xbf16>
    %15 = vector.shape_cast %14 : vector<1x288x128xbf16> to vector<288x128xbf16>
    %c2_19 = arith.constant 2 : index
    %c0_20 = arith.constant 0 : index
    %c0_21 = arith.constant 0 : index
    %16 = vector.load %arg4[%c2_19, %c0_20, %c0_21] : memref<9x128x128xbf16, #tpu.memory_space<vmem>>, vector<1x128x128xbf16>
    %17 = vector.shape_cast %16 : vector<1x128x128xbf16> to vector<128x128xbf16>
    %cst_22 = arith.constant dense<0.000000e+00> : vector<288x128xf32>
    %18 = tpu.matmul %15, %17, %cst_22 {dimension_numbers = #tpu.dot_dimension_numbers<[1], [0], [0], [1], [0, 0, 1, 1], [], []>} : vector<288x128xbf16>, vector<128x128xbf16>, vector<288x128xf32> -> vector<288x128xf32>
    %c0_23 = arith.constant 0 : index
    %c0_24 = arith.constant 0 : index
    %19 = vector.load %arg9[%c0_23, %c0_24] : memref<288x128xf32, #tpu.memory_space<vmem>>, vector<288x128xf32>
    %20 = arith.addf %19, %18 : vector<288x128xf32>
    %c0_25 = arith.constant 0 : index
    %c0_26 = arith.constant 0 : index
    %21 = vector.load %arg9[%c0_25, %c0_26] : memref<288x128xf32, #tpu.memory_space<vmem>>, vector<288x128xf32>
    tpu.vector_store %arg9[%c0_25, %c0_26], %20 {strides = array<i32>} : memref<288x128xf32, #tpu.memory_space<vmem>>, vector<288x128xf32>,
    %c0_27 = arith.constant 0 : index
    %c18 = arith.constant 18 : index
    %c0_28 = arith.constant 0 : index
    %22 = vector.load %arg3[%c0_27, %c18, %c0_28] : memref<1x352x128xbf16, #tpu.memory_space<vmem>>, vector<1x288x128xbf16>
    %23 = vector.shape_cast %22 : vector<1x288x128xbf16> to vector<288x128xbf16>
    %c3 = arith.constant 3 : index
    %c0_29 = arith.constant 0 : index
    %c0_30 = arith.constant 0 : index
    %24 = vector.load %arg4[%c3, %c0_29, %c0_30] : memref<9x128x128xbf16, #tpu.memory_space<vmem>>, vector<1x128x128xbf16>
    %25 = vector.shape_cast %24 : vector<1x128x128xbf16> to vector<128x128xbf16>
    %cst_31 = arith.constant dense<0.000000e+00> : vector<288x128xf32>
    %26 = tpu.matmul %23, %25, %cst_31 {dimension_numbers = #tpu.dot_dimension_numbers<[1], [0], [0], [1], [0, 0, 1, 1], [], []>} : vector<288x128xbf16>, vector<128x128xbf16>, vector<288x128xf32> -> vector<288x128xf32>
    %c0_32 = arith.constant 0 : index
    %c0_33 = arith.constant 0 : index
    %27 = vector.load %arg9[%c0_32, %c0_33] : memref<288x128xf32, #tpu.memory_space<vmem>>, vector<288x128xf32>
    %28 = arith.addf %27, %26 : vector<288x128xf32>
    %c0_34 = arith.constant 0 : index
    %c0_35 = arith.constant 0 : index
    %29 = vector.load %arg9[%c0_34, %c0_35] : memref<288x128xf32, #tpu.memory_space<vmem>>, vector<288x128xf32>
    tpu.vector_store %arg9[%c0_34, %c0_35], %28 {strides = array<i32>} : memref<288x128xf32, #tpu.memory_space<vmem>>, vector<288x128xf32>,
    %c0_36 = arith.constant 0 : index
    %c19 = arith.constant 19 : index
    %c0_37 = arith.constant 0 : index
    %30 = vector.load %arg3[%c0_36, %c19, %c0_37] : memref<1x352x128xbf16, #tpu.memory_space<vmem>>, vector<1x288x128xbf16>
    %31 = vector.shape_cast %30 : vector<1x288x128xbf16> to vector<288x128xbf16>
    %c4 = arith.constant 4 : index
    %c0_38 = arith.constant 0 : index
    %c0_39 = arith.constant 0 : index
    %32 = vector.load %arg4[%c4, %c0_38, %c0_39] : memref<9x128x128xbf16, #tpu.memory_space<vmem>>, vector<1x128x128xbf16>
    %33 = vector.shape_cast %32 : vector<1x128x128xbf16> to vector<128x128xbf16>
    %cst_40 = arith.constant dense<0.000000e+00> : vector<288x128xf32>
    %34 = tpu.matmul %31, %33, %cst_40 {dimension_numbers = #tpu.dot_dimension_numbers<[1], [0], [0], [1], [0, 0, 1, 1], [], []>} : vector<288x128xbf16>, vector<128x128xbf16>, vector<288x128xf32> -> vector<288x128xf32>
    %c0_41 = arith.constant 0 : index
    %c0_42 = arith.constant 0 : index
    %35 = vector.load %arg9[%c0_41, %c0_42] : memref<288x128xf32, #tpu.memory_space<vmem>>, vector<288x128xf32>
    %36 = arith.addf %35, %34 : vector<288x128xf32>
    %c0_43 = arith.constant 0 : index
    %c0_44 = arith.constant 0 : index
    %37 = vector.load %arg9[%c0_43, %c0_44] : memref<288x128xf32, #tpu.memory_space<vmem>>, vector<288x128xf32>
    tpu.vector_store %arg9[%c0_43, %c0_44], %36 {strides = array<i32>} : memref<288x128xf32, #tpu.memory_space<vmem>>, vector<288x128xf32>,
    %c0_45 = arith.constant 0 : index
    %c20 = arith.constant 20 : index
    %c0_46 = arith.constant 0 : index
    %38 = vector.load %arg3[%c0_45, %c20, %c0_46] : memref<1x352x128xbf16, #tpu.memory_space<vmem>>, vector<1x288x128xbf16>
    %39 = vector.shape_cast %38 : vector<1x288x128xbf16> to vector<288x128xbf16>
    %c5 = arith.constant 5 : index
    %c0_47 = arith.constant 0 : index
    %c0_48 = arith.constant 0 : index
    %40 = vector.load %arg4[%c5, %c0_47, %c0_48] : memref<9x128x128xbf16, #tpu.memory_space<vmem>>, vector<1x128x128xbf16>
    %41 = vector.shape_cast %40 : vector<1x128x128xbf16> to vector<128x128xbf16>
    %cst_49 = arith.constant dense<0.000000e+00> : vector<288x128xf32>
    %42 = tpu.matmul %39, %41, %cst_49 {dimension_numbers = #tpu.dot_dimension_numbers<[1], [0], [0], [1], [0, 0, 1, 1], [], []>} : vector<288x128xbf16>, vector<128x128xbf16>, vector<288x128xf32> -> vector<288x128xf32>
    %c0_50 = arith.constant 0 : index
    %c0_51 = arith.constant 0 : index
    %43 = vector.load %arg9[%c0_50, %c0_51] : memref<288x128xf32, #tpu.memory_space<vmem>>, vector<288x128xf32>
    %44 = arith.addf %43, %42 : vector<288x128xf32>
    %c0_52 = arith.constant 0 : index
    %c0_53 = arith.constant 0 : index
    %45 = vector.load %arg9[%c0_52, %c0_53] : memref<288x128xf32, #tpu.memory_space<vmem>>, vector<288x128xf32>
    tpu.vector_store %arg9[%c0_52, %c0_53], %44 {strides = array<i32>} : memref<288x128xf32, #tpu.memory_space<vmem>>, vector<288x128xf32>,
    %c0_54 = arith.constant 0 : index
    %c36 = arith.constant 36 : index
    %c0_55 = arith.constant 0 : index
    %46 = vector.load %arg3[%c0_54, %c36, %c0_55] : memref<1x352x128xbf16, #tpu.memory_space<vmem>>, vector<1x288x128xbf16>
    %47 = vector.shape_cast %46 : vector<1x288x128xbf16> to vector<288x128xbf16>
    %c6 = arith.constant 6 : index
    %c0_56 = arith.constant 0 : index
    %c0_57 = arith.constant 0 : index
    %48 = vector.load %arg4[%c6, %c0_56, %c0_57] : memref<9x128x128xbf16, #tpu.memory_space<vmem>>, vector<1x128x128xbf16>
    %49 = vector.shape_cast %48 : vector<1x128x128xbf16> to vector<128x128xbf16>
    %cst_58 = arith.constant dense<0.000000e+00> : vector<288x128xf32>
    %50 = tpu.matmul %47, %49, %cst_58 {dimension_numbers = #tpu.dot_dimension_numbers<[1], [0], [0], [1], [0, 0, 1, 1], [], []>} : vector<288x128xbf16>, vector<128x128xbf16>, vector<288x128xf32> -> vector<288x128xf32>
    %c0_59 = arith.constant 0 : index
    %c0_60 = arith.constant 0 : index
    %51 = vector.load %arg9[%c0_59, %c0_60] : memref<288x128xf32, #tpu.memory_space<vmem>>, vector<288x128xf32>
    %52 = arith.addf %51, %50 : vector<288x128xf32>
    %c0_61 = arith.constant 0 : index
    %c0_62 = arith.constant 0 : index
    %53 = vector.load %arg9[%c0_61, %c0_62] : memref<288x128xf32, #tpu.memory_space<vmem>>, vector<288x128xf32>
    tpu.vector_store %arg9[%c0_61, %c0_62], %52 {strides = array<i32>} : memref<288x128xf32, #tpu.memory_space<vmem>>, vector<288x128xf32>,
    %c0_63 = arith.constant 0 : index
    %c37 = arith.constant 37 : index
    %c0_64 = arith.constant 0 : index
    %54 = vector.load %arg3[%c0_63, %c37, %c0_64] : memref<1x352x128xbf16, #tpu.memory_space<vmem>>, vector<1x288x128xbf16>
    %55 = vector.shape_cast %54 : vector<1x288x128xbf16> to vector<288x128xbf16>
    %c7 = arith.constant 7 : index
    %c0_65 = arith.constant 0 : index
    %c0_66 = arith.constant 0 : index
    %56 = vector.load %arg4[%c7, %c0_65, %c0_66] : memref<9x128x128xbf16, #tpu.memory_space<vmem>>, vector<1x128x128xbf16>
    %57 = vector.shape_cast %56 : vector<1x128x128xbf16> to vector<128x128xbf16>
    %cst_67 = arith.constant dense<0.000000e+00> : vector<288x128xf32>
    %58 = tpu.matmul %55, %57, %cst_67 {dimension_numbers = #tpu.dot_dimension_numbers<[1], [0], [0], [1], [0, 0, 1, 1], [], []>} : vector<288x128xbf16>, vector<128x128xbf16>, vector<288x128xf32> -> vector<288x128xf32>
    %c0_68 = arith.constant 0 : index
    %c0_69 = arith.constant 0 : index
    %59 = vector.load %arg9[%c0_68, %c0_69] : memref<288x128xf32, #tpu.memory_space<vmem>>, vector<288x128xf32>
    %60 = arith.addf %59, %58 : vector<288x128xf32>
    %c0_70 = arith.constant 0 : index
    %c0_71 = arith.constant 0 : index
    %61 = vector.load %arg9[%c0_70, %c0_71] : memref<288x128xf32, #tpu.memory_space<vmem>>, vector<288x128xf32>
    tpu.vector_store %arg9[%c0_70, %c0_71], %60 {strides = array<i32>} : memref<288x128xf32, #tpu.memory_space<vmem>>, vector<288x128xf32>,
    %c0_72 = arith.constant 0 : index
    %c38 = arith.constant 38 : index
    %c0_73 = arith.constant 0 : index
    %62 = vector.load %arg3[%c0_72, %c38, %c0_73] : memref<1x352x128xbf16, #tpu.memory_space<vmem>>, vector<1x288x128xbf16>
    %63 = vector.shape_cast %62 : vector<1x288x128xbf16> to vector<288x128xbf16>
    %c8 = arith.constant 8 : index
    %c0_74 = arith.constant 0 : index
    %c0_75 = arith.constant 0 : index
    %64 = vector.load %arg4[%c8, %c0_74, %c0_75] : memref<9x128x128xbf16, #tpu.memory_space<vmem>>, vector<1x128x128xbf16>
    %65 = vector.shape_cast %64 : vector<1x128x128xbf16> to vector<128x128xbf16>
    %cst_76 = arith.constant dense<0.000000e+00> : vector<288x128xf32>
    %66 = tpu.matmul %63, %65, %cst_76 {dimension_numbers = #tpu.dot_dimension_numbers<[1], [0], [0], [1], [0, 0, 1, 1], [], []>} : vector<288x128xbf16>, vector<128x128xbf16>, vector<288x128xf32> -> vector<288x128xf32>
    %c0_77 = arith.constant 0 : index
    %c0_78 = arith.constant 0 : index
    %67 = vector.load %arg9[%c0_77, %c0_78] : memref<288x128xf32, #tpu.memory_space<vmem>>, vector<288x128xf32>
    %68 = arith.addf %67, %66 : vector<288x128xf32>
    %c0_79 = arith.constant 0 : index
    %c0_80 = arith.constant 0 : index
    %69 = vector.load %arg9[%c0_79, %c0_80] : memref<288x128xf32, #tpu.memory_space<vmem>>, vector<288x128xf32>
    tpu.vector_store %arg9[%c0_79, %c0_80], %68 {strides = array<i32>} : memref<288x128xf32, #tpu.memory_space<vmem>>, vector<288x128xf32>,
    %c0_81 = arith.constant 0 : index
    %c0_82 = arith.constant 0 : index
    %70 = vector.load %arg9[%c0_81, %c0_82] : memref<288x128xf32, #tpu.memory_space<vmem>>, vector<288x128xf32>
    %c0_83 = arith.constant 0 : index
    %c0_84 = arith.constant 0 : index
    %71 = vector.load %arg5[%c0_83, %c0_84] : memref<1x128xf32, #tpu.memory_space<vmem>>, vector<1x128xf32>
    %72 = vector.broadcast %71 : vector<1x128xf32> to vector<288x128xf32>
    %73 = arith.addf %70, %72 : vector<288x128xf32>
    %74 = vector.shape_cast %73 : vector<288x128xf32> to vector<1x288x128xf32>
    %75 = arith.truncf %74 : vector<1x288x128xf32> to vector<1x288x128xbf16>
    %c0_85 = arith.constant 0 : index
    %c0_86 = arith.constant 0 : index
    %c0_87 = arith.constant 0 : index
    %76 = vector.load %arg7[%c0_85, %c0_86, %c0_87] : memref<1x288x128xbf16, #tpu.memory_space<vmem>>, vector<1x288x128xbf16>
    tpu.vector_store %arg7[%c0_85, %c0_86, %c0_87], %75 {strides = array<i32>} : memref<1x288x128xbf16, #tpu.memory_space<vmem>>, vector<1x288x128xbf16>,
    %77 = math.absf %73 : vector<288x128xf32>
    %c0_88 = arith.constant 0 : index
    %c0_89 = arith.constant 0 : index
    %78 = vector.load %arg6[%c0_88, %c0_89] : memref<288x1xf32, #tpu.memory_space<vmem>>, vector<288x1xf32>
    %79 = vector.broadcast %78 : vector<288x1xf32> to vector<288x128xf32>
    %80 = arith.mulf %77, %79 : vector<288x128xf32>
    %cst_90 = arith.constant dense<0xFF800000> : vector<128xf32>
    %81 = vector.multi_reduction <maximumf>, %80, %cst_90 [0] : vector<288x128xf32> to vector<128xf32>
    %82 = vector.shape_cast %81 : vector<128xf32> to vector<1x128xf32>
    %83 = vector.shape_cast %82 : vector<1x128xf32> to vector<1x128xf32>
    %84 = vector.broadcast %83 : vector<1x128xf32> to vector<8x128xf32>
    %c0_91 = arith.constant 0 : index
    %c0_92 = arith.constant 0 : index
    %85 = vector.load %arg8[%c0_91, %c0_92] : memref<8x128xf32, #tpu.memory_space<vmem>>, vector<8x128xf32>
    tpu.vector_store %arg8[%c0_91, %c0_92], %84 {strides = array<i32>} : memref<8x128xf32, #tpu.memory_space<vmem>>, vector<8x128xf32>,
    return
  }
  func.func @transform_0(%arg0: i32, %arg1: i32, %arg2: i32) -> (i32, i32, i32) {
    %c0_i32 = arith.constant 0 : i32
    %c0_i32_0 = arith.constant 0 : i32
    %c0_i32_1 = arith.constant 0 : i32
    return %arg0, %c0_i32, %c0_i32_0 : i32, i32, i32
  }
  func.func @transform_1(%arg0: i32, %arg1: i32, %arg2: i32) -> (i32, i32, i32) {
    %c0_i32 = arith.constant 0 : i32
    %c0_i32_0 = arith.constant 0 : i32
    %c0_i32_1 = arith.constant 0 : i32
    return %c0_i32, %c0_i32_0, %arg1 : i32, i32, i32
  }
  func.func @transform_2(%arg0: i32, %arg1: i32, %arg2: i32) -> (i32, i32) {
    %c0_i32 = arith.constant 0 : i32
    %c0_i32_0 = arith.constant 0 : i32
    return %c0_i32, %arg1 : i32, i32
  }
  func.func @transform_3(%arg0: i32, %arg1: i32, %arg2: i32) -> (i32, i32) {
    %c0_i32 = arith.constant 0 : i32
    %c0_i32_0 = arith.constant 0 : i32
    return %arg2, %c0_i32 : i32, i32
  }
  func.func @transform_4(%arg0: i32, %arg1: i32, %arg2: i32) -> (i32, i32, i32) {
    %c0_i32 = arith.constant 0 : i32
    return %arg0, %arg2, %arg1 : i32, i32, i32
  }
  func.func @transform_5(%arg0: i32, %arg1: i32, %arg2: i32) -> (i32, i32) {
    %c1_i32 = arith.constant 1 : i32
    %0 = arith.muli %arg0, %c1_i32 : i32
    %1 = arith.addi %0, %arg2 : i32
    %c0_i32 = arith.constant 0 : i32
    return %1, %arg1 : i32, i32
  }
}

</mosaic_0001>

<llo_original>
// kernel: quantized_conv2d_forward.3
$region0: #{quantized_conv2d_forward.3}
  #allocation0 [shape = 'u32[]', space=smem, size = 0x4, offset = 0x4, fixed_abs, tag = 'smem constant byte address 0x4 - core index']
  #allocation1 [shape = 'u32[144,128]{1,0:T(1,128)}', space=vmem, size = 0x12000, scoped, tag = 'internal scratch']
  #allocation2 [shape = 'f32[1]{0:T(128)S(6)}', space=smem, size = 0x200, scoped, tag = 'scoped memory for quantized_conv2d_forward.3']
  %s0 = inlined_call_operand.vmem [shape: bf16[576,128], index: 0, kind: input, shape index: {}]
  %s1 = inlined_call_operand.<no memory space> [shape: f32[1], index: 1, kind: input, shape index: {}]
  %s2 = inlined_call_operand.vmem [shape: s8[576,128], index: 2, kind: output, shape index: {}]
  %s3 = sld [smem:[#allocation0]]
  $region41: #{quantized_conv2d_forward.3} parent=0
    _
  %s5 = ssub.s32 1, %s3
  %s6 = scalar_select 0, %s5, %s3
  %7 = sst [smem:[#allocation2]] %s1
  loop: start=0, step=1, limit=4
  $region2: #{quantized_conv2d_forward.3} parent=0 // loop_pre_header
    _
  $region3: #{quantized_conv2d_forward.3} parent=0 // loop_header
    %s9 = sphi 0, %s13
    %p10 = scmp.ge.s32.totalorder %s9, 4
    %s19 = sphi 0, %s21
    %s22 = sphi 0, %s19
    %s23 = sphi 0, %s22
    %s39 = sphi 0, %s23
    %s43 = sphi 0, %s43
    %s45 = sphi 0, %s43
    %s46 = sphi 0, %s45
    %s60 = sphi 0, %s46
    %s66 = sphi 0, %s68
    %s69 = sphi 0, %s66
    %s70 = sphi 0, %s69
    %s86 = sphi 0, %s70
  $region4: #{quantized_conv2d_forward.3} parent=0 // loop_header_branch
    %12 = sbr.rel (%p10) target = $region8
  $region5: #{quantized_conv2d_forward.3} parent=0 // loop_body
    %s14 = ssub.s32 %s9, 1
    %s15 = ssub.s32 %s9, 2
    %s16 = sadd.s32 %s9, 1
    %s17 = ssub.s32 %s9, %s16
    %p18 = scmp.eq.s32.totalorder %s17, 0
    %s20 = sadd.s32 %s19, 1
    %s21 = scalar_select %p18, %s19, %s20
    %p24 = pneg %p18
    %p25 = scmp.eq.s32.totalorder %s9, 1
    %p26 = por %p24, %p25
    %p27 = scmp.ne.s32.totalorder %s19, %s22
    %p28 = scmp.eq.s32.totalorder %s9, 0
    %p29 = por %p27, %p28
    %p30 = scmp.ne.s32.totalorder %s19, %s22
    %p31 = scmp.eq.s32.totalorder %s14, 1
    %p32 = por %p30, %p31
    %p33 = scmp.ne.s32.totalorder %s22, %s23
    %p34 = scmp.eq.s32.totalorder %s14, 0
    %p35 = por %p33, %p34
    %p36 = scmp.ne.s32.totalorder %s22, %s23
    %p37 = scmp.eq.s32.totalorder %s15, 1
    %p38 = por %p36, %p37
    %p40 = scmp.ne.s32.totalorder %s23, %s39
    %p41 = scmp.eq.s32.totalorder %s15, 0
    %p42 = por %p40, %p41
    %s44 = sadd.s32 %s43, 1
    %p47 = scmp.eq.s32.totalorder %s9, 1
    %p48 = scmp.ne.s32.totalorder %s43, %s45
    %p49 = scmp.eq.s32.totalorder %s9, 0
    %p50 = por %p48, %p49
    %p51 = scmp.ne.s32.totalorder %s43, %s45
    %p52 = scmp.eq.s32.totalorder %s14, 1
    %p53 = por %p51, %p52
    %p54 = scmp.ne.s32.totalorder %s45, %s46
    %p55 = scmp.eq.s32.totalorder %s14, 0
    %p56 = por %p54, %p55
    %p57 = scmp.ne.s32.totalorder %s45, %s46
    %p58 = scmp.eq.s32.totalorder %s15, 1
    %p59 = por %p57, %p58
    %p61 = scmp.ne.s32.totalorder %s46, %s60
    %p62 = scmp.eq.s32.totalorder %s15, 0
    %p63 = por %p61, %p62
    %s64 = ssub.s32 %s9, %s16
    %p65 = scmp.eq.s32.totalorder %s64, 0
    %s67 = sadd.s32 %s66, 1
    %s68 = scalar_select %p65, %s66, %s67
    %p71 = pneg %p65
    %p72 = scmp.eq.s32.totalorder %s9, 1
    %p73 = por %p71, %p72
    %p74 = scmp.ne.s32.totalorder %s66, %s69
    %p75 = scmp.eq.s32.totalorder %s9, 0
    %p76 = por %p74, %p75
    %p77 = scmp.ne.s32.totalorder %s66, %s69
    %p78 = scmp.eq.s32.totalorder %s14, 1
    %p79 = por %p77, %p78
    %p80 = scmp.ne.s32.totalorder %s69, %s70
    %p81 = scmp.eq.s32.totalorder %s14, 0
    %p82 = por %p80, %p81
    %p83 = scmp.ne.s32.totalorder %s69, %s70
    %p84 = scmp.eq.s32.totalorder %s15, 1
    %p85 = por %p83, %p84
    %p87 = scmp.ne.s32.totalorder %s70, %s86
    %p88 = scmp.eq.s32.totalorder %s15, 0
    %p89 = por %p87, %p88
    %p90 = scmp.le.s32.totalorder 1, %s9
    %p91 = scmp.lt.s32.totalorder %s9, 3
    %p92 = pnand %p90, %p91
    %p93 = pneg %p92
    // Predicated region
    $region9: #{quantized_conv2d_forward.3} parent=5 // pred_check
      _
    $region10: #{quantized_conv2d_forward.3} parent=5 // pred_check_branch
      %95 = sbr.rel (%p92) target = $region12
    $region11: #{quantized_conv2d_forward.3} parent=5 // pred_region
      %s96 = ssub.s32 %s9, 1
      // Predicated region
      $region13: #{quantized_conv2d_forward.3} parent=11 // pred_check
        %p97 = pneg %p56
      $region14: #{quantized_conv2d_forward.3} parent=11 // pred_check_branch
        %99 = sbr.rel (%p97) target = $region16
      $region15: #{quantized_conv2d_forward.3} parent=11 // pred_region
        _
      $region16: #{quantized_conv2d_forward.3} parent=11 // pred_fallthru
        _
    $region12: #{quantized_conv2d_forward.3} parent=5 // pred_fallthru
      _
    %p100 = scmp.lt.s32.totalorder %s9, 2
    // Predicated region
    $region17: #{quantized_conv2d_forward.3} parent=5 // pred_check
      %p101 = pneg %p100
    $region18: #{quantized_conv2d_forward.3} parent=5 // pred_check_branch
      %103 = sbr.rel (%p101) target = $region20
    $region19: #{quantized_conv2d_forward.3} parent=5 // pred_region
      // Predicated region
      $region21: #{quantized_conv2d_forward.3} parent=19 // pred_check
        %p104 = pneg %p29
      $region22: #{quantized_conv2d_forward.3} parent=19 // pred_check_branch
        %106 = sbr.rel (%p104) target = $region24
      $region23: #{quantized_conv2d_forward.3} parent=19 // pred_region
        %s107 = smul.u32 36, %s9
        %p108 = scmp.lt.s32.totalorder %s107, 71
        %s109 = scalar_select %p108, %s107, 71
        %s110 = smul.addr %s109, 4
        %s111 = scalar_lea.vmem %s0, %s110
        %s112 = smul.u32 36, %s9
      $region24: #{quantized_conv2d_forward.3} parent=19 // pred_fallthru
        _
    $region20: #{quantized_conv2d_forward.3} parent=5 // pred_fallthru
      _
    %p113 = scmp.le.s32.totalorder 1, %s9
    %p114 = scmp.lt.s32.totalorder %s9, 3
    %p115 = pnand %p113, %p114
    %p116 = pneg %p115
    // Predicated region
    $region25: #{quantized_conv2d_forward.3} parent=5 // pred_check
      _
    $region26: #{quantized_conv2d_forward.3} parent=5 // pred_check_branch
      %118 = sbr.rel (%p115) target = $region28
    $region27: #{quantized_conv2d_forward.3} parent=5 // pred_region
      %s119 = ssub.s32 %s9, 1
      %s120 = smul.u32 36, %s14
      %p121 = scmp.lt.s32.totalorder %s120, 71
      %s122 = scalar_select %p121, %s120, 71
      %s123 = smul.addr %s122, 4
      %s124 = scalar_lea.vmem %s0, %s123
      %p125 = pneg %p35
      %p126 = pneg %p32
      %p127 = pneg %p56
      %p128 = pneg %p53
      %p129 = pneg %p82
      %p130 = pneg %p79
      %s131 = smul.u32 36, %s14
      %p132 = scmp.lt.s32.totalorder %s131, 71
      %s133 = scalar_select %p132, %s131, 71
      %s134 = smul.addr %s133, 2
      %s135 = scalar_lea.vmem %s2, %s134
      %s136 = smul.u32 36, %s14
      %p137 = scmp.lt.s32.totalorder %s136, 71
      %s138 = scalar_select %p137, %s136, 71
      %s139 = smul.addr %s138, 4
      %s140 = scalar_lea.vmem %s0, %s139
      %s141 = smul.u32 36, %s14
      %s142 = smul.u32 36, %s14
      %p143 = scmp.lt.s32.totalorder %s142, 71
      %s144 = scalar_select %p143, %s142, 71
      %s145 = smul.addr %s144, 2
      %s146 = scalar_lea.vmem %s2, %s145
      %s147 = smul.u32 36, %s14
      %s148 = sld [smem:[#allocation2]]
      %v149 = vld [vmem:[%s140] sm:$0xf]
      %v150 = vld [vmem:[%s140 + $0x4] sm:$0xf]
      %v151 = vld [vmem:[%s140 + $0x8] sm:$0xf]
      %v152 = vld [vmem:[%s140 + $0xc] sm:$0xf]
      %v153 = vld [vmem:[%s140 + $0x10] sm:$0xf]
      %v154 = vld [vmem:[%s140 + $0x14] sm:$0xf]
      %v155 = vld [vmem:[%s140 + $0x18] sm:$0xf]
      %v156 = vld [vmem:[%s140 + $0x1c] sm:$0xf]
      %v157 = vld [vmem:[%s140 + $0x20] sm:$0xf]
      %v158 = vld [vmem:[%s140 + $0x24] sm:$0xf]
      %v159 = vld [vmem:[%s140 + $0x28] sm:$0xf]
      %v160 = vld [vmem:[%s140 + $0x2c] sm:$0xf]
      %v161 = vld [vmem:[%s140 + $0x30] sm:$0xf]
      %v162 = vld [vmem:[%s140 + $0x34] sm:$0xf]
      %v163 = vld [vmem:[%s140 + $0x38] sm:$0xf]
      %v164 = vld [vmem:[%s140 + $0x3c] sm:$0xf]
      %v165 = vld [vmem:[%s140 + $0x40] sm:$0xf]
      %v166 = vld [vmem:[%s140 + $0x44] sm:$0xf]
      %v167 = vld [vmem:[%s140 + $0x48] sm:$0xf]
      %v168 = vld [vmem:[%s140 + $0x4c] sm:$0xf]
      %v169 = vld [vmem:[%s140 + $0x50] sm:$0xf]
      %v170 = vld [vmem:[%s140 + $0x54] sm:$0xf]
      %v171 = vld [vmem:[%s140 + $0x58] sm:$0xf]
      %v172 = vld [vmem:[%s140 + $0x5c] sm:$0xf]
      %v173 = vld [vmem:[%s140 + $0x60] sm:$0xf]
      %v174 = vld [vmem:[%s140 + $0x64] sm:$0xf]
      %v175 = vld [vmem:[%s140 + $0x68] sm:$0xf]
      %v176 = vld [vmem:[%s140 + $0x6c] sm:$0xf]
      %v177 = vld [vmem:[%s140 + $0x70] sm:$0xf]
      %v178 = vld [vmem:[%s140 + $0x74] sm:$0xf]
      %v179 = vld [vmem:[%s140 + $0x78] sm:$0xf]
      %v180 = vld [vmem:[%s140 + $0x7c] sm:$0xf]
      %v181 = vld [vmem:[%s140 + $0x80] sm:$0xf]
      %v182 = vld [vmem:[%s140 + $0x84] sm:$0xf]
      %v183 = vld [vmem:[%s140 + $0x88] sm:$0xf]
      %v184 = vld [vmem:[%s140 + $0x8c] sm:$0xf]
      %v185 = vunpack.c.l.bf16 %v149
      %v186 = vunpack.c.l.bf16 %v150
      %v187 = vunpack.c.l.bf16 %v151
      %v188 = vunpack.c.l.bf16 %v152
      %v189 = vunpack.c.l.bf16 %v153
      %v190 = vunpack.c.l.bf16 %v154
      %v191 = vunpack.c.l.bf16 %v155
      %v192 = vunpack.c.l.bf16 %v156
      %v193 = vunpack.c.l.bf16 %v157
      %v194 = vunpack.c.l.bf16 %v158
      %v195 = vunpack.c.l.bf16 %v159
      %v196 = vunpack.c.l.bf16 %v160
      %v197 = vunpack.c.l.bf16 %v161
      %v198 = vunpack.c.l.bf16 %v162
      %v199 = vunpack.c.l.bf16 %v163
      %v200 = vunpack.c.l.bf16 %v164
      %v201 = vunpack.c.l.bf16 %v165
      %v202 = vunpack.c.l.bf16 %v166
      %v203 = vunpack.c.l.bf16 %v167
      %v204 = vunpack.c.l.bf16 %v168
      %v205 = vunpack.c.l.bf16 %v169
      %v206 = vunpack.c.l.bf16 %v170
      %v207 = vunpack.c.l.bf16 %v171
      %v208 = vunpack.c.l.bf16 %v172
      %v209 = vunpack.c.l.bf16 %v173
      %v210 = vunpack.c.l.bf16 %v174
      %v211 = vunpack.c.l.bf16 %v175
      %v212 = vunpack.c.l.bf16 %v176
      %v213 = vunpack.c.l.bf16 %v177
      %v214 = vunpack.c.l.bf16 %v178
      %v215 = vunpack.c.l.bf16 %v179
      %v216 = vunpack.c.l.bf16 %v180
      %v217 = vunpack.c.l.bf16 %v181
      %v218 = vunpack.c.l.bf16 %v182
      %v219 = vunpack.c.l.bf16 %v183
      %v220 = vunpack.c.l.bf16 %v184
      %v221 = vstv %s148
      %v222 = vmul.f32 %v185, %v221
      %v223 = vmul.f32 %v186, %v221
      %v224 = vmul.f32 %v187, %v221
      %v225 = vmul.f32 %v188, %v221
      %v226 = vmul.f32 %v189, %v221
      %v227 = vmul.f32 %v190, %v221
      %v228 = vmul.f32 %v191, %v221
      %v229 = vmul.f32 %v192, %v221
      %v230 = vmul.f32 %v193, %v221
      %v231 = vmul.f32 %v194, %v221
      %v232 = vmul.f32 %v195, %v221
      %v233 = vmul.f32 %v196, %v221
      %v234 = vmul.f32 %v197, %v221
      %v235 = vmul.f32 %v198, %v221
      %v236 = vmul.f32 %v199, %v221
      %v237 = vmul.f32 %v200, %v221
      %v238 = vmul.f32 %v201, %v221
      %v239 = vmul.f32 %v202, %v221
      %v240 = vmul.f32 %v203, %v221
      %v241 = vmul.f32 %v204, %v221
      %v242 = vmul.f32 %v205, %v221
      %v243 = vmul.f32 %v206, %v221
      %v244 = vmul.f32 %v207, %v221
      %v245 = vmul.f32 %v208, %v221
      %v246 = vmul.f32 %v209, %v221
      %v247 = vmul.f32 %v210, %v221
      %v248 = vmul.f32 %v211, %v221
      %v249 = vmul.f32 %v212, %v221
      %v250 = vmul.f32 %v213, %v221
      %v251 = vmul.f32 %v214, %v221
      %v252 = vmul.f32 %v215, %v221
      %v253 = vmul.f32 %v216, %v221
      %v254 = vmul.f32 %v217, %v221
      %v255 = vmul.f32 %v218, %v221
      %v256 = vmul.f32 %v219, %v221
      %v257 = vmul.f32 %v220, %v221
      %v258 = vround.ne.pseudo %v222
      %v259 = vround.ne.pseudo %v223
      %v260 = vround.ne.pseudo %v224
      %v261 = vround.ne.pseudo %v225
      %v262 = vround.ne.pseudo %v226
      %v263 = vround.ne.pseudo %v227
      %v264 = vround.ne.pseudo %v228
      %v265 = vround.ne.pseudo %v229
      %v266 = vround.ne.pseudo %v230
      %v267 = vround.ne.pseudo %v231
      %v268 = vround.ne.pseudo %v232
      %v269 = vround.ne.pseudo %v233
      %v270 = vround.ne.pseudo %v234
      %v271 = vround.ne.pseudo %v235
      %v272 = vround.ne.pseudo %v236
      %v273 = vround.ne.pseudo %v237
      %v274 = vround.ne.pseudo %v238
      %v275 = vround.ne.pseudo %v239
      %v276 = vround.ne.pseudo %v240
      %v277 = vround.ne.pseudo %v241
      %v278 = vround.ne.pseudo %v242
      %v279 = vround.ne.pseudo %v243
      %v280 = vround.ne.pseudo %v244
      %v281 = vround.ne.pseudo %v245
      %v282 = vround.ne.pseudo %v246
      %v283 = vround.ne.pseudo %v247
      %v284 = vround.ne.pseudo %v248
      %v285 = vround.ne.pseudo %v249
      %v286 = vround.ne.pseudo %v250
      %v287 = vround.ne.pseudo %v251
      %v288 = vround.ne.pseudo %v252
      %v289 = vround.ne.pseudo %v253
      %v290 = vround.ne.pseudo %v254
      %v291 = vround.ne.pseudo %v255
      %v292 = vround.ne.pseudo %v256
      %v293 = vround.ne.pseudo %v257
      %v294 = vmax.f32 %v258, -127.0
      %v295 = vmax.f32 %v259, -127.0
      %v296 = vmax.f32 %v260, -127.0
      %v297 = vmax.f32 %v261, -127.0
      %v298 = vmax.f32 %v262, -127.0
      %v299 = vmax.f32 %v263, -127.0
      %v300 = vmax.f32 %v264, -127.0
      %v301 = vmax.f32 %v265, -127.0
      %v302 = vmax.f32 %v266, -127.0
      %v303 = vmax.f32 %v267, -127.0
      %v304 = vmax.f32 %v268, -127.0
      %v305 = vmax.f32 %v269, -127.0
      %v306 = vmax.f32 %v270, -127.0
      %v307 = vmax.f32 %v271, -127.0
      %v308 = vmax.f32 %v272, -127.0
      %v309 = vmax.f32 %v273, -127.0
      %v310 = vmax.f32 %v274, -127.0
      %v311 = vmax.f32 %v275, -127.0
      %v312 = vmax.f32 %v276, -127.0
      %v313 = vmax.f32 %v277, -127.0
      %v314 = vmax.f32 %v278, -127.0
      %v315 = vmax.f32 %v279, -127.0
      %v316 = vmax.f32 %v280, -127.0
      %v317 = vmax.f32 %v281, -127.0
      %v318 = vmax.f32 %v282, -127.0
      %v319 = vmax.f32 %v283, -127.0
      %v320 = vmax.f32 %v284, -127.0
      %v321 = vmax.f32 %v285, -127.0
      %v322 = vmax.f32 %v286, -127.0
      %v323 = vmax.f32 %v287, -127.0
      %v324 = vmax.f32 %v288, -127.0
      %v325 = vmax.f32 %v289, -127.0
      %v326 = vmax.f32 %v290, -127.0
      %v327 = vmax.f32 %v291, -127.0
      %v328 = vmax.f32 %v292, -127.0
      %v329 = vmax.f32 %v293, -127.0
      %v330 = vmin.f32 %v294, 127.0
      %v331 = vmin.f32 %v295, 127.0
      %v332 = vmin.f32 %v296, 127.0
      %v333 = vmin.f32 %v297, 127.0
      %v334 = vmin.f32 %v298, 127.0
      %v335 = vmin.f32 %v299, 127.0
      %v336 = vmin.f32 %v300, 127.0
      %v337 = vmin.f32 %v301, 127.0
      %v338 = vmin.f32 %v302, 127.0
      %v339 = vmin.f32 %v303, 127.0
      %v340 = vmin.f32 %v304, 127.0
      %v341 = vmin.f32 %v305, 127.0
      %v342 = vmin.f32 %v306, 127.0
      %v343 = vmin.f32 %v307, 127.0
      %v344 = vmin.f32 %v308, 127.0
      %v345 = vmin.f32 %v309, 127.0
      %v346 = vmin.f32 %v310, 127.0
      %v347 = vmin.f32 %v311, 127.0
      %v348 = vmin.f32 %v312, 127.0
      %v349 = vmin.f32 %v313, 127.0
      %v350 = vmin.f32 %v314, 127.0
      %v351 = vmin.f32 %v315, 127.0
      %v352 = vmin.f32 %v316, 127.0
      %v353 = vmin.f32 %v317, 127.0
      %v354 = vmin.f32 %v318, 127.0
      %v355 = vmin.f32 %v319, 127.0
      %v356 = vmin.f32 %v320, 127.0
      %v357 = vmin.f32 %v321, 127.0
      %v358 = vmin.f32 %v322, 127.0
      %v359 = vmin.f32 %v323, 127.0
      %v360 = vmin.f32 %v324, 127.0
      %v361 = vmin.f32 %v325, 127.0
      %v362 = vmin.f32 %v326, 127.0
      %v363 = vmin.f32 %v327, 127.0
      %v364 = vmin.f32 %v328, 127.0
      %v365 = vmin.f32 %v329, 127.0
      %v366 = vtrunc.f32 %v330
      %v367 = vtrunc.f32 %v331
      %v368 = vtrunc.f32 %v332
      %v369 = vtrunc.f32 %v333
      %v370 = vtrunc.f32 %v334
      %v371 = vtrunc.f32 %v335
      %v372 = vtrunc.f32 %v336
      %v373 = vtrunc.f32 %v337
      %v374 = vtrunc.f32 %v338
      %v375 = vtrunc.f32 %v339
      %v376 = vtrunc.f32 %v340
      %v377 = vtrunc.f32 %v341
      %v378 = vtrunc.f32 %v342
      %v379 = vtrunc.f32 %v343
      %v380 = vtrunc.f32 %v344
      %v381 = vtrunc.f32 %v345
      %v382 = vtrunc.f32 %v346
      %v383 = vtrunc.f32 %v347
      %v384 = vtrunc.f32 %v348
      %v385 = vtrunc.f32 %v349
      %v386 = vtrunc.f32 %v350
      %v387 = vtrunc.f32 %v351
      %v388 = vtrunc.f32 %v352
      %v389 = vtrunc.f32 %v353
      %v390 = vtrunc.f32 %v354
      %v391 = vtrunc.f32 %v355
      %v392 = vtrunc.f32 %v356
      %v393 = vtrunc.f32 %v357
      %v394 = vtrunc.f32 %v358
      %v395 = vtrunc.f32 %v359
      %v396 = vtrunc.f32 %v360
      %v397 = vtrunc.f32 %v361
      %v398 = vtrunc.f32 %v362
      %v399 = vtrunc.f32 %v363
      %v400 = vtrunc.f32 %v364
      %v401 = vtrunc.f32 %v365
      %v402 = vpack.c.f32.eXmY %v366, %v367, 312
      %v406 = vpack.c.f32.eXmY %v368, %v369, 312
      %v410 = vpack.c.b8 %v406, %v402
      %v412 = vpack.c.f32.eXmY %v370, %v371, 312
      %v416 = vpack.c.f32.eXmY %v372, %v373, 312
      %v420 = vpack.c.b8 %v416, %v412
      %v422 = vpack.c.f32.eXmY %v374, %v375, 312
      %v426 = vpack.c.f32.eXmY %v376, %v377, 312
      %v430 = vpack.c.b8 %v426, %v422
      %v432 = vpack.c.f32.eXmY %v378, %v379, 312
      %v436 = vpack.c.f32.eXmY %v380, %v381, 312
      %v440 = vpack.c.b8 %v436, %v432
      %v442 = vpack.c.f32.eXmY %v382, %v383, 312
      %v446 = vpack.c.f32.eXmY %v384, %v385, 312
      %v450 = vpack.c.b8 %v446, %v442
      %v452 = vpack.c.f32.eXmY %v386, %v387, 312
      %v456 = vpack.c.f32.eXmY %v388, %v389, 312
      %v460 = vpack.c.b8 %v456, %v452
      %v462 = vpack.c.f32.eXmY %v390, %v391, 312
      %v466 = vpack.c.f32.eXmY %v392, %v393, 312
      %v470 = vpack.c.b8 %v466, %v462
      %v472 = vpack.c.f32.eXmY %v394, %v395, 312
      %v476 = vpack.c.f32.eXmY %v396, %v397, 312
      %v480 = vpack.c.b8 %v476, %v472
      %v482 = vpack.c.f32.eXmY %v398, %v399, 312
      %v486 = vpack.c.f32.eXmY %v400, %v401, 312
      %v490 = vpack.c.b8 %v486, %v482
      %v492 = vunpack.c.0.s8 %v410
      %v493 = vunpack.c.1.s8 %v410
      %v494 = vunpack.c.2.s8 %v410
      %v495 = vunpack.c.3.s8 %v410
      %v496 = vunpack.c.0.s8 %v420
      %v497 = vunpack.c.1.s8 %v420
      %v498 = vunpack.c.2.s8 %v420
      %v499 = vunpack.c.3.s8 %v420
      %v500 = vunpack.c.0.s8 %v430
      %v501 = vunpack.c.1.s8 %v430
      %v502 = vunpack.c.2.s8 %v430
      %v503 = vunpack.c.3.s8 %v430
      %v504 = vunpack.c.0.s8 %v440
      %v505 = vunpack.c.1.s8 %v440
      %v506 = vunpack.c.2.s8 %v440
      %v507 = vunpack.c.3.s8 %v440
      %v508 = vunpack.c.0.s8 %v450
      %v509 = vunpack.c.1.s8 %v450
      %v510 = vunpack.c.2.s8 %v450
      %v511 = vunpack.c.3.s8 %v450
      %v512 = vunpack.c.0.s8 %v460
      %v513 = vunpack.c.1.s8 %v460
      %v514 = vunpack.c.2.s8 %v460
      %v515 = vunpack.c.3.s8 %v460
      %v516 = vunpack.c.0.s8 %v470
      %v517 = vunpack.c.1.s8 %v470
      %v518 = vunpack.c.2.s8 %v470
      %v519 = vunpack.c.3.s8 %v470
      %v520 = vunpack.c.0.s8 %v480
      %v521 = vunpack.c.1.s8 %v480
      %v522 = vunpack.c.2.s8 %v480
      %v523 = vunpack.c.3.s8 %v480
      %v524 = vunpack.c.0.s8 %v490
      %v525 = vunpack.c.1.s8 %v490
      %v526 = vunpack.c.2.s8 %v490
      %v527 = vunpack.c.3.s8 %v490
      %v528 = vpack.c.b16 %v492, %v492
      %v529 = vpack.c.b8 %v528, %v528
      %v530 = vpack.c.b16 %v493, %v493
      %v531 = vpack.c.b8 %v530, %v530
      %v532 = vpack.c.b16 %v494, %v494
      %v533 = vpack.c.b8 %v532, %v532
      %v534 = vpack.c.b16 %v495, %v495
      %v535 = vpack.c.b8 %v534, %v534
      %v536 = vpack.c.b16 %v496, %v496
      %v537 = vpack.c.b8 %v536, %v536
      %v538 = vpack.c.b16 %v497, %v497
      %v539 = vpack.c.b8 %v538, %v538
      %v540 = vpack.c.b16 %v498, %v498
      %v541 = vpack.c.b8 %v540, %v540
      %v542 = vpack.c.b16 %v499, %v499
      %v543 = vpack.c.b8 %v542, %v542
      %v544 = vpack.c.b16 %v500, %v500
      %v545 = vpack.c.b8 %v544, %v544
      %v546 = vpack.c.b16 %v501, %v501
      %v547 = vpack.c.b8 %v546, %v546
      %v548 = vpack.c.b16 %v502, %v502
      %v549 = vpack.c.b8 %v548, %v548
      %v550 = vpack.c.b16 %v503, %v503
      %v551 = vpack.c.b8 %v550, %v550
      %v552 = vpack.c.b16 %v504, %v504
      %v553 = vpack.c.b8 %v552, %v552
      %v554 = vpack.c.b16 %v505, %v505
      %v555 = vpack.c.b8 %v554, %v554
      %v556 = vpack.c.b16 %v506, %v506
      %v557 = vpack.c.b8 %v556, %v556
      %v558 = vpack.c.b16 %v507, %v507
      %v559 = vpack.c.b8 %v558, %v558
      %v560 = vpack.c.b16 %v508, %v508
      %v561 = vpack.c.b8 %v560, %v560
      %v562 = vpack.c.b16 %v509, %v509
      %v563 = vpack.c.b8 %v562, %v562
      %v564 = vpack.c.b16 %v510, %v510
      %v565 = vpack.c.b8 %v564, %v564
      %v566 = vpack.c.b16 %v511, %v511
      %v567 = vpack.c.b8 %v566, %v566
      %v568 = vpack.c.b16 %v512, %v512
      %v569 = vpack.c.b8 %v568, %v568
      %v570 = vpack.c.b16 %v513, %v513
      %v571 = vpack.c.b8 %v570, %v570
      %v572 = vpack.c.b16 %v514, %v514
      %v573 = vpack.c.b8 %v572, %v572
      %v574 = vpack.c.b16 %v515, %v515
      %v575 = vpack.c.b8 %v574, %v574
      %v576 = vpack.c.b16 %v516, %v516
      %v577 = vpack.c.b8 %v576, %v576
      %v578 = vpack.c.b16 %v517, %v517
      %v579 = vpack.c.b8 %v578, %v578
      %v580 = vpack.c.b16 %v518, %v518
      %v581 = vpack.c.b8 %v580, %v580
      %v582 = vpack.c.b16 %v519, %v519
      %v583 = vpack.c.b8 %v582, %v582
      %v584 = vpack.c.b16 %v520, %v520
      %v585 = vpack.c.b8 %v584, %v584
      %v586 = vpack.c.b16 %v521, %v521
      %v587 = vpack.c.b8 %v586, %v586
      %v588 = vpack.c.b16 %v522, %v522
      %v589 = vpack.c.b8 %v588, %v588
      %v590 = vpack.c.b16 %v523, %v523
      %v591 = vpack.c.b8 %v590, %v590
      %v592 = vpack.c.b16 %v524, %v524
      %v593 = vpack.c.b8 %v592, %v592
      %v594 = vpack.c.b16 %v525, %v525
      %v595 = vpack.c.b8 %v594, %v594
      %v596 = vpack.c.b16 %v526, %v526
      %v597 = vpack.c.b8 %v596, %v596
      %v598 = vpack.c.b16 %v527, %v527
      %v599 = vpack.c.b8 %v598, %v598
      %600 = vst [vmem:[%s146] sm:$0x3] %v529
      %601 = vst [vmem:[%s146 + $0x2] sm:$0x3] %v531
      %602 = vst [vmem:[%s146 + $0x4] sm:$0x3] %v533
      %603 = vst [vmem:[%s146 + $0x6] sm:$0x3] %v535
      %604 = vst [vmem:[%s146 + $0x8] sm:$0x3] %v537
      %605 = vst [vmem:[%s146 + $0xa] sm:$0x3] %v539
      %606 = vst [vmem:[%s146 + $0xc] sm:$0x3] %v541
      %607 = vst [vmem:[%s146 + $0xe] sm:$0x3] %v543
      %608 = vst [vmem:[%s146 + $0x10] sm:$0x3] %v545
      %609 = vst [vmem:[%s146 + $0x12] sm:$0x3] %v547
      %610 = vst [vmem:[%s146 + $0x14] sm:$0x3] %v549
      %611 = vst [vmem:[%s146 + $0x16] sm:$0x3] %v551
      %612 = vst [vmem:[%s146 + $0x18] sm:$0x3] %v553
      %613 = vst [vmem:[%s146 + $0x1a] sm:$0x3] %v555
      %614 = vst [vmem:[%s146 + $0x1c] sm:$0x3] %v557
      %615 = vst [vmem:[%s146 + $0x1e] sm:$0x3] %v559
      %616 = vst [vmem:[%s146 + $0x20] sm:$0x3] %v561
      %617 = vst [vmem:[%s146 + $0x22] sm:$0x3] %v563
      %618 = vst [vmem:[%s146 + $0x24] sm:$0x3] %v565
      %619 = vst [vmem:[%s146 + $0x26] sm:$0x3] %v567
      %620 = vst [vmem:[%s146 + $0x28] sm:$0x3] %v569
      %621 = vst [vmem:[%s146 + $0x2a] sm:$0x3] %v571
      %622 = vst [vmem:[%s146 + $0x2c] sm:$0x3] %v573
      %623 = vst [vmem:[%s146 + $0x2e] sm:$0x3] %v575
      %624 = vst [vmem:[%s146 + $0x30] sm:$0x3] %v577
      %625 = vst [vmem:[%s146 + $0x32] sm:$0x3] %v579
      %626 = vst [vmem:[%s146 + $0x34] sm:$0x3] %v581
      %627 = vst [vmem:[%s146 + $0x36] sm:$0x3] %v583
      %628 = vst [vmem:[%s146 + $0x38] sm:$0x3] %v585
      %629 = vst [vmem:[%s146 + $0x3a] sm:$0x3] %v587
      %630 = vst [vmem:[%s146 + $0x3c] sm:$0x3] %v589
      %631 = vst [vmem:[%s146 + $0x3e] sm:$0x3] %v591
      %632 = vst [vmem:[%s146 + $0x40] sm:$0x3] %v593
      %633 = vst [vmem:[%s146 + $0x42] sm:$0x3] %v595
      %634 = vst [vmem:[%s146 + $0x44] sm:$0x3] %v597
      %635 = vst [vmem:[%s146 + $0x46] sm:$0x3] %v599
      %s636 = smul.u32 36, %s14
      %p637 = scmp.lt.s32.totalorder %s636, 71
      %s638 = scalar_select %p637, %s636, 71
      %s639 = smul.addr %s638, 2
      %s640 = scalar_lea.vmem %s2, %s639
      // Predicated region
      $region29: #{quantized_conv2d_forward.3} parent=27 // pred_check
        %p641 = pneg %p79
      $region30: #{quantized_conv2d_forward.3} parent=27 // pred_check_branch
        %643 = sbr.rel (%p641) target = $region32
      $region31: #{quantized_conv2d_forward.3} parent=27 // pred_region
        %s644 = smul.u32 36, %s14
      $region32: #{quantized_conv2d_forward.3} parent=27 // pred_fallthru
        _
    $region28: #{quantized_conv2d_forward.3} parent=5 // pred_fallthru
      _
    %p645 = scmp.le.s32.totalorder 2, %s9
    // Predicated region
    $region33: #{quantized_conv2d_forward.3} parent=5 // pred_check
      %p646 = pneg %p645
    $region34: #{quantized_conv2d_forward.3} parent=5 // pred_check_branch
      %648 = sbr.rel (%p646) target = $region36
    $region35: #{quantized_conv2d_forward.3} parent=5 // pred_region
      %s649 = ssub.s32 %s9, 2
      // Predicated region
      $region37: #{quantized_conv2d_forward.3} parent=35 // pred_check
        %p650 = pneg %p85
      $region38: #{quantized_conv2d_forward.3} parent=35 // pred_check_branch
        %652 = sbr.rel (%p650) target = $region40
      $region39: #{quantized_conv2d_forward.3} parent=35 // pred_region
        %s653 = smul.u32 36, %s15
        %p654 = scmp.lt.s32.totalorder %s653, 71
        %s655 = scalar_select %p654, %s653, 71
        %s656 = smul.addr %s655, 2
        %s657 = scalar_lea.vmem %s2, %s656
      $region40: #{quantized_conv2d_forward.3} parent=35 // pred_fallthru
        _
    $region36: #{quantized_conv2d_forward.3} parent=5 // pred_fallthru
      _
  $region6: #{quantized_conv2d_forward.3} parent=0 // loop_footer
    %s13 = sadd.s32 1, %s9
  $region7: #{quantized_conv2d_forward.3} parent=0 // loop_footer_branch
    %8 = sbr.rel target = $region3
  $region8: #{quantized_conv2d_forward.3} parent=0 // loop_exit
    _

// kernel: quantized_conv2d_forward.2
$region0: #{quantized_conv2d_forward.2}
  #allocation0 [shape = 'u32[]', space=smem, size = 0x4, offset = 0x4, fixed_abs, tag = 'smem constant byte address 0x4 - core index']
  #allocation1 [shape = 'u32[144,128]{1,0:T(1,128)}', space=vmem, size = 0x12000, scoped, tag = 'internal scratch']
  #allocation2 [shape = 'f32[288,128]{1,0:T(8,128)}', space=vmem, size = 0x24000, scoped, tag = 'scratch operand']
  %s0 = inlined_call_operand.vmem [shape: bf16[2,352,128], index: 0, kind: input, shape index: {}]
  %s1 = inlined_call_operand.vmem [shape: bf16[9,128,128], index: 1, kind: input, shape index: {}]
  %s2 = inlined_call_operand.vmem [shape: f32[1,128], index: 2, kind: input, shape index: {}]
  %s3 = inlined_call_operand.vmem [shape: f32[288,1], index: 3, kind: input, shape index: {}]
  %s4 = inlined_call_operand.vmem [shape: bf16[2,288,128], index: 4, kind: output, shape index: {0}]
  %s5 = inlined_call_operand.vmem [shape: f32[16,128], index: 5, kind: output, shape index: {1}]
  %6 = xla_tuple %s4, %s5
  %s7 = sld [smem:[#allocation0]]
  $region57: #{quantized_conv2d_forward.2} parent=0
    _
  %s9 = ssub.s32 1, %s7
  %s10 = scalar_select 0, %s9, %s7
  loop: start=0, step=1, limit=4
  $region2: #{quantized_conv2d_forward.2} parent=0 // loop_pre_header
    _
  $region3: #{quantized_conv2d_forward.2} parent=0 // loop_header
    %s12 = sphi 0, %s16
    %p13 = scmp.ge.s32.totalorder %s12, 4
    %s19 = sphi 0, %s38
    %s20 = sphi 0, %s34
    %s21 = sphi 0, %s30
    %s22 = sphi 0, %s19
    %s23 = sphi 0, %s20
    %s24 = sphi 0, %s21
    %s25 = sphi 0, %s22
    %s26 = sphi 0, %s23
    %s27 = sphi 0, %s24
    %s41 = sphi 0, %s43
    %s44 = sphi 0, %s41
    %s45 = sphi 0, %s44
    %s61 = sphi 0, %s45
    %s67 = sphi 0, %s69
    %s70 = sphi 0, %s67
    %s71 = sphi 0, %s70
    %s87 = sphi 0, %s71
    %s93 = sphi 0, %s95
    %s96 = sphi 0, %s93
    %s97 = sphi 0, %s96
    %s113 = sphi 0, %s97
    %s119 = sphi 0, %s121
    %s122 = sphi 0, %s119
    %s123 = sphi 0, %s122
    %s139 = sphi 0, %s123
    %s149 = sphi 0, %s151
    %s152 = sphi 0, %s149
    %s153 = sphi 0, %s152
    %s169 = sphi 0, %s153
    %s179 = sphi 0, %s181
    %s182 = sphi 0, %s179
    %s183 = sphi 0, %s182
    %s199 = sphi 0, %s183
  $region4: #{quantized_conv2d_forward.2} parent=0 // loop_header_branch
    %15 = sbr.rel (%p13) target = $region8
  $region5: #{quantized_conv2d_forward.2} parent=0 // loop_body
    %s17 = ssub.s32 %s12, 1
    %s18 = ssub.s32 %s12, 2
    %s28 = sadd.s32 1, %s21
    %p29 = scmp.ge.s32.totalorder %s28, 1
    %s30 = scalar_select %p29, 0, %s28
    %s31 = sadd.s32 1, %s20
    %s32 = scalar_select %p29, %s31, %s20
    %p33 = scmp.ge.s32.totalorder %s32, 1
    %s34 = scalar_select %p33, 0, %s32
    %s35 = sadd.s32 1, %s19
    %s36 = scalar_select %p33, %s35, %s19
    %p37 = scmp.ge.s32.totalorder %s36, 2
    %s38 = scalar_select %p37, 0, %s36
    %s39 = ssub.s32 %s19, %s38
    %p40 = scmp.eq.s32.totalorder %s39, 0
    %s42 = sadd.s32 %s41, 1
    %s43 = scalar_select %p40, %s41, %s42
    %p46 = pneg %p40
    %p47 = scmp.eq.s32.totalorder %s12, 1
    %p48 = por %p46, %p47
    %p49 = scmp.ne.s32.totalorder %s41, %s44
    %p50 = scmp.eq.s32.totalorder %s12, 0
    %p51 = por %p49, %p50
    %p52 = scmp.ne.s32.totalorder %s41, %s44
    %p53 = scmp.eq.s32.totalorder %s17, 1
    %p54 = por %p52, %p53
    %p55 = scmp.ne.s32.totalorder %s44, %s45
    %p56 = scmp.eq.s32.totalorder %s17, 0
    %p57 = por %p55, %p56
    %p58 = scmp.ne.s32.totalorder %s44, %s45
    %p59 = scmp.eq.s32.totalorder %s18, 1
    %p60 = por %p58, %p59
    %p62 = scmp.ne.s32.totalorder %s45, %s61
    %p63 = scmp.eq.s32.totalorder %s18, 0
    %p64 = por %p62, %p63
    %s65 = ssub.s32 %s20, %s34
    %p66 = scmp.eq.s32.totalorder %s65, 0
    %s68 = sadd.s32 %s67, 1
    %s69 = scalar_select %p66, %s67, %s68
    %p72 = pneg %p66
    %p73 = scmp.eq.s32.totalorder %s12, 1
    %p74 = por %p72, %p73
    %p75 = scmp.ne.s32.totalorder %s67, %s70
    %p76 = scmp.eq.s32.totalorder %s12, 0
    %p77 = por %p75, %p76
    %p78 = scmp.ne.s32.totalorder %s67, %s70
    %p79 = scmp.eq.s32.totalorder %s17, 1
    %p80 = por %p78, %p79
    %p81 = scmp.ne.s32.totalorder %s70, %s71
    %p82 = scmp.eq.s32.totalorder %s17, 0
    %p83 = por %p81, %p82
    %p84 = scmp.ne.s32.totalorder %s70, %s71
    %p85 = scmp.eq.s32.totalorder %s18, 1
    %p86 = por %p84, %p85
    %p88 = scmp.ne.s32.totalorder %s71, %s87
    %p89 = scmp.eq.s32.totalorder %s18, 0
    %p90 = por %p88, %p89
    %s91 = ssub.s32 %s20, %s34
    %p92 = scmp.eq.s32.totalorder %s91, 0
    %s94 = sadd.s32 %s93, 1
    %s95 = scalar_select %p92, %s93, %s94
    %p98 = pneg %p92
    %p99 = scmp.eq.s32.totalorder %s12, 1
    %p100 = por %p98, %p99
    %p101 = scmp.ne.s32.totalorder %s93, %s96
    %p102 = scmp.eq.s32.totalorder %s12, 0
    %p103 = por %p101, %p102
    %p104 = scmp.ne.s32.totalorder %s93, %s96
    %p105 = scmp.eq.s32.totalorder %s17, 1
    %p106 = por %p104, %p105
    %p107 = scmp.ne.s32.totalorder %s96, %s97
    %p108 = scmp.eq.s32.totalorder %s17, 0
    %p109 = por %p107, %p108
    %p110 = scmp.ne.s32.totalorder %s96, %s97
    %p111 = scmp.eq.s32.totalorder %s18, 1
    %p112 = por %p110, %p111
    %p114 = scmp.ne.s32.totalorder %s97, %s113
    %p115 = scmp.eq.s32.totalorder %s18, 0
    %p116 = por %p114, %p115
    %s117 = ssub.s32 %s21, %s30
    %p118 = scmp.eq.s32.totalorder %s117, 0
    %s120 = sadd.s32 %s119, 1
    %s121 = scalar_select %p118, %s119, %s120
    %p124 = pneg %p118
    %p125 = scmp.eq.s32.totalorder %s12, 1
    %p126 = por %p124, %p125
    %p127 = scmp.ne.s32.totalorder %s119, %s122
    %p128 = scmp.eq.s32.totalorder %s12, 0
    %p129 = por %p127, %p128
    %p130 = scmp.ne.s32.totalorder %s119, %s122
    %p131 = scmp.eq.s32.totalorder %s17, 1
    %p132 = por %p130, %p131
    %p133 = scmp.ne.s32.totalorder %s122, %s123
    %p134 = scmp.eq.s32.totalorder %s17, 0
    %p135 = por %p133, %p134
    %p136 = scmp.ne.s32.totalorder %s122, %s123
    %p137 = scmp.eq.s32.totalorder %s18, 1
    %p138 = por %p136, %p137
    %p140 = scmp.ne.s32.totalorder %s123, %s139
    %p141 = scmp.eq.s32.totalorder %s18, 0
    %p142 = por %p140, %p141
    %s143 = ssub.s32 %s19, %s38
    %s144 = ssub.s32 %s21, %s30
    %s145 = sor.u32 %s143, %s144
    %s146 = ssub.s32 %s20, %s34
    %s147 = sor.u32 %s145, %s146
    %p148 = scmp.eq.s32.totalorder %s147, 0
    %s150 = sadd.s32 %s149, 1
    %s151 = scalar_select %p148, %s149, %s150
    %p154 = pneg %p148
    %p155 = scmp.eq.s32.totalorder %s12, 1
    %p156 = por %p154, %p155
    %p157 = scmp.ne.s32.totalorder %s149, %s152
    %p158 = scmp.eq.s32.totalorder %s12, 0
    %p159 = por %p157, %p158
    %p160 = scmp.ne.s32.totalorder %s149, %s152
    %p161 = scmp.eq.s32.totalorder %s17, 1
    %p162 = por %p160, %p161
    %p163 = scmp.ne.s32.totalorder %s152, %s153
    %p164 = scmp.eq.s32.totalorder %s17, 0
    %p165 = por %p163, %p164
    %p166 = scmp.ne.s32.totalorder %s152, %s153
    %p167 = scmp.eq.s32.totalorder %s18, 1
    %p168 = por %p166, %p167
    %p170 = scmp.ne.s32.totalorder %s153, %s169
    %p171 = scmp.eq.s32.totalorder %s18, 0
    %p172 = por %p170, %p171
    %s173 = sadd.s32 %s19, %s21
    %s174 = sadd.s32 %s38, %s30
    %s175 = ssub.s32 %s173, %s174
    %s176 = ssub.s32 %s20, %s34
    %s177 = sor.u32 %s175, %s176
    %p178 = scmp.eq.s32.totalorder %s177, 0
    %s180 = sadd.s32 %s179, 1
    %s181 = scalar_select %p178, %s179, %s180
    %p184 = pneg %p178
    %p185 = scmp.eq.s32.totalorder %s12, 1
    %p186 = por %p184, %p185
    %p187 = scmp.ne.s32.totalorder %s179, %s182
    %p188 = scmp.eq.s32.totalorder %s12, 0
    %p189 = por %p187, %p188
    %p190 = scmp.ne.s32.totalorder %s179, %s182
    %p191 = scmp.eq.s32.totalorder %s17, 1
    %p192 = por %p190, %p191
    %p193 = scmp.ne.s32.totalorder %s182, %s183
    %p194 = scmp.eq.s32.totalorder %s17, 0
    %p195 = por %p193, %p194
    %p196 = scmp.ne.s32.totalorder %s182, %s183
    %p197 = scmp.eq.s32.totalorder %s18, 1
    %p198 = por %p196, %p197
    %p200 = scmp.ne.s32.totalorder %s183, %s199
    %p201 = scmp.eq.s32.totalorder %s18, 0
    %p202 = por %p200, %p201
    %p203 = scmp.le.s32.totalorder 1, %s12
    %p204 = scmp.lt.s32.totalorder %s12, 3
    %p205 = pnand %p203, %p204
    %p206 = pneg %p205
    // Predicated region
    $region9: #{quantized_conv2d_forward.2} parent=5 // pred_check
      _
    $region10: #{quantized_conv2d_forward.2} parent=5 // pred_check_branch
      %208 = sbr.rel (%p205) target = $region12
    $region11: #{quantized_conv2d_forward.2} parent=5 // pred_region
      %s209 = ssub.s32 %s12, 1
      // Predicated region
      $region13: #{quantized_conv2d_forward.2} parent=11 // pred_check
        %p210 = pneg %p83
      $region14: #{quantized_conv2d_forward.2} parent=11 // pred_check_branch
        %212 = sbr.rel (%p210) target = $region16
      $region15: #{quantized_conv2d_forward.2} parent=11 // pred_region
        %p213 = scmp.lt.s32.totalorder %s23, 0
        %s214 = scalar_select %p213, %s23, 0
        %s215 = smul.addr %s214, 4
        %s216 = scalar_lea.vmem %s1, %s215
      $region16: #{quantized_conv2d_forward.2} parent=11 // pred_fallthru
        _
      // Predicated region
      $region17: #{quantized_conv2d_forward.2} parent=11 // pred_check
        %p217 = pneg %p109
      $region18: #{quantized_conv2d_forward.2} parent=11 // pred_check_branch
        %219 = sbr.rel (%p217) target = $region20
      $region19: #{quantized_conv2d_forward.2} parent=11 // pred_region
        %p220 = scmp.lt.s32.totalorder %s23, 0
        %s221 = scalar_select %p220, %s23, 0
        %s222 = scalar_lea.vmem %s2, %s221
      $region20: #{quantized_conv2d_forward.2} parent=11 // pred_fallthru
        _
      // Predicated region
      $region21: #{quantized_conv2d_forward.2} parent=11 // pred_check
        %p223 = pneg %p135
      $region22: #{quantized_conv2d_forward.2} parent=11 // pred_check_branch
        %225 = sbr.rel (%p223) target = $region24
      $region23: #{quantized_conv2d_forward.2} parent=11 // pred_region
        %s226 = smul.u32 36, %s24
        %p227 = scmp.lt.s32.totalorder %s226, 35
        %s228 = scalar_select %p227, %s226, 35
        %s229 = smul.addr %s228, 8
        %s230 = scalar_lea.vmem %s3, %s229
        %s231 = smul.u32 36, %s24
      $region24: #{quantized_conv2d_forward.2} parent=11 // pred_fallthru
        _
    $region12: #{quantized_conv2d_forward.2} parent=5 // pred_fallthru
      _
    %p232 = scmp.lt.s32.totalorder %s12, 2
    // Predicated region
    $region25: #{quantized_conv2d_forward.2} parent=5 // pred_check
      %p233 = pneg %p232
    $region26: #{quantized_conv2d_forward.2} parent=5 // pred_check_branch
      %235 = sbr.rel (%p233) target = $region28
    $region27: #{quantized_conv2d_forward.2} parent=5 // pred_region
      // Predicated region
      $region29: #{quantized_conv2d_forward.2} parent=27 // pred_check
        %p236 = pneg %p51
      $region30: #{quantized_conv2d_forward.2} parent=27 // pred_check_branch
        %238 = sbr.rel (%p236) target = $region32
      $region31: #{quantized_conv2d_forward.2} parent=27 // pred_region
        %p239 = scmp.lt.s32.totalorder %s19, 1
        %s240 = scalar_select %p239, %s19, 1
        %s241 = smul.addr %s240, 44
        %s242 = smul.addr %s241, 4
        %s243 = scalar_lea.vmem %s0, %s242
      $region32: #{quantized_conv2d_forward.2} parent=27 // pred_fallthru
        _
    $region28: #{quantized_conv2d_forward.2} parent=5 // pred_fallthru
      _
    %p244 = scmp.le.s32.totalorder 1, %s12
    %p245 = scmp.lt.s32.totalorder %s12, 3
    %p246 = pnand %p244, %p245
    %p247 = pneg %p246
    // Predicated region
    $region33: #{quantized_conv2d_forward.2} parent=5 // pred_check
      _
    $region34: #{quantized_conv2d_forward.2} parent=5 // pred_check_branch
      %249 = sbr.rel (%p246) target = $region36
    $region35: #{quantized_conv2d_forward.2} parent=5 // pred_region
      %s250 = ssub.s32 %s12, 1
      %p251 = scmp.lt.s32.totalorder %s22, 1
      %s252 = scalar_select %p251, %s22, 1
      %s253 = smul.addr %s252, 44
      %s254 = smul.addr %s253, 4
      %s255 = scalar_lea.vmem %s0, %s254
      %p256 = pneg %p57
      %p257 = pneg %p54
      %p258 = scmp.lt.s32.totalorder %s23, 0
      %s259 = scalar_select %p258, %s23, 0
      %s260 = smul.addr %s259, 4
      %s261 = scalar_lea.vmem %s1, %s260
      %p262 = pneg %p83
      %p263 = pneg %p80
      %p264 = scmp.lt.s32.totalorder %s23, 0
      %s265 = scalar_select %p264, %s23, 0
      %s266 = scalar_lea.vmem %s2, %s265
      %p267 = pneg %p109
      %p268 = pneg %p106
      %s269 = smul.u32 36, %s24
      %p270 = scmp.lt.s32.totalorder %s269, 35
      %s271 = scalar_select %p270, %s269, 35
      %s272 = smul.addr %s271, 8
      %s273 = scalar_lea.vmem %s3, %s272
      %p274 = pneg %p135
      %p275 = pneg %p132
      %p276 = pneg %p165
      %p277 = pneg %p162
      %s278 = smul.u32 36, %s24
      %p279 = scmp.lt.s32.totalorder %s22, 1
      %s280 = scalar_select %p279, %s22, 1
      %p281 = scmp.lt.s32.totalorder %s278, 35
      %s282 = scalar_select %p281, %s278, 35
      %p283 = scmp.lt.s32.totalorder %s23, 0
      %s284 = scalar_select %p283, %s23, 0
      %s285 = sadd.s32 %s284, %s282
      %s286 = smul.addr %s280, 36
      %s287 = sadd.s32 %s285, %s286
      %s288 = smul.addr %s287, 4
      %s289 = scalar_lea.vmem %s4, %s288
      %p290 = pneg %p195
      %p291 = pneg %p192
      %s292 = sadd.s32 %s22, %s24
      %p293 = scmp.lt.s32.totalorder %s292, 1
      %s294 = scalar_select %p293, %s292, 1
      %p295 = scmp.lt.s32.totalorder %s23, 0
      %s296 = scalar_select %p295, %s23, 0
      %s297 = sadd.s32 %s296, %s294
      %s298 = smul.addr %s297, 8
      %s299 = scalar_lea.vmem %s5, %s298
      %p300 = scmp.lt.s32.totalorder %s22, 1
      %s301 = scalar_select %p300, %s22, 1
      %s302 = smul.addr %s301, 44
      %s303 = smul.addr %s302, 4
      %s304 = scalar_lea.vmem %s0, %s303
      %p305 = scmp.lt.s32.totalorder %s23, 0
      %s306 = scalar_select %p305, %s23, 0
      %s307 = smul.addr %s306, 4
      %s308 = scalar_lea.vmem %s1, %s307
      %p309 = scmp.lt.s32.totalorder %s23, 0
      %s310 = scalar_select %p309, %s23, 0
      %s311 = scalar_lea.vmem %s2, %s310
      %s312 = smul.u32 36, %s24
      %p313 = scmp.lt.s32.totalorder %s312, 35
      %s314 = scalar_select %p313, %s312, 35
      %s315 = smul.addr %s314, 8
      %s316 = scalar_lea.vmem %s3, %s315
      %s317 = smul.u32 36, %s24
      %s318 = smul.u32 36, %s24
      %p319 = scmp.lt.s32.totalorder %s22, 1
      %s320 = scalar_select %p319, %s22, 1
      %p321 = scmp.lt.s32.totalorder %s318, 35
      %s322 = scalar_select %p321, %s318, 35
      %p323 = scmp.lt.s32.totalorder %s23, 0
      %s324 = scalar_select %p323, %s23, 0
      %s325 = sadd.s32 %s324, %s322
      %s326 = smul.addr %s320, 36
      %s327 = sadd.s32 %s325, %s326
      %s328 = smul.addr %s327, 4
      %s329 = scalar_lea.vmem %s4, %s328
      %s330 = smul.u32 36, %s24
      %s331 = sadd.s32 %s22, %s24
      %p332 = scmp.lt.s32.totalorder %s331, 1
      %s333 = scalar_select %p332, %s331, 1
      %p334 = scmp.lt.s32.totalorder %s23, 0
      %s335 = scalar_select %p334, %s23, 0
      %s336 = sadd.s32 %s335, %s333
      %s337 = smul.addr %s336, 8
      %s338 = scalar_lea.vmem %s5, %s337
      %s339 = sadd.s32 %s22, %s24
      %v341 = vld [vmem:[%s304] sm:$0xf]
      %v342 = vld [vmem:[%s304 + $0x4] sm:$0xf]
      %v343 = vld [vmem:[%s304 + $0x8] sm:$0xf]
      %v344 = vld [vmem:[%s304 + $0xc] sm:$0xf]
      %v345 = vld [vmem:[%s304 + $0x10] sm:$0xf]
      %v346 = vld [vmem:[%s304 + $0x14] sm:$0xf]
      %v347 = vld [vmem:[%s304 + $0x18] sm:$0xf]
      %v348 = vld [vmem:[%s304 + $0x1c] sm:$0xf]
      %v349 = vld [vmem:[%s304 + $0x20] sm:$0xf]
      %v350 = vld [vmem:[%s304 + $0x24] sm:$0xf]
      %v351 = vld [vmem:[%s304 + $0x28] sm:$0xf]
      %v352 = vld [vmem:[%s304 + $0x2c] sm:$0xf]
      %v353 = vld [vmem:[%s304 + $0x30] sm:$0xf]
      %v354 = vld [vmem:[%s304 + $0x34] sm:$0xf]
      %v355 = vld [vmem:[%s304 + $0x38] sm:$0xf]
      %v356 = vld [vmem:[%s304 + $0x3c] sm:$0xf]
      %v357 = vld [vmem:[%s304 + $0x40] sm:$0xf]
      %v358 = vld [vmem:[%s304 + $0x44] sm:$0xf]
      %v359 = vld [vmem:[%s304 + $0x48] sm:$0xf]
      %v360 = vld [vmem:[%s304 + $0x4c] sm:$0xf]
      %v361 = vld [vmem:[%s304 + $0x50] sm:$0xf]
      %v362 = vld [vmem:[%s304 + $0x54] sm:$0xf]
      %v363 = vld [vmem:[%s304 + $0x58] sm:$0xf]
      %v364 = vld [vmem:[%s304 + $0x5c] sm:$0xf]
      %v365 = vld [vmem:[%s304 + $0x60] sm:$0xf]
      %v366 = vld [vmem:[%s304 + $0x64] sm:$0xf]
      %v367 = vld [vmem:[%s304 + $0x68] sm:$0xf]
      %v368 = vld [vmem:[%s304 + $0x6c] sm:$0xf]
      %v369 = vld [vmem:[%s304 + $0x70] sm:$0xf]
      %v370 = vld [vmem:[%s304 + $0x74] sm:$0xf]
      %v371 = vld [vmem:[%s304 + $0x78] sm:$0xf]
      %v372 = vld [vmem:[%s304 + $0x7c] sm:$0xf]
      %v373 = vld [vmem:[%s304 + $0x80] sm:$0xf]
      %v374 = vld [vmem:[%s304 + $0x84] sm:$0xf]
      %v375 = vld [vmem:[%s304 + $0x88] sm:$0xf]
      %v376 = vld [vmem:[%s304 + $0x8c] sm:$0xf]
      %v377 = vld [vmem:[%s308] sm:$0xf]
      %v378 = vld [vmem:[%s308 + $0x4] sm:$0xf]
      %v379 = vld [vmem:[%s308 + $0x8] sm:$0xf]
      %v380 = vld [vmem:[%s308 + $0xc] sm:$0xf]
      %v381 = vld [vmem:[%s308 + $0x10] sm:$0xf]
      %v382 = vld [vmem:[%s308 + $0x14] sm:$0xf]
      %v383 = vld [vmem:[%s308 + $0x18] sm:$0xf]
      %v384 = vld [vmem:[%s308 + $0x1c] sm:$0xf]
      %v385 = vld [vmem:[%s308 + $0x20] sm:$0xf]
      %v386 = vld [vmem:[%s308 + $0x24] sm:$0xf]
      %v387 = vld [vmem:[%s308 + $0x28] sm:$0xf]
      %v388 = vld [vmem:[%s308 + $0x2c] sm:$0xf]
      %v389 = vld [vmem:[%s308 + $0x30] sm:$0xf]
      %v390 = vld [vmem:[%s308 + $0x34] sm:$0xf]
      %v391 = vld [vmem:[%s308 + $0x38] sm:$0xf]
      %v392 = vld [vmem:[%s308 + $0x3c] sm:$0xf]
      %v429 = vunpack.c.l.b16 %v341
      %v430 = vunpack.c.l.b16 %v342
      %v431 = vunpack.c.l.b16 %v343
      %v432 = vunpack.c.l.b16 %v344
      %v433 = vunpack.c.l.b16 %v345
      %v434 = vunpack.c.l.b16 %v346
      %v435 = vunpack.c.l.b16 %v347
      %v436 = vunpack.c.l.b16 %v348
      %v437 = vunpack.c.l.b16 %v349
      %v438 = vunpack.c.l.b16 %v350
      %v439 = vunpack.c.l.b16 %v351
      %v440 = vunpack.c.l.b16 %v352
      %v441 = vunpack.c.l.b16 %v353
      %v442 = vunpack.c.l.b16 %v354
      %v443 = vunpack.c.l.b16 %v355
      %v444 = vunpack.c.l.b16 %v356
      %v445 = vunpack.c.l.b16 %v357
      %v446 = vunpack.c.l.b16 %v358
      %v447 = vunpack.c.l.b16 %v359
      %v448 = vunpack.c.l.b16 %v360
      %v449 = vunpack.c.l.b16 %v361
      %v450 = vunpack.c.l.b16 %v362
      %v451 = vunpack.c.l.b16 %v363
      %v452 = vunpack.c.l.b16 %v364
      %v453 = vunpack.c.l.b16 %v365
      %v454 = vunpack.c.l.b16 %v366
      %v455 = vunpack.c.l.b16 %v367
      %v456 = vunpack.c.l.b16 %v368
      %v457 = vunpack.c.l.b16 %v369
      %v458 = vunpack.c.l.b16 %v370
      %v459 = vunpack.c.l.b16 %v371
      %v460 = vunpack.c.l.b16 %v372
      %v461 = vunpack.c.l.b16 %v373
      %v462 = vunpack.c.l.b16 %v374
      %v463 = vunpack.c.l.b16 %v375
      %v464 = vunpack.c.l.b16 %v376
      %v465 = vpack.c.b16 %v430, %v429
      %v466 = vpack.c.b16 %v432, %v431
      %v467 = vpack.c.b16 %v434, %v433
      %v468 = vpack.c.b16 %v436, %v435
      %v469 = vpack.c.b16 %v438, %v437
      %v470 = vpack.c.b16 %v440, %v439
      %v471 = vpack.c.b16 %v442, %v441
      %v472 = vpack.c.b16 %v444, %v443
      %v473 = vpack.c.b16 %v446, %v445
      %v474 = vpack.c.b16 %v448, %v447
      %v475 = vpack.c.b16 %v450, %v449
      %v476 = vpack.c.b16 %v452, %v451
      %v477 = vpack.c.b16 %v454, %v453
      %v478 = vpack.c.b16 %v456, %v455
      %v479 = vpack.c.b16 %v458, %v457
      %v480 = vpack.c.b16 %v460, %v459
      %v481 = vpack.c.b16 %v462, %v461
      %v482 = vpack.c.b16 %v464, %v463
      %v517 = vunpack.c.l.b16 %v377
      %v518 = vunpack.c.l.b16 %v378
      %v519 = vunpack.c.l.b16 %v379
      %v520 = vunpack.c.l.b16 %v380
      %v521 = vunpack.c.l.b16 %v381
      %v522 = vunpack.c.l.b16 %v382
      %v523 = vunpack.c.l.b16 %v383
      %v524 = vunpack.c.l.b16 %v384
      %v525 = vunpack.c.l.b16 %v385
      %v526 = vunpack.c.l.b16 %v386
      %v527 = vunpack.c.l.b16 %v387
      %v528 = vunpack.c.l.b16 %v388
      %v529 = vunpack.c.l.b16 %v389
      %v530 = vunpack.c.l.b16 %v390
      %v531 = vunpack.c.l.b16 %v391
      %v532 = vunpack.c.l.b16 %v392
      %v533 = vpack.c.b16 %v518, %v517
      %v534 = vpack.c.b16 %v520, %v519
      %v535 = vpack.c.b16 %v522, %v521
      %v536 = vpack.c.b16 %v524, %v523
      %v537 = vpack.c.b16 %v526, %v525
      %v538 = vpack.c.b16 %v528, %v527
      %v539 = vpack.c.b16 %v530, %v529
      %v540 = vpack.c.b16 %v532, %v531
      %549 = vmatprep.subr.bf16.mxu0 0
      %550 = vmatpush1.bf16.msra.mxu0 %v533
      %551 = vmatprep.subr.bf16.mxu0 0
      %552 = vmatpush1.bf16.msra.mxu0 %v534
      %553 = vmatprep.subr.bf16.mxu0 0
      %554 = vmatpush1.bf16.msra.mxu0 %v535
      %555 = vmatprep.subr.bf16.mxu0 0
      %556 = vmatpush1.bf16.msra.mxu0 %v536
      %557 = vmatprep.subr.bf16.mxu0 0
      %558 = vmatpush1.bf16.msra.mxu0 %v537
      %559 = vmatprep.subr.bf16.mxu0 0
      %560 = vmatpush1.bf16.msra.mxu0 %v538
      %561 = vmatprep.subr.bf16.mxu0 0
      %562 = vmatpush1.bf16.msra.mxu0 %v539
      %563 = vmatprep.subr.bf16.mxu0 0
      %564 = vmatpush1.bf16.msra.mxu0 %v540
      %565 = vmatprep.subr.bf16.mxu0 0
      %566 = vmatpush1.bf16.msra.mxu0 0
      %567 = vmatprep.subr.bf16.mxu0 0
      %568 = vmatpush1.bf16.msra.mxu0 0
      %569 = vmatprep.subr.bf16.mxu0 0
      %570 = vmatpush1.bf16.msra.mxu0 0
      %571 = vmatprep.subr.bf16.mxu0 0
      %572 = vmatpush1.bf16.msra.mxu0 0
      %573 = vmatprep.subr.bf16.mxu0 0
      %574 = vmatpush1.bf16.msra.mxu0 0
      %575 = vmatprep.subr.bf16.mxu0 0
      %576 = vmatpush1.bf16.msra.mxu0 0
      %577 = vmatprep.subr.bf16.mxu0 0
      %578 = vmatpush1.bf16.msra.mxu0 0
      %579 = vmatprep.subr.bf16.mxu0 0
      %580 = vmatpush1.bf16.msra.mxu0 0
      %581 = vmatprep.mubr.bf16.mxu0 0
      %582 = vmatmul.mubr.bf16.gmra.mrb[0].mxu0 %v465
      %v583 = vpop.f32.mrb[0].mxu0
      %v584 = vadd.f32 0.0, %v583
      %v585 = vpop.f32.mrb[0].mxu0
      %v586 = vpop.f32.mrb[0].mxu0
      %v587 = vadd.f32 0.0, %v586
      %v588 = vpop.f32.mrb[0].mxu0
      %589 = vmatprep.mubr.bf16.mxu0 0
      %590 = vmatmul.mubr.bf16.gmra.mrb[0].mxu0 %v466
      %v591 = vpop.f32.mrb[0].mxu0
      %v592 = vadd.f32 0.0, %v591
      %v593 = vpop.f32.mrb[0].mxu0
      %v594 = vpop.f32.mrb[0].mxu0
      %v595 = vadd.f32 0.0, %v594
      %v596 = vpop.f32.mrb[0].mxu0
      %597 = vmatprep.mubr.bf16.mxu0 0
      %598 = vmatmul.mubr.bf16.gmra.mrb[0].mxu0 %v467
      %v599 = vpop.f32.mrb[0].mxu0
      %v600 = vadd.f32 0.0, %v599
      %v601 = vpop.f32.mrb[0].mxu0
      %v602 = vpop.f32.mrb[0].mxu0
      %v603 = vadd.f32 0.0, %v602
      %v604 = vpop.f32.mrb[0].mxu0
      %605 = vmatprep.mubr.bf16.mxu0 0
      %606 = vmatmul.mubr.bf16.gmra.mrb[0].mxu0 %v468
      %v607 = vpop.f32.mrb[0].mxu0
      %v608 = vadd.f32 0.0, %v607
      %v609 = vpop.f32.mrb[0].mxu0
      %v610 = vpop.f32.mrb[0].mxu0
      %v611 = vadd.f32 0.0, %v610
      %v612 = vpop.f32.mrb[0].mxu0
      %613 = vmatprep.mubr.bf16.mxu0 0
      %614 = vmatmul.mubr.bf16.gmra.mrb[0].mxu0 %v469
      %v615 = vpop.f32.mrb[0].mxu0
      %v616 = vadd.f32 0.0, %v615
      %v617 = vpop.f32.mrb[0].mxu0
      %v618 = vpop.f32.mrb[0].mxu0
      %v619 = vadd.f32 0.0, %v618
      %v620 = vpop.f32.mrb[0].mxu0
      %621 = vmatprep.mubr.bf16.mxu0 0
      %622 = vmatmul.mubr.bf16.gmra.mrb[0].mxu0 %v470
      %v623 = vpop.f32.mrb[0].mxu0
      %v624 = vadd.f32 0.0, %v623
      %v625 = vpop.f32.mrb[0].mxu0
      %v626 = vpop.f32.mrb[0].mxu0
      %v627 = vadd.f32 0.0, %v626
      %v628 = vpop.f32.mrb[0].mxu0
      %629 = vmatprep.mubr.bf16.mxu0 0
      %630 = vmatmul.mubr.bf16.gmra.mrb[0].mxu0 %v471
      %v631 = vpop.f32.mrb[0].mxu0
      %v632 = vadd.f32 0.0, %v631
      %v633 = vpop.f32.mrb[0].mxu0
      %v634 = vpop.f32.mrb[0].mxu0
      %v635 = vadd.f32 0.0, %v634
      %v636 = vpop.f32.mrb[0].mxu0
      %637 = vmatprep.mubr.bf16.mxu0 0
      %638 = vmatmul.mubr.bf16.gmra.mrb[0].mxu0 %v472
      %v639 = vpop.f32.mrb[0].mxu0
      %v640 = vadd.f32 0.0, %v639
      %v641 = vpop.f32.mrb[0].mxu0
      %v642 = vpop.f32.mrb[0].mxu0
      %v643 = vadd.f32 0.0, %v642
      %v644 = vpop.f32.mrb[0].mxu0
      %645 = vmatprep.mubr.bf16.mxu0 0
      %646 = vmatmul.mubr.bf16.gmra.mrb[0].mxu0 %v473
      %v647 = vpop.f32.mrb[0].mxu0
      %v648 = vadd.f32 0.0, %v647
      %v649 = vpop.f32.mrb[0].mxu0
      %v650 = vpop.f32.mrb[0].mxu0
      %v651 = vadd.f32 0.0, %v650
      %v652 = vpop.f32.mrb[0].mxu0
      %653 = vmatprep.mubr.bf16.mxu0 0
      %654 = vmatmul.mubr.bf16.gmra.mrb[0].mxu0 %v474
      %v655 = vpop.f32.mrb[0].mxu0
      %v656 = vadd.f32 0.0, %v655
      %v657 = vpop.f32.mrb[0].mxu0
      %v658 = vpop.f32.mrb[0].mxu0
      %v659 = vadd.f32 0.0, %v658
      %v660 = vpop.f32.mrb[0].mxu0
      %661 = vmatprep.mubr.bf16.mxu0 0
      %662 = vmatmul.mubr.bf16.gmra.mrb[0].mxu0 %v475
      %v663 = vpop.f32.mrb[0].mxu0
      %v664 = vadd.f32 0.0, %v663
      %v665 = vpop.f32.mrb[0].mxu0
      %v666 = vpop.f32.mrb[0].mxu0
      %v667 = vadd.f32 0.0, %v666
      %v668 = vpop.f32.mrb[0].mxu0
      %669 = vmatprep.mubr.bf16.mxu0 0
      %670 = vmatmul.mubr.bf16.gmra.mrb[0].mxu0 %v476
      %v671 = vpop.f32.mrb[0].mxu0
      %v672 = vadd.f32 0.0, %v671
      %v673 = vpop.f32.mrb[0].mxu0
      %v674 = vpop.f32.mrb[0].mxu0
      %v675 = vadd.f32 0.0, %v674
      %v676 = vpop.f32.mrb[0].mxu0
      %677 = vmatprep.mubr.bf16.mxu0 0
      %678 = vmatmul.mubr.bf16.gmra.mrb[0].mxu0 %v477
      %v679 = vpop.f32.mrb[0].mxu0
      %v680 = vadd.f32 0.0, %v679
      %v681 = vpop.f32.mrb[0].mxu0
      %v682 = vpop.f32.mrb[0].mxu0
      %v683 = vadd.f32 0.0, %v682
      %v684 = vpop.f32.mrb[0].mxu0
      %685 = vmatprep.mubr.bf16.mxu0 0
      %686 = vmatmul.mubr.bf16.gmra.mrb[0].mxu0 %v478
      %v687 = vpop.f32.mrb[0].mxu0
      %v688 = vadd.f32 0.0, %v687
      %v689 = vpop.f32.mrb[0].mxu0
      %v690 = vpop.f32.mrb[0].mxu0
      %v691 = vadd.f32 0.0, %v690
      %v692 = vpop.f32.mrb[0].mxu0
      %693 = vmatprep.mubr.bf16.mxu0 0
      %694 = vmatmul.mubr.bf16.gmra.mrb[0].mxu0 %v479
      %v695 = vpop.f32.mrb[0].mxu0
      %v696 = vadd.f32 0.0, %v695
      %v697 = vpop.f32.mrb[0].mxu0
      %v698 = vpop.f32.mrb[0].mxu0
      %v699 = vadd.f32 0.0, %v698
      %v700 = vpop.f32.mrb[0].mxu0
      %701 = vmatprep.mubr.bf16.mxu0 0
      %702 = vmatmul.mubr.bf16.gmra.mrb[0].mxu0 %v480
      %v703 = vpop.f32.mrb[0].mxu0
      %v704 = vadd.f32 0.0, %v703
      %v705 = vpop.f32.mrb[0].mxu0
      %v706 = vpop.f32.mrb[0].mxu0
      %v707 = vadd.f32 0.0, %v706
      %v708 = vpop.f32.mrb[0].mxu0
      %709 = vmatprep.mubr.bf16.mxu0 0
      %710 = vmatmul.mubr.bf16.gmra.mrb[0].mxu0 %v481
      %v711 = vpop.f32.mrb[0].mxu0
      %v712 = vadd.f32 0.0, %v711
      %v713 = vpop.f32.mrb[0].mxu0
      %v714 = vpop.f32.mrb[0].mxu0
      %v715 = vadd.f32 0.0, %v714
      %v716 = vpop.f32.mrb[0].mxu0
      %717 = vmatprep.mubr.bf16.mxu0 0
      %718 = vmatmul.mubr.bf16.gmra.mrb[0].mxu0 %v482
      %v719 = vpop.f32.mrb[0].mxu0
      %v720 = vadd.f32 0.0, %v719
      %v721 = vpop.f32.mrb[0].mxu0
      %v722 = vpop.f32.mrb[0].mxu0
      %v723 = vadd.f32 0.0, %v722
      %v724 = vpop.f32.mrb[0].mxu0
      %725 = vdwg.mxu0
      %726 = vst [vmem:[#allocation2] sm:$0xff] %v584
      %727 = vst [vmem:[#allocation2 + $0x8] sm:$0xff] %v587
      %728 = vst [vmem:[#allocation2 + $0x10] sm:$0xff] %v592
      %729 = vst [vmem:[#allocation2 + $0x18] sm:$0xff] %v595
      %730 = vst [vmem:[#allocation2 + $0x20] sm:$0xff] %v600
      %731 = vst [vmem:[#allocation2 + $0x28] sm:$0xff] %v603
      %732 = vst [vmem:[#allocation2 + $0x30] sm:$0xff] %v608
      %733 = vst [vmem:[#allocation2 + $0x38] sm:$0xff] %v611
      %734 = vst [vmem:[#allocation2 + $0x40] sm:$0xff] %v616
      %735 = vst [vmem:[#allocation2 + $0x48] sm:$0xff] %v619
      %736 = vst [vmem:[#allocation2 + $0x50] sm:$0xff] %v624
      %737 = vst [vmem:[#allocation2 + $0x58] sm:$0xff] %v627
      %738 = vst [vmem:[#allocation2 + $0x60] sm:$0xff] %v632
      %739 = vst [vmem:[#allocation2 + $0x68] sm:$0xff] %v635
      %740 = vst [vmem:[#allocation2 + $0x70] sm:$0xff] %v640
      %741 = vst [vmem:[#allocation2 + $0x78] sm:$0xff] %v643
      %742 = vst [vmem:[#allocation2 + $0x80] sm:$0xff] %v648
      %743 = vst [vmem:[#allocation2 + $0x88] sm:$0xff] %v651
      %744 = vst [vmem:[#allocation2 + $0x90] sm:$0xff] %v656
      %745 = vst [vmem:[#allocation2 + $0x98] sm:$0xff] %v659
      %746 = vst [vmem:[#allocation2 + $0xa0] sm:$0xff] %v664
      %747 = vst [vmem:[#allocation2 + $0xa8] sm:$0xff] %v667
      %748 = vst [vmem:[#allocation2 + $0xb0] sm:$0xff] %v672
      %749 = vst [vmem:[#allocation2 + $0xb8] sm:$0xff] %v675
      %750 = vst [vmem:[#allocation2 + $0xc0] sm:$0xff] %v680
      %751 = vst [vmem:[#allocation2 + $0xc8] sm:$0xff] %v683
      %752 = vst [vmem:[#allocation2 + $0xd0] sm:$0xff] %v688
      %753 = vst [vmem:[#allocation2 + $0xd8] sm:$0xff] %v691
      %754 = vst [vmem:[#allocation2 + $0xe0] sm:$0xff] %v696
      %755 = vst [vmem:[#allocation2 + $0xe8] sm:$0xff] %v699
      %756 = vst [vmem:[#allocation2 + $0xf0] sm:$0xff] %v704
      %757 = vst [vmem:[#allocation2 + $0xf8] sm:$0xff] %v707
      %758 = vst [vmem:[#allocation2 + $0x100] sm:$0xff] %v712
      %759 = vst [vmem:[#allocation2 + $0x108] sm:$0xff] %v715
      %760 = vst [vmem:[#allocation2 + $0x110] sm:$0xff] %v720
      %761 = vst [vmem:[#allocation2 + $0x118] sm:$0xff] %v723
      %v762 = vld [vmem:[%s304] sm:$0xf]
      %v763 = vld [vmem:[%s304 + $0x4] sm:$0xf]
      %v764 = vld [vmem:[%s304 + $0x8] sm:$0xf]
      %v765 = vld [vmem:[%s304 + $0xc] sm:$0xf]
      %v766 = vld [vmem:[%s304 + $0x10] sm:$0xf]
      %v767 = vld [vmem:[%s304 + $0x14] sm:$0xf]
      %v768 = vld [vmem:[%s304 + $0x18] sm:$0xf]
      %v769 = vld [vmem:[%s304 + $0x1c] sm:$0xf]
      %v770 = vld [vmem:[%s304 + $0x20] sm:$0xf]
      %v771 = vld [vmem:[%s304 + $0x24] sm:$0xf]
      %v772 = vld [vmem:[%s304 + $0x28] sm:$0xf]
      %v773 = vld [vmem:[%s304 + $0x2c] sm:$0xf]
      %v774 = vld [vmem:[%s304 + $0x30] sm:$0xf]
      %v775 = vld [vmem:[%s304 + $0x34] sm:$0xf]
      %v776 = vld [vmem:[%s304 + $0x38] sm:$0xf]
      %v777 = vld [vmem:[%s304 + $0x3c] sm:$0xf]
      %v778 = vld [vmem:[%s304 + $0x40] sm:$0xf]
      %v779 = vld [vmem:[%s304 + $0x44] sm:$0xf]
      %v780 = vld [vmem:[%s304 + $0x48] sm:$0xf]
      %v781 = vld [vmem:[%s304 + $0x4c] sm:$0xf]
      %v782 = vld [vmem:[%s304 + $0x50] sm:$0xf]
      %v783 = vld [vmem:[%s304 + $0x54] sm:$0xf]
      %v784 = vld [vmem:[%s304 + $0x58] sm:$0xf]
      %v785 = vld [vmem:[%s304 + $0x5c] sm:$0xf]
      %v786 = vld [vmem:[%s304 + $0x60] sm:$0xf]
      %v787 = vld [vmem:[%s304 + $0x64] sm:$0xf]
      %v788 = vld [vmem:[%s304 + $0x68] sm:$0xf]
      %v789 = vld [vmem:[%s304 + $0x6c] sm:$0xf]
      %v790 = vld [vmem:[%s304 + $0x70] sm:$0xf]
      %v791 = vld [vmem:[%s304 + $0x74] sm:$0xf]
      %v792 = vld [vmem:[%s304 + $0x78] sm:$0xf]
      %v793 = vld [vmem:[%s304 + $0x7c] sm:$0xf]
      %v794 = vld [vmem:[%s304 + $0x80] sm:$0xf]
      %v795 = vld [vmem:[%s304 + $0x84] sm:$0xf]
      %v796 = vld [vmem:[%s304 + $0x88] sm:$0xf]
      %v797 = vld [vmem:[%s304 + $0x8c] sm:$0xf]
      %v798 = vld [vmem:[%s304 + $0x90] sm:$0x1]
      %s799 = scalar_lea.vmem %s308, 64
      %v800 = vld [vmem:[%s799] sm:$0xf]
      %v801 = vld [vmem:[%s799 + $0x4] sm:$0xf]
      %v802 = vld [vmem:[%s799 + $0x8] sm:$0xf]
      %v803 = vld [vmem:[%s799 + $0xc] sm:$0xf]
      %v804 = vld [vmem:[%s799 + $0x10] sm:$0xf]
      %v805 = vld [vmem:[%s799 + $0x14] sm:$0xf]
      %v806 = vld [vmem:[%s799 + $0x18] sm:$0xf]
      %v807 = vld [vmem:[%s799 + $0x1c] sm:$0xf]
      %v808 = vld [vmem:[%s799 + $0x20] sm:$0xf]
      %v809 = vld [vmem:[%s799 + $0x24] sm:$0xf]
      %v810 = vld [vmem:[%s799 + $0x28] sm:$0xf]
      %v811 = vld [vmem:[%s799 + $0x2c] sm:$0xf]
      %v812 = vld [vmem:[%s799 + $0x30] sm:$0xf]
      %v813 = vld [vmem:[%s799 + $0x34] sm:$0xf]
      %v814 = vld [vmem:[%s799 + $0x38] sm:$0xf]
      %v815 = vld [vmem:[%s799 + $0x3c] sm:$0xf]
      %v853 = vunpack.c.l.b16 %v762
      %v854 = vunpack.c.l.b16 %v763
      %v855 = vunpack.c.l.b16 %v764
      %v856 = vunpack.c.l.b16 %v765
      %v857 = vunpack.c.l.b16 %v766
      %v858 = vunpack.c.l.b16 %v767
      %v859 = vunpack.c.l.b16 %v768
      %v860 = vunpack.c.l.b16 %v769
      %v861 = vunpack.c.l.b16 %v770
      %v862 = vunpack.c.l.b16 %v771
      %v863 = vunpack.c.l.b16 %v772
      %v864 = vunpack.c.l.b16 %v773
      %v865 = vunpack.c.l.b16 %v774
      %v866 = vunpack.c.l.b16 %v775
      %v867 = vunpack.c.l.b16 %v776
      %v868 = vunpack.c.l.b16 %v777
      %v869 = vunpack.c.l.b16 %v778
      %v870 = vunpack.c.l.b16 %v779
      %v871 = vunpack.c.l.b16 %v780
      %v872 = vunpack.c.l.b16 %v781
      %v873 = vunpack.c.l.b16 %v782
      %v874 = vunpack.c.l.b16 %v783
      %v875 = vunpack.c.l.b16 %v784
      %v876 = vunpack.c.l.b16 %v785
      %v877 = vunpack.c.l.b16 %v786
      %v878 = vunpack.c.l.b16 %v787
      %v879 = vunpack.c.l.b16 %v788
      %v880 = vunpack.c.l.b16 %v789
      %v881 = vunpack.c.l.b16 %v790
      %v882 = vunpack.c.l.b16 %v791
      %v883 = vunpack.c.l.b16 %v792
      %v884 = vunpack.c.l.b16 %v793
      %v885 = vunpack.c.l.b16 %v794
      %v886 = vunpack.c.l.b16 %v795
      %v887 = vunpack.c.l.b16 %v796
      %v888 = vunpack.c.l.b16 %v797
      %v889 = vunpack.c.l.b16 %v798
      %v890 = vpack.c.b16 %v854, %v853
      %v891 = vpack.c.b16 %v856, %v855
      %v892 = vpack.c.b16 %v858, %v857
      %v893 = vpack.c.b16 %v860, %v859
      %v894 = vpack.c.b16 %v862, %v861
      %v895 = vpack.c.b16 %v864, %v863
      %v896 = vpack.c.b16 %v866, %v865
      %v897 = vpack.c.b16 %v868, %v867
      %v898 = vpack.c.b16 %v870, %v869
      %v899 = vpack.c.b16 %v872, %v871
      %v900 = vpack.c.b16 %v874, %v873
      %v901 = vpack.c.b16 %v876, %v875
      %v902 = vpack.c.b16 %v878, %v877
      %v903 = vpack.c.b16 %v880, %v879
      %v904 = vpack.c.b16 %v882, %v881
      %v905 = vpack.c.b16 %v884, %v883
      %v906 = vpack.c.b16 %v886, %v885
      %v907 = vpack.c.b16 %v888, %v887
      %v908 = vpack.c.b16 %v889, %v889
      %vm909 = vsmask.f32 7424
      %v911 = vshrl.u32 %v890, 16
      %v913 = vshll.u32 %v890, 16
      %v915 = vrot.slane %v913, 1
      %v916 = vor.u32 %v911, %v915
      %v918 = vshll.u32 %v891, 16
      %v920 = vrot.slane %v918, 1
      %v921 = vsel %vm909, %v916, %v920
      %v922 = vshrl.u32 %v891, 16
      %v924 = vor.u32 %v922, %v920
      %v926 = vshll.u32 %v892, 16
      %v928 = vrot.slane %v926, 1
      %v929 = vsel %vm909, %v924, %v928
      %v930 = vshrl.u32 %v892, 16
      %v932 = vor.u32 %v930, %v928
      %v934 = vshll.u32 %v893, 16
      %v936 = vrot.slane %v934, 1
      %v937 = vsel %vm909, %v932, %v936
      %v938 = vshrl.u32 %v893, 16
      %v940 = vor.u32 %v938, %v936
      %v942 = vshll.u32 %v894, 16
      %v944 = vrot.slane %v942, 1
      %v945 = vsel %vm909, %v940, %v944
      %v946 = vshrl.u32 %v894, 16
      %v948 = vor.u32 %v946, %v944
      %v950 = vshll.u32 %v895, 16
      %v952 = vrot.slane %v950, 1
      %v953 = vsel %vm909, %v948, %v952
      %v954 = vshrl.u32 %v895, 16
      %v956 = vor.u32 %v954, %v952
      %v958 = vshll.u32 %v896, 16
      %v960 = vrot.slane %v958, 1
      %v961 = vsel %vm909, %v956, %v960
      %v962 = vshrl.u32 %v896, 16
      %v964 = vor.u32 %v962, %v960
      %v966 = vshll.u32 %v897, 16
      %v968 = vrot.slane %v966, 1
      %v969 = vsel %vm909, %v964, %v968
      %v970 = vshrl.u32 %v897, 16
      %v972 = vor.u32 %v970, %v968
      %v974 = vshll.u32 %v898, 16
      %v976 = vrot.slane %v974, 1
      %v977 = vsel %vm909, %v972, %v976
      %v978 = vshrl.u32 %v898, 16
      %v980 = vor.u32 %v978, %v976
      %v982 = vshll.u32 %v899, 16
      %v984 = vrot.slane %v982, 1
      %v985 = vsel %vm909, %v980, %v984
      %v986 = vshrl.u32 %v899, 16
      %v988 = vor.u32 %v986, %v984
      %v990 = vshll.u32 %v900, 16
      %v992 = vrot.slane %v990, 1
      %v993 = vsel %vm909, %v988, %v992
      %v994 = vshrl.u32 %v900, 16
      %v996 = vor.u32 %v994, %v992
      %v998 = vshll.u32 %v901, 16
      %v1000 = vrot.slane %v998, 1
      %v1001 = vsel %vm909, %v996, %v1000
      %v1002 = vshrl.u32 %v901, 16
      %v1004 = vor.u32 %v1002, %v1000
      %v1006 = vshll.u32 %v902, 16
      %v1008 = vrot.slane %v1006, 1
      %v1009 = vsel %vm909, %v1004, %v1008
      %v1010 = vshrl.u32 %v902, 16
      %v1012 = vor.u32 %v1010, %v1008
      %v1014 = vshll.u32 %v903, 16
      %v1016 = vrot.slane %v1014, 1
      %v1017 = vsel %vm909, %v1012, %v1016
      %v1018 = vshrl.u32 %v903, 16
      %v1020 = vor.u32 %v1018, %v1016
      %v1022 = vshll.u32 %v904, 16
      %v1024 = vrot.slane %v1022, 1
      %v1025 = vsel %vm909, %v1020, %v1024
      %v1026 = vshrl.u32 %v904, 16
      %v1028 = vor.u32 %v1026, %v1024
      %v1030 = vshll.u32 %v905, 16
      %v1032 = vrot.slane %v1030, 1
      %v1033 = vsel %vm909, %v1028, %v1032
      %v1034 = vshrl.u32 %v905, 16
      %v1036 = vor.u32 %v1034, %v1032
      %v1038 = vshll.u32 %v906, 16
      %v1040 = vrot.slane %v1038, 1
      %v1041 = vsel %vm909, %v1036, %v1040
      %v1042 = vshrl.u32 %v906, 16
      %v1044 = vor.u32 %v1042, %v1040
      %v1046 = vshll.u32 %v907, 16
      %v1048 = vrot.slane %v1046, 1
      %v1049 = vsel %vm909, %v1044, %v1048
      %v1050 = vshrl.u32 %v907, 16
      %v1052 = vor.u32 %v1050, %v1048
      %v1054 = vshll.u32 %v908, 16
      %v1056 = vrot.slane %v1054, 1
      %v1057 = vsel %vm909, %v1052, %v1056
      %v1092 = vunpack.c.l.b16 %v800
      %v1093 = vunpack.c.l.b16 %v801
      %v1094 = vunpack.c.l.b16 %v802
      %v1095 = vunpack.c.l.b16 %v803
      %v1096 = vunpack.c.l.b16 %v804
      %v1097 = vunpack.c.l.b16 %v805
      %v1098 = vunpack.c.l.b16 %v806
      %v1099 = vunpack.c.l.b16 %v807
      %v1100 = vunpack.c.l.b16 %v808
      %v1101 = vunpack.c.l.b16 %v809
      %v1102 = vunpack.c.l.b16 %v810
      %v1103 = vunpack.c.l.b16 %v811
      %v1104 = vunpack.c.l.b16 %v812
      %v1105 = vunpack.c.l.b16 %v813
      %v1106 = vunpack.c.l.b16 %v814
      %v1107 = vunpack.c.l.b16 %v815
      %v1108 = vpack.c.b16 %v1093, %v1092
      %v1109 = vpack.c.b16 %v1095, %v1094
      %v1110 = vpack.c.b16 %v1097, %v1096
      %v1111 = vpack.c.b16 %v1099, %v1098
      %v1112 = vpack.c.b16 %v1101, %v1100
      %v1113 = vpack.c.b16 %v1103, %v1102
      %v1114 = vpack.c.b16 %v1105, %v1104
      %v1115 = vpack.c.b16 %v1107, %v1106
      %1124 = vmatprep.subr.bf16.mxu0 0
      %1125 = vmatpush1.bf16.msra.mxu0 %v1108
      %1126 = vmatprep.subr.bf16.mxu0 0
      %1127 = vmatpush1.bf16.msra.mxu0 %v1109
      %1128 = vmatprep.subr.bf16.mxu0 0
      %1129 = vmatpush1.bf16.msra.mxu0 %v1110
      %1130 = vmatprep.subr.bf16.mxu0 0
      %1131 = vmatpush1.bf16.msra.mxu0 %v1111
      %1132 = vmatprep.subr.bf16.mxu0 0
      %1133 = vmatpush1.bf16.msra.mxu0 %v1112
      %1134 = vmatprep.subr.bf16.mxu0 0
      %1135 = vmatpush1.bf16.msra.mxu0 %v1113
      %1136 = vmatprep.subr.bf16.mxu0 0
      %1137 = vmatpush1.bf16.msra.mxu0 %v1114
      %1138 = vmatprep.subr.bf16.mxu0 0
      %1139 = vmatpush1.bf16.msra.mxu0 %v1115
      %1140 = vmatprep.subr.bf16.mxu0 0
      %1141 = vmatpush1.bf16.msra.mxu0 0
      %1142 = vmatprep.subr.bf16.mxu0 0
      %1143 = vmatpush1.bf16.msra.mxu0 0
      %1144 = vmatprep.subr.bf16.mxu0 0
      %1145 = vmatpush1.bf16.msra.mxu0 0
      %1146 = vmatprep.subr.bf16.mxu0 0
      %1147 = vmatpush1.bf16.msra.mxu0 0
      %1148 = vmatprep.subr.bf16.mxu0 0
      %1149 = vmatpush1.bf16.msra.mxu0 0
      %1150 = vmatprep.subr.bf16.mxu0 0
      %1151 = vmatpush1.bf16.msra.mxu0 0
      %1152 = vmatprep.subr.bf16.mxu0 0
      %1153 = vmatpush1.bf16.msra.mxu0 0
      %1154 = vmatprep.subr.bf16.mxu0 0
      %1155 = vmatpush1.bf16.msra.mxu0 0
      %1156 = vmatprep.mubr.bf16.mxu0 0
      %1157 = vmatmul.mubr.bf16.gmra.mrb[0].mxu0 %v921
      %v1158 = vpop.f32.mrb[0].mxu0
      %v1159 = vadd.f32 0.0, %v1158
      %v1160 = vpop.f32.mrb[0].mxu0
      %v1161 = vpop.f32.mrb[0].mxu0
      %v1162 = vadd.f32 0.0, %v1161
      %v1163 = vpop.f32.mrb[0].mxu0
      %1164 = vmatprep.mubr.bf16.mxu0 0
      %1165 = vmatmul.mubr.bf16.gmra.mrb[0].mxu0 %v929
      %v1166 = vpop.f32.mrb[0].mxu0
      %v1167 = vadd.f32 0.0, %v1166
      %v1168 = vpop.f32.mrb[0].mxu0
      %v1169 = vpop.f32.mrb[0].mxu0
      %v1170 = vadd.f32 0.0, %v1169
      %v1171 = vpop.f32.mrb[0].mxu0
      %1172 = vmatprep.mubr.bf16.mxu0 0
      %1173 = vmatmul.mubr.bf16.gmra.mrb[0].mxu0 %v937
      %v1174 = vpop.f32.mrb[0].mxu0
      %v1175 = vadd.f32 0.0, %v1174
      %v1176 = vpop.f32.mrb[0].mxu0
      %v1177 = vpop.f32.mrb[0].mxu0
      %v1178 = vadd.f32 0.0, %v1177
      %v1179 = vpop.f32.mrb[0].mxu0
      %1180 = vmatprep.mubr.bf16.mxu0 0
      %1181 = vmatmul.mubr.bf16.gmra.mrb[0].mxu0 %v945
      %v1182 = vpop.f32.mrb[0].mxu0
      %v1183 = vadd.f32 0.0, %v1182
      %v1184 = vpop.f32.mrb[0].mxu0
      %v1185 = vpop.f32.mrb[0].mxu0
      %v1186 = vadd.f32 0.0, %v1185
      %v1187 = vpop.f32.mrb[0].mxu0
      %1188 = vmatprep.mubr.bf16.mxu0 0
      %1189 = vmatmul.mubr.bf16.gmra.mrb[0].mxu0 %v953
      %v1190 = vpop.f32.mrb[0].mxu0
      %v1191 = vadd.f32 0.0, %v1190
      %v1192 = vpop.f32.mrb[0].mxu0
      %v1193 = vpop.f32.mrb[0].mxu0
      %v1194 = vadd.f32 0.0, %v1193
      %v1195 = vpop.f32.mrb[0].mxu0
      %1196 = vmatprep.mubr.bf16.mxu0 0
      %1197 = vmatmul.mubr.bf16.gmra.mrb[0].mxu0 %v961
      %v1198 = vpop.f32.mrb[0].mxu0
      %v1199 = vadd.f32 0.0, %v1198
      %v1200 = vpop.f32.mrb[0].mxu0
      %v1201 = vpop.f32.mrb[0].mxu0
      %v1202 = vadd.f32 0.0, %v1201
      %v1203 = vpop.f32.mrb[0].mxu0
      %1204 = vmatprep.mubr.bf16.mxu0 0
      %1205 = vmatmul.mubr.bf16.gmra.mrb[0].mxu0 %v969
      %v1206 = vpop.f32.mrb[0].mxu0
      %v1207 = vadd.f32 0.0, %v1206
      %v1208 = vpop.f32.mrb[0].mxu0
      %v1209 = vpop.f32.mrb[0].mxu0
      %v1210 = vadd.f32 0.0, %v1209
      %v1211 = vpop.f32.mrb[0].mxu0
      %1212 = vmatprep.mubr.bf16.mxu0 0
      %1213 = vmatmul.mubr.bf16.gmra.mrb[0].mxu0 %v977
      %v1214 = vpop.f32.mrb[0].mxu0
      %v1215 = vadd.f32 0.0, %v1214
      %v1216 = vpop.f32.mrb[0].mxu0
      %v1217 = vpop.f32.mrb[0].mxu0
      %v1218 = vadd.f32 0.0, %v1217
      %v1219 = vpop.f32.mrb[0].mxu0
      %1220 = vmatprep.mubr.bf16.mxu0 0
      %1221 = vmatmul.mubr.bf16.gmra.mrb[0].mxu0 %v985
      %v1222 = vpop.f32.mrb[0].mxu0
      %v1223 = vadd.f32 0.0, %v1222
      %v1224 = vpop.f32.mrb[0].mxu0
      %v1225 = vpop.f32.mrb[0].mxu0
      %v1226 = vadd.f32 0.0, %v1225
      %v1227 = vpop.f32.mrb[0].mxu0
      %1228 = vmatprep.mubr.bf16.mxu0 0
      %1229 = vmatmul.mubr.bf16.gmra.mrb[0].mxu0 %v993
      %v1230 = vpop.f32.mrb[0].mxu0
      %v1231 = vadd.f32 0.0, %v1230
      %v1232 = vpop.f32.mrb[0].mxu0
      %v1233 = vpop.f32.mrb[0].mxu0
      %v1234 = vadd.f32 0.0, %v1233
      %v1235 = vpop.f32.mrb[0].mxu0
      %1236 = vmatprep.mubr.bf16.mxu0 0
      %1237 = vmatmul.mubr.bf16.gmra.mrb[0].mxu0 %v1001
      %v1238 = vpop.f32.mrb[0].mxu0
      %v1239 = vadd.f32 0.0, %v1238
      %v1240 = vpop.f32.mrb[0].mxu0
      %v1241 = vpop.f32.mrb[0].mxu0
      %v1242 = vadd.f32 0.0, %v1241
      %v1243 = vpop.f32.mrb[0].mxu0
      %1244 = vmatprep.mubr.bf16.mxu0 0
      %1245 = vmatmul.mubr.bf16.gmra.mrb[0].mxu0 %v1009
      %v1246 = vpop.f32.mrb[0].mxu0
      %v1247 = vadd.f32 0.0, %v1246
      %v1248 = vpop.f32.mrb[0].mxu0
      %v1249 = vpop.f32.mrb[0].mxu0
      %v1250 = vadd.f32 0.0, %v1249
      %v1251 = vpop.f32.mrb[0].mxu0
      %1252 = vmatprep.mubr.bf16.mxu0 0
      %1253 = vmatmul.mubr.bf16.gmra.mrb[0].mxu0 %v1017
      %v1254 = vpop.f32.mrb[0].mxu0
      %v1255 = vadd.f32 0.0, %v1254
      %v1256 = vpop.f32.mrb[0].mxu0
      %v1257 = vpop.f32.mrb[0].mxu0
      %v1258 = vadd.f32 0.0, %v1257
      %v1259 = vpop.f32.mrb[0].mxu0
      %1260 = vmatprep.mubr.bf16.mxu0 0
      %1261 = vmatmul.mubr.bf16.gmra.mrb[0].mxu0 %v1025
      %v1262 = vpop.f32.mrb[0].mxu0
      %v1263 = vadd.f32 0.0, %v1262
      %v1264 = vpop.f32.mrb[0].mxu0
      %v1265 = vpop.f32.mrb[0].mxu0
      %v1266 = vadd.f32 0.0, %v1265
      %v1267 = vpop.f32.mrb[0].mxu0
      %1268 = vmatprep.mubr.bf16.mxu0 0
      %1269 = vmatmul.mubr.bf16.gmra.mrb[0].mxu0 %v1033
      %v1270 = vpop.f32.mrb[0].mxu0
      %v1271 = vadd.f32 0.0, %v1270
      %v1272 = vpop.f32.mrb[0].mxu0
      %v1273 = vpop.f32.mrb[0].mxu0
      %v1274 = vadd.f32 0.0, %v1273
      %v1275 = vpop.f32.mrb[0].mxu0
      %1276 = vmatprep.mubr.bf16.mxu0 0
      %1277 = vmatmul.mubr.bf16.gmra.mrb[0].mxu0 %v1041
      %v1278 = vpop.f32.mrb[0].mxu0
      %v1279 = vadd.f32 0.0, %v1278
      %v1280 = vpop.f32.mrb[0].mxu0
      %v1281 = vpop.f32.mrb[0].mxu0
      %v1282 = vadd.f32 0.0, %v1281
      %v1283 = vpop.f32.mrb[0].mxu0
      %1284 = vmatprep.mubr.bf16.mxu0 0
      %1285 = vmatmul.mubr.bf16.gmra.mrb[0].mxu0 %v1049
      %v1286 = vpop.f32.mrb[0].mxu0
      %v1287 = vadd.f32 0.0, %v1286
      %v1288 = vpop.f32.mrb[0].mxu0
      %v1289 = vpop.f32.mrb[0].mxu0
      %v1290 = vadd.f32 0.0, %v1289
      %v1291 = vpop.f32.mrb[0].mxu0
      %1292 = vmatprep.mubr.bf16.mxu0 0
      %1293 = vmatmul.mubr.bf16.gmra.mrb[0].mxu0 %v1057
      %v1294 = vpop.f32.mrb[0].mxu0
      %v1295 = vadd.f32 0.0, %v1294
      %v1296 = vpop.f32.mrb[0].mxu0
      %v1297 = vpop.f32.mrb[0].mxu0
      %v1298 = vadd.f32 0.0, %v1297
      %v1299 = vpop.f32.mrb[0].mxu0
      %1300 = vdwg.mxu0
      %v1301 = vld [vmem:[#allocation2] sm:$0xff]
      %v1302 = vld [vmem:[#allocation2 + $0x8] sm:$0xff]
      %v1303 = vld [vmem:[#allocation2 + $0x10] sm:$0xff]
      %v1304 = vld [vmem:[#allocation2 + $0x18] sm:$0xff]
      %v1305 = vld [vmem:[#allocation2 + $0x20] sm:$0xff]
      %v1306 = vld [vmem:[#allocation2 + $0x28] sm:$0xff]
      %v1307 = vld [vmem:[#allocation2 + $0x30] sm:$0xff]
      %v1308 = vld [vmem:[#allocation2 + $0x38] sm:$0xff]
      %v1309 = vld [vmem:[#allocation2 + $0x40] sm:$0xff]
      %v1310 = vld [vmem:[#allocation2 + $0x48] sm:$0xff]
      %v1311 = vld [vmem:[#allocation2 + $0x50] sm:$0xff]
      %v1312 = vld [vmem:[#allocation2 + $0x58] sm:$0xff]
      %v1313 = vld [vmem:[#allocation2 + $0x60] sm:$0xff]
      %v1314 = vld [vmem:[#allocation2 + $0x68] sm:$0xff]
      %v1315 = vld [vmem:[#allocation2 + $0x70] sm:$0xff]
      %v1316 = vld [vmem:[#allocation2 + $0x78] sm:$0xff]
      %v1317 = vld [vmem:[#allocation2 + $0x80] sm:$0xff]
      %v1318 = vld [vmem:[#allocation2 + $0x88] sm:$0xff]
      %v1319 = vld [vmem:[#allocation2 + $0x90] sm:$0xff]
      %v1320 = vld [vmem:[#allocation2 + $0x98] sm:$0xff]
      %v1321 = vld [vmem:[#allocation2 + $0xa0] sm:$0xff]
      %v1322 = vld [vmem:[#allocation2 + $0xa8] sm:$0xff]
      %v1323 = vld [vmem:[#allocation2 + $0xb0] sm:$0xff]
      %v1324 = vld [vmem:[#allocation2 + $0xb8] sm:$0xff]
      %v1325 = vld [vmem:[#allocation2 + $0xc0] sm:$0xff]
      %v1326 = vld [vmem:[#allocation2 + $0xc8] sm:$0xff]
      %v1327 = vld [vmem:[#allocation2 + $0xd0] sm:$0xff]
      %v1328 = vld [vmem:[#allocation2 + $0xd8] sm:$0xff]
      %v1329 = vld [vmem:[#allocation2 + $0xe0] sm:$0xff]
      %v1330 = vld [vmem:[#allocation2 + $0xe8] sm:$0xff]
      %v1331 = vld [vmem:[#allocation2 + $0xf0] sm:$0xff]
      %v1332 = vld [vmem:[#allocation2 + $0xf8] sm:$0xff]
      %v1333 = vld [vmem:[#allocation2 + $0x100] sm:$0xff]
      %v1334 = vld [vmem:[#allocation2 + $0x108] sm:$0xff]
      %v1335 = vld [vmem:[#allocation2 + $0x110] sm:$0xff]
      %v1336 = vld [vmem:[#allocation2 + $0x118] sm:$0xff]
      %v1337 = vadd.f32 %v1301, %v1159
      %v1338 = vadd.f32 %v1302, %v1162
      %v1339 = vadd.f32 %v1303, %v1167
      %v1340 = vadd.f32 %v1304, %v1170
      %v1341 = vadd.f32 %v1305, %v1175
      %v1342 = vadd.f32 %v1306, %v1178
      %v1343 = vadd.f32 %v1307, %v1183
      %v1344 = vadd.f32 %v1308, %v1186
      %v1345 = vadd.f32 %v1309, %v1191
      %v1346 = vadd.f32 %v1310, %v1194
      %v1347 = vadd.f32 %v1311, %v1199
      %v1348 = vadd.f32 %v1312, %v1202
      %v1349 = vadd.f32 %v1313, %v1207
      %v1350 = vadd.f32 %v1314, %v1210
      %v1351 = vadd.f32 %v1315, %v1215
      %v1352 = vadd.f32 %v1316, %v1218
      %v1353 = vadd.f32 %v1317, %v1223
      %v1354 = vadd.f32 %v1318, %v1226
      %v1355 = vadd.f32 %v1319, %v1231
      %v1356 = vadd.f32 %v1320, %v1234
      %v1357 = vadd.f32 %v1321, %v1239
      %v1358 = vadd.f32 %v1322, %v1242
      %v1359 = vadd.f32 %v1323, %v1247
      %v1360 = vadd.f32 %v1324, %v1250
      %v1361 = vadd.f32 %v1325, %v1255
      %v1362 = vadd.f32 %v1326, %v1258
      %v1363 = vadd.f32 %v1327, %v1263
      %v1364 = vadd.f32 %v1328, %v1266
      %v1365 = vadd.f32 %v1329, %v1271
      %v1366 = vadd.f32 %v1330, %v1274
      %v1367 = vadd.f32 %v1331, %v1279
      %v1368 = vadd.f32 %v1332, %v1282
      %v1369 = vadd.f32 %v1333, %v1287
      %v1370 = vadd.f32 %v1334, %v1290
      %v1371 = vadd.f32 %v1335, %v1295
      %v1372 = vadd.f32 %v1336, %v1298
      %1373 = vst [vmem:[#allocation2] sm:$0xff] %v1337
      %1374 = vst [vmem:[#allocation2 + $0x8] sm:$0xff] %v1338
      %1375 = vst [vmem:[#allocation2 + $0x10] sm:$0xff] %v1339
      %1376 = vst [vmem:[#allocation2 + $0x18] sm:$0xff] %v1340
      %1377 = vst [vmem:[#allocation2 + $0x20] sm:$0xff] %v1341
      %1378 = vst [vmem:[#allocation2 + $0x28] sm:$0xff] %v1342
      %1379 = vst [vmem:[#allocation2 + $0x30] sm:$0xff] %v1343
      %1380 = vst [vmem:[#allocation2 + $0x38] sm:$0xff] %v1344
      %1381 = vst [vmem:[#allocation2 + $0x40] sm:$0xff] %v1345
      %1382 = vst [vmem:[#allocation2 + $0x48] sm:$0xff] %v1346
      %1383 = vst [vmem:[#allocation2 + $0x50] sm:$0xff] %v1347
      %1384 = vst [vmem:[#allocation2 + $0x58] sm:$0xff] %v1348
      %1385 = vst [vmem:[#allocation2 + $0x60] sm:$0xff] %v1349
      %1386 = vst [vmem:[#allocation2 + $0x68] sm:$0xff] %v1350
      %1387 = vst [vmem:[#allocation2 + $0x70] sm:$0xff] %v1351
      %1388 = vst [vmem:[#allocation2 + $0x78] sm:$0xff] %v1352
      %1389 = vst [vmem:[#allocation2 + $0x80] sm:$0xff] %v1353
      %1390 = vst [vmem:[#allocation2 + $0x88] sm:$0xff] %v1354
      %1391 = vst [vmem:[#allocation2 + $0x90] sm:$0xff] %v1355
      %1392 = vst [vmem:[#allocation2 + $0x98] sm:$0xff] %v1356
      %1393 = vst [vmem:[#allocation2 + $0xa0] sm:$0xff] %v1357
      %1394 = vst [vmem:[#allocation2 + $0xa8] sm:$0xff] %v1358
      %1395 = vst [vmem:[#allocation2 + $0xb0] sm:$0xff] %v1359
      %1396 = vst [vmem:[#allocation2 + $0xb8] sm:$0xff] %v1360
      %1397 = vst [vmem:[#allocation2 + $0xc0] sm:$0xff] %v1361
      %1398 = vst [vmem:[#allocation2 + $0xc8] sm:$0xff] %v1362
      %1399 = vst [vmem:[#allocation2 + $0xd0] sm:$0xff] %v1363
      %1400 = vst [vmem:[#allocation2 + $0xd8] sm:$0xff] %v1364
      %1401 = vst [vmem:[#allocation2 + $0xe0] sm:$0xff] %v1365
      %1402 = vst [vmem:[#allocation2 + $0xe8] sm:$0xff] %v1366
      %1403 = vst [vmem:[#allocation2 + $0xf0] sm:$0xff] %v1367
      %1404 = vst [vmem:[#allocation2 + $0xf8] sm:$0xff] %v1368
      %1405 = vst [vmem:[#allocation2 + $0x100] sm:$0xff] %v1369
      %1406 = vst [vmem:[#allocation2 + $0x108] sm:$0xff] %v1370
      %1407 = vst [vmem:[#allocation2 + $0x110] sm:$0xff] %v1371
      %1408 = vst [vmem:[#allocation2 + $0x118] sm:$0xff] %v1372
      %v1409 = vld [vmem:[%s304] sm:$0xe]
      %v1410 = vld [vmem:[%s304 + $0x4] sm:$0xf]
      %v1411 = vld [vmem:[%s304 + $0x8] sm:$0xf]
      %v1412 = vld [vmem:[%s304 + $0xc] sm:$0xf]
      %v1413 = vld [vmem:[%s304 + $0x10] sm:$0xf]
      %v1414 = vld [vmem:[%s304 + $0x14] sm:$0xf]
      %v1415 = vld [vmem:[%s304 + $0x18] sm:$0xf]
      %v1416 = vld [vmem:[%s304 + $0x1c] sm:$0xf]
      %v1417 = vld [vmem:[%s304 + $0x20] sm:$0xf]
      %v1418 = vld [vmem:[%s304 + $0x24] sm:$0xf]
      %v1419 = vld [vmem:[%s304 + $0x28] sm:$0xf]
      %v1420 = vld [vmem:[%s304 + $0x2c] sm:$0xf]
      %v1421 = vld [vmem:[%s304 + $0x30] sm:$0xf]
      %v1422 = vld [vmem:[%s304 + $0x34] sm:$0xf]
      %v1423 = vld [vmem:[%s304 + $0x38] sm:$0xf]
      %v1424 = vld [vmem:[%s304 + $0x3c] sm:$0xf]
      %v1425 = vld [vmem:[%s304 + $0x40] sm:$0xf]
      %v1426 = vld [vmem:[%s304 + $0x44] sm:$0xf]
      %v1427 = vld [vmem:[%s304 + $0x48] sm:$0xf]
      %v1428 = vld [vmem:[%s304 + $0x4c] sm:$0xf]
      %v1429 = vld [vmem:[%s304 + $0x50] sm:$0xf]
      %v1430 = vld [vmem:[%s304 + $0x54] sm:$0xf]
      %v1431 = vld [vmem:[%s304 + $0x58] sm:$0xf]
      %v1432 = vld [vmem:[%s304 + $0x5c] sm:$0xf]
      %v1433 = vld [vmem:[%s304 + $0x60] sm:$0xf]
      %v1434 = vld [vmem:[%s304 + $0x64] sm:$0xf]
      %v1435 = vld [vmem:[%s304 + $0x68] sm:$0xf]
      %v1436 = vld [vmem:[%s304 + $0x6c] sm:$0xf]
      %v1437 = vld [vmem:[%s304 + $0x70] sm:$0xf]
      %v1438 = vld [vmem:[%s304 + $0x74] sm:$0xf]
      %v1439 = vld [vmem:[%s304 + $0x78] sm:$0xf]
      %v1440 = vld [vmem:[%s304 + $0x7c] sm:$0xf]
      %v1441 = vld [vmem:[%s304 + $0x80] sm:$0xf]
      %v1442 = vld [vmem:[%s304 + $0x84] sm:$0xf]
      %v1443 = vld [vmem:[%s304 + $0x88] sm:$0xf]
      %v1444 = vld [vmem:[%s304 + $0x8c] sm:$0xf]
      %v1445 = vld [vmem:[%s304 + $0x90] sm:$0x1]
      %s1446 = scalar_lea.vmem %s308, 128
      %v1447 = vld [vmem:[%s1446] sm:$0xf]
      %v1448 = vld [vmem:[%s1446 + $0x4] sm:$0xf]
      %v1449 = vld [vmem:[%s1446 + $0x8] sm:$0xf]
      %v1450 = vld [vmem:[%s1446 + $0xc] sm:$0xf]
      %v1451 = vld [vmem:[%s1446 + $0x10] sm:$0xf]
      %v1452 = vld [vmem:[%s1446 + $0x14] sm:$0xf]
      %v1453 = vld [vmem:[%s1446 + $0x18] sm:$0xf]
      %v1454 = vld [vmem:[%s1446 + $0x1c] sm:$0xf]
      %v1455 = vld [vmem:[%s1446 + $0x20] sm:$0xf]
      %v1456 = vld [vmem:[%s1446 + $0x24] sm:$0xf]
      %v1457 = vld [vmem:[%s1446 + $0x28] sm:$0xf]
      %v1458 = vld [vmem:[%s1446 + $0x2c] sm:$0xf]
      %v1459 = vld [vmem:[%s1446 + $0x30] sm:$0xf]
      %v1460 = vld [vmem:[%s1446 + $0x34] sm:$0xf]
      %v1461 = vld [vmem:[%s1446 + $0x38] sm:$0xf]
      %v1462 = vld [vmem:[%s1446 + $0x3c] sm:$0xf]
      %v1500 = vunpack.c.l.b16 %v1409
      %v1501 = vunpack.c.l.b16 %v1410
      %v1502 = vunpack.c.l.b16 %v1411
      %v1503 = vunpack.c.l.b16 %v1412
      %v1504 = vunpack.c.l.b16 %v1413
      %v1505 = vunpack.c.l.b16 %v1414
      %v1506 = vunpack.c.l.b16 %v1415
      %v1507 = vunpack.c.l.b16 %v1416
      %v1508 = vunpack.c.l.b16 %v1417
      %v1509 = vunpack.c.l.b16 %v1418
      %v1510 = vunpack.c.l.b16 %v1419
      %v1511 = vunpack.c.l.b16 %v1420
      %v1512 = vunpack.c.l.b16 %v1421
      %v1513 = vunpack.c.l.b16 %v1422
      %v1514 = vunpack.c.l.b16 %v1423
      %v1515 = vunpack.c.l.b16 %v1424
      %v1516 = vunpack.c.l.b16 %v1425
      %v1517 = vunpack.c.l.b16 %v1426
      %v1518 = vunpack.c.l.b16 %v1427
      %v1519 = vunpack.c.l.b16 %v1428
      %v1520 = vunpack.c.l.b16 %v1429
      %v1521 = vunpack.c.l.b16 %v1430
      %v1522 = vunpack.c.l.b16 %v1431
      %v1523 = vunpack.c.l.b16 %v1432
      %v1524 = vunpack.c.l.b16 %v1433
      %v1525 = vunpack.c.l.b16 %v1434
      %v1526 = vunpack.c.l.b16 %v1435
      %v1527 = vunpack.c.l.b16 %v1436
      %v1528 = vunpack.c.l.b16 %v1437
      %v1529 = vunpack.c.l.b16 %v1438
      %v1530 = vunpack.c.l.b16 %v1439
      %v1531 = vunpack.c.l.b16 %v1440
      %v1532 = vunpack.c.l.b16 %v1441
      %v1533 = vunpack.c.l.b16 %v1442
      %v1534 = vunpack.c.l.b16 %v1443
      %v1535 = vunpack.c.l.b16 %v1444
      %v1536 = vunpack.c.l.b16 %v1445
      %v1537 = vpack.c.b16 %v1501, %v1500
      %v1538 = vpack.c.b16 %v1503, %v1502
      %v1539 = vpack.c.b16 %v1505, %v1504
      %v1540 = vpack.c.b16 %v1507, %v1506
      %v1541 = vpack.c.b16 %v1509, %v1508
      %v1542 = vpack.c.b16 %v1511, %v1510
      %v1543 = vpack.c.b16 %v1513, %v1512
      %v1544 = vpack.c.b16 %v1515, %v1514
      %v1545 = vpack.c.b16 %v1517, %v1516
      %v1546 = vpack.c.b16 %v1519, %v1518
      %v1547 = vpack.c.b16 %v1521, %v1520
      %v1548 = vpack.c.b16 %v1523, %v1522
      %v1549 = vpack.c.b16 %v1525, %v1524
      %v1550 = vpack.c.b16 %v1527, %v1526
      %v1551 = vpack.c.b16 %v1529, %v1528
      %v1552 = vpack.c.b16 %v1531, %v1530
      %v1553 = vpack.c.b16 %v1533, %v1532
      %v1554 = vpack.c.b16 %v1535, %v1534
      %v1555 = vpack.c.b16 %v1536, %v1536
      %vm1556 = vcmask 1046528
      %v1557 = vrot.slane %v1537, 1
      %v1558 = vrot.slane %v1538, 1
      %v1559 = vsel %vm1556, %v1557, %v1558
      %v1560 = vrot.slane %v1539, 1
      %v1561 = vsel %vm1556, %v1558, %v1560
      %v1562 = vrot.slane %v1540, 1
      %v1563 = vsel %vm1556, %v1560, %v1562
      %v1564 = vrot.slane %v1541, 1
      %v1565 = vsel %vm1556, %v1562, %v1564
      %v1566 = vrot.slane %v1542, 1
      %v1567 = vsel %vm1556, %v1564, %v1566
      %v1568 = vrot.slane %v1543, 1
      %v1569 = vsel %vm1556, %v1566, %v1568
      %v1570 = vrot.slane %v1544, 1
      %v1571 = vsel %vm1556, %v1568, %v1570
      %v1572 = vrot.slane %v1545, 1
      %v1573 = vsel %vm1556, %v1570, %v1572
      %v1574 = vrot.slane %v1546, 1
      %v1575 = vsel %vm1556, %v1572, %v1574
      %v1576 = vrot.slane %v1547, 1
      %v1577 = vsel %vm1556, %v1574, %v1576
      %v1578 = vrot.slane %v1548, 1
      %v1579 = vsel %vm1556, %v1576, %v1578
      %v1580 = vrot.slane %v1549, 1
      %v1581 = vsel %vm1556, %v1578, %v1580
      %v1582 = vrot.slane %v1550, 1
      %v1583 = vsel %vm1556, %v1580, %v1582
      %v1584 = vrot.slane %v1551, 1
      %v1585 = vsel %vm1556, %v1582, %v1584
      %v1586 = vrot.slane %v1552, 1
      %v1587 = vsel %vm1556, %v1584, %v1586
      %v1588 = vrot.slane %v1553, 1
      %v1589 = vsel %vm1556, %v1586, %v1588
      %v1590 = vrot.slane %v1554, 1
      %v1591 = vsel %vm1556, %v1588, %v1590
      %v1592 = vrot.slane %v1555, 1
      %v1593 = vsel %vm1556, %v1590, %v1592
      %v1628 = vunpack.c.l.b16 %v1447
      %v1629 = vunpack.c.l.b16 %v1448
      %v1630 = vunpack.c.l.b16 %v1449
      %v1631 = vunpack.c.l.b16 %v1450
      %v1632 = vunpack.c.l.b16 %v1451
      %v1633 = vunpack.c.l.b16 %v1452
      %v1634 = vunpack.c.l.b16 %v1453
      %v1635 = vunpack.c.l.b16 %v1454
      %v1636 = vunpack.c.l.b16 %v1455
      %v1637 = vunpack.c.l.b16 %v1456
      %v1638 = vunpack.c.l.b16 %v1457
      %v1639 = vunpack.c.l.b16 %v1458
      %v1640 = vunpack.c.l.b16 %v1459
      %v1641 = vunpack.c.l.b16 %v1460
      %v1642 = vunpack.c.l.b16 %v1461
      %v1643 = vunpack.c.l.b16 %v1462
      %v1644 = vpack.c.b16 %v1629, %v1628
      %v1645 = vpack.c.b16 %v1631, %v1630
      %v1646 = vpack.c.b16 %v1633, %v1632
      %v1647 = vpack.c.b16 %v1635, %v1634
      %v1648 = vpack.c.b16 %v1637, %v1636
      %v1649 = vpack.c.b16 %v1639, %v1638
      %v1650 = vpack.c.b16 %v1641, %v1640
      %v1651 = vpack.c.b16 %v1643, %v1642
      %1660 = vmatprep.subr.bf16.mxu0 0
      %1661 = vmatpush1.bf16.msra.mxu0 %v1644
      %1662 = vmatprep.subr.bf16.mxu0 0
      %1663 = vmatpush1.bf16.msra.mxu0 %v1645
      %1664 = vmatprep.subr.bf16.mxu0 0
      %1665 = vmatpush1.bf16.msra.mxu0 %v1646
      %1666 = vmatprep.subr.bf16.mxu0 0
      %1667 = vmatpush1.bf16.msra.mxu0 %v1647
      %1668 = vmatprep.subr.bf16.mxu0 0
      %1669 = vmatpush1.bf16.msra.mxu0 %v1648
      %1670 = vmatprep.subr.bf16.mxu0 0
      %1671 = vmatpush1.bf16.msra.mxu0 %v1649
      %1672 = vmatprep.subr.bf16.mxu0 0
      %1673 = vmatpush1.bf16.msra.mxu0 %v1650
      %1674 = vmatprep.subr.bf16.mxu0 0
      %1675 = vmatpush1.bf16.msra.mxu0 %v1651
      %1676 = vmatprep.subr.bf16.mxu0 0
      %1677 = vmatpush1.bf16.msra.mxu0 0
      %1678 = vmatprep.subr.bf16.mxu0 0
      %1679 = vmatpush1.bf16.msra.mxu0 0
      %1680 = vmatprep.subr.bf16.mxu0 0
      %1681 = vmatpush1.bf16.msra.mxu0 0
      %1682 = vmatprep.subr.bf16.mxu0 0
      %1683 = vmatpush1.bf16.msra.mxu0 0
      %1684 = vmatprep.subr.bf16.mxu0 0
      %1685 = vmatpush1.bf16.msra.mxu0 0
      %1686 = vmatprep.subr.bf16.mxu0 0
      %1687 = vmatpush1.bf16.msra.mxu0 0
      %1688 = vmatprep.subr.bf16.mxu0 0
      %1689 = vmatpush1.bf16.msra.mxu0 0
      %1690 = vmatprep.subr.bf16.mxu0 0
      %1691 = vmatpush1.bf16.msra.mxu0 0
      %1692 = vmatprep.mubr.bf16.mxu0 0
      %1693 = vmatmul.mubr.bf16.gmra.mrb[0].mxu0 %v1559
      %v1694 = vpop.f32.mrb[0].mxu0
      %v1695 = vadd.f32 0.0, %v1694
      %v1696 = vpop.f32.mrb[0].mxu0
      %v1697 = vpop.f32.mrb[0].mxu0
      %v1698 = vadd.f32 0.0, %v1697
      %v1699 = vpop.f32.mrb[0].mxu0
      %1700 = vmatprep.mubr.bf16.mxu0 0
      %1701 = vmatmul.mubr.bf16.gmra.mrb[0].mxu0 %v1561
      %v1702 = vpop.f32.mrb[0].mxu0
      %v1703 = vadd.f32 0.0, %v1702
      %v1704 = vpop.f32.mrb[0].mxu0
      %v1705 = vpop.f32.mrb[0].mxu0
      %v1706 = vadd.f32 0.0, %v1705
      %v1707 = vpop.f32.mrb[0].mxu0
      %1708 = vmatprep.mubr.bf16.mxu0 0
      %1709 = vmatmul.mubr.bf16.gmra.mrb[0].mxu0 %v1563
      %v1710 = vpop.f32.mrb[0].mxu0
      %v1711 = vadd.f32 0.0, %v1710
      %v1712 = vpop.f32.mrb[0].mxu0
      %v1713 = vpop.f32.mrb[0].mxu0
      %v1714 = vadd.f32 0.0, %v1713
      %v1715 = vpop.f32.mrb[0].mxu0
      %1716 = vmatprep.mubr.bf16.mxu0 0
      %1717 = vmatmul.mubr.bf16.gmra.mrb[0].mxu0 %v1565
      %v1718 = vpop.f32.mrb[0].mxu0
      %v1719 = vadd.f32 0.0, %v1718
      %v1720 = vpop.f32.mrb[0].mxu0
      %v1721 = vpop.f32.mrb[0].mxu0
      %v1722 = vadd.f32 0.0, %v1721
      %v1723 = vpop.f32.mrb[0].mxu0
      %1724 = vmatprep.mubr.bf16.mxu0 0
      %1725 = vmatmul.mubr.bf16.gmra.mrb[0].mxu0 %v1567
      %v1726 = vpop.f32.mrb[0].mxu0
      %v1727 = vadd.f32 0.0, %v1726
      %v1728 = vpop.f32.mrb[0].mxu0
      %v1729 = vpop.f32.mrb[0].mxu0
      %v1730 = vadd.f32 0.0, %v1729
      %v1731 = vpop.f32.mrb[0].mxu0
      %1732 = vmatprep.mubr.bf16.mxu0 0
      %1733 = vmatmul.mubr.bf16.gmra.mrb[0].mxu0 %v1569
      %v1734 = vpop.f32.mrb[0].mxu0
      %v1735 = vadd.f32 0.0, %v1734
      %v1736 = vpop.f32.mrb[0].mxu0
      %v1737 = vpop.f32.mrb[0].mxu0
      %v1738 = vadd.f32 0.0, %v1737
      %v1739 = vpop.f32.mrb[0].mxu0
      %1740 = vmatprep.mubr.bf16.mxu0 0
      %1741 = vmatmul.mubr.bf16.gmra.mrb[0].mxu0 %v1571
      %v1742 = vpop.f32.mrb[0].mxu0
      %v1743 = vadd.f32 0.0, %v1742
      %v1744 = vpop.f32.mrb[0].mxu0
      %v1745 = vpop.f32.mrb[0].mxu0
      %v1746 = vadd.f32 0.0, %v1745
      %v1747 = vpop.f32.mrb[0].mxu0
      %1748 = vmatprep.mubr.bf16.mxu0 0
      %1749 = vmatmul.mubr.bf16.gmra.mrb[0].mxu0 %v1573
      %v1750 = vpop.f32.mrb[0].mxu0
      %v1751 = vadd.f32 0.0, %v1750
      %v1752 = vpop.f32.mrb[0].mxu0
      %v1753 = vpop.f32.mrb[0].mxu0
      %v1754 = vadd.f32 0.0, %v1753
      %v1755 = vpop.f32.mrb[0].mxu0
      %1756 = vmatprep.mubr.bf16.mxu0 0
      %1757 = vmatmul.mubr.bf16.gmra.mrb[0].mxu0 %v1575
      %v1758 = vpop.f32.mrb[0].mxu0
      %v1759 = vadd.f32 0.0, %v1758
      %v1760 = vpop.f32.mrb[0].mxu0
      %v1761 = vpop.f32.mrb[0].mxu0
      %v1762 = vadd.f32 0.0, %v1761
      %v1763 = vpop.f32.mrb[0].mxu0
      %1764 = vmatprep.mubr.bf16.mxu0 0
      %1765 = vmatmul.mubr.bf16.gmra.mrb[0].mxu0 %v1577
      %v1766 = vpop.f32.mrb[0].mxu0
      %v1767 = vadd.f32 0.0, %v1766
      %v1768 = vpop.f32.mrb[0].mxu0
      %v1769 = vpop.f32.mrb[0].mxu0
      %v1770 = vadd.f32 0.0, %v1769
      %v1771 = vpop.f32.mrb[0].mxu0
      %1772 = vmatprep.mubr.bf16.mxu0 0
      %1773 = vmatmul.mubr.bf16.gmra.mrb[0].mxu0 %v1579
      %v1774 = vpop.f32.mrb[0].mxu0
      %v1775 = vadd.f32 0.0, %v1774
      %v1776 = vpop.f32.mrb[0].mxu0
      %v1777 = vpop.f32.mrb[0].mxu0
      %v1778 = vadd.f32 0.0, %v1777
      %v1779 = vpop.f32.mrb[0].mxu0
      %1780 = vmatprep.mubr.bf16.mxu0 0
      %1781 = vmatmul.mubr.bf16.gmra.mrb[0].mxu0 %v1581
      %v1782 = vpop.f32.mrb[0].mxu0
      %v1783 = vadd.f32 0.0, %v1782
      %v1784 = vpop.f32.mrb[0].mxu0
      %v1785 = vpop.f32.mrb[0].mxu0
      %v1786 = vadd.f32 0.0, %v1785
      %v1787 = vpop.f32.mrb[0].mxu0
      %1788 = vmatprep.mubr.bf16.mxu0 0
      %1789 = vmatmul.mubr.bf16.gmra.mrb[0].mxu0 %v1583
      %v1790 = vpop.f32.mrb[0].mxu0
      %v1791 = vadd.f32 0.0, %v1790
      %v1792 = vpop.f32.mrb[0].mxu0
      %v1793 = vpop.f32.mrb[0].mxu0
      %v1794 = vadd.f32 0.0, %v1793
      %v1795 = vpop.f32.mrb[0].mxu0
      %1796 = vmatprep.mubr.bf16.mxu0 0
      %1797 = vmatmul.mubr.bf16.gmra.mrb[0].mxu0 %v1585
      %v1798 = vpop.f32.mrb[0].mxu0
      %v1799 = vadd.f32 0.0, %v1798
      %v1800 = vpop.f32.mrb[0].mxu0
      %v1801 = vpop.f32.mrb[0].mxu0
      %v1802 = vadd.f32 0.0, %v1801
      %v1803 = vpop.f32.mrb[0].mxu0
      %1804 = vmatprep.mubr.bf16.mxu0 0
      %1805 = vmatmul.mubr.bf16.gmra.mrb[0].mxu0 %v1587
      %v1806 = vpop.f32.mrb[0].mxu0
      %v1807 = vadd.f32 0.0, %v1806
      %v1808 = vpop.f32.mrb[0].mxu0
      %v1809 = vpop.f32.mrb[0].mxu0
      %v1810 = vadd.f32 0.0, %v1809
      %v1811 = vpop.f32.mrb[0].mxu0
      %1812 = vmatprep.mubr.bf16.mxu0 0
      %1813 = vmatmul.mubr.bf16.gmra.mrb[0].mxu0 %v1589
      %v1814 = vpop.f32.mrb[0].mxu0
      %v1815 = vadd.f32 0.0, %v1814
      %v1816 = vpop.f32.mrb[0].mxu0
      %v1817 = vpop.f32.mrb[0].mxu0
      %v1818 = vadd.f32 0.0, %v1817
      %v1819 = vpop.f32.mrb[0].mxu0
      %1820 = vmatprep.mubr.bf16.mxu0 0
      %1821 = vmatmul.mubr.bf16.gmra.mrb[0].mxu0 %v1591
      %v1822 = vpop.f32.mrb[0].mxu0
      %v1823 = vadd.f32 0.0, %v1822
      %v1824 = vpop.f32.mrb[0].mxu0
      %v1825 = vpop.f32.mrb[0].mxu0
      %v1826 = vadd.f32 0.0, %v1825
      %v1827 = vpop.f32.mrb[0].mxu0
      %1828 = vmatprep.mubr.bf16.mxu0 0
      %1829 = vmatmul.mubr.bf16.gmra.mrb[0].mxu0 %v1593
      %v1830 = vpop.f32.mrb[0].mxu0
      %v1831 = vadd.f32 0.0, %v1830
      %v1832 = vpop.f32.mrb[0].mxu0
      %v1833 = vpop.f32.mrb[0].mxu0
      %v1834 = vadd.f32 0.0, %v1833
      %v1835 = vpop.f32.mrb[0].mxu0
      %1836 = vdwg.mxu0
      %v1837 = vld [vmem:[#allocation2] sm:$0xff]
      %v1838 = vld [vmem:[#allocation2 + $0x8] sm:$0xff]
      %v1839 = vld [vmem:[#allocation2 + $0x10] sm:$0xff]
      %v1840 = vld [vmem:[#allocation2 + $0x18] sm:$0xff]
      %v1841 = vld [vmem:[#allocation2 + $0x20] sm:$0xff]
      %v1842 = vld [vmem:[#allocation2 + $0x28] sm:$0xff]
      %v1843 = vld [vmem:[#allocation2 + $0x30] sm:$0xff]
      %v1844 = vld [vmem:[#allocation2 + $0x38] sm:$0xff]
      %v1845 = vld [vmem:[#allocation2 + $0x40] sm:$0xff]
      %v1846 = vld [vmem:[#allocation2 + $0x48] sm:$0xff]
      %v1847 = vld [vmem:[#allocation2 + $0x50] sm:$0xff]
      %v1848 = vld [vmem:[#allocation2 + $0x58] sm:$0xff]
      %v1849 = vld [vmem:[#allocation2 + $0x60] sm:$0xff]
      %v1850 = vld [vmem:[#allocation2 + $0x68] sm:$0xff]
      %v1851 = vld [vmem:[#allocation2 + $0x70] sm:$0xff]
      %v1852 = vld [vmem:[#allocation2 + $0x78] sm:$0xff]
      %v1853 = vld [vmem:[#allocation2 + $0x80] sm:$0xff]
      %v1854 = vld [vmem:[#allocation2 + $0x88] sm:$0xff]
      %v1855 = vld [vmem:[#allocation2 + $0x90] sm:$0xff]
      %v1856 = vld [vmem:[#allocation2 + $0x98] sm:$0xff]
      %v1857 = vld [vmem:[#allocation2 + $0xa0] sm:$0xff]
      %v1858 = vld [vmem:[#allocation2 + $0xa8] sm:$0xff]
      %v1859 = vld [vmem:[#allocation2 + $0xb0] sm:$0xff]
      %v1860 = vld [vmem:[#allocation2 + $0xb8] sm:$0xff]
      %v1861 = vld [vmem:[#allocation2 + $0xc0] sm:$0xff]
      %v1862 = vld [vmem:[#allocation2 + $0xc8] sm:$0xff]
      %v1863 = vld [vmem:[#allocation2 + $0xd0] sm:$0xff]
      %v1864 = vld [vmem:[#allocation2 + $0xd8] sm:$0xff]
      %v1865 = vld [vmem:[#allocation2 + $0xe0] sm:$0xff]
      %v1866 = vld [vmem:[#allocation2 + $0xe8] sm:$0xff]
      %v1867 = vld [vmem:[#allocation2 + $0xf0] sm:$0xff]
      %v1868 = vld [vmem:[#allocation2 + $0xf8] sm:$0xff]
      %v1869 = vld [vmem:[#allocation2 + $0x100] sm:$0xff]
      %v1870 = vld [vmem:[#allocation2 + $0x108] sm:$0xff]
      %v1871 = vld [vmem:[#allocation2 + $0x110] sm:$0xff]
      %v1872 = vld [vmem:[#allocation2 + $0x118] sm:$0xff]
      %v1873 = vadd.f32 %v1837, %v1695
      %v1874 = vadd.f32 %v1838, %v1698
      %v1875 = vadd.f32 %v1839, %v1703
      %v1876 = vadd.f32 %v1840, %v1706
      %v1877 = vadd.f32 %v1841, %v1711
      %v1878 = vadd.f32 %v1842, %v1714
      %v1879 = vadd.f32 %v1843, %v1719
      %v1880 = vadd.f32 %v1844, %v1722
      %v1881 = vadd.f32 %v1845, %v1727
      %v1882 = vadd.f32 %v1846, %v1730
      %v1883 = vadd.f32 %v1847, %v1735
      %v1884 = vadd.f32 %v1848, %v1738
      %v1885 = vadd.f32 %v1849, %v1743
      %v1886 = vadd.f32 %v1850, %v1746
      %v1887 = vadd.f32 %v1851, %v1751
      %v1888 = vadd.f32 %v1852, %v1754
      %v1889 = vadd.f32 %v1853, %v1759
      %v1890 = vadd.f32 %v1854, %v1762
      %v1891 = vadd.f32 %v1855, %v1767
      %v1892 = vadd.f32 %v1856, %v1770
      %v1893 = vadd.f32 %v1857, %v1775
      %v1894 = vadd.f32 %v1858, %v1778
      %v1895 = vadd.f32 %v1859, %v1783
      %v1896 = vadd.f32 %v1860, %v1786
      %v1897 = vadd.f32 %v1861, %v1791
      %v1898 = vadd.f32 %v1862, %v1794
      %v1899 = vadd.f32 %v1863, %v1799
      %v1900 = vadd.f32 %v1864, %v1802
      %v1901 = vadd.f32 %v1865, %v1807
      %v1902 = vadd.f32 %v1866, %v1810
      %v1903 = vadd.f32 %v1867, %v1815
      %v1904 = vadd.f32 %v1868, %v1818
      %v1905 = vadd.f32 %v1869, %v1823
      %v1906 = vadd.f32 %v1870, %v1826
      %v1907 = vadd.f32 %v1871, %v1831
      %v1908 = vadd.f32 %v1872, %v1834
      %1909 = vst [vmem:[#allocation2] sm:$0xff] %v1873
      %1910 = vst [vmem:[#allocation2 + $0x8] sm:$0xff] %v1874
      %1911 = vst [vmem:[#allocation2 + $0x10] sm:$0xff] %v1875
      %1912 = vst [vmem:[#allocation2 + $0x18] sm:$0xff] %v1876
      %1913 = vst [vmem:[#allocation2 + $0x20] sm:$0xff] %v1877
      %1914 = vst [vmem:[#allocation2 + $0x28] sm:$0xff] %v1878
      %1915 = vst [vmem:[#allocation2 + $0x30] sm:$0xff] %v1879
      %1916 = vst [vmem:[#allocation2 + $0x38] sm:$0xff] %v1880
      %1917 = vst [vmem:[#allocation2 + $0x40] sm:$0xff] %v1881
      %1918 = vst [vmem:[#allocation2 + $0x48] sm:$0xff] %v1882
      %1919 = vst [vmem:[#allocation2 + $0x50] sm:$0xff] %v1883
      %1920 = vst [vmem:[#allocation2 + $0x58] sm:$0xff] %v1884
      %1921 = vst [vmem:[#allocation2 + $0x60] sm:$0xff] %v1885
      %1922 = vst [vmem:[#allocation2 + $0x68] sm:$0xff] %v1886
      %1923 = vst [vmem:[#allocation2 + $0x70] sm:$0xff] %v1887
      %1924 = vst [vmem:[#allocation2 + $0x78] sm:$0xff] %v1888
      %1925 = vst [vmem:[#allocation2 + $0x80] sm:$0xff] %v1889
      %1926 = vst [vmem:[#allocation2 + $0x88] sm:$0xff] %v1890
      %1927 = vst [vmem:[#allocation2 + $0x90] sm:$0xff] %v1891
      %1928 = vst [vmem:[#allocation2 + $0x98] sm:$0xff] %v1892
      %1929 = vst [vmem:[#allocation2 + $0xa0] sm:$0xff] %v1893
      %1930 = vst [vmem:[#allocation2 + $0xa8] sm:$0xff] %v1894
      %1931 = vst [vmem:[#allocation2 + $0xb0] sm:$0xff] %v1895
      %1932 = vst [vmem:[#allocation2 + $0xb8] sm:$0xff] %v1896
      %1933 = vst [vmem:[#allocation2 + $0xc0] sm:$0xff] %v1897
      %1934 = vst [vmem:[#allocation2 + $0xc8] sm:$0xff] %v1898
      %1935 = vst [vmem:[#allocation2 + $0xd0] sm:$0xff] %v1899
      %1936 = vst [vmem:[#allocation2 + $0xd8] sm:$0xff] %v1900
      %1937 = vst [vmem:[#allocation2 + $0xe0] sm:$0xff] %v1901
      %1938 = vst [vmem:[#allocation2 + $0xe8] sm:$0xff] %v1902
      %1939 = vst [vmem:[#allocation2 + $0xf0] sm:$0xff] %v1903
      %1940 = vst [vmem:[#allocation2 + $0xf8] sm:$0xff] %v1904
      %1941 = vst [vmem:[#allocation2 + $0x100] sm:$0xff] %v1905
      %1942 = vst [vmem:[#allocation2 + $0x108] sm:$0xff] %v1906
      %1943 = vst [vmem:[#allocation2 + $0x110] sm:$0xff] %v1907
      %1944 = vst [vmem:[#allocation2 + $0x118] sm:$0xff] %v1908
      %v1945 = vld [vmem:[%s304 + $0x8] sm:$0xe]
      %v1946 = vld [vmem:[%s304 + $0xc] sm:$0xf]
      %v1947 = vld [vmem:[%s304 + $0x10] sm:$0xf]
      %v1948 = vld [vmem:[%s304 + $0x14] sm:$0xf]
      %v1949 = vld [vmem:[%s304 + $0x18] sm:$0xf]
      %v1950 = vld [vmem:[%s304 + $0x1c] sm:$0xf]
      %v1951 = vld [vmem:[%s304 + $0x20] sm:$0xf]
      %v1952 = vld [vmem:[%s304 + $0x24] sm:$0xf]
      %v1953 = vld [vmem:[%s304 + $0x28] sm:$0xf]
      %v1954 = vld [vmem:[%s304 + $0x2c] sm:$0xf]
      %v1955 = vld [vmem:[%s304 + $0x30] sm:$0xf]
      %v1956 = vld [vmem:[%s304 + $0x34] sm:$0xf]
      %v1957 = vld [vmem:[%s304 + $0x38] sm:$0xf]
      %v1958 = vld [vmem:[%s304 + $0x3c] sm:$0xf]
      %v1959 = vld [vmem:[%s304 + $0x40] sm:$0xf]
      %v1960 = vld [vmem:[%s304 + $0x44] sm:$0xf]
      %v1961 = vld [vmem:[%s304 + $0x48] sm:$0xf]
      %v1962 = vld [vmem:[%s304 + $0x4c] sm:$0xf]
      %v1963 = vld [vmem:[%s304 + $0x50] sm:$0xf]
      %v1964 = vld [vmem:[%s304 + $0x54] sm:$0xf]
      %v1965 = vld [vmem:[%s304 + $0x58] sm:$0xf]
      %v1966 = vld [vmem:[%s304 + $0x5c] sm:$0xf]
      %v1967 = vld [vmem:[%s304 + $0x60] sm:$0xf]
      %v1968 = vld [vmem:[%s304 + $0x64] sm:$0xf]
      %v1969 = vld [vmem:[%s304 + $0x68] sm:$0xf]
      %v1970 = vld [vmem:[%s304 + $0x6c] sm:$0xf]
      %v1971 = vld [vmem:[%s304 + $0x70] sm:$0xf]
      %v1972 = vld [vmem:[%s304 + $0x74] sm:$0xf]
      %v1973 = vld [vmem:[%s304 + $0x78] sm:$0xf]
      %v1974 = vld [vmem:[%s304 + $0x7c] sm:$0xf]
      %v1975 = vld [vmem:[%s304 + $0x80] sm:$0xf]
      %v1976 = vld [vmem:[%s304 + $0x84] sm:$0xf]
      %v1977 = vld [vmem:[%s304 + $0x88] sm:$0xf]
      %v1978 = vld [vmem:[%s304 + $0x8c] sm:$0xf]
      %v1979 = vld [vmem:[%s304 + $0x90] sm:$0xf]
      %v1980 = vld [vmem:[%s304 + $0x94] sm:$0xf]
      %v1981 = vld [vmem:[%s304 + $0x98] sm:$0x1]
      %s1982 = scalar_lea.vmem %s308, 192
      %v1983 = vld [vmem:[%s1982] sm:$0xf]
      %v1984 = vld [vmem:[%s1982 + $0x4] sm:$0xf]
      %v1985 = vld [vmem:[%s1982 + $0x8] sm:$0xf]
      %v1986 = vld [vmem:[%s1982 + $0xc] sm:$0xf]
      %v1987 = vld [vmem:[%s1982 + $0x10] sm:$0xf]
      %v1988 = vld [vmem:[%s1982 + $0x14] sm:$0xf]
      %v1989 = vld [vmem:[%s1982 + $0x18] sm:$0xf]
      %v1990 = vld [vmem:[%s1982 + $0x1c] sm:$0xf]
      %v1991 = vld [vmem:[%s1982 + $0x20] sm:$0xf]
      %v1992 = vld [vmem:[%s1982 + $0x24] sm:$0xf]
      %v1993 = vld [vmem:[%s1982 + $0x28] sm:$0xf]
      %v1994 = vld [vmem:[%s1982 + $0x2c] sm:$0xf]
      %v1995 = vld [vmem:[%s1982 + $0x30] sm:$0xf]
      %v1996 = vld [vmem:[%s1982 + $0x34] sm:$0xf]
      %v1997 = vld [vmem:[%s1982 + $0x38] sm:$0xf]
      %v1998 = vld [vmem:[%s1982 + $0x3c] sm:$0xf]
      %v2036 = vunpack.c.l.b16 %v1945
      %v2037 = vunpack.c.l.b16 %v1946
      %v2038 = vunpack.c.l.b16 %v1947
      %v2039 = vunpack.c.l.b16 %v1948
      %v2040 = vunpack.c.l.b16 %v1949
      %v2041 = vunpack.c.l.b16 %v1950
      %v2042 = vunpack.c.l.b16 %v1951
      %v2043 = vunpack.c.l.b16 %v1952
      %v2044 = vunpack.c.l.b16 %v1953
      %v2045 = vunpack.c.l.b16 %v1954
      %v2046 = vunpack.c.l.b16 %v1955
      %v2047 = vunpack.c.l.b16 %v1956
      %v2048 = vunpack.c.l.b16 %v1957
      %v2049 = vunpack.c.l.b16 %v1958
      %v2050 = vunpack.c.l.b16 %v1959
      %v2051 = vunpack.c.l.b16 %v1960
      %v2052 = vunpack.c.l.b16 %v1961
      %v2053 = vunpack.c.l.b16 %v1962
      %v2054 = vunpack.c.l.b16 %v1963
      %v2055 = vunpack.c.l.b16 %v1964
      %v2056 = vunpack.c.l.b16 %v1965
      %v2057 = vunpack.c.l.b16 %v1966
      %v2058 = vunpack.c.l.b16 %v1967
      %v2059 = vunpack.c.l.b16 %v1968
      %v2060 = vunpack.c.l.b16 %v1969
      %v2061 = vunpack.c.l.b16 %v1970
      %v2062 = vunpack.c.l.b16 %v1971
      %v2063 = vunpack.c.l.b16 %v1972
      %v2064 = vunpack.c.l.b16 %v1973
      %v2065 = vunpack.c.l.b16 %v1974
      %v2066 = vunpack.c.l.b16 %v1975
      %v2067 = vunpack.c.l.b16 %v1976
      %v2068 = vunpack.c.l.b16 %v1977
      %v2069 = vunpack.c.l.b16 %v1978
      %v2070 = vunpack.c.l.b16 %v1979
      %v2071 = vunpack.c.l.b16 %v1980
      %v2072 = vunpack.c.l.b16 %v1981
      %v2073 = vpack.c.b16 %v2037, %v2036
      %v2074 = vpack.c.b16 %v2039, %v2038
      %v2075 = vpack.c.b16 %v2041, %v2040
      %v2076 = vpack.c.b16 %v2043, %v2042
      %v2077 = vpack.c.b16 %v2045, %v2044
      %v2078 = vpack.c.b16 %v2047, %v2046
      %v2079 = vpack.c.b16 %v2049, %v2048
      %v2080 = vpack.c.b16 %v2051, %v2050
      %v2081 = vpack.c.b16 %v2053, %v2052
      %v2082 = vpack.c.b16 %v2055, %v2054
      %v2083 = vpack.c.b16 %v2057, %v2056
      %v2084 = vpack.c.b16 %v2059, %v2058
      %v2085 = vpack.c.b16 %v2061, %v2060
      %v2086 = vpack.c.b16 %v2063, %v2062
      %v2087 = vpack.c.b16 %v2065, %v2064
      %v2088 = vpack.c.b16 %v2067, %v2066
      %v2089 = vpack.c.b16 %v2069, %v2068
      %v2090 = vpack.c.b16 %v2071, %v2070
      %v2091 = vpack.c.b16 %v2072, %v2072
      %v2092 = vrot.slane %v2073, 1
      %v2093 = vrot.slane %v2074, 1
      %v2094 = vsel %vm1556, %v2092, %v2093
      %v2095 = vrot.slane %v2075, 1
      %v2096 = vsel %vm1556, %v2093, %v2095
      %v2097 = vrot.slane %v2076, 1
      %v2098 = vsel %vm1556, %v2095, %v2097
      %v2099 = vrot.slane %v2077, 1
      %v2100 = vsel %vm1556, %v2097, %v2099
      %v2101 = vrot.slane %v2078, 1
      %v2102 = vsel %vm1556, %v2099, %v2101
      %v2103 = vrot.slane %v2079, 1
      %v2104 = vsel %vm1556, %v2101, %v2103
      %v2105 = vrot.slane %v2080, 1
      %v2106 = vsel %vm1556, %v2103, %v2105
      %v2107 = vrot.slane %v2081, 1
      %v2108 = vsel %vm1556, %v2105, %v2107
      %v2109 = vrot.slane %v2082, 1
      %v2110 = vsel %vm1556, %v2107, %v2109
      %v2111 = vrot.slane %v2083, 1
      %v2112 = vsel %vm1556, %v2109, %v2111
      %v2113 = vrot.slane %v2084, 1
      %v2114 = vsel %vm1556, %v2111, %v2113
      %v2115 = vrot.slane %v2085, 1
      %v2116 = vsel %vm1556, %v2113, %v2115
      %v2117 = vrot.slane %v2086, 1
      %v2118 = vsel %vm1556, %v2115, %v2117
      %v2119 = vrot.slane %v2087, 1
      %v2120 = vsel %vm1556, %v2117, %v2119
      %v2121 = vrot.slane %v2088, 1
      %v2122 = vsel %vm1556, %v2119, %v2121
      %v2123 = vrot.slane %v2089, 1
      %v2124 = vsel %vm1556, %v2121, %v2123
      %v2125 = vrot.slane %v2090, 1
      %v2126 = vsel %vm1556, %v2123, %v2125
      %v2127 = vrot.slane %v2091, 1
      %v2128 = vsel %vm1556, %v2125, %v2127
      %v2163 = vunpack.c.l.b16 %v1983
      %v2164 = vunpack.c.l.b16 %v1984
      %v2165 = vunpack.c.l.b16 %v1985
      %v2166 = vunpack.c.l.b16 %v1986
      %v2167 = vunpack.c.l.b16 %v1987
      %v2168 = vunpack.c.l.b16 %v1988
      %v2169 = vunpack.c.l.b16 %v1989
      %v2170 = vunpack.c.l.b16 %v1990
      %v2171 = vunpack.c.l.b16 %v1991
      %v2172 = vunpack.c.l.b16 %v1992
      %v2173 = vunpack.c.l.b16 %v1993
      %v2174 = vunpack.c.l.b16 %v1994
      %v2175 = vunpack.c.l.b16 %v1995
      %v2176 = vunpack.c.l.b16 %v1996
      %v2177 = vunpack.c.l.b16 %v1997
      %v2178 = vunpack.c.l.b16 %v1998
      %v2179 = vpack.c.b16 %v2164, %v2163
      %v2180 = vpack.c.b16 %v2166, %v2165
      %v2181 = vpack.c.b16 %v2168, %v2167
      %v2182 = vpack.c.b16 %v2170, %v2169
      %v2183 = vpack.c.b16 %v2172, %v2171
      %v2184 = vpack.c.b16 %v2174, %v2173
      %v2185 = vpack.c.b16 %v2176, %v2175
      %v2186 = vpack.c.b16 %v2178, %v2177
      %2195 = vmatprep.subr.bf16.mxu0 0
      %2196 = vmatpush1.bf16.msra.mxu0 %v2179
      %2197 = vmatprep.subr.bf16.mxu0 0
      %2198 = vmatpush1.bf16.msra.mxu0 %v2180
      %2199 = vmatprep.subr.bf16.mxu0 0
      %2200 = vmatpush1.bf16.msra.mxu0 %v2181
      %2201 = vmatprep.subr.bf16.mxu0 0
      %2202 = vmatpush1.bf16.msra.mxu0 %v2182
      %2203 = vmatprep.subr.bf16.mxu0 0
      %2204 = vmatpush1.bf16.msra.mxu0 %v2183
      %2205 = vmatprep.subr.bf16.mxu0 0
      %2206 = vmatpush1.bf16.msra.mxu0 %v2184
      %2207 = vmatprep.subr.bf16.mxu0 0
      %2208 = vmatpush1.bf16.msra.mxu0 %v2185
      %2209 = vmatprep.subr.bf16.mxu0 0
      %2210 = vmatpush1.bf16.msra.mxu0 %v2186
      %2211 = vmatprep.subr.bf16.mxu0 0
      %2212 = vmatpush1.bf16.msra.mxu0 0
      %2213 = vmatprep.subr.bf16.mxu0 0
      %2214 = vmatpush1.bf16.msra.mxu0 0
      %2215 = vmatprep.subr.bf16.mxu0 0
      %2216 = vmatpush1.bf16.msra.mxu0 0
      %2217 = vmatprep.subr.bf16.mxu0 0
      %2218 = vmatpush1.bf16.msra.mxu0 0
      %2219 = vmatprep.subr.bf16.mxu0 0
      %2220 = vmatpush1.bf16.msra.mxu0 0
      %2221 = vmatprep.subr.bf16.mxu0 0
      %2222 = vmatpush1.bf16.msra.mxu0 0
      %2223 = vmatprep.subr.bf16.mxu0 0
      %2224 = vmatpush1.bf16.msra.mxu0 0
      %2225 = vmatprep.subr.bf16.mxu0 0
      %2226 = vmatpush1.bf16.msra.mxu0 0
      %2227 = vmatprep.mubr.bf16.mxu0 0
      %2228 = vmatmul.mubr.bf16.gmra.mrb[0].mxu0 %v2094
      %v2229 = vpop.f32.mrb[0].mxu0
      %v2230 = vadd.f32 0.0, %v2229
      %v2231 = vpop.f32.mrb[0].mxu0
      %v2232 = vpop.f32.mrb[0].mxu0
      %v2233 = vadd.f32 0.0, %v2232
      %v2234 = vpop.f32.mrb[0].mxu0
      %2235 = vmatprep.mubr.bf16.mxu0 0
      %2236 = vmatmul.mubr.bf16.gmra.mrb[0].mxu0 %v2096
      %v2237 = vpop.f32.mrb[0].mxu0
      %v2238 = vadd.f32 0.0, %v2237
      %v2239 = vpop.f32.mrb[0].mxu0
      %v2240 = vpop.f32.mrb[0].mxu0
      %v2241 = vadd.f32 0.0, %v2240
      %v2242 = vpop.f32.mrb[0].mxu0
      %2243 = vmatprep.mubr.bf16.mxu0 0
      %2244 = vmatmul.mubr.bf16.gmra.mrb[0].mxu0 %v2098
      %v2245 = vpop.f32.mrb[0].mxu0
      %v2246 = vadd.f32 0.0, %v2245
      %v2247 = vpop.f32.mrb[0].mxu0
      %v2248 = vpop.f32.mrb[0].mxu0
      %v2249 = vadd.f32 0.0, %v2248
      %v2250 = vpop.f32.mrb[0].mxu0
      %2251 = vmatprep.mubr.bf16.mxu0 0
      %2252 = vmatmul.mubr.bf16.gmra.mrb[0].mxu0 %v2100
      %v2253 = vpop.f32.mrb[0].mxu0
      %v2254 = vadd.f32 0.0, %v2253
      %v2255 = vpop.f32.mrb[0].mxu0
      %v2256 = vpop.f32.mrb[0].mxu0
      %v2257 = vadd.f32 0.0, %v2256
      %v2258 = vpop.f32.mrb[0].mxu0
      %2259 = vmatprep.mubr.bf16.mxu0 0
      %2260 = vmatmul.mubr.bf16.gmra.mrb[0].mxu0 %v2102
      %v2261 = vpop.f32.mrb[0].mxu0
      %v2262 = vadd.f32 0.0, %v2261
      %v2263 = vpop.f32.mrb[0].mxu0
      %v2264 = vpop.f32.mrb[0].mxu0
      %v2265 = vadd.f32 0.0, %v2264
      %v2266 = vpop.f32.mrb[0].mxu0
      %2267 = vmatprep.mubr.bf16.mxu0 0
      %2268 = vmatmul.mubr.bf16.gmra.mrb[0].mxu0 %v2104
      %v2269 = vpop.f32.mrb[0].mxu0
      %v2270 = vadd.f32 0.0, %v2269
      %v2271 = vpop.f32.mrb[0].mxu0
      %v2272 = vpop.f32.mrb[0].mxu0
      %v2273 = vadd.f32 0.0, %v2272
      %v2274 = vpop.f32.mrb[0].mxu0
      %2275 = vmatprep.mubr.bf16.mxu0 0
      %2276 = vmatmul.mubr.bf16.gmra.mrb[0].mxu0 %v2106
      %v2277 = vpop.f32.mrb[0].mxu0
      %v2278 = vadd.f32 0.0, %v2277
      %v2279 = vpop.f32.mrb[0].mxu0
      %v2280 = vpop.f32.mrb[0].mxu0
      %v2281 = vadd.f32 0.0, %v2280
      %v2282 = vpop.f32.mrb[0].mxu0
      %2283 = vmatprep.mubr.bf16.mxu0 0
      %2284 = vmatmul.mubr.bf16.gmra.mrb[0].mxu0 %v2108
      %v2285 = vpop.f32.mrb[0].mxu0
      %v2286 = vadd.f32 0.0, %v2285
      %v2287 = vpop.f32.mrb[0].mxu0
      %v2288 = vpop.f32.mrb[0].mxu0
      %v2289 = vadd.f32 0.0, %v2288
      %v2290 = vpop.f32.mrb[0].mxu0
      %2291 = vmatprep.mubr.bf16.mxu0 0
      %2292 = vmatmul.mubr.bf16.gmra.mrb[0].mxu0 %v2110
      %v2293 = vpop.f32.mrb[0].mxu0
      %v2294 = vadd.f32 0.0, %v2293
      %v2295 = vpop.f32.mrb[0].mxu0
      %v2296 = vpop.f32.mrb[0].mxu0
      %v2297 = vadd.f32 0.0, %v2296
      %v2298 = vpop.f32.mrb[0].mxu0
      %2299 = vmatprep.mubr.bf16.mxu0 0
      %2300 = vmatmul.mubr.bf16.gmra.mrb[0].mxu0 %v2112
      %v2301 = vpop.f32.mrb[0].mxu0
      %v2302 = vadd.f32 0.0, %v2301
      %v2303 = vpop.f32.mrb[0].mxu0
      %v2304 = vpop.f32.mrb[0].mxu0
      %v2305 = vadd.f32 0.0, %v2304
      %v2306 = vpop.f32.mrb[0].mxu0
      %2307 = vmatprep.mubr.bf16.mxu0 0
      %2308 = vmatmul.mubr.bf16.gmra.mrb[0].mxu0 %v2114
      %v2309 = vpop.f32.mrb[0].mxu0
      %v2310 = vadd.f32 0.0, %v2309
      %v2311 = vpop.f32.mrb[0].mxu0
      %v2312 = vpop.f32.mrb[0].mxu0
      %v2313 = vadd.f32 0.0, %v2312
      %v2314 = vpop.f32.mrb[0].mxu0
      %2315 = vmatprep.mubr.bf16.mxu0 0
      %2316 = vmatmul.mubr.bf16.gmra.mrb[0].mxu0 %v2116
      %v2317 = vpop.f32.mrb[0].mxu0
      %v2318 = vadd.f32 0.0, %v2317
      %v2319 = vpop.f32.mrb[0].mxu0
      %v2320 = vpop.f32.mrb[0].mxu0
      %v2321 = vadd.f32 0.0, %v2320
      %v2322 = vpop.f32.mrb[0].mxu0
      %2323 = vmatprep.mubr.bf16.mxu0 0
      %2324 = vmatmul.mubr.bf16.gmra.mrb[0].mxu0 %v2118
      %v2325 = vpop.f32.mrb[0].mxu0
      %v2326 = vadd.f32 0.0, %v2325
      %v2327 = vpop.f32.mrb[0].mxu0
      %v2328 = vpop.f32.mrb[0].mxu0
      %v2329 = vadd.f32 0.0, %v2328
      %v2330 = vpop.f32.mrb[0].mxu0
      %2331 = vmatprep.mubr.bf16.mxu0 0
      %2332 = vmatmul.mubr.bf16.gmra.mrb[0].mxu0 %v2120
      %v2333 = vpop.f32.mrb[0].mxu0
      %v2334 = vadd.f32 0.0, %v2333
      %v2335 = vpop.f32.mrb[0].mxu0
      %v2336 = vpop.f32.mrb[0].mxu0
      %v2337 = vadd.f32 0.0, %v2336
      %v2338 = vpop.f32.mrb[0].mxu0
      %2339 = vmatprep.mubr.bf16.mxu0 0
      %2340 = vmatmul.mubr.bf16.gmra.mrb[0].mxu0 %v2122
      %v2341 = vpop.f32.mrb[0].mxu0
      %v2342 = vadd.f32 0.0, %v2341
      %v2343 = vpop.f32.mrb[0].mxu0
      %v2344 = vpop.f32.mrb[0].mxu0
      %v2345 = vadd.f32 0.0, %v2344
      %v2346 = vpop.f32.mrb[0].mxu0
      %2347 = vmatprep.mubr.bf16.mxu0 0
      %2348 = vmatmul.mubr.bf16.gmra.mrb[0].mxu0 %v2124
      %v2349 = vpop.f32.mrb[0].mxu0
      %v2350 = vadd.f32 0.0, %v2349
      %v2351 = vpop.f32.mrb[0].mxu0
      %v2352 = vpop.f32.mrb[0].mxu0
      %v2353 = vadd.f32 0.0, %v2352
      %v2354 = vpop.f32.mrb[0].mxu0
      %2355 = vmatprep.mubr.bf16.mxu0 0
      %2356 = vmatmul.mubr.bf16.gmra.mrb[0].mxu0 %v2126
      %v2357 = vpop.f32.mrb[0].mxu0
      %v2358 = vadd.f32 0.0, %v2357
      %v2359 = vpop.f32.mrb[0].mxu0
      %v2360 = vpop.f32.mrb[0].mxu0
      %v2361 = vadd.f32 0.0, %v2360
      %v2362 = vpop.f32.mrb[0].mxu0
      %2363 = vmatprep.mubr.bf16.mxu0 0
      %2364 = vmatmul.mubr.bf16.gmra.mrb[0].mxu0 %v2128
      %v2365 = vpop.f32.mrb[0].mxu0
      %v2366 = vadd.f32 0.0, %v2365
      %v2367 = vpop.f32.mrb[0].mxu0
      %v2368 = vpop.f32.mrb[0].mxu0
      %v2369 = vadd.f32 0.0, %v2368
      %v2370 = vpop.f32.mrb[0].mxu0
      %2371 = vdwg.mxu0
      %v2372 = vld [vmem:[#allocation2] sm:$0xff]
      %v2373 = vld [vmem:[#allocation2 + $0x8] sm:$0xff]
      %v2374 = vld [vmem:[#allocation2 + $0x10] sm:$0xff]
      %v2375 = vld [vmem:[#allocation2 + $0x18] sm:$0xff]
      %v2376 = vld [vmem:[#allocation2 + $0x20] sm:$0xff]
      %v2377 = vld [vmem:[#allocation2 + $0x28] sm:$0xff]
      %v2378 = vld [vmem:[#allocation2 + $0x30] sm:$0xff]
      %v2379 = vld [vmem:[#allocation2 + $0x38] sm:$0xff]
      %v2380 = vld [vmem:[#allocation2 + $0x40] sm:$0xff]
      %v2381 = vld [vmem:[#allocation2 + $0x48] sm:$0xff]
      %v2382 = vld [vmem:[#allocation2 + $0x50] sm:$0xff]
      %v2383 = vld [vmem:[#allocation2 + $0x58] sm:$0xff]
      %v2384 = vld [vmem:[#allocation2 + $0x60] sm:$0xff]
      %v2385 = vld [vmem:[#allocation2 + $0x68] sm:$0xff]
      %v2386 = vld [vmem:[#allocation2 + $0x70] sm:$0xff]
      %v2387 = vld [vmem:[#allocation2 + $0x78] sm:$0xff]
      %v2388 = vld [vmem:[#allocation2 + $0x80] sm:$0xff]
      %v2389 = vld [vmem:[#allocation2 + $0x88] sm:$0xff]
      %v2390 = vld [vmem:[#allocation2 + $0x90] sm:$0xff]
      %v2391 = vld [vmem:[#allocation2 + $0x98] sm:$0xff]
      %v2392 = vld [vmem:[#allocation2 + $0xa0] sm:$0xff]
      %v2393 = vld [vmem:[#allocation2 + $0xa8] sm:$0xff]
      %v2394 = vld [vmem:[#allocation2 + $0xb0] sm:$0xff]
      %v2395 = vld [vmem:[#allocation2 + $0xb8] sm:$0xff]
      %v2396 = vld [vmem:[#allocation2 + $0xc0] sm:$0xff]
      %v2397 = vld [vmem:[#allocation2 + $0xc8] sm:$0xff]
      %v2398 = vld [vmem:[#allocation2 + $0xd0] sm:$0xff]
      %v2399 = vld [vmem:[#allocation2 + $0xd8] sm:$0xff]
      %v2400 = vld [vmem:[#allocation2 + $0xe0] sm:$0xff]
      %v2401 = vld [vmem:[#allocation2 + $0xe8] sm:$0xff]
      %v2402 = vld [vmem:[#allocation2 + $0xf0] sm:$0xff]
      %v2403 = vld [vmem:[#allocation2 + $0xf8] sm:$0xff]
      %v2404 = vld [vmem:[#allocation2 + $0x100] sm:$0xff]
      %v2405 = vld [vmem:[#allocation2 + $0x108] sm:$0xff]
      %v2406 = vld [vmem:[#allocation2 + $0x110] sm:$0xff]
      %v2407 = vld [vmem:[#allocation2 + $0x118] sm:$0xff]
      %v2408 = vadd.f32 %v2372, %v2230
      %v2409 = vadd.f32 %v2373, %v2233
      %v2410 = vadd.f32 %v2374, %v2238
      %v2411 = vadd.f32 %v2375, %v2241
      %v2412 = vadd.f32 %v2376, %v2246
      %v2413 = vadd.f32 %v2377, %v2249
      %v2414 = vadd.f32 %v2378, %v2254
      %v2415 = vadd.f32 %v2379, %v2257
      %v2416 = vadd.f32 %v2380, %v2262
      %v2417 = vadd.f32 %v2381, %v2265
      %v2418 = vadd.f32 %v2382, %v2270
      %v2419 = vadd.f32 %v2383, %v2273
      %v2420 = vadd.f32 %v2384, %v2278
      %v2421 = vadd.f32 %v2385, %v2281
      %v2422 = vadd.f32 %v2386, %v2286
      %v2423 = vadd.f32 %v2387, %v2289
      %v2424 = vadd.f32 %v2388, %v2294
      %v2425 = vadd.f32 %v2389, %v2297
      %v2426 = vadd.f32 %v2390, %v2302
      %v2427 = vadd.f32 %v2391, %v2305
      %v2428 = vadd.f32 %v2392, %v2310
      %v2429 = vadd.f32 %v2393, %v2313
      %v2430 = vadd.f32 %v2394, %v2318
      %v2431 = vadd.f32 %v2395, %v2321
      %v2432 = vadd.f32 %v2396, %v2326
      %v2433 = vadd.f32 %v2397, %v2329
      %v2434 = vadd.f32 %v2398, %v2334
      %v2435 = vadd.f32 %v2399, %v2337
      %v2436 = vadd.f32 %v2400, %v2342
      %v2437 = vadd.f32 %v2401, %v2345
      %v2438 = vadd.f32 %v2402, %v2350
      %v2439 = vadd.f32 %v2403, %v2353
      %v2440 = vadd.f32 %v2404, %v2358
      %v2441 = vadd.f32 %v2405, %v2361
      %v2442 = vadd.f32 %v2406, %v2366
      %v2443 = vadd.f32 %v2407, %v2369
      %2444 = vst [vmem:[#allocation2] sm:$0xff] %v2408
      %2445 = vst [vmem:[#allocation2 + $0x8] sm:$0xff] %v2409
      %2446 = vst [vmem:[#allocation2 + $0x10] sm:$0xff] %v2410
      %2447 = vst [vmem:[#allocation2 + $0x18] sm:$0xff] %v2411
      %2448 = vst [vmem:[#allocation2 + $0x20] sm:$0xff] %v2412
      %2449 = vst [vmem:[#allocation2 + $0x28] sm:$0xff] %v2413
      %2450 = vst [vmem:[#allocation2 + $0x30] sm:$0xff] %v2414
      %2451 = vst [vmem:[#allocation2 + $0x38] sm:$0xff] %v2415
      %2452 = vst [vmem:[#allocation2 + $0x40] sm:$0xff] %v2416
      %2453 = vst [vmem:[#allocation2 + $0x48] sm:$0xff] %v2417
      %2454 = vst [vmem:[#allocation2 + $0x50] sm:$0xff] %v2418
      %2455 = vst [vmem:[#allocation2 + $0x58] sm:$0xff] %v2419
      %2456 = vst [vmem:[#allocation2 + $0x60] sm:$0xff] %v2420
      %2457 = vst [vmem:[#allocation2 + $0x68] sm:$0xff] %v2421
      %2458 = vst [vmem:[#allocation2 + $0x70] sm:$0xff] %v2422
      %2459 = vst [vmem:[#allocation2 + $0x78] sm:$0xff] %v2423
      %2460 = vst [vmem:[#allocation2 + $0x80] sm:$0xff] %v2424
      %2461 = vst [vmem:[#allocation2 + $0x88] sm:$0xff] %v2425
      %2462 = vst [vmem:[#allocation2 + $0x90] sm:$0xff] %v2426
      %2463 = vst [vmem:[#allocation2 + $0x98] sm:$0xff] %v2427
      %2464 = vst [vmem:[#allocation2 + $0xa0] sm:$0xff] %v2428
      %2465 = vst [vmem:[#allocation2 + $0xa8] sm:$0xff] %v2429
      %2466 = vst [vmem:[#allocation2 + $0xb0] sm:$0xff] %v2430
      %2467 = vst [vmem:[#allocation2 + $0xb8] sm:$0xff] %v2431
      %2468 = vst [vmem:[#allocation2 + $0xc0] sm:$0xff] %v2432
      %2469 = vst [vmem:[#allocation2 + $0xc8] sm:$0xff] %v2433
      %2470 = vst [vmem:[#allocation2 + $0xd0] sm:$0xff] %v2434
      %2471 = vst [vmem:[#allocation2 + $0xd8] sm:$0xff] %v2435
      %2472 = vst [vmem:[#allocation2 + $0xe0] sm:$0xff] %v2436
      %2473 = vst [vmem:[#allocation2 + $0xe8] sm:$0xff] %v2437
      %2474 = vst [vmem:[#allocation2 + $0xf0] sm:$0xff] %v2438
      %2475 = vst [vmem:[#allocation2 + $0xf8] sm:$0xff] %v2439
      %2476 = vst [vmem:[#allocation2 + $0x100] sm:$0xff] %v2440
      %2477 = vst [vmem:[#allocation2 + $0x108] sm:$0xff] %v2441
      %2478 = vst [vmem:[#allocation2 + $0x110] sm:$0xff] %v2442
      %2479 = vst [vmem:[#allocation2 + $0x118] sm:$0xff] %v2443
      %v2480 = vld [vmem:[%s304 + $0x8] sm:$0xe]
      %v2481 = vld [vmem:[%s304 + $0xc] sm:$0xf]
      %v2482 = vld [vmem:[%s304 + $0x10] sm:$0xf]
      %v2483 = vld [vmem:[%s304 + $0x14] sm:$0xf]
      %v2484 = vld [vmem:[%s304 + $0x18] sm:$0xf]
      %v2485 = vld [vmem:[%s304 + $0x1c] sm:$0xf]
      %v2486 = vld [vmem:[%s304 + $0x20] sm:$0xf]
      %v2487 = vld [vmem:[%s304 + $0x24] sm:$0xf]
      %v2488 = vld [vmem:[%s304 + $0x28] sm:$0xf]
      %v2489 = vld [vmem:[%s304 + $0x2c] sm:$0xf]
      %v2490 = vld [vmem:[%s304 + $0x30] sm:$0xf]
      %v2491 = vld [vmem:[%s304 + $0x34] sm:$0xf]
      %v2492 = vld [vmem:[%s304 + $0x38] sm:$0xf]
      %v2493 = vld [vmem:[%s304 + $0x3c] sm:$0xf]
      %v2494 = vld [vmem:[%s304 + $0x40] sm:$0xf]
      %v2495 = vld [vmem:[%s304 + $0x44] sm:$0xf]
      %v2496 = vld [vmem:[%s304 + $0x48] sm:$0xf]
      %v2497 = vld [vmem:[%s304 + $0x4c] sm:$0xf]
      %v2498 = vld [vmem:[%s304 + $0x50] sm:$0xf]
      %v2499 = vld [vmem:[%s304 + $0x54] sm:$0xf]
      %v2500 = vld [vmem:[%s304 + $0x58] sm:$0xf]
      %v2501 = vld [vmem:[%s304 + $0x5c] sm:$0xf]
      %v2502 = vld [vmem:[%s304 + $0x60] sm:$0xf]
      %v2503 = vld [vmem:[%s304 + $0x64] sm:$0xf]
      %v2504 = vld [vmem:[%s304 + $0x68] sm:$0xf]
      %v2505 = vld [vmem:[%s304 + $0x6c] sm:$0xf]
      %v2506 = vld [vmem:[%s304 + $0x70] sm:$0xf]
      %v2507 = vld [vmem:[%s304 + $0x74] sm:$0xf]
      %v2508 = vld [vmem:[%s304 + $0x78] sm:$0xf]
      %v2509 = vld [vmem:[%s304 + $0x7c] sm:$0xf]
      %v2510 = vld [vmem:[%s304 + $0x80] sm:$0xf]
      %v2511 = vld [vmem:[%s304 + $0x84] sm:$0xf]
      %v2512 = vld [vmem:[%s304 + $0x88] sm:$0xf]
      %v2513 = vld [vmem:[%s304 + $0x8c] sm:$0xf]
      %v2514 = vld [vmem:[%s304 + $0x90] sm:$0xf]
      %v2515 = vld [vmem:[%s304 + $0x94] sm:$0xf]
      %v2516 = vld [vmem:[%s304 + $0x98] sm:$0x3]
      %s2517 = scalar_lea.vmem %s308, 256
      %v2518 = vld [vmem:[%s2517] sm:$0xf]
      %v2519 = vld [vmem:[%s2517 + $0x4] sm:$0xf]
      %v2520 = vld [vmem:[%s2517 + $0x8] sm:$0xf]
      %v2521 = vld [vmem:[%s2517 + $0xc] sm:$0xf]
      %v2522 = vld [vmem:[%s2517 + $0x10] sm:$0xf]
      %v2523 = vld [vmem:[%s2517 + $0x14] sm:$0xf]
      %v2524 = vld [vmem:[%s2517 + $0x18] sm:$0xf]
      %v2525 = vld [vmem:[%s2517 + $0x1c] sm:$0xf]
      %v2526 = vld [vmem:[%s2517 + $0x20] sm:$0xf]
      %v2527 = vld [vmem:[%s2517 + $0x24] sm:$0xf]
      %v2528 = vld [vmem:[%s2517 + $0x28] sm:$0xf]
      %v2529 = vld [vmem:[%s2517 + $0x2c] sm:$0xf]
      %v2530 = vld [vmem:[%s2517 + $0x30] sm:$0xf]
      %v2531 = vld [vmem:[%s2517 + $0x34] sm:$0xf]
      %v2532 = vld [vmem:[%s2517 + $0x38] sm:$0xf]
      %v2533 = vld [vmem:[%s2517 + $0x3c] sm:$0xf]
      %v2571 = vunpack.c.l.b16 %v2480
      %v2572 = vunpack.c.l.b16 %v2481
      %v2573 = vunpack.c.l.b16 %v2482
      %v2574 = vunpack.c.l.b16 %v2483
      %v2575 = vunpack.c.l.b16 %v2484
      %v2576 = vunpack.c.l.b16 %v2485
      %v2577 = vunpack.c.l.b16 %v2486
      %v2578 = vunpack.c.l.b16 %v2487
      %v2579 = vunpack.c.l.b16 %v2488
      %v2580 = vunpack.c.l.b16 %v2489
      %v2581 = vunpack.c.l.b16 %v2490
      %v2582 = vunpack.c.l.b16 %v2491
      %v2583 = vunpack.c.l.b16 %v2492
      %v2584 = vunpack.c.l.b16 %v2493
      %v2585 = vunpack.c.l.b16 %v2494
      %v2586 = vunpack.c.l.b16 %v2495
      %v2587 = vunpack.c.l.b16 %v2496
      %v2588 = vunpack.c.l.b16 %v2497
      %v2589 = vunpack.c.l.b16 %v2498
      %v2590 = vunpack.c.l.b16 %v2499
      %v2591 = vunpack.c.l.b16 %v2500
      %v2592 = vunpack.c.l.b16 %v2501
      %v2593 = vunpack.c.l.b16 %v2502
      %v2594 = vunpack.c.l.b16 %v2503
      %v2595 = vunpack.c.l.b16 %v2504
      %v2596 = vunpack.c.l.b16 %v2505
      %v2597 = vunpack.c.l.b16 %v2506
      %v2598 = vunpack.c.l.b16 %v2507
      %v2599 = vunpack.c.l.b16 %v2508
      %v2600 = vunpack.c.l.b16 %v2509
      %v2601 = vunpack.c.l.b16 %v2510
      %v2602 = vunpack.c.l.b16 %v2511
      %v2603 = vunpack.c.l.b16 %v2512
      %v2604 = vunpack.c.l.b16 %v2513
      %v2605 = vunpack.c.l.b16 %v2514
      %v2606 = vunpack.c.l.b16 %v2515
      %v2607 = vunpack.c.l.b16 %v2516
      %v2608 = vpack.c.b16 %v2572, %v2571
      %v2609 = vpack.c.b16 %v2574, %v2573
      %v2610 = vpack.c.b16 %v2576, %v2575
      %v2611 = vpack.c.b16 %v2578, %v2577
      %v2612 = vpack.c.b16 %v2580, %v2579
      %v2613 = vpack.c.b16 %v2582, %v2581
      %v2614 = vpack.c.b16 %v2584, %v2583
      %v2615 = vpack.c.b16 %v2586, %v2585
      %v2616 = vpack.c.b16 %v2588, %v2587
      %v2617 = vpack.c.b16 %v2590, %v2589
      %v2618 = vpack.c.b16 %v2592, %v2591
      %v2619 = vpack.c.b16 %v2594, %v2593
      %v2620 = vpack.c.b16 %v2596, %v2595
      %v2621 = vpack.c.b16 %v2598, %v2597
      %v2622 = vpack.c.b16 %v2600, %v2599
      %v2623 = vpack.c.b16 %v2602, %v2601
      %v2624 = vpack.c.b16 %v2604, %v2603
      %v2625 = vpack.c.b16 %v2606, %v2605
      %v2626 = vpack.c.b16 %v2607, %v2607
      %vm2627 = vsmask.f32 6400
      %v2629 = vshrl.u32 %v2608, 16
      %v2631 = vrot.slane %v2629, 1
      %v2632 = vshll.u32 %v2608, 16
      %v2634 = vrot.slane %v2632, 2
      %v2635 = vor.u32 %v2631, %v2634
      %v2637 = vshrl.u32 %v2609, 16
      %v2639 = vrot.slane %v2637, 1
      %v2640 = vshll.u32 %v2609, 16
      %v2642 = vrot.slane %v2640, 2
      %v2643 = vor.u32 %v2639, %v2642
      %v2644 = vsel %vm2627, %v2635, %v2643
      %v2646 = vshrl.u32 %v2610, 16
      %v2648 = vrot.slane %v2646, 1
      %v2649 = vshll.u32 %v2610, 16
      %v2651 = vrot.slane %v2649, 2
      %v2652 = vor.u32 %v2648, %v2651
      %v2653 = vsel %vm2627, %v2643, %v2652
      %v2655 = vshrl.u32 %v2611, 16
      %v2657 = vrot.slane %v2655, 1
      %v2658 = vshll.u32 %v2611, 16
      %v2660 = vrot.slane %v2658, 2
      %v2661 = vor.u32 %v2657, %v2660
      %v2662 = vsel %vm2627, %v2652, %v2661
      %v2664 = vshrl.u32 %v2612, 16
      %v2666 = vrot.slane %v2664, 1
      %v2667 = vshll.u32 %v2612, 16
      %v2669 = vrot.slane %v2667, 2
      %v2670 = vor.u32 %v2666, %v2669
      %v2671 = vsel %vm2627, %v2661, %v2670
      %v2673 = vshrl.u32 %v2613, 16
      %v2675 = vrot.slane %v2673, 1
      %v2676 = vshll.u32 %v2613, 16
      %v2678 = vrot.slane %v2676, 2
      %v2679 = vor.u32 %v2675, %v2678
      %v2680 = vsel %vm2627, %v2670, %v2679
      %v2682 = vshrl.u32 %v2614, 16
      %v2684 = vrot.slane %v2682, 1
      %v2685 = vshll.u32 %v2614, 16
      %v2687 = vrot.slane %v2685, 2
      %v2688 = vor.u32 %v2684, %v2687
      %v2689 = vsel %vm2627, %v2679, %v2688
      %v2691 = vshrl.u32 %v2615, 16
      %v2693 = vrot.slane %v2691, 1
      %v2694 = vshll.u32 %v2615, 16
      %v2696 = vrot.slane %v2694, 2
      %v2697 = vor.u32 %v2693, %v2696
      %v2698 = vsel %vm2627, %v2688, %v2697
      %v2700 = vshrl.u32 %v2616, 16
      %v2702 = vrot.slane %v2700, 1
      %v2703 = vshll.u32 %v2616, 16
      %v2705 = vrot.slane %v2703, 2
      %v2706 = vor.u32 %v2702, %v2705
      %v2707 = vsel %vm2627, %v2697, %v2706
      %v2709 = vshrl.u32 %v2617, 16
      %v2711 = vrot.slane %v2709, 1
      %v2712 = vshll.u32 %v2617, 16
      %v2714 = vrot.slane %v2712, 2
      %v2715 = vor.u32 %v2711, %v2714
      %v2716 = vsel %vm2627, %v2706, %v2715
      %v2718 = vshrl.u32 %v2618, 16
      %v2720 = vrot.slane %v2718, 1
      %v2721 = vshll.u32 %v2618, 16
      %v2723 = vrot.slane %v2721, 2
      %v2724 = vor.u32 %v2720, %v2723
      %v2725 = vsel %vm2627, %v2715, %v2724
      %v2727 = vshrl.u32 %v2619, 16
      %v2729 = vrot.slane %v2727, 1
      %v2730 = vshll.u32 %v2619, 16
      %v2732 = vrot.slane %v2730, 2
      %v2733 = vor.u32 %v2729, %v2732
      %v2734 = vsel %vm2627, %v2724, %v2733
      %v2736 = vshrl.u32 %v2620, 16
      %v2738 = vrot.slane %v2736, 1
      %v2739 = vshll.u32 %v2620, 16
      %v2741 = vrot.slane %v2739, 2
      %v2742 = vor.u32 %v2738, %v2741
      %v2743 = vsel %vm2627, %v2733, %v2742
      %v2745 = vshrl.u32 %v2621, 16
      %v2747 = vrot.slane %v2745, 1
      %v2748 = vshll.u32 %v2621, 16
      %v2750 = vrot.slane %v2748, 2
      %v2751 = vor.u32 %v2747, %v2750
      %v2752 = vsel %vm2627, %v2742, %v2751
      %v2754 = vshrl.u32 %v2622, 16
      %v2756 = vrot.slane %v2754, 1
      %v2757 = vshll.u32 %v2622, 16
      %v2759 = vrot.slane %v2757, 2
      %v2760 = vor.u32 %v2756, %v2759
      %v2761 = vsel %vm2627, %v2751, %v2760
      %v2763 = vshrl.u32 %v2623, 16
      %v2765 = vrot.slane %v2763, 1
      %v2766 = vshll.u32 %v2623, 16
      %v2768 = vrot.slane %v2766, 2
      %v2769 = vor.u32 %v2765, %v2768
      %v2770 = vsel %vm2627, %v2760, %v2769
      %v2772 = vshrl.u32 %v2624, 16
      %v2774 = vrot.slane %v2772, 1
      %v2775 = vshll.u32 %v2624, 16
      %v2777 = vrot.slane %v2775, 2
      %v2778 = vor.u32 %v2774, %v2777
      %v2779 = vsel %vm2627, %v2769, %v2778
      %v2781 = vshrl.u32 %v2625, 16
      %v2783 = vrot.slane %v2781, 1
      %v2784 = vshll.u32 %v2625, 16
      %v2786 = vrot.slane %v2784, 2
      %v2787 = vor.u32 %v2783, %v2786
      %v2788 = vsel %vm2627, %v2778, %v2787
      %v2790 = vshrl.u32 %v2626, 16
      %v2792 = vrot.slane %v2790, 1
      %v2793 = vshll.u32 %v2626, 16
      %v2795 = vrot.slane %v2793, 2
      %v2796 = vor.u32 %v2792, %v2795
      %v2797 = vsel %vm2627, %v2787, %v2796
      %v2832 = vunpack.c.l.b16 %v2518
      %v2833 = vunpack.c.l.b16 %v2519
      %v2834 = vunpack.c.l.b16 %v2520
      %v2835 = vunpack.c.l.b16 %v2521
      %v2836 = vunpack.c.l.b16 %v2522
      %v2837 = vunpack.c.l.b16 %v2523
      %v2838 = vunpack.c.l.b16 %v2524
      %v2839 = vunpack.c.l.b16 %v2525
      %v2840 = vunpack.c.l.b16 %v2526
      %v2841 = vunpack.c.l.b16 %v2527
      %v2842 = vunpack.c.l.b16 %v2528
      %v2843 = vunpack.c.l.b16 %v2529
      %v2844 = vunpack.c.l.b16 %v2530
      %v2845 = vunpack.c.l.b16 %v2531
      %v2846 = vunpack.c.l.b16 %v2532
      %v2847 = vunpack.c.l.b16 %v2533
      %v2848 = vpack.c.b16 %v2833, %v2832
      %v2849 = vpack.c.b16 %v2835, %v2834
      %v2850 = vpack.c.b16 %v2837, %v2836
      %v2851 = vpack.c.b16 %v2839, %v2838
      %v2852 = vpack.c.b16 %v2841, %v2840
      %v2853 = vpack.c.b16 %v2843, %v2842
      %v2854 = vpack.c.b16 %v2845, %v2844
      %v2855 = vpack.c.b16 %v2847, %v2846
      %2864 = vmatprep.subr.bf16.mxu0 0
      %2865 = vmatpush1.bf16.msra.mxu0 %v2848
      %2866 = vmatprep.subr.bf16.mxu0 0
      %2867 = vmatpush1.bf16.msra.mxu0 %v2849
      %2868 = vmatprep.subr.bf16.mxu0 0
      %2869 = vmatpush1.bf16.msra.mxu0 %v2850
      %2870 = vmatprep.subr.bf16.mxu0 0
      %2871 = vmatpush1.bf16.msra.mxu0 %v2851
      %2872 = vmatprep.subr.bf16.mxu0 0
      %2873 = vmatpush1.bf16.msra.mxu0 %v2852
      %2874 = vmatprep.subr.bf16.mxu0 0
      %2875 = vmatpush1.bf16.msra.mxu0 %v2853
      %2876 = vmatprep.subr.bf16.mxu0 0
      %2877 = vmatpush1.bf16.msra.mxu0 %v2854
      %2878 = vmatprep.subr.bf16.mxu0 0
      %2879 = vmatpush1.bf16.msra.mxu0 %v2855
      %2880 = vmatprep.subr.bf16.mxu0 0
      %2881 = vmatpush1.bf16.msra.mxu0 0
      %2882 = vmatprep.subr.bf16.mxu0 0
      %2883 = vmatpush1.bf16.msra.mxu0 0
      %2884 = vmatprep.subr.bf16.mxu0 0
      %2885 = vmatpush1.bf16.msra.mxu0 0
      %2886 = vmatprep.subr.bf16.mxu0 0
      %2887 = vmatpush1.bf16.msra.mxu0 0
      %2888 = vmatprep.subr.bf16.mxu0 0
      %2889 = vmatpush1.bf16.msra.mxu0 0
      %2890 = vmatprep.subr.bf16.mxu0 0
      %2891 = vmatpush1.bf16.msra.mxu0 0
      %2892 = vmatprep.subr.bf16.mxu0 0
      %2893 = vmatpush1.bf16.msra.mxu0 0
      %2894 = vmatprep.subr.bf16.mxu0 0
      %2895 = vmatpush1.bf16.msra.mxu0 0
      %2896 = vmatprep.mubr.bf16.mxu0 0
      %2897 = vmatmul.mubr.bf16.gmra.mrb[0].mxu0 %v2644
      %v2898 = vpop.f32.mrb[0].mxu0
      %v2899 = vadd.f32 0.0, %v2898
      %v2900 = vpop.f32.mrb[0].mxu0
      %v2901 = vpop.f32.mrb[0].mxu0
      %v2902 = vadd.f32 0.0, %v2901
      %v2903 = vpop.f32.mrb[0].mxu0
      %2904 = vmatprep.mubr.bf16.mxu0 0
      %2905 = vmatmul.mubr.bf16.gmra.mrb[0].mxu0 %v2653
      %v2906 = vpop.f32.mrb[0].mxu0
      %v2907 = vadd.f32 0.0, %v2906
      %v2908 = vpop.f32.mrb[0].mxu0
      %v2909 = vpop.f32.mrb[0].mxu0
      %v2910 = vadd.f32 0.0, %v2909
      %v2911 = vpop.f32.mrb[0].mxu0
      %2912 = vmatprep.mubr.bf16.mxu0 0
      %2913 = vmatmul.mubr.bf16.gmra.mrb[0].mxu0 %v2662
      %v2914 = vpop.f32.mrb[0].mxu0
      %v2915 = vadd.f32 0.0, %v2914
      %v2916 = vpop.f32.mrb[0].mxu0
      %v2917 = vpop.f32.mrb[0].mxu0
      %v2918 = vadd.f32 0.0, %v2917
      %v2919 = vpop.f32.mrb[0].mxu0
      %2920 = vmatprep.mubr.bf16.mxu0 0
      %2921 = vmatmul.mubr.bf16.gmra.mrb[0].mxu0 %v2671
      %v2922 = vpop.f32.mrb[0].mxu0
      %v2923 = vadd.f32 0.0, %v2922
      %v2924 = vpop.f32.mrb[0].mxu0
      %v2925 = vpop.f32.mrb[0].mxu0
      %v2926 = vadd.f32 0.0, %v2925
      %v2927 = vpop.f32.mrb[0].mxu0
      %2928 = vmatprep.mubr.bf16.mxu0 0
      %2929 = vmatmul.mubr.bf16.gmra.mrb[0].mxu0 %v2680
      %v2930 = vpop.f32.mrb[0].mxu0
      %v2931 = vadd.f32 0.0, %v2930
      %v2932 = vpop.f32.mrb[0].mxu0
      %v2933 = vpop.f32.mrb[0].mxu0
      %v2934 = vadd.f32 0.0, %v2933
      %v2935 = vpop.f32.mrb[0].mxu0
      %2936 = vmatprep.mubr.bf16.mxu0 0
      %2937 = vmatmul.mubr.bf16.gmra.mrb[0].mxu0 %v2689
      %v2938 = vpop.f32.mrb[0].mxu0
      %v2939 = vadd.f32 0.0, %v2938
      %v2940 = vpop.f32.mrb[0].mxu0
      %v2941 = vpop.f32.mrb[0].mxu0
      %v2942 = vadd.f32 0.0, %v2941
      %v2943 = vpop.f32.mrb[0].mxu0
      %2944 = vmatprep.mubr.bf16.mxu0 0
      %2945 = vmatmul.mubr.bf16.gmra.mrb[0].mxu0 %v2698
      %v2946 = vpop.f32.mrb[0].mxu0
      %v2947 = vadd.f32 0.0, %v2946
      %v2948 = vpop.f32.mrb[0].mxu0
      %v2949 = vpop.f32.mrb[0].mxu0
      %v2950 = vadd.f32 0.0, %v2949
      %v2951 = vpop.f32.mrb[0].mxu0
      %2952 = vmatprep.mubr.bf16.mxu0 0
      %2953 = vmatmul.mubr.bf16.gmra.mrb[0].mxu0 %v2707
      %v2954 = vpop.f32.mrb[0].mxu0
      %v2955 = vadd.f32 0.0, %v2954
      %v2956 = vpop.f32.mrb[0].mxu0
      %v2957 = vpop.f32.mrb[0].mxu0
      %v2958 = vadd.f32 0.0, %v2957
      %v2959 = vpop.f32.mrb[0].mxu0
      %2960 = vmatprep.mubr.bf16.mxu0 0
      %2961 = vmatmul.mubr.bf16.gmra.mrb[0].mxu0 %v2716
      %v2962 = vpop.f32.mrb[0].mxu0
      %v2963 = vadd.f32 0.0, %v2962
      %v2964 = vpop.f32.mrb[0].mxu0
      %v2965 = vpop.f32.mrb[0].mxu0
      %v2966 = vadd.f32 0.0, %v2965
      %v2967 = vpop.f32.mrb[0].mxu0
      %2968 = vmatprep.mubr.bf16.mxu0 0
      %2969 = vmatmul.mubr.bf16.gmra.mrb[0].mxu0 %v2725
      %v2970 = vpop.f32.mrb[0].mxu0
      %v2971 = vadd.f32 0.0, %v2970
      %v2972 = vpop.f32.mrb[0].mxu0
      %v2973 = vpop.f32.mrb[0].mxu0
      %v2974 = vadd.f32 0.0, %v2973
      %v2975 = vpop.f32.mrb[0].mxu0
      %2976 = vmatprep.mubr.bf16.mxu0 0
      %2977 = vmatmul.mubr.bf16.gmra.mrb[0].mxu0 %v2734
      %v2978 = vpop.f32.mrb[0].mxu0
      %v2979 = vadd.f32 0.0, %v2978
      %v2980 = vpop.f32.mrb[0].mxu0
      %v2981 = vpop.f32.mrb[0].mxu0
      %v2982 = vadd.f32 0.0, %v2981
      %v2983 = vpop.f32.mrb[0].mxu0
      %2984 = vmatprep.mubr.bf16.mxu0 0
      %2985 = vmatmul.mubr.bf16.gmra.mrb[0].mxu0 %v2743
      %v2986 = vpop.f32.mrb[0].mxu0
      %v2987 = vadd.f32 0.0, %v2986
      %v2988 = vpop.f32.mrb[0].mxu0
      %v2989 = vpop.f32.mrb[0].mxu0
      %v2990 = vadd.f32 0.0, %v2989
      %v2991 = vpop.f32.mrb[0].mxu0
      %2992 = vmatprep.mubr.bf16.mxu0 0
      %2993 = vmatmul.mubr.bf16.gmra.mrb[0].mxu0 %v2752
      %v2994 = vpop.f32.mrb[0].mxu0
      %v2995 = vadd.f32 0.0, %v2994
      %v2996 = vpop.f32.mrb[0].mxu0
      %v2997 = vpop.f32.mrb[0].mxu0
      %v2998 = vadd.f32 0.0, %v2997
      %v2999 = vpop.f32.mrb[0].mxu0
      %3000 = vmatprep.mubr.bf16.mxu0 0
      %3001 = vmatmul.mubr.bf16.gmra.mrb[0].mxu0 %v2761
      %v3002 = vpop.f32.mrb[0].mxu0
      %v3003 = vadd.f32 0.0, %v3002
      %v3004 = vpop.f32.mrb[0].mxu0
      %v3005 = vpop.f32.mrb[0].mxu0
      %v3006 = vadd.f32 0.0, %v3005
      %v3007 = vpop.f32.mrb[0].mxu0
      %3008 = vmatprep.mubr.bf16.mxu0 0
      %3009 = vmatmul.mubr.bf16.gmra.mrb[0].mxu0 %v2770
      %v3010 = vpop.f32.mrb[0].mxu0
      %v3011 = vadd.f32 0.0, %v3010
      %v3012 = vpop.f32.mrb[0].mxu0
      %v3013 = vpop.f32.mrb[0].mxu0
      %v3014 = vadd.f32 0.0, %v3013
      %v3015 = vpop.f32.mrb[0].mxu0
      %3016 = vmatprep.mubr.bf16.mxu0 0
      %3017 = vmatmul.mubr.bf16.gmra.mrb[0].mxu0 %v2779
      %v3018 = vpop.f32.mrb[0].mxu0
      %v3019 = vadd.f32 0.0, %v3018
      %v3020 = vpop.f32.mrb[0].mxu0
      %v3021 = vpop.f32.mrb[0].mxu0
      %v3022 = vadd.f32 0.0, %v3021
      %v3023 = vpop.f32.mrb[0].mxu0
      %3024 = vmatprep.mubr.bf16.mxu0 0
      %3025 = vmatmul.mubr.bf16.gmra.mrb[0].mxu0 %v2788
      %v3026 = vpop.f32.mrb[0].mxu0
      %v3027 = vadd.f32 0.0, %v3026
      %v3028 = vpop.f32.mrb[0].mxu0
      %v3029 = vpop.f32.mrb[0].mxu0
      %v3030 = vadd.f32 0.0, %v3029
      %v3031 = vpop.f32.mrb[0].mxu0
      %3032 = vmatprep.mubr.bf16.mxu0 0
      %3033 = vmatmul.mubr.bf16.gmra.mrb[0].mxu0 %v2797
      %v3034 = vpop.f32.mrb[0].mxu0
      %v3035 = vadd.f32 0.0, %v3034
      %v3036 = vpop.f32.mrb[0].mxu0
      %v3037 = vpop.f32.mrb[0].mxu0
      %v3038 = vadd.f32 0.0, %v3037
      %v3039 = vpop.f32.mrb[0].mxu0
      %3040 = vdwg.mxu0
      %v3041 = vld [vmem:[#allocation2] sm:$0xff]
      %v3042 = vld [vmem:[#allocation2 + $0x8] sm:$0xff]
      %v3043 = vld [vmem:[#allocation2 + $0x10] sm:$0xff]
      %v3044 = vld [vmem:[#allocation2 + $0x18] sm:$0xff]
      %v3045 = vld [vmem:[#allocation2 + $0x20] sm:$0xff]
      %v3046 = vld [vmem:[#allocation2 + $0x28] sm:$0xff]
      %v3047 = vld [vmem:[#allocation2 + $0x30] sm:$0xff]
      %v3048 = vld [vmem:[#allocation2 + $0x38] sm:$0xff]
      %v3049 = vld [vmem:[#allocation2 + $0x40] sm:$0xff]
      %v3050 = vld [vmem:[#allocation2 + $0x48] sm:$0xff]
      %v3051 = vld [vmem:[#allocation2 + $0x50] sm:$0xff]
      %v3052 = vld [vmem:[#allocation2 + $0x58] sm:$0xff]
      %v3053 = vld [vmem:[#allocation2 + $0x60] sm:$0xff]
      %v3054 = vld [vmem:[#allocation2 + $0x68] sm:$0xff]
      %v3055 = vld [vmem:[#allocation2 + $0x70] sm:$0xff]
      %v3056 = vld [vmem:[#allocation2 + $0x78] sm:$0xff]
      %v3057 = vld [vmem:[#allocation2 + $0x80] sm:$0xff]
      %v3058 = vld [vmem:[#allocation2 + $0x88] sm:$0xff]
      %v3059 = vld [vmem:[#allocation2 + $0x90] sm:$0xff]
      %v3060 = vld [vmem:[#allocation2 + $0x98] sm:$0xff]
      %v3061 = vld [vmem:[#allocation2 + $0xa0] sm:$0xff]
      %v3062 = vld [vmem:[#allocation2 + $0xa8] sm:$0xff]
      %v3063 = vld [vmem:[#allocation2 + $0xb0] sm:$0xff]
      %v3064 = vld [vmem:[#allocation2 + $0xb8] sm:$0xff]
      %v3065 = vld [vmem:[#allocation2 + $0xc0] sm:$0xff]
      %v3066 = vld [vmem:[#allocation2 + $0xc8] sm:$0xff]
      %v3067 = vld [vmem:[#allocation2 + $0xd0] sm:$0xff]
      %v3068 = vld [vmem:[#allocation2 + $0xd8] sm:$0xff]
      %v3069 = vld [vmem:[#allocation2 + $0xe0] sm:$0xff]
      %v3070 = vld [vmem:[#allocation2 + $0xe8] sm:$0xff]
      %v3071 = vld [vmem:[#allocation2 + $0xf0] sm:$0xff]
      %v3072 = vld [vmem:[#allocation2 + $0xf8] sm:$0xff]
      %v3073 = vld [vmem:[#allocation2 + $0x100] sm:$0xff]
      %v3074 = vld [vmem:[#allocation2 + $0x108] sm:$0xff]
      %v3075 = vld [vmem:[#allocation2 + $0x110] sm:$0xff]
      %v3076 = vld [vmem:[#allocation2 + $0x118] sm:$0xff]
      %v3077 = vadd.f32 %v3041, %v2899
      %v3078 = vadd.f32 %v3042, %v2902
      %v3079 = vadd.f32 %v3043, %v2907
      %v3080 = vadd.f32 %v3044, %v2910
      %v3081 = vadd.f32 %v3045, %v2915
      %v3082 = vadd.f32 %v3046, %v2918
      %v3083 = vadd.f32 %v3047, %v2923
      %v3084 = vadd.f32 %v3048, %v2926
      %v3085 = vadd.f32 %v3049, %v2931
      %v3086 = vadd.f32 %v3050, %v2934
      %v3087 = vadd.f32 %v3051, %v2939
      %v3088 = vadd.f32 %v3052, %v2942
      %v3089 = vadd.f32 %v3053, %v2947
      %v3090 = vadd.f32 %v3054, %v2950
      %v3091 = vadd.f32 %v3055, %v2955
      %v3092 = vadd.f32 %v3056, %v2958
      %v3093 = vadd.f32 %v3057, %v2963
      %v3094 = vadd.f32 %v3058, %v2966
      %v3095 = vadd.f32 %v3059, %v2971
      %v3096 = vadd.f32 %v3060, %v2974
      %v3097 = vadd.f32 %v3061, %v2979
      %v3098 = vadd.f32 %v3062, %v2982
      %v3099 = vadd.f32 %v3063, %v2987
      %v3100 = vadd.f32 %v3064, %v2990
      %v3101 = vadd.f32 %v3065, %v2995
      %v3102 = vadd.f32 %v3066, %v2998
      %v3103 = vadd.f32 %v3067, %v3003
      %v3104 = vadd.f32 %v3068, %v3006
      %v3105 = vadd.f32 %v3069, %v3011
      %v3106 = vadd.f32 %v3070, %v3014
      %v3107 = vadd.f32 %v3071, %v3019
      %v3108 = vadd.f32 %v3072, %v3022
      %v3109 = vadd.f32 %v3073, %v3027
      %v3110 = vadd.f32 %v3074, %v3030
      %v3111 = vadd.f32 %v3075, %v3035
      %v3112 = vadd.f32 %v3076, %v3038
      %3113 = vst [vmem:[#allocation2] sm:$0xff] %v3077
      %3114 = vst [vmem:[#allocation2 + $0x8] sm:$0xff] %v3078
      %3115 = vst [vmem:[#allocation2 + $0x10] sm:$0xff] %v3079
      %3116 = vst [vmem:[#allocation2 + $0x18] sm:$0xff] %v3080
      %3117 = vst [vmem:[#allocation2 + $0x20] sm:$0xff] %v3081
      %3118 = vst [vmem:[#allocation2 + $0x28] sm:$0xff] %v3082
      %3119 = vst [vmem:[#allocation2 + $0x30] sm:$0xff] %v3083
      %3120 = vst [vmem:[#allocation2 + $0x38] sm:$0xff] %v3084
      %3121 = vst [vmem:[#allocation2 + $0x40] sm:$0xff] %v3085
      %3122 = vst [vmem:[#allocation2 + $0x48] sm:$0xff] %v3086
      %3123 = vst [vmem:[#allocation2 + $0x50] sm:$0xff] %v3087
      %3124 = vst [vmem:[#allocation2 + $0x58] sm:$0xff] %v3088
      %3125 = vst [vmem:[#allocation2 + $0x60] sm:$0xff] %v3089
      %3126 = vst [vmem:[#allocation2 + $0x68] sm:$0xff] %v3090
      %3127 = vst [vmem:[#allocation2 + $0x70] sm:$0xff] %v3091
      %3128 = vst [vmem:[#allocation2 + $0x78] sm:$0xff] %v3092
      %3129 = vst [vmem:[#allocation2 + $0x80] sm:$0xff] %v3093
      %3130 = vst [vmem:[#allocation2 + $0x88] sm:$0xff] %v3094
      %3131 = vst [vmem:[#allocation2 + $0x90] sm:$0xff] %v3095
      %3132 = vst [vmem:[#allocation2 + $0x98] sm:$0xff] %v3096
      %3133 = vst [vmem:[#allocation2 + $0xa0] sm:$0xff] %v3097
      %3134 = vst [vmem:[#allocation2 + $0xa8] sm:$0xff] %v3098
      %3135 = vst [vmem:[#allocation2 + $0xb0] sm:$0xff] %v3099
      %3136 = vst [vmem:[#allocation2 + $0xb8] sm:$0xff] %v3100
      %3137 = vst [vmem:[#allocation2 + $0xc0] sm:$0xff] %v3101
      %3138 = vst [vmem:[#allocation2 + $0xc8] sm:$0xff] %v3102
      %3139 = vst [vmem:[#allocation2 + $0xd0] sm:$0xff] %v3103
      %3140 = vst [vmem:[#allocation2 + $0xd8] sm:$0xff] %v3104
      %3141 = vst [vmem:[#allocation2 + $0xe0] sm:$0xff] %v3105
      %3142 = vst [vmem:[#allocation2 + $0xe8] sm:$0xff] %v3106
      %3143 = vst [vmem:[#allocation2 + $0xf0] sm:$0xff] %v3107
      %3144 = vst [vmem:[#allocation2 + $0xf8] sm:$0xff] %v3108
      %3145 = vst [vmem:[#allocation2 + $0x100] sm:$0xff] %v3109
      %3146 = vst [vmem:[#allocation2 + $0x108] sm:$0xff] %v3110
      %3147 = vst [vmem:[#allocation2 + $0x110] sm:$0xff] %v3111
      %3148 = vst [vmem:[#allocation2 + $0x118] sm:$0xff] %v3112
      %v3149 = vld [vmem:[%s304 + $0x8] sm:$0xc]
      %v3150 = vld [vmem:[%s304 + $0xc] sm:$0xf]
      %v3151 = vld [vmem:[%s304 + $0x10] sm:$0xf]
      %v3152 = vld [vmem:[%s304 + $0x14] sm:$0xf]
      %v3153 = vld [vmem:[%s304 + $0x18] sm:$0xf]
      %v3154 = vld [vmem:[%s304 + $0x1c] sm:$0xf]
      %v3155 = vld [vmem:[%s304 + $0x20] sm:$0xf]
      %v3156 = vld [vmem:[%s304 + $0x24] sm:$0xf]
      %v3157 = vld [vmem:[%s304 + $0x28] sm:$0xf]
      %v3158 = vld [vmem:[%s304 + $0x2c] sm:$0xf]
      %v3159 = vld [vmem:[%s304 + $0x30] sm:$0xf]
      %v3160 = vld [vmem:[%s304 + $0x34] sm:$0xf]
      %v3161 = vld [vmem:[%s304 + $0x38] sm:$0xf]
      %v3162 = vld [vmem:[%s304 + $0x3c] sm:$0xf]
      %v3163 = vld [vmem:[%s304 + $0x40] sm:$0xf]
      %v3164 = vld [vmem:[%s304 + $0x44] sm:$0xf]
      %v3165 = vld [vmem:[%s304 + $0x48] sm:$0xf]
      %v3166 = vld [vmem:[%s304 + $0x4c] sm:$0xf]
      %v3167 = vld [vmem:[%s304 + $0x50] sm:$0xf]
      %v3168 = vld [vmem:[%s304 + $0x54] sm:$0xf]
      %v3169 = vld [vmem:[%s304 + $0x58] sm:$0xf]
      %v3170 = vld [vmem:[%s304 + $0x5c] sm:$0xf]
      %v3171 = vld [vmem:[%s304 + $0x60] sm:$0xf]
      %v3172 = vld [vmem:[%s304 + $0x64] sm:$0xf]
      %v3173 = vld [vmem:[%s304 + $0x68] sm:$0xf]
      %v3174 = vld [vmem:[%s304 + $0x6c] sm:$0xf]
      %v3175 = vld [vmem:[%s304 + $0x70] sm:$0xf]
      %v3176 = vld [vmem:[%s304 + $0x74] sm:$0xf]
      %v3177 = vld [vmem:[%s304 + $0x78] sm:$0xf]
      %v3178 = vld [vmem:[%s304 + $0x7c] sm:$0xf]
      %v3179 = vld [vmem:[%s304 + $0x80] sm:$0xf]
      %v3180 = vld [vmem:[%s304 + $0x84] sm:$0xf]
      %v3181 = vld [vmem:[%s304 + $0x88] sm:$0xf]
      %v3182 = vld [vmem:[%s304 + $0x8c] sm:$0xf]
      %v3183 = vld [vmem:[%s304 + $0x90] sm:$0xf]
      %v3184 = vld [vmem:[%s304 + $0x94] sm:$0xf]
      %v3185 = vld [vmem:[%s304 + $0x98] sm:$0x3]
      %s3186 = scalar_lea.vmem %s308, 320
      %v3187 = vld [vmem:[%s3186] sm:$0xf]
      %v3188 = vld [vmem:[%s3186 + $0x4] sm:$0xf]
      %v3189 = vld [vmem:[%s3186 + $0x8] sm:$0xf]
      %v3190 = vld [vmem:[%s3186 + $0xc] sm:$0xf]
      %v3191 = vld [vmem:[%s3186 + $0x10] sm:$0xf]
      %v3192 = vld [vmem:[%s3186 + $0x14] sm:$0xf]
      %v3193 = vld [vmem:[%s3186 + $0x18] sm:$0xf]
      %v3194 = vld [vmem:[%s3186 + $0x1c] sm:$0xf]
      %v3195 = vld [vmem:[%s3186 + $0x20] sm:$0xf]
      %v3196 = vld [vmem:[%s3186 + $0x24] sm:$0xf]
      %v3197 = vld [vmem:[%s3186 + $0x28] sm:$0xf]
      %v3198 = vld [vmem:[%s3186 + $0x2c] sm:$0xf]
      %v3199 = vld [vmem:[%s3186 + $0x30] sm:$0xf]
      %v3200 = vld [vmem:[%s3186 + $0x34] sm:$0xf]
      %v3201 = vld [vmem:[%s3186 + $0x38] sm:$0xf]
      %v3202 = vld [vmem:[%s3186 + $0x3c] sm:$0xf]
      %v3240 = vunpack.c.l.b16 %v3149
      %v3241 = vunpack.c.l.b16 %v3150
      %v3242 = vunpack.c.l.b16 %v3151
      %v3243 = vunpack.c.l.b16 %v3152
      %v3244 = vunpack.c.l.b16 %v3153
      %v3245 = vunpack.c.l.b16 %v3154
      %v3246 = vunpack.c.l.b16 %v3155
      %v3247 = vunpack.c.l.b16 %v3156
      %v3248 = vunpack.c.l.b16 %v3157
      %v3249 = vunpack.c.l.b16 %v3158
      %v3250 = vunpack.c.l.b16 %v3159
      %v3251 = vunpack.c.l.b16 %v3160
      %v3252 = vunpack.c.l.b16 %v3161
      %v3253 = vunpack.c.l.b16 %v3162
      %v3254 = vunpack.c.l.b16 %v3163
      %v3255 = vunpack.c.l.b16 %v3164
      %v3256 = vunpack.c.l.b16 %v3165
      %v3257 = vunpack.c.l.b16 %v3166
      %v3258 = vunpack.c.l.b16 %v3167
      %v3259 = vunpack.c.l.b16 %v3168
      %v3260 = vunpack.c.l.b16 %v3169
      %v3261 = vunpack.c.l.b16 %v3170
      %v3262 = vunpack.c.l.b16 %v3171
      %v3263 = vunpack.c.l.b16 %v3172
      %v3264 = vunpack.c.l.b16 %v3173
      %v3265 = vunpack.c.l.b16 %v3174
      %v3266 = vunpack.c.l.b16 %v3175
      %v3267 = vunpack.c.l.b16 %v3176
      %v3268 = vunpack.c.l.b16 %v3177
      %v3269 = vunpack.c.l.b16 %v3178
      %v3270 = vunpack.c.l.b16 %v3179
      %v3271 = vunpack.c.l.b16 %v3180
      %v3272 = vunpack.c.l.b16 %v3181
      %v3273 = vunpack.c.l.b16 %v3182
      %v3274 = vunpack.c.l.b16 %v3183
      %v3275 = vunpack.c.l.b16 %v3184
      %v3276 = vunpack.c.l.b16 %v3185
      %v3277 = vpack.c.b16 %v3241, %v3240
      %v3278 = vpack.c.b16 %v3243, %v3242
      %v3279 = vpack.c.b16 %v3245, %v3244
      %v3280 = vpack.c.b16 %v3247, %v3246
      %v3281 = vpack.c.b16 %v3249, %v3248
      %v3282 = vpack.c.b16 %v3251, %v3250
      %v3283 = vpack.c.b16 %v3253, %v3252
      %v3284 = vpack.c.b16 %v3255, %v3254
      %v3285 = vpack.c.b16 %v3257, %v3256
      %v3286 = vpack.c.b16 %v3259, %v3258
      %v3287 = vpack.c.b16 %v3261, %v3260
      %v3288 = vpack.c.b16 %v3263, %v3262
      %v3289 = vpack.c.b16 %v3265, %v3264
      %v3290 = vpack.c.b16 %v3267, %v3266
      %v3291 = vpack.c.b16 %v3269, %v3268
      %v3292 = vpack.c.b16 %v3271, %v3270
      %v3293 = vpack.c.b16 %v3273, %v3272
      %v3294 = vpack.c.b16 %v3275, %v3274
      %v3295 = vpack.c.b16 %v3276, %v3276
      %vm3296 = vcmask 1045504
      %v3297 = vrot.slane %v3277, 2
      %v3298 = vrot.slane %v3278, 2
      %v3299 = vsel %vm3296, %v3297, %v3298
      %v3300 = vrot.slane %v3279, 2
      %v3301 = vsel %vm3296, %v3298, %v3300
      %v3302 = vrot.slane %v3280, 2
      %v3303 = vsel %vm3296, %v3300, %v3302
      %v3304 = vrot.slane %v3281, 2
      %v3305 = vsel %vm3296, %v3302, %v3304
      %v3306 = vrot.slane %v3282, 2
      %v3307 = vsel %vm3296, %v3304, %v3306
      %v3308 = vrot.slane %v3283, 2
      %v3309 = vsel %vm3296, %v3306, %v3308
      %v3310 = vrot.slane %v3284, 2
      %v3311 = vsel %vm3296, %v3308, %v3310
      %v3312 = vrot.slane %v3285, 2
      %v3313 = vsel %vm3296, %v3310, %v3312
      %v3314 = vrot.slane %v3286, 2
      %v3315 = vsel %vm3296, %v3312, %v3314
      %v3316 = vrot.slane %v3287, 2
      %v3317 = vsel %vm3296, %v3314, %v3316
      %v3318 = vrot.slane %v3288, 2
      %v3319 = vsel %vm3296, %v3316, %v3318
      %v3320 = vrot.slane %v3289, 2
      %v3321 = vsel %vm3296, %v3318, %v3320
      %v3322 = vrot.slane %v3290, 2
      %v3323 = vsel %vm3296, %v3320, %v3322
      %v3324 = vrot.slane %v3291, 2
      %v3325 = vsel %vm3296, %v3322, %v3324
      %v3326 = vrot.slane %v3292, 2
      %v3327 = vsel %vm3296, %v3324, %v3326
      %v3328 = vrot.slane %v3293, 2
      %v3329 = vsel %vm3296, %v3326, %v3328
      %v3330 = vrot.slane %v3294, 2
      %v3331 = vsel %vm3296, %v3328, %v3330
      %v3332 = vrot.slane %v3295, 2
      %v3333 = vsel %vm3296, %v3330, %v3332
      %v3368 = vunpack.c.l.b16 %v3187
      %v3369 = vunpack.c.l.b16 %v3188
      %v3370 = vunpack.c.l.b16 %v3189
      %v3371 = vunpack.c.l.b16 %v3190
      %v3372 = vunpack.c.l.b16 %v3191
      %v3373 = vunpack.c.l.b16 %v3192
      %v3374 = vunpack.c.l.b16 %v3193
      %v3375 = vunpack.c.l.b16 %v3194
      %v3376 = vunpack.c.l.b16 %v3195
      %v3377 = vunpack.c.l.b16 %v3196
      %v3378 = vunpack.c.l.b16 %v3197
      %v3379 = vunpack.c.l.b16 %v3198
      %v3380 = vunpack.c.l.b16 %v3199
      %v3381 = vunpack.c.l.b16 %v3200
      %v3382 = vunpack.c.l.b16 %v3201
      %v3383 = vunpack.c.l.b16 %v3202
      %v3384 = vpack.c.b16 %v3369, %v3368
      %v3385 = vpack.c.b16 %v3371, %v3370
      %v3386 = vpack.c.b16 %v3373, %v3372
      %v3387 = vpack.c.b16 %v3375, %v3374
      %v3388 = vpack.c.b16 %v3377, %v3376
      %v3389 = vpack.c.b16 %v3379, %v3378
      %v3390 = vpack.c.b16 %v3381, %v3380
      %v3391 = vpack.c.b16 %v3383, %v3382
      %3400 = vmatprep.subr.bf16.mxu0 0
      %3401 = vmatpush1.bf16.msra.mxu0 %v3384
      %3402 = vmatprep.subr.bf16.mxu0 0
      %3403 = vmatpush1.bf16.msra.mxu0 %v3385
      %3404 = vmatprep.subr.bf16.mxu0 0
      %3405 = vmatpush1.bf16.msra.mxu0 %v3386
      %3406 = vmatprep.subr.bf16.mxu0 0
      %3407 = vmatpush1.bf16.msra.mxu0 %v3387
      %3408 = vmatprep.subr.bf16.mxu0 0
      %3409 = vmatpush1.bf16.msra.mxu0 %v3388
      %3410 = vmatprep.subr.bf16.mxu0 0
      %3411 = vmatpush1.bf16.msra.mxu0 %v3389
      %3412 = vmatprep.subr.bf16.mxu0 0
      %3413 = vmatpush1.bf16.msra.mxu0 %v3390
      %3414 = vmatprep.subr.bf16.mxu0 0
      %3415 = vmatpush1.bf16.msra.mxu0 %v3391
      %3416 = vmatprep.subr.bf16.mxu0 0
      %3417 = vmatpush1.bf16.msra.mxu0 0
      %3418 = vmatprep.subr.bf16.mxu0 0
      %3419 = vmatpush1.bf16.msra.mxu0 0
      %3420 = vmatprep.subr.bf16.mxu0 0
      %3421 = vmatpush1.bf16.msra.mxu0 0
      %3422 = vmatprep.subr.bf16.mxu0 0
      %3423 = vmatpush1.bf16.msra.mxu0 0
      %3424 = vmatprep.subr.bf16.mxu0 0
      %3425 = vmatpush1.bf16.msra.mxu0 0
      %3426 = vmatprep.subr.bf16.mxu0 0
      %3427 = vmatpush1.bf16.msra.mxu0 0
      %3428 = vmatprep.subr.bf16.mxu0 0
      %3429 = vmatpush1.bf16.msra.mxu0 0
      %3430 = vmatprep.subr.bf16.mxu0 0
      %3431 = vmatpush1.bf16.msra.mxu0 0
      %3432 = vmatprep.mubr.bf16.mxu0 0
      %3433 = vmatmul.mubr.bf16.gmra.mrb[0].mxu0 %v3299
      %v3434 = vpop.f32.mrb[0].mxu0
      %v3435 = vadd.f32 0.0, %v3434
      %v3436 = vpop.f32.mrb[0].mxu0
      %v3437 = vpop.f32.mrb[0].mxu0
      %v3438 = vadd.f32 0.0, %v3437
      %v3439 = vpop.f32.mrb[0].mxu0
      %3440 = vmatprep.mubr.bf16.mxu0 0
      %3441 = vmatmul.mubr.bf16.gmra.mrb[0].mxu0 %v3301
      %v3442 = vpop.f32.mrb[0].mxu0
      %v3443 = vadd.f32 0.0, %v3442
      %v3444 = vpop.f32.mrb[0].mxu0
      %v3445 = vpop.f32.mrb[0].mxu0
      %v3446 = vadd.f32 0.0, %v3445
      %v3447 = vpop.f32.mrb[0].mxu0
      %3448 = vmatprep.mubr.bf16.mxu0 0
      %3449 = vmatmul.mubr.bf16.gmra.mrb[0].mxu0 %v3303
      %v3450 = vpop.f32.mrb[0].mxu0
      %v3451 = vadd.f32 0.0, %v3450
      %v3452 = vpop.f32.mrb[0].mxu0
      %v3453 = vpop.f32.mrb[0].mxu0
      %v3454 = vadd.f32 0.0, %v3453
      %v3455 = vpop.f32.mrb[0].mxu0
      %3456 = vmatprep.mubr.bf16.mxu0 0
      %3457 = vmatmul.mubr.bf16.gmra.mrb[0].mxu0 %v3305
      %v3458 = vpop.f32.mrb[0].mxu0
      %v3459 = vadd.f32 0.0, %v3458
      %v3460 = vpop.f32.mrb[0].mxu0
      %v3461 = vpop.f32.mrb[0].mxu0
      %v3462 = vadd.f32 0.0, %v3461
      %v3463 = vpop.f32.mrb[0].mxu0
      %3464 = vmatprep.mubr.bf16.mxu0 0
      %3465 = vmatmul.mubr.bf16.gmra.mrb[0].mxu0 %v3307
      %v3466 = vpop.f32.mrb[0].mxu0
      %v3467 = vadd.f32 0.0, %v3466
      %v3468 = vpop.f32.mrb[0].mxu0
      %v3469 = vpop.f32.mrb[0].mxu0
      %v3470 = vadd.f32 0.0, %v3469
      %v3471 = vpop.f32.mrb[0].mxu0
      %3472 = vmatprep.mubr.bf16.mxu0 0
      %3473 = vmatmul.mubr.bf16.gmra.mrb[0].mxu0 %v3309
      %v3474 = vpop.f32.mrb[0].mxu0
      %v3475 = vadd.f32 0.0, %v3474
      %v3476 = vpop.f32.mrb[0].mxu0
      %v3477 = vpop.f32.mrb[0].mxu0
      %v3478 = vadd.f32 0.0, %v3477
      %v3479 = vpop.f32.mrb[0].mxu0
      %3480 = vmatprep.mubr.bf16.mxu0 0
      %3481 = vmatmul.mubr.bf16.gmra.mrb[0].mxu0 %v3311
      %v3482 = vpop.f32.mrb[0].mxu0
      %v3483 = vadd.f32 0.0, %v3482
      %v3484 = vpop.f32.mrb[0].mxu0
      %v3485 = vpop.f32.mrb[0].mxu0
      %v3486 = vadd.f32 0.0, %v3485
      %v3487 = vpop.f32.mrb[0].mxu0
      %3488 = vmatprep.mubr.bf16.mxu0 0
      %3489 = vmatmul.mubr.bf16.gmra.mrb[0].mxu0 %v3313
      %v3490 = vpop.f32.mrb[0].mxu0
      %v3491 = vadd.f32 0.0, %v3490
      %v3492 = vpop.f32.mrb[0].mxu0
      %v3493 = vpop.f32.mrb[0].mxu0
      %v3494 = vadd.f32 0.0, %v3493
      %v3495 = vpop.f32.mrb[0].mxu0
      %3496 = vmatprep.mubr.bf16.mxu0 0
      %3497 = vmatmul.mubr.bf16.gmra.mrb[0].mxu0 %v3315
      %v3498 = vpop.f32.mrb[0].mxu0
      %v3499 = vadd.f32 0.0, %v3498
      %v3500 = vpop.f32.mrb[0].mxu0
      %v3501 = vpop.f32.mrb[0].mxu0
      %v3502 = vadd.f32 0.0, %v3501
      %v3503 = vpop.f32.mrb[0].mxu0
      %3504 = vmatprep.mubr.bf16.mxu0 0
      %3505 = vmatmul.mubr.bf16.gmra.mrb[0].mxu0 %v3317
      %v3506 = vpop.f32.mrb[0].mxu0
      %v3507 = vadd.f32 0.0, %v3506
      %v3508 = vpop.f32.mrb[0].mxu0
      %v3509 = vpop.f32.mrb[0].mxu0
      %v3510 = vadd.f32 0.0, %v3509
      %v3511 = vpop.f32.mrb[0].mxu0
      %3512 = vmatprep.mubr.bf16.mxu0 0
      %3513 = vmatmul.mubr.bf16.gmra.mrb[0].mxu0 %v3319
      %v3514 = vpop.f32.mrb[0].mxu0
      %v3515 = vadd.f32 0.0, %v3514
      %v3516 = vpop.f32.mrb[0].mxu0
      %v3517 = vpop.f32.mrb[0].mxu0
      %v3518 = vadd.f32 0.0, %v3517
      %v3519 = vpop.f32.mrb[0].mxu0
      %3520 = vmatprep.mubr.bf16.mxu0 0
      %3521 = vmatmul.mubr.bf16.gmra.mrb[0].mxu0 %v3321
      %v3522 = vpop.f32.mrb[0].mxu0
      %v3523 = vadd.f32 0.0, %v3522
      %v3524 = vpop.f32.mrb[0].mxu0
      %v3525 = vpop.f32.mrb[0].mxu0
      %v3526 = vadd.f32 0.0, %v3525
      %v3527 = vpop.f32.mrb[0].mxu0
      %3528 = vmatprep.mubr.bf16.mxu0 0
      %3529 = vmatmul.mubr.bf16.gmra.mrb[0].mxu0 %v3323
      %v3530 = vpop.f32.mrb[0].mxu0
      %v3531 = vadd.f32 0.0, %v3530
      %v3532 = vpop.f32.mrb[0].mxu0
      %v3533 = vpop.f32.mrb[0].mxu0
      %v3534 = vadd.f32 0.0, %v3533
      %v3535 = vpop.f32.mrb[0].mxu0
      %3536 = vmatprep.mubr.bf16.mxu0 0
      %3537 = vmatmul.mubr.bf16.gmra.mrb[0].mxu0 %v3325
      %v3538 = vpop.f32.mrb[0].mxu0
      %v3539 = vadd.f32 0.0, %v3538
      %v3540 = vpop.f32.mrb[0].mxu0
      %v3541 = vpop.f32.mrb[0].mxu0
      %v3542 = vadd.f32 0.0, %v3541
      %v3543 = vpop.f32.mrb[0].mxu0
      %3544 = vmatprep.mubr.bf16.mxu0 0
      %3545 = vmatmul.mubr.bf16.gmra.mrb[0].mxu0 %v3327
      %v3546 = vpop.f32.mrb[0].mxu0
      %v3547 = vadd.f32 0.0, %v3546
      %v3548 = vpop.f32.mrb[0].mxu0
      %v3549 = vpop.f32.mrb[0].mxu0
      %v3550 = vadd.f32 0.0, %v3549
      %v3551 = vpop.f32.mrb[0].mxu0
      %3552 = vmatprep.mubr.bf16.mxu0 0
      %3553 = vmatmul.mubr.bf16.gmra.mrb[0].mxu0 %v3329
      %v3554 = vpop.f32.mrb[0].mxu0
      %v3555 = vadd.f32 0.0, %v3554
      %v3556 = vpop.f32.mrb[0].mxu0
      %v3557 = vpop.f32.mrb[0].mxu0
      %v3558 = vadd.f32 0.0, %v3557
      %v3559 = vpop.f32.mrb[0].mxu0
      %3560 = vmatprep.mubr.bf16.mxu0 0
      %3561 = vmatmul.mubr.bf16.gmra.mrb[0].mxu0 %v3331
      %v3562 = vpop.f32.mrb[0].mxu0
      %v3563 = vadd.f32 0.0, %v3562
      %v3564 = vpop.f32.mrb[0].mxu0
      %v3565 = vpop.f32.mrb[0].mxu0
      %v3566 = vadd.f32 0.0, %v3565
      %v3567 = vpop.f32.mrb[0].mxu0
      %3568 = vmatprep.mubr.bf16.mxu0 0
      %3569 = vmatmul.mubr.bf16.gmra.mrb[0].mxu0 %v3333
      %v3570 = vpop.f32.mrb[0].mxu0
      %v3571 = vadd.f32 0.0, %v3570
      %v3572 = vpop.f32.mrb[0].mxu0
      %v3573 = vpop.f32.mrb[0].mxu0
      %v3574 = vadd.f32 0.0, %v3573
      %v3575 = vpop.f32.mrb[0].mxu0
      %3576 = vdwg.mxu0
      %v3577 = vld [vmem:[#allocation2] sm:$0xff]
      %v3578 = vld [vmem:[#allocation2 + $0x8] sm:$0xff]
      %v3579 = vld [vmem:[#allocation2 + $0x10] sm:$0xff]
      %v3580 = vld [vmem:[#allocation2 + $0x18] sm:$0xff]
      %v3581 = vld [vmem:[#allocation2 + $0x20] sm:$0xff]
      %v3582 = vld [vmem:[#allocation2 + $0x28] sm:$0xff]
      %v3583 = vld [vmem:[#allocation2 + $0x30] sm:$0xff]
      %v3584 = vld [vmem:[#allocation2 + $0x38] sm:$0xff]
      %v3585 = vld [vmem:[#allocation2 + $0x40] sm:$0xff]
      %v3586 = vld [vmem:[#allocation2 + $0x48] sm:$0xff]
      %v3587 = vld [vmem:[#allocation2 + $0x50] sm:$0xff]
      %v3588 = vld [vmem:[#allocation2 + $0x58] sm:$0xff]
      %v3589 = vld [vmem:[#allocation2 + $0x60] sm:$0xff]
      %v3590 = vld [vmem:[#allocation2 + $0x68] sm:$0xff]
      %v3591 = vld [vmem:[#allocation2 + $0x70] sm:$0xff]
      %v3592 = vld [vmem:[#allocation2 + $0x78] sm:$0xff]
      %v3593 = vld [vmem:[#allocation2 + $0x80] sm:$0xff]
      %v3594 = vld [vmem:[#allocation2 + $0x88] sm:$0xff]
      %v3595 = vld [vmem:[#allocation2 + $0x90] sm:$0xff]
      %v3596 = vld [vmem:[#allocation2 + $0x98] sm:$0xff]
      %v3597 = vld [vmem:[#allocation2 + $0xa0] sm:$0xff]
      %v3598 = vld [vmem:[#allocation2 + $0xa8] sm:$0xff]
      %v3599 = vld [vmem:[#allocation2 + $0xb0] sm:$0xff]
      %v3600 = vld [vmem:[#allocation2 + $0xb8] sm:$0xff]
      %v3601 = vld [vmem:[#allocation2 + $0xc0] sm:$0xff]
      %v3602 = vld [vmem:[#allocation2 + $0xc8] sm:$0xff]
      %v3603 = vld [vmem:[#allocation2 + $0xd0] sm:$0xff]
      %v3604 = vld [vmem:[#allocation2 + $0xd8] sm:$0xff]
      %v3605 = vld [vmem:[#allocation2 + $0xe0] sm:$0xff]
      %v3606 = vld [vmem:[#allocation2 + $0xe8] sm:$0xff]
      %v3607 = vld [vmem:[#allocation2 + $0xf0] sm:$0xff]
      %v3608 = vld [vmem:[#allocation2 + $0xf8] sm:$0xff]
      %v3609 = vld [vmem:[#allocation2 + $0x100] sm:$0xff]
      %v3610 = vld [vmem:[#allocation2 + $0x108] sm:$0xff]
      %v3611 = vld [vmem:[#allocation2 + $0x110] sm:$0xff]
      %v3612 = vld [vmem:[#allocation2 + $0x118] sm:$0xff]
      %v3613 = vadd.f32 %v3577, %v3435
      %v3614 = vadd.f32 %v3578, %v3438
      %v3615 = vadd.f32 %v3579, %v3443
      %v3616 = vadd.f32 %v3580, %v3446
      %v3617 = vadd.f32 %v3581, %v3451
      %v3618 = vadd.f32 %v3582, %v3454
      %v3619 = vadd.f32 %v3583, %v3459
      %v3620 = vadd.f32 %v3584, %v3462
      %v3621 = vadd.f32 %v3585, %v3467
      %v3622 = vadd.f32 %v3586, %v3470
      %v3623 = vadd.f32 %v3587, %v3475
      %v3624 = vadd.f32 %v3588, %v3478
      %v3625 = vadd.f32 %v3589, %v3483
      %v3626 = vadd.f32 %v3590, %v3486
      %v3627 = vadd.f32 %v3591, %v3491
      %v3628 = vadd.f32 %v3592, %v3494
      %v3629 = vadd.f32 %v3593, %v3499
      %v3630 = vadd.f32 %v3594, %v3502
      %v3631 = vadd.f32 %v3595, %v3507
      %v3632 = vadd.f32 %v3596, %v3510
      %v3633 = vadd.f32 %v3597, %v3515
      %v3634 = vadd.f32 %v3598, %v3518
      %v3635 = vadd.f32 %v3599, %v3523
      %v3636 = vadd.f32 %v3600, %v3526
      %v3637 = vadd.f32 %v3601, %v3531
      %v3638 = vadd.f32 %v3602, %v3534
      %v3639 = vadd.f32 %v3603, %v3539
      %v3640 = vadd.f32 %v3604, %v3542
      %v3641 = vadd.f32 %v3605, %v3547
      %v3642 = vadd.f32 %v3606, %v3550
      %v3643 = vadd.f32 %v3607, %v3555
      %v3644 = vadd.f32 %v3608, %v3558
      %v3645 = vadd.f32 %v3609, %v3563
      %v3646 = vadd.f32 %v3610, %v3566
      %v3647 = vadd.f32 %v3611, %v3571
      %v3648 = vadd.f32 %v3612, %v3574
      %3649 = vst [vmem:[#allocation2] sm:$0xff] %v3613
      %3650 = vst [vmem:[#allocation2 + $0x8] sm:$0xff] %v3614
      %3651 = vst [vmem:[#allocation2 + $0x10] sm:$0xff] %v3615
      %3652 = vst [vmem:[#allocation2 + $0x18] sm:$0xff] %v3616
      %3653 = vst [vmem:[#allocation2 + $0x20] sm:$0xff] %v3617
      %3654 = vst [vmem:[#allocation2 + $0x28] sm:$0xff] %v3618
      %3655 = vst [vmem:[#allocation2 + $0x30] sm:$0xff] %v3619
      %3656 = vst [vmem:[#allocation2 + $0x38] sm:$0xff] %v3620
      %3657 = vst [vmem:[#allocation2 + $0x40] sm:$0xff] %v3621
      %3658 = vst [vmem:[#allocation2 + $0x48] sm:$0xff] %v3622
      %3659 = vst [vmem:[#allocation2 + $0x50] sm:$0xff] %v3623
      %3660 = vst [vmem:[#allocation2 + $0x58] sm:$0xff] %v3624
      %3661 = vst [vmem:[#allocation2 + $0x60] sm:$0xff] %v3625
      %3662 = vst [vmem:[#allocation2 + $0x68] sm:$0xff] %v3626
      %3663 = vst [vmem:[#allocation2 + $0x70] sm:$0xff] %v3627
      %3664 = vst [vmem:[#allocation2 + $0x78] sm:$0xff] %v3628
      %3665 = vst [vmem:[#allocation2 + $0x80] sm:$0xff] %v3629
      %3666 = vst [vmem:[#allocation2 + $0x88] sm:$0xff] %v3630
      %3667 = vst [vmem:[#allocation2 + $0x90] sm:$0xff] %v3631
      %3668 = vst [vmem:[#allocation2 + $0x98] sm:$0xff] %v3632
      %3669 = vst [vmem:[#allocation2 + $0xa0] sm:$0xff] %v3633
      %3670 = vst [vmem:[#allocation2 + $0xa8] sm:$0xff] %v3634
      %3671 = vst [vmem:[#allocation2 + $0xb0] sm:$0xff] %v3635
      %3672 = vst [vmem:[#allocation2 + $0xb8] sm:$0xff] %v3636
      %3673 = vst [vmem:[#allocation2 + $0xc0] sm:$0xff] %v3637
      %3674 = vst [vmem:[#allocation2 + $0xc8] sm:$0xff] %v3638
      %3675 = vst [vmem:[#allocation2 + $0xd0] sm:$0xff] %v3639
      %3676 = vst [vmem:[#allocation2 + $0xd8] sm:$0xff] %v3640
      %3677 = vst [vmem:[#allocation2 + $0xe0] sm:$0xff] %v3641
      %3678 = vst [vmem:[#allocation2 + $0xe8] sm:$0xff] %v3642
      %3679 = vst [vmem:[#allocation2 + $0xf0] sm:$0xff] %v3643
      %3680 = vst [vmem:[#allocation2 + $0xf8] sm:$0xff] %v3644
      %3681 = vst [vmem:[#allocation2 + $0x100] sm:$0xff] %v3645
      %3682 = vst [vmem:[#allocation2 + $0x108] sm:$0xff] %v3646
      %3683 = vst [vmem:[#allocation2 + $0x110] sm:$0xff] %v3647
      %3684 = vst [vmem:[#allocation2 + $0x118] sm:$0xff] %v3648
      %v3685 = vld [vmem:[%s304 + $0x10] sm:$0xc]
      %v3686 = vld [vmem:[%s304 + $0x14] sm:$0xf]
      %v3687 = vld [vmem:[%s304 + $0x18] sm:$0xf]
      %v3688 = vld [vmem:[%s304 + $0x1c] sm:$0xf]
      %v3689 = vld [vmem:[%s304 + $0x20] sm:$0xf]
      %v3690 = vld [vmem:[%s304 + $0x24] sm:$0xf]
      %v3691 = vld [vmem:[%s304 + $0x28] sm:$0xf]
      %v3692 = vld [vmem:[%s304 + $0x2c] sm:$0xf]
      %v3693 = vld [vmem:[%s304 + $0x30] sm:$0xf]
      %v3694 = vld [vmem:[%s304 + $0x34] sm:$0xf]
      %v3695 = vld [vmem:[%s304 + $0x38] sm:$0xf]
      %v3696 = vld [vmem:[%s304 + $0x3c] sm:$0xf]
      %v3697 = vld [vmem:[%s304 + $0x40] sm:$0xf]
      %v3698 = vld [vmem:[%s304 + $0x44] sm:$0xf]
      %v3699 = vld [vmem:[%s304 + $0x48] sm:$0xf]
      %v3700 = vld [vmem:[%s304 + $0x4c] sm:$0xf]
      %v3701 = vld [vmem:[%s304 + $0x50] sm:$0xf]
      %v3702 = vld [vmem:[%s304 + $0x54] sm:$0xf]
      %v3703 = vld [vmem:[%s304 + $0x58] sm:$0xf]
      %v3704 = vld [vmem:[%s304 + $0x5c] sm:$0xf]
      %v3705 = vld [vmem:[%s304 + $0x60] sm:$0xf]
      %v3706 = vld [vmem:[%s304 + $0x64] sm:$0xf]
      %v3707 = vld [vmem:[%s304 + $0x68] sm:$0xf]
      %v3708 = vld [vmem:[%s304 + $0x6c] sm:$0xf]
      %v3709 = vld [vmem:[%s304 + $0x70] sm:$0xf]
      %v3710 = vld [vmem:[%s304 + $0x74] sm:$0xf]
      %v3711 = vld [vmem:[%s304 + $0x78] sm:$0xf]
      %v3712 = vld [vmem:[%s304 + $0x7c] sm:$0xf]
      %v3713 = vld [vmem:[%s304 + $0x80] sm:$0xf]
      %v3714 = vld [vmem:[%s304 + $0x84] sm:$0xf]
      %v3715 = vld [vmem:[%s304 + $0x88] sm:$0xf]
      %v3716 = vld [vmem:[%s304 + $0x8c] sm:$0xf]
      %v3717 = vld [vmem:[%s304 + $0x90] sm:$0xf]
      %v3718 = vld [vmem:[%s304 + $0x94] sm:$0xf]
      %v3719 = vld [vmem:[%s304 + $0x98] sm:$0xf]
      %v3720 = vld [vmem:[%s304 + $0x9c] sm:$0xf]
      %v3721 = vld [vmem:[%s304 + $0xa0] sm:$0x3]
      %s3722 = scalar_lea.vmem %s308, 384
      %v3723 = vld [vmem:[%s3722] sm:$0xf]
      %v3724 = vld [vmem:[%s3722 + $0x4] sm:$0xf]
      %v3725 = vld [vmem:[%s3722 + $0x8] sm:$0xf]
      %v3726 = vld [vmem:[%s3722 + $0xc] sm:$0xf]
      %v3727 = vld [vmem:[%s3722 + $0x10] sm:$0xf]
      %v3728 = vld [vmem:[%s3722 + $0x14] sm:$0xf]
      %v3729 = vld [vmem:[%s3722 + $0x18] sm:$0xf]
      %v3730 = vld [vmem:[%s3722 + $0x1c] sm:$0xf]
      %v3731 = vld [vmem:[%s3722 + $0x20] sm:$0xf]
      %v3732 = vld [vmem:[%s3722 + $0x24] sm:$0xf]
      %v3733 = vld [vmem:[%s3722 + $0x28] sm:$0xf]
      %v3734 = vld [vmem:[%s3722 + $0x2c] sm:$0xf]
      %v3735 = vld [vmem:[%s3722 + $0x30] sm:$0xf]
      %v3736 = vld [vmem:[%s3722 + $0x34] sm:$0xf]
      %v3737 = vld [vmem:[%s3722 + $0x38] sm:$0xf]
      %v3738 = vld [vmem:[%s3722 + $0x3c] sm:$0xf]
      %v3776 = vunpack.c.l.b16 %v3685
      %v3777 = vunpack.c.l.b16 %v3686
      %v3778 = vunpack.c.l.b16 %v3687
      %v3779 = vunpack.c.l.b16 %v3688
      %v3780 = vunpack.c.l.b16 %v3689
      %v3781 = vunpack.c.l.b16 %v3690
      %v3782 = vunpack.c.l.b16 %v3691
      %v3783 = vunpack.c.l.b16 %v3692
      %v3784 = vunpack.c.l.b16 %v3693
      %v3785 = vunpack.c.l.b16 %v3694
      %v3786 = vunpack.c.l.b16 %v3695
      %v3787 = vunpack.c.l.b16 %v3696
      %v3788 = vunpack.c.l.b16 %v3697
      %v3789 = vunpack.c.l.b16 %v3698
      %v3790 = vunpack.c.l.b16 %v3699
      %v3791 = vunpack.c.l.b16 %v3700
      %v3792 = vunpack.c.l.b16 %v3701
      %v3793 = vunpack.c.l.b16 %v3702
      %v3794 = vunpack.c.l.b16 %v3703
      %v3795 = vunpack.c.l.b16 %v3704
      %v3796 = vunpack.c.l.b16 %v3705
      %v3797 = vunpack.c.l.b16 %v3706
      %v3798 = vunpack.c.l.b16 %v3707
      %v3799 = vunpack.c.l.b16 %v3708
      %v3800 = vunpack.c.l.b16 %v3709
      %v3801 = vunpack.c.l.b16 %v3710
      %v3802 = vunpack.c.l.b16 %v3711
      %v3803 = vunpack.c.l.b16 %v3712
      %v3804 = vunpack.c.l.b16 %v3713
      %v3805 = vunpack.c.l.b16 %v3714
      %v3806 = vunpack.c.l.b16 %v3715
      %v3807 = vunpack.c.l.b16 %v3716
      %v3808 = vunpack.c.l.b16 %v3717
      %v3809 = vunpack.c.l.b16 %v3718
      %v3810 = vunpack.c.l.b16 %v3719
      %v3811 = vunpack.c.l.b16 %v3720
      %v3812 = vunpack.c.l.b16 %v3721
      %v3813 = vpack.c.b16 %v3777, %v3776
      %v3814 = vpack.c.b16 %v3779, %v3778
      %v3815 = vpack.c.b16 %v3781, %v3780
      %v3816 = vpack.c.b16 %v3783, %v3782
      %v3817 = vpack.c.b16 %v3785, %v3784
      %v3818 = vpack.c.b16 %v3787, %v3786
      %v3819 = vpack.c.b16 %v3789, %v3788
      %v3820 = vpack.c.b16 %v3791, %v3790
      %v3821 = vpack.c.b16 %v3793, %v3792
      %v3822 = vpack.c.b16 %v3795, %v3794
      %v3823 = vpack.c.b16 %v3797, %v3796
      %v3824 = vpack.c.b16 %v3799, %v3798
      %v3825 = vpack.c.b16 %v3801, %v3800
      %v3826 = vpack.c.b16 %v3803, %v3802
      %v3827 = vpack.c.b16 %v3805, %v3804
      %v3828 = vpack.c.b16 %v3807, %v3806
      %v3829 = vpack.c.b16 %v3809, %v3808
      %v3830 = vpack.c.b16 %v3811, %v3810
      %v3831 = vpack.c.b16 %v3812, %v3812
      %v3832 = vrot.slane %v3813, 2
      %v3833 = vrot.slane %v3814, 2
      %v3834 = vsel %vm3296, %v3832, %v3833
      %v3835 = vrot.slane %v3815, 2
      %v3836 = vsel %vm3296, %v3833, %v3835
      %v3837 = vrot.slane %v3816, 2
      %v3838 = vsel %vm3296, %v3835, %v3837
      %v3839 = vrot.slane %v3817, 2
      %v3840 = vsel %vm3296, %v3837, %v3839
      %v3841 = vrot.slane %v3818, 2
      %v3842 = vsel %vm3296, %v3839, %v3841
      %v3843 = vrot.slane %v3819, 2
      %v3844 = vsel %vm3296, %v3841, %v3843
      %v3845 = vrot.slane %v3820, 2
      %v3846 = vsel %vm3296, %v3843, %v3845
      %v3847 = vrot.slane %v3821, 2
      %v3848 = vsel %vm3296, %v3845, %v3847
      %v3849 = vrot.slane %v3822, 2
      %v3850 = vsel %vm3296, %v3847, %v3849
      %v3851 = vrot.slane %v3823, 2
      %v3852 = vsel %vm3296, %v3849, %v3851
      %v3853 = vrot.slane %v3824, 2
      %v3854 = vsel %vm3296, %v3851, %v3853
      %v3855 = vrot.slane %v3825, 2
      %v3856 = vsel %vm3296, %v3853, %v3855
      %v3857 = vrot.slane %v3826, 2
      %v3858 = vsel %vm3296, %v3855, %v3857
      %v3859 = vrot.slane %v3827, 2
      %v3860 = vsel %vm3296, %v3857, %v3859
      %v3861 = vrot.slane %v3828, 2
      %v3862 = vsel %vm3296, %v3859, %v3861
      %v3863 = vrot.slane %v3829, 2
      %v3864 = vsel %vm3296, %v3861, %v3863
      %v3865 = vrot.slane %v3830, 2
      %v3866 = vsel %vm3296, %v3863, %v3865
      %v3867 = vrot.slane %v3831, 2
      %v3868 = vsel %vm3296, %v3865, %v3867
      %v3903 = vunpack.c.l.b16 %v3723
      %v3904 = vunpack.c.l.b16 %v3724
      %v3905 = vunpack.c.l.b16 %v3725
      %v3906 = vunpack.c.l.b16 %v3726
      %v3907 = vunpack.c.l.b16 %v3727
      %v3908 = vunpack.c.l.b16 %v3728
      %v3909 = vunpack.c.l.b16 %v3729
      %v3910 = vunpack.c.l.b16 %v3730
      %v3911 = vunpack.c.l.b16 %v3731
      %v3912 = vunpack.c.l.b16 %v3732
      %v3913 = vunpack.c.l.b16 %v3733
      %v3914 = vunpack.c.l.b16 %v3734
      %v3915 = vunpack.c.l.b16 %v3735
      %v3916 = vunpack.c.l.b16 %v3736
      %v3917 = vunpack.c.l.b16 %v3737
      %v3918 = vunpack.c.l.b16 %v3738
      %v3919 = vpack.c.b16 %v3904, %v3903
      %v3920 = vpack.c.b16 %v3906, %v3905
      %v3921 = vpack.c.b16 %v3908, %v3907
      %v3922 = vpack.c.b16 %v3910, %v3909
      %v3923 = vpack.c.b16 %v3912, %v3911
      %v3924 = vpack.c.b16 %v3914, %v3913
      %v3925 = vpack.c.b16 %v3916, %v3915
      %v3926 = vpack.c.b16 %v3918, %v3917
      %3935 = vmatprep.subr.bf16.mxu0 0
      %3936 = vmatpush1.bf16.msra.mxu0 %v3919
      %3937 = vmatprep.subr.bf16.mxu0 0
      %3938 = vmatpush1.bf16.msra.mxu0 %v3920
      %3939 = vmatprep.subr.bf16.mxu0 0
      %3940 = vmatpush1.bf16.msra.mxu0 %v3921
      %3941 = vmatprep.subr.bf16.mxu0 0
      %3942 = vmatpush1.bf16.msra.mxu0 %v3922
      %3943 = vmatprep.subr.bf16.mxu0 0
      %3944 = vmatpush1.bf16.msra.mxu0 %v3923
      %3945 = vmatprep.subr.bf16.mxu0 0
      %3946 = vmatpush1.bf16.msra.mxu0 %v3924
      %3947 = vmatprep.subr.bf16.mxu0 0
      %3948 = vmatpush1.bf16.msra.mxu0 %v3925
      %3949 = vmatprep.subr.bf16.mxu0 0
      %3950 = vmatpush1.bf16.msra.mxu0 %v3926
      %3951 = vmatprep.subr.bf16.mxu0 0
      %3952 = vmatpush1.bf16.msra.mxu0 0
      %3953 = vmatprep.subr.bf16.mxu0 0
      %3954 = vmatpush1.bf16.msra.mxu0 0
      %3955 = vmatprep.subr.bf16.mxu0 0
      %3956 = vmatpush1.bf16.msra.mxu0 0
      %3957 = vmatprep.subr.bf16.mxu0 0
      %3958 = vmatpush1.bf16.msra.mxu0 0
      %3959 = vmatprep.subr.bf16.mxu0 0
      %3960 = vmatpush1.bf16.msra.mxu0 0
      %3961 = vmatprep.subr.bf16.mxu0 0
      %3962 = vmatpush1.bf16.msra.mxu0 0
      %3963 = vmatprep.subr.bf16.mxu0 0
      %3964 = vmatpush1.bf16.msra.mxu0 0
      %3965 = vmatprep.subr.bf16.mxu0 0
      %3966 = vmatpush1.bf16.msra.mxu0 0
      %3967 = vmatprep.mubr.bf16.mxu0 0
      %3968 = vmatmul.mubr.bf16.gmra.mrb[0].mxu0 %v3834
      %v3969 = vpop.f32.mrb[0].mxu0
      %v3970 = vadd.f32 0.0, %v3969
      %v3971 = vpop.f32.mrb[0].mxu0
      %v3972 = vpop.f32.mrb[0].mxu0
      %v3973 = vadd.f32 0.0, %v3972
      %v3974 = vpop.f32.mrb[0].mxu0
      %3975 = vmatprep.mubr.bf16.mxu0 0
      %3976 = vmatmul.mubr.bf16.gmra.mrb[0].mxu0 %v3836
      %v3977 = vpop.f32.mrb[0].mxu0
      %v3978 = vadd.f32 0.0, %v3977
      %v3979 = vpop.f32.mrb[0].mxu0
      %v3980 = vpop.f32.mrb[0].mxu0
      %v3981 = vadd.f32 0.0, %v3980
      %v3982 = vpop.f32.mrb[0].mxu0
      %3983 = vmatprep.mubr.bf16.mxu0 0
      %3984 = vmatmul.mubr.bf16.gmra.mrb[0].mxu0 %v3838
      %v3985 = vpop.f32.mrb[0].mxu0
      %v3986 = vadd.f32 0.0, %v3985
      %v3987 = vpop.f32.mrb[0].mxu0
      %v3988 = vpop.f32.mrb[0].mxu0
      %v3989 = vadd.f32 0.0, %v3988
      %v3990 = vpop.f32.mrb[0].mxu0
      %3991 = vmatprep.mubr.bf16.mxu0 0
      %3992 = vmatmul.mubr.bf16.gmra.mrb[0].mxu0 %v3840
      %v3993 = vpop.f32.mrb[0].mxu0
      %v3994 = vadd.f32 0.0, %v3993
      %v3995 = vpop.f32.mrb[0].mxu0
      %v3996 = vpop.f32.mrb[0].mxu0
      %v3997 = vadd.f32 0.0, %v3996
      %v3998 = vpop.f32.mrb[0].mxu0
      %3999 = vmatprep.mubr.bf16.mxu0 0
      %4000 = vmatmul.mubr.bf16.gmra.mrb[0].mxu0 %v3842
      %v4001 = vpop.f32.mrb[0].mxu0
      %v4002 = vadd.f32 0.0, %v4001
      %v4003 = vpop.f32.mrb[0].mxu0
      %v4004 = vpop.f32.mrb[0].mxu0
      %v4005 = vadd.f32 0.0, %v4004
      %v4006 = vpop.f32.mrb[0].mxu0
      %4007 = vmatprep.mubr.bf16.mxu0 0
      %4008 = vmatmul.mubr.bf16.gmra.mrb[0].mxu0 %v3844
      %v4009 = vpop.f32.mrb[0].mxu0
      %v4010 = vadd.f32 0.0, %v4009
      %v4011 = vpop.f32.mrb[0].mxu0
      %v4012 = vpop.f32.mrb[0].mxu0
      %v4013 = vadd.f32 0.0, %v4012
      %v4014 = vpop.f32.mrb[0].mxu0
      %4015 = vmatprep.mubr.bf16.mxu0 0
      %4016 = vmatmul.mubr.bf16.gmra.mrb[0].mxu0 %v3846
      %v4017 = vpop.f32.mrb[0].mxu0
      %v4018 = vadd.f32 0.0, %v4017
      %v4019 = vpop.f32.mrb[0].mxu0
      %v4020 = vpop.f32.mrb[0].mxu0
      %v4021 = vadd.f32 0.0, %v4020
      %v4022 = vpop.f32.mrb[0].mxu0
      %4023 = vmatprep.mubr.bf16.mxu0 0
      %4024 = vmatmul.mubr.bf16.gmra.mrb[0].mxu0 %v3848
      %v4025 = vpop.f32.mrb[0].mxu0
      %v4026 = vadd.f32 0.0, %v4025
      %v4027 = vpop.f32.mrb[0].mxu0
      %v4028 = vpop.f32.mrb[0].mxu0
      %v4029 = vadd.f32 0.0, %v4028
      %v4030 = vpop.f32.mrb[0].mxu0
      %4031 = vmatprep.mubr.bf16.mxu0 0
      %4032 = vmatmul.mubr.bf16.gmra.mrb[0].mxu0 %v3850
      %v4033 = vpop.f32.mrb[0].mxu0
      %v4034 = vadd.f32 0.0, %v4033
      %v4035 = vpop.f32.mrb[0].mxu0
      %v4036 = vpop.f32.mrb[0].mxu0
      %v4037 = vadd.f32 0.0, %v4036
      %v4038 = vpop.f32.mrb[0].mxu0
      %4039 = vmatprep.mubr.bf16.mxu0 0
      %4040 = vmatmul.mubr.bf16.gmra.mrb[0].mxu0 %v3852
      %v4041 = vpop.f32.mrb[0].mxu0
      %v4042 = vadd.f32 0.0, %v4041
      %v4043 = vpop.f32.mrb[0].mxu0
      %v4044 = vpop.f32.mrb[0].mxu0
      %v4045 = vadd.f32 0.0, %v4044
      %v4046 = vpop.f32.mrb[0].mxu0
      %4047 = vmatprep.mubr.bf16.mxu0 0
      %4048 = vmatmul.mubr.bf16.gmra.mrb[0].mxu0 %v3854
      %v4049 = vpop.f32.mrb[0].mxu0
      %v4050 = vadd.f32 0.0, %v4049
      %v4051 = vpop.f32.mrb[0].mxu0
      %v4052 = vpop.f32.mrb[0].mxu0
      %v4053 = vadd.f32 0.0, %v4052
      %v4054 = vpop.f32.mrb[0].mxu0
      %4055 = vmatprep.mubr.bf16.mxu0 0
      %4056 = vmatmul.mubr.bf16.gmra.mrb[0].mxu0 %v3856
      %v4057 = vpop.f32.mrb[0].mxu0
      %v4058 = vadd.f32 0.0, %v4057
      %v4059 = vpop.f32.mrb[0].mxu0
      %v4060 = vpop.f32.mrb[0].mxu0
      %v4061 = vadd.f32 0.0, %v4060
      %v4062 = vpop.f32.mrb[0].mxu0
      %4063 = vmatprep.mubr.bf16.mxu0 0
      %4064 = vmatmul.mubr.bf16.gmra.mrb[0].mxu0 %v3858
      %v4065 = vpop.f32.mrb[0].mxu0
      %v4066 = vadd.f32 0.0, %v4065
      %v4067 = vpop.f32.mrb[0].mxu0
      %v4068 = vpop.f32.mrb[0].mxu0
      %v4069 = vadd.f32 0.0, %v4068
      %v4070 = vpop.f32.mrb[0].mxu0
      %4071 = vmatprep.mubr.bf16.mxu0 0
      %4072 = vmatmul.mubr.bf16.gmra.mrb[0].mxu0 %v3860
      %v4073 = vpop.f32.mrb[0].mxu0
      %v4074 = vadd.f32 0.0, %v4073
      %v4075 = vpop.f32.mrb[0].mxu0
      %v4076 = vpop.f32.mrb[0].mxu0
      %v4077 = vadd.f32 0.0, %v4076
      %v4078 = vpop.f32.mrb[0].mxu0
      %4079 = vmatprep.mubr.bf16.mxu0 0
      %4080 = vmatmul.mubr.bf16.gmra.mrb[0].mxu0 %v3862
      %v4081 = vpop.f32.mrb[0].mxu0
      %v4082 = vadd.f32 0.0, %v4081
      %v4083 = vpop.f32.mrb[0].mxu0
      %v4084 = vpop.f32.mrb[0].mxu0
      %v4085 = vadd.f32 0.0, %v4084
      %v4086 = vpop.f32.mrb[0].mxu0
      %4087 = vmatprep.mubr.bf16.mxu0 0
      %4088 = vmatmul.mubr.bf16.gmra.mrb[0].mxu0 %v3864
      %v4089 = vpop.f32.mrb[0].mxu0
      %v4090 = vadd.f32 0.0, %v4089
      %v4091 = vpop.f32.mrb[0].mxu0
      %v4092 = vpop.f32.mrb[0].mxu0
      %v4093 = vadd.f32 0.0, %v4092
      %v4094 = vpop.f32.mrb[0].mxu0
      %4095 = vmatprep.mubr.bf16.mxu0 0
      %4096 = vmatmul.mubr.bf16.gmra.mrb[0].mxu0 %v3866
      %v4097 = vpop.f32.mrb[0].mxu0
      %v4098 = vadd.f32 0.0, %v4097
      %v4099 = vpop.f32.mrb[0].mxu0
      %v4100 = vpop.f32.mrb[0].mxu0
      %v4101 = vadd.f32 0.0, %v4100
      %v4102 = vpop.f32.mrb[0].mxu0
      %4103 = vmatprep.mubr.bf16.mxu0 0
      %4104 = vmatmul.mubr.bf16.gmra.mrb[0].mxu0 %v3868
      %v4105 = vpop.f32.mrb[0].mxu0
      %v4106 = vadd.f32 0.0, %v4105
      %v4107 = vpop.f32.mrb[0].mxu0
      %v4108 = vpop.f32.mrb[0].mxu0
      %v4109 = vadd.f32 0.0, %v4108
      %v4110 = vpop.f32.mrb[0].mxu0
      %4111 = vdwg.mxu0
      %v4112 = vld [vmem:[#allocation2] sm:$0xff]
      %v4113 = vld [vmem:[#allocation2 + $0x8] sm:$0xff]
      %v4114 = vld [vmem:[#allocation2 + $0x10] sm:$0xff]
      %v4115 = vld [vmem:[#allocation2 + $0x18] sm:$0xff]
      %v4116 = vld [vmem:[#allocation2 + $0x20] sm:$0xff]
      %v4117 = vld [vmem:[#allocation2 + $0x28] sm:$0xff]
      %v4118 = vld [vmem:[#allocation2 + $0x30] sm:$0xff]
      %v4119 = vld [vmem:[#allocation2 + $0x38] sm:$0xff]
      %v4120 = vld [vmem:[#allocation2 + $0x40] sm:$0xff]
      %v4121 = vld [vmem:[#allocation2 + $0x48] sm:$0xff]
      %v4122 = vld [vmem:[#allocation2 + $0x50] sm:$0xff]
      %v4123 = vld [vmem:[#allocation2 + $0x58] sm:$0xff]
      %v4124 = vld [vmem:[#allocation2 + $0x60] sm:$0xff]
      %v4125 = vld [vmem:[#allocation2 + $0x68] sm:$0xff]
      %v4126 = vld [vmem:[#allocation2 + $0x70] sm:$0xff]
      %v4127 = vld [vmem:[#allocation2 + $0x78] sm:$0xff]
      %v4128 = vld [vmem:[#allocation2 + $0x80] sm:$0xff]
      %v4129 = vld [vmem:[#allocation2 + $0x88] sm:$0xff]
      %v4130 = vld [vmem:[#allocation2 + $0x90] sm:$0xff]
      %v4131 = vld [vmem:[#allocation2 + $0x98] sm:$0xff]
      %v4132 = vld [vmem:[#allocation2 + $0xa0] sm:$0xff]
      %v4133 = vld [vmem:[#allocation2 + $0xa8] sm:$0xff]
      %v4134 = vld [vmem:[#allocation2 + $0xb0] sm:$0xff]
      %v4135 = vld [vmem:[#allocation2 + $0xb8] sm:$0xff]
      %v4136 = vld [vmem:[#allocation2 + $0xc0] sm:$0xff]
      %v4137 = vld [vmem:[#allocation2 + $0xc8] sm:$0xff]
      %v4138 = vld [vmem:[#allocation2 + $0xd0] sm:$0xff]
      %v4139 = vld [vmem:[#allocation2 + $0xd8] sm:$0xff]
      %v4140 = vld [vmem:[#allocation2 + $0xe0] sm:$0xff]
      %v4141 = vld [vmem:[#allocation2 + $0xe8] sm:$0xff]
      %v4142 = vld [vmem:[#allocation2 + $0xf0] sm:$0xff]
      %v4143 = vld [vmem:[#allocation2 + $0xf8] sm:$0xff]
      %v4144 = vld [vmem:[#allocation2 + $0x100] sm:$0xff]
      %v4145 = vld [vmem:[#allocation2 + $0x108] sm:$0xff]
      %v4146 = vld [vmem:[#allocation2 + $0x110] sm:$0xff]
      %v4147 = vld [vmem:[#allocation2 + $0x118] sm:$0xff]
      %v4148 = vadd.f32 %v4112, %v3970
      %v4149 = vadd.f32 %v4113, %v3973
      %v4150 = vadd.f32 %v4114, %v3978
      %v4151 = vadd.f32 %v4115, %v3981
      %v4152 = vadd.f32 %v4116, %v3986
      %v4153 = vadd.f32 %v4117, %v3989
      %v4154 = vadd.f32 %v4118, %v3994
      %v4155 = vadd.f32 %v4119, %v3997
      %v4156 = vadd.f32 %v4120, %v4002
      %v4157 = vadd.f32 %v4121, %v4005
      %v4158 = vadd.f32 %v4122, %v4010
      %v4159 = vadd.f32 %v4123, %v4013
      %v4160 = vadd.f32 %v4124, %v4018
      %v4161 = vadd.f32 %v4125, %v4021
      %v4162 = vadd.f32 %v4126, %v4026
      %v4163 = vadd.f32 %v4127, %v4029
      %v4164 = vadd.f32 %v4128, %v4034
      %v4165 = vadd.f32 %v4129, %v4037
      %v4166 = vadd.f32 %v4130, %v4042
      %v4167 = vadd.f32 %v4131, %v4045
      %v4168 = vadd.f32 %v4132, %v4050
      %v4169 = vadd.f32 %v4133, %v4053
      %v4170 = vadd.f32 %v4134, %v4058
      %v4171 = vadd.f32 %v4135, %v4061
      %v4172 = vadd.f32 %v4136, %v4066
      %v4173 = vadd.f32 %v4137, %v4069
      %v4174 = vadd.f32 %v4138, %v4074
      %v4175 = vadd.f32 %v4139, %v4077
      %v4176 = vadd.f32 %v4140, %v4082
      %v4177 = vadd.f32 %v4141, %v4085
      %v4178 = vadd.f32 %v4142, %v4090
      %v4179 = vadd.f32 %v4143, %v4093
      %v4180 = vadd.f32 %v4144, %v4098
      %v4181 = vadd.f32 %v4145, %v4101
      %v4182 = vadd.f32 %v4146, %v4106
      %v4183 = vadd.f32 %v4147, %v4109
      %4184 = vst [vmem:[#allocation2] sm:$0xff] %v4148
      %4185 = vst [vmem:[#allocation2 + $0x8] sm:$0xff] %v4149
      %4186 = vst [vmem:[#allocation2 + $0x10] sm:$0xff] %v4150
      %4187 = vst [vmem:[#allocation2 + $0x18] sm:$0xff] %v4151
      %4188 = vst [vmem:[#allocation2 + $0x20] sm:$0xff] %v4152
      %4189 = vst [vmem:[#allocation2 + $0x28] sm:$0xff] %v4153
      %4190 = vst [vmem:[#allocation2 + $0x30] sm:$0xff] %v4154
      %4191 = vst [vmem:[#allocation2 + $0x38] sm:$0xff] %v4155
      %4192 = vst [vmem:[#allocation2 + $0x40] sm:$0xff] %v4156
      %4193 = vst [vmem:[#allocation2 + $0x48] sm:$0xff] %v4157
      %4194 = vst [vmem:[#allocation2 + $0x50] sm:$0xff] %v4158
      %4195 = vst [vmem:[#allocation2 + $0x58] sm:$0xff] %v4159
      %4196 = vst [vmem:[#allocation2 + $0x60] sm:$0xff] %v4160
      %4197 = vst [vmem:[#allocation2 + $0x68] sm:$0xff] %v4161
      %4198 = vst [vmem:[#allocation2 + $0x70] sm:$0xff] %v4162
      %4199 = vst [vmem:[#allocation2 + $0x78] sm:$0xff] %v4163
      %4200 = vst [vmem:[#allocation2 + $0x80] sm:$0xff] %v4164
      %4201 = vst [vmem:[#allocation2 + $0x88] sm:$0xff] %v4165
      %4202 = vst [vmem:[#allocation2 + $0x90] sm:$0xff] %v4166
      %4203 = vst [vmem:[#allocation2 + $0x98] sm:$0xff] %v4167
      %4204 = vst [vmem:[#allocation2 + $0xa0] sm:$0xff] %v4168
      %4205 = vst [vmem:[#allocation2 + $0xa8] sm:$0xff] %v4169
      %4206 = vst [vmem:[#allocation2 + $0xb0] sm:$0xff] %v4170
      %4207 = vst [vmem:[#allocation2 + $0xb8] sm:$0xff] %v4171
      %4208 = vst [vmem:[#allocation2 + $0xc0] sm:$0xff] %v4172
      %4209 = vst [vmem:[#allocation2 + $0xc8] sm:$0xff] %v4173
      %4210 = vst [vmem:[#allocation2 + $0xd0] sm:$0xff] %v4174
      %4211 = vst [vmem:[#allocation2 + $0xd8] sm:$0xff] %v4175
      %4212 = vst [vmem:[#allocation2 + $0xe0] sm:$0xff] %v4176
      %4213 = vst [vmem:[#allocation2 + $0xe8] sm:$0xff] %v4177
      %4214 = vst [vmem:[#allocation2 + $0xf0] sm:$0xff] %v4178
      %4215 = vst [vmem:[#allocation2 + $0xf8] sm:$0xff] %v4179
      %4216 = vst [vmem:[#allocation2 + $0x100] sm:$0xff] %v4180
      %4217 = vst [vmem:[#allocation2 + $0x108] sm:$0xff] %v4181
      %4218 = vst [vmem:[#allocation2 + $0x110] sm:$0xff] %v4182
      %4219 = vst [vmem:[#allocation2 + $0x118] sm:$0xff] %v4183
      %v4220 = vld [vmem:[%s304 + $0x10] sm:$0xc]
      %v4221 = vld [vmem:[%s304 + $0x14] sm:$0xf]
      %v4222 = vld [vmem:[%s304 + $0x18] sm:$0xf]
      %v4223 = vld [vmem:[%s304 + $0x1c] sm:$0xf]
      %v4224 = vld [vmem:[%s304 + $0x20] sm:$0xf]
      %v4225 = vld [vmem:[%s304 + $0x24] sm:$0xf]
      %v4226 = vld [vmem:[%s304 + $0x28] sm:$0xf]
      %v4227 = vld [vmem:[%s304 + $0x2c] sm:$0xf]
      %v4228 = vld [vmem:[%s304 + $0x30] sm:$0xf]
      %v4229 = vld [vmem:[%s304 + $0x34] sm:$0xf]
      %v4230 = vld [vmem:[%s304 + $0x38] sm:$0xf]
      %v4231 = vld [vmem:[%s304 + $0x3c] sm:$0xf]
      %v4232 = vld [vmem:[%s304 + $0x40] sm:$0xf]
      %v4233 = vld [vmem:[%s304 + $0x44] sm:$0xf]
      %v4234 = vld [vmem:[%s304 + $0x48] sm:$0xf]
      %v4235 = vld [vmem:[%s304 + $0x4c] sm:$0xf]
      %v4236 = vld [vmem:[%s304 + $0x50] sm:$0xf]
      %v4237 = vld [vmem:[%s304 + $0x54] sm:$0xf]
      %v4238 = vld [vmem:[%s304 + $0x58] sm:$0xf]
      %v4239 = vld [vmem:[%s304 + $0x5c] sm:$0xf]
      %v4240 = vld [vmem:[%s304 + $0x60] sm:$0xf]
      %v4241 = vld [vmem:[%s304 + $0x64] sm:$0xf]
      %v4242 = vld [vmem:[%s304 + $0x68] sm:$0xf]
      %v4243 = vld [vmem:[%s304 + $0x6c] sm:$0xf]
      %v4244 = vld [vmem:[%s304 + $0x70] sm:$0xf]
      %v4245 = vld [vmem:[%s304 + $0x74] sm:$0xf]
      %v4246 = vld [vmem:[%s304 + $0x78] sm:$0xf]
      %v4247 = vld [vmem:[%s304 + $0x7c] sm:$0xf]
      %v4248 = vld [vmem:[%s304 + $0x80] sm:$0xf]
      %v4249 = vld [vmem:[%s304 + $0x84] sm:$0xf]
      %v4250 = vld [vmem:[%s304 + $0x88] sm:$0xf]
      %v4251 = vld [vmem:[%s304 + $0x8c] sm:$0xf]
      %v4252 = vld [vmem:[%s304 + $0x90] sm:$0xf]
      %v4253 = vld [vmem:[%s304 + $0x94] sm:$0xf]
      %v4254 = vld [vmem:[%s304 + $0x98] sm:$0xf]
      %v4255 = vld [vmem:[%s304 + $0x9c] sm:$0xf]
      %v4256 = vld [vmem:[%s304 + $0xa0] sm:$0x7]
      %s4257 = scalar_lea.vmem %s308, 448
      %v4258 = vld [vmem:[%s4257] sm:$0xf]
      %v4259 = vld [vmem:[%s4257 + $0x4] sm:$0xf]
      %v4260 = vld [vmem:[%s4257 + $0x8] sm:$0xf]
      %v4261 = vld [vmem:[%s4257 + $0xc] sm:$0xf]
      %v4262 = vld [vmem:[%s4257 + $0x10] sm:$0xf]
      %v4263 = vld [vmem:[%s4257 + $0x14] sm:$0xf]
      %v4264 = vld [vmem:[%s4257 + $0x18] sm:$0xf]
      %v4265 = vld [vmem:[%s4257 + $0x1c] sm:$0xf]
      %v4266 = vld [vmem:[%s4257 + $0x20] sm:$0xf]
      %v4267 = vld [vmem:[%s4257 + $0x24] sm:$0xf]
      %v4268 = vld [vmem:[%s4257 + $0x28] sm:$0xf]
      %v4269 = vld [vmem:[%s4257 + $0x2c] sm:$0xf]
      %v4270 = vld [vmem:[%s4257 + $0x30] sm:$0xf]
      %v4271 = vld [vmem:[%s4257 + $0x34] sm:$0xf]
      %v4272 = vld [vmem:[%s4257 + $0x38] sm:$0xf]
      %v4273 = vld [vmem:[%s4257 + $0x3c] sm:$0xf]
      %v4311 = vunpack.c.l.b16 %v4220
      %v4312 = vunpack.c.l.b16 %v4221
      %v4313 = vunpack.c.l.b16 %v4222
      %v4314 = vunpack.c.l.b16 %v4223
      %v4315 = vunpack.c.l.b16 %v4224
      %v4316 = vunpack.c.l.b16 %v4225
      %v4317 = vunpack.c.l.b16 %v4226
      %v4318 = vunpack.c.l.b16 %v4227
      %v4319 = vunpack.c.l.b16 %v4228
      %v4320 = vunpack.c.l.b16 %v4229
      %v4321 = vunpack.c.l.b16 %v4230
      %v4322 = vunpack.c.l.b16 %v4231
      %v4323 = vunpack.c.l.b16 %v4232
      %v4324 = vunpack.c.l.b16 %v4233
      %v4325 = vunpack.c.l.b16 %v4234
      %v4326 = vunpack.c.l.b16 %v4235
      %v4327 = vunpack.c.l.b16 %v4236
      %v4328 = vunpack.c.l.b16 %v4237
      %v4329 = vunpack.c.l.b16 %v4238
      %v4330 = vunpack.c.l.b16 %v4239
      %v4331 = vunpack.c.l.b16 %v4240
      %v4332 = vunpack.c.l.b16 %v4241
      %v4333 = vunpack.c.l.b16 %v4242
      %v4334 = vunpack.c.l.b16 %v4243
      %v4335 = vunpack.c.l.b16 %v4244
      %v4336 = vunpack.c.l.b16 %v4245
      %v4337 = vunpack.c.l.b16 %v4246
      %v4338 = vunpack.c.l.b16 %v4247
      %v4339 = vunpack.c.l.b16 %v4248
      %v4340 = vunpack.c.l.b16 %v4249
      %v4341 = vunpack.c.l.b16 %v4250
      %v4342 = vunpack.c.l.b16 %v4251
      %v4343 = vunpack.c.l.b16 %v4252
      %v4344 = vunpack.c.l.b16 %v4253
      %v4345 = vunpack.c.l.b16 %v4254
      %v4346 = vunpack.c.l.b16 %v4255
      %v4347 = vunpack.c.l.b16 %v4256
      %v4348 = vpack.c.b16 %v4312, %v4311
      %v4349 = vpack.c.b16 %v4314, %v4313
      %v4350 = vpack.c.b16 %v4316, %v4315
      %v4351 = vpack.c.b16 %v4318, %v4317
      %v4352 = vpack.c.b16 %v4320, %v4319
      %v4353 = vpack.c.b16 %v4322, %v4321
      %v4354 = vpack.c.b16 %v4324, %v4323
      %v4355 = vpack.c.b16 %v4326, %v4325
      %v4356 = vpack.c.b16 %v4328, %v4327
      %v4357 = vpack.c.b16 %v4330, %v4329
      %v4358 = vpack.c.b16 %v4332, %v4331
      %v4359 = vpack.c.b16 %v4334, %v4333
      %v4360 = vpack.c.b16 %v4336, %v4335
      %v4361 = vpack.c.b16 %v4338, %v4337
      %v4362 = vpack.c.b16 %v4340, %v4339
      %v4363 = vpack.c.b16 %v4342, %v4341
      %v4364 = vpack.c.b16 %v4344, %v4343
      %v4365 = vpack.c.b16 %v4346, %v4345
      %v4366 = vpack.c.b16 %v4347, %v4347
      %vm4367 = vsmask.f32 5376
      %v4369 = vshrl.u32 %v4348, 16
      %v4371 = vrot.slane %v4369, 2
      %v4372 = vshll.u32 %v4348, 16
      %v4374 = vrot.slane %v4372, 3
      %v4375 = vor.u32 %v4371, %v4374
      %v4377 = vshrl.u32 %v4349, 16
      %v4379 = vrot.slane %v4377, 2
      %v4380 = vshll.u32 %v4349, 16
      %v4382 = vrot.slane %v4380, 3
      %v4383 = vor.u32 %v4379, %v4382
      %v4384 = vsel %vm4367, %v4375, %v4383
      %v4386 = vshrl.u32 %v4350, 16
      %v4388 = vrot.slane %v4386, 2
      %v4389 = vshll.u32 %v4350, 16
      %v4391 = vrot.slane %v4389, 3
      %v4392 = vor.u32 %v4388, %v4391
      %v4393 = vsel %vm4367, %v4383, %v4392
      %v4395 = vshrl.u32 %v4351, 16
      %v4397 = vrot.slane %v4395, 2
      %v4398 = vshll.u32 %v4351, 16
      %v4400 = vrot.slane %v4398, 3
      %v4401 = vor.u32 %v4397, %v4400
      %v4402 = vsel %vm4367, %v4392, %v4401
      %v4404 = vshrl.u32 %v4352, 16
      %v4406 = vrot.slane %v4404, 2
      %v4407 = vshll.u32 %v4352, 16
      %v4409 = vrot.slane %v4407, 3
      %v4410 = vor.u32 %v4406, %v4409
      %v4411 = vsel %vm4367, %v4401, %v4410
      %v4413 = vshrl.u32 %v4353, 16
      %v4415 = vrot.slane %v4413, 2
      %v4416 = vshll.u32 %v4353, 16
      %v4418 = vrot.slane %v4416, 3
      %v4419 = vor.u32 %v4415, %v4418
      %v4420 = vsel %vm4367, %v4410, %v4419
      %v4422 = vshrl.u32 %v4354, 16
      %v4424 = vrot.slane %v4422, 2
      %v4425 = vshll.u32 %v4354, 16
      %v4427 = vrot.slane %v4425, 3
      %v4428 = vor.u32 %v4424, %v4427
      %v4429 = vsel %vm4367, %v4419, %v4428
      %v4431 = vshrl.u32 %v4355, 16
      %v4433 = vrot.slane %v4431, 2
      %v4434 = vshll.u32 %v4355, 16
      %v4436 = vrot.slane %v4434, 3
      %v4437 = vor.u32 %v4433, %v4436
      %v4438 = vsel %vm4367, %v4428, %v4437
      %v4440 = vshrl.u32 %v4356, 16
      %v4442 = vrot.slane %v4440, 2
      %v4443 = vshll.u32 %v4356, 16
      %v4445 = vrot.slane %v4443, 3
      %v4446 = vor.u32 %v4442, %v4445
      %v4447 = vsel %vm4367, %v4437, %v4446
      %v4449 = vshrl.u32 %v4357, 16
      %v4451 = vrot.slane %v4449, 2
      %v4452 = vshll.u32 %v4357, 16
      %v4454 = vrot.slane %v4452, 3
      %v4455 = vor.u32 %v4451, %v4454
      %v4456 = vsel %vm4367, %v4446, %v4455
      %v4458 = vshrl.u32 %v4358, 16
      %v4460 = vrot.slane %v4458, 2
      %v4461 = vshll.u32 %v4358, 16
      %v4463 = vrot.slane %v4461, 3
      %v4464 = vor.u32 %v4460, %v4463
      %v4465 = vsel %vm4367, %v4455, %v4464
      %v4467 = vshrl.u32 %v4359, 16
      %v4469 = vrot.slane %v4467, 2
      %v4470 = vshll.u32 %v4359, 16
      %v4472 = vrot.slane %v4470, 3
      %v4473 = vor.u32 %v4469, %v4472
      %v4474 = vsel %vm4367, %v4464, %v4473
      %v4476 = vshrl.u32 %v4360, 16
      %v4478 = vrot.slane %v4476, 2
      %v4479 = vshll.u32 %v4360, 16
      %v4481 = vrot.slane %v4479, 3
      %v4482 = vor.u32 %v4478, %v4481
      %v4483 = vsel %vm4367, %v4473, %v4482
      %v4485 = vshrl.u32 %v4361, 16
      %v4487 = vrot.slane %v4485, 2
      %v4488 = vshll.u32 %v4361, 16
      %v4490 = vrot.slane %v4488, 3
      %v4491 = vor.u32 %v4487, %v4490
      %v4492 = vsel %vm4367, %v4482, %v4491
      %v4494 = vshrl.u32 %v4362, 16
      %v4496 = vrot.slane %v4494, 2
      %v4497 = vshll.u32 %v4362, 16
      %v4499 = vrot.slane %v4497, 3
      %v4500 = vor.u32 %v4496, %v4499
      %v4501 = vsel %vm4367, %v4491, %v4500
      %v4503 = vshrl.u32 %v4363, 16
      %v4505 = vrot.slane %v4503, 2
      %v4506 = vshll.u32 %v4363, 16
      %v4508 = vrot.slane %v4506, 3
      %v4509 = vor.u32 %v4505, %v4508
      %v4510 = vsel %vm4367, %v4500, %v4509
      %v4512 = vshrl.u32 %v4364, 16
      %v4514 = vrot.slane %v4512, 2
      %v4515 = vshll.u32 %v4364, 16
      %v4517 = vrot.slane %v4515, 3
      %v4518 = vor.u32 %v4514, %v4517
      %v4519 = vsel %vm4367, %v4509, %v4518
      %v4521 = vshrl.u32 %v4365, 16
      %v4523 = vrot.slane %v4521, 2
      %v4524 = vshll.u32 %v4365, 16
      %v4526 = vrot.slane %v4524, 3
      %v4527 = vor.u32 %v4523, %v4526
      %v4528 = vsel %vm4367, %v4518, %v4527
      %v4530 = vshrl.u32 %v4366, 16
      %v4532 = vrot.slane %v4530, 2
      %v4533 = vshll.u32 %v4366, 16
      %v4535 = vrot.slane %v4533, 3
      %v4536 = vor.u32 %v4532, %v4535
      %v4537 = vsel %vm4367, %v4527, %v4536
      %v4572 = vunpack.c.l.b16 %v4258
      %v4573 = vunpack.c.l.b16 %v4259
      %v4574 = vunpack.c.l.b16 %v4260
      %v4575 = vunpack.c.l.b16 %v4261
      %v4576 = vunpack.c.l.b16 %v4262
      %v4577 = vunpack.c.l.b16 %v4263
      %v4578 = vunpack.c.l.b16 %v4264
      %v4579 = vunpack.c.l.b16 %v4265
      %v4580 = vunpack.c.l.b16 %v4266
      %v4581 = vunpack.c.l.b16 %v4267
      %v4582 = vunpack.c.l.b16 %v4268
      %v4583 = vunpack.c.l.b16 %v4269
      %v4584 = vunpack.c.l.b16 %v4270
      %v4585 = vunpack.c.l.b16 %v4271
      %v4586 = vunpack.c.l.b16 %v4272
      %v4587 = vunpack.c.l.b16 %v4273
      %v4588 = vpack.c.b16 %v4573, %v4572
      %v4589 = vpack.c.b16 %v4575, %v4574
      %v4590 = vpack.c.b16 %v4577, %v4576
      %v4591 = vpack.c.b16 %v4579, %v4578
      %v4592 = vpack.c.b16 %v4581, %v4580
      %v4593 = vpack.c.b16 %v4583, %v4582
      %v4594 = vpack.c.b16 %v4585, %v4584
      %v4595 = vpack.c.b16 %v4587, %v4586
      %4604 = vmatprep.subr.bf16.mxu0 0
      %4605 = vmatpush1.bf16.msra.mxu0 %v4588
      %4606 = vmatprep.subr.bf16.mxu0 0
      %4607 = vmatpush1.bf16.msra.mxu0 %v4589
      %4608 = vmatprep.subr.bf16.mxu0 0
      %4609 = vmatpush1.bf16.msra.mxu0 %v4590
      %4610 = vmatprep.subr.bf16.mxu0 0
      %4611 = vmatpush1.bf16.msra.mxu0 %v4591
      %4612 = vmatprep.subr.bf16.mxu0 0
      %4613 = vmatpush1.bf16.msra.mxu0 %v4592
      %4614 = vmatprep.subr.bf16.mxu0 0
      %4615 = vmatpush1.bf16.msra.mxu0 %v4593
      %4616 = vmatprep.subr.bf16.mxu0 0
      %4617 = vmatpush1.bf16.msra.mxu0 %v4594
      %4618 = vmatprep.subr.bf16.mxu0 0
      %4619 = vmatpush1.bf16.msra.mxu0 %v4595
      %4620 = vmatprep.subr.bf16.mxu0 0
      %4621 = vmatpush1.bf16.msra.mxu0 0
      %4622 = vmatprep.subr.bf16.mxu0 0
      %4623 = vmatpush1.bf16.msra.mxu0 0
      %4624 = vmatprep.subr.bf16.mxu0 0
      %4625 = vmatpush1.bf16.msra.mxu0 0
      %4626 = vmatprep.subr.bf16.mxu0 0
      %4627 = vmatpush1.bf16.msra.mxu0 0
      %4628 = vmatprep.subr.bf16.mxu0 0
      %4629 = vmatpush1.bf16.msra.mxu0 0
      %4630 = vmatprep.subr.bf16.mxu0 0
      %4631 = vmatpush1.bf16.msra.mxu0 0
      %4632 = vmatprep.subr.bf16.mxu0 0
      %4633 = vmatpush1.bf16.msra.mxu0 0
      %4634 = vmatprep.subr.bf16.mxu0 0
      %4635 = vmatpush1.bf16.msra.mxu0 0
      %4636 = vmatprep.mubr.bf16.mxu0 0
      %4637 = vmatmul.mubr.bf16.gmra.mrb[0].mxu0 %v4384
      %v4638 = vpop.f32.mrb[0].mxu0
      %v4639 = vadd.f32 0.0, %v4638
      %v4640 = vpop.f32.mrb[0].mxu0
      %v4641 = vpop.f32.mrb[0].mxu0
      %v4642 = vadd.f32 0.0, %v4641
      %v4643 = vpop.f32.mrb[0].mxu0
      %4644 = vmatprep.mubr.bf16.mxu0 0
      %4645 = vmatmul.mubr.bf16.gmra.mrb[0].mxu0 %v4393
      %v4646 = vpop.f32.mrb[0].mxu0
      %v4647 = vadd.f32 0.0, %v4646
      %v4648 = vpop.f32.mrb[0].mxu0
      %v4649 = vpop.f32.mrb[0].mxu0
      %v4650 = vadd.f32 0.0, %v4649
      %v4651 = vpop.f32.mrb[0].mxu0
      %4652 = vmatprep.mubr.bf16.mxu0 0
      %4653 = vmatmul.mubr.bf16.gmra.mrb[0].mxu0 %v4402
      %v4654 = vpop.f32.mrb[0].mxu0
      %v4655 = vadd.f32 0.0, %v4654
      %v4656 = vpop.f32.mrb[0].mxu0
      %v4657 = vpop.f32.mrb[0].mxu0
      %v4658 = vadd.f32 0.0, %v4657
      %v4659 = vpop.f32.mrb[0].mxu0
      %4660 = vmatprep.mubr.bf16.mxu0 0
      %4661 = vmatmul.mubr.bf16.gmra.mrb[0].mxu0 %v4411
      %v4662 = vpop.f32.mrb[0].mxu0
      %v4663 = vadd.f32 0.0, %v4662
      %v4664 = vpop.f32.mrb[0].mxu0
      %v4665 = vpop.f32.mrb[0].mxu0
      %v4666 = vadd.f32 0.0, %v4665
      %v4667 = vpop.f32.mrb[0].mxu0
      %4668 = vmatprep.mubr.bf16.mxu0 0
      %4669 = vmatmul.mubr.bf16.gmra.mrb[0].mxu0 %v4420
      %v4670 = vpop.f32.mrb[0].mxu0
      %v4671 = vadd.f32 0.0, %v4670
      %v4672 = vpop.f32.mrb[0].mxu0
      %v4673 = vpop.f32.mrb[0].mxu0
      %v4674 = vadd.f32 0.0, %v4673
      %v4675 = vpop.f32.mrb[0].mxu0
      %4676 = vmatprep.mubr.bf16.mxu0 0
      %4677 = vmatmul.mubr.bf16.gmra.mrb[0].mxu0 %v4429
      %v4678 = vpop.f32.mrb[0].mxu0
      %v4679 = vadd.f32 0.0, %v4678
      %v4680 = vpop.f32.mrb[0].mxu0
      %v4681 = vpop.f32.mrb[0].mxu0
      %v4682 = vadd.f32 0.0, %v4681
      %v4683 = vpop.f32.mrb[0].mxu0
      %4684 = vmatprep.mubr.bf16.mxu0 0
      %4685 = vmatmul.mubr.bf16.gmra.mrb[0].mxu0 %v4438
      %v4686 = vpop.f32.mrb[0].mxu0
      %v4687 = vadd.f32 0.0, %v4686
      %v4688 = vpop.f32.mrb[0].mxu0
      %v4689 = vpop.f32.mrb[0].mxu0
      %v4690 = vadd.f32 0.0, %v4689
      %v4691 = vpop.f32.mrb[0].mxu0
      %4692 = vmatprep.mubr.bf16.mxu0 0
      %4693 = vmatmul.mubr.bf16.gmra.mrb[0].mxu0 %v4447
      %v4694 = vpop.f32.mrb[0].mxu0
      %v4695 = vadd.f32 0.0, %v4694
      %v4696 = vpop.f32.mrb[0].mxu0
      %v4697 = vpop.f32.mrb[0].mxu0
      %v4698 = vadd.f32 0.0, %v4697
      %v4699 = vpop.f32.mrb[0].mxu0
      %4700 = vmatprep.mubr.bf16.mxu0 0
      %4701 = vmatmul.mubr.bf16.gmra.mrb[0].mxu0 %v4456
      %v4702 = vpop.f32.mrb[0].mxu0
      %v4703 = vadd.f32 0.0, %v4702
      %v4704 = vpop.f32.mrb[0].mxu0
      %v4705 = vpop.f32.mrb[0].mxu0
      %v4706 = vadd.f32 0.0, %v4705
      %v4707 = vpop.f32.mrb[0].mxu0
      %4708 = vmatprep.mubr.bf16.mxu0 0
      %4709 = vmatmul.mubr.bf16.gmra.mrb[0].mxu0 %v4465
      %v4710 = vpop.f32.mrb[0].mxu0
      %v4711 = vadd.f32 0.0, %v4710
      %v4712 = vpop.f32.mrb[0].mxu0
      %v4713 = vpop.f32.mrb[0].mxu0
      %v4714 = vadd.f32 0.0, %v4713
      %v4715 = vpop.f32.mrb[0].mxu0
      %4716 = vmatprep.mubr.bf16.mxu0 0
      %4717 = vmatmul.mubr.bf16.gmra.mrb[0].mxu0 %v4474
      %v4718 = vpop.f32.mrb[0].mxu0
      %v4719 = vadd.f32 0.0, %v4718
      %v4720 = vpop.f32.mrb[0].mxu0
      %v4721 = vpop.f32.mrb[0].mxu0
      %v4722 = vadd.f32 0.0, %v4721
      %v4723 = vpop.f32.mrb[0].mxu0
      %4724 = vmatprep.mubr.bf16.mxu0 0
      %4725 = vmatmul.mubr.bf16.gmra.mrb[0].mxu0 %v4483
      %v4726 = vpop.f32.mrb[0].mxu0
      %v4727 = vadd.f32 0.0, %v4726
      %v4728 = vpop.f32.mrb[0].mxu0
      %v4729 = vpop.f32.mrb[0].mxu0
      %v4730 = vadd.f32 0.0, %v4729
      %v4731 = vpop.f32.mrb[0].mxu0
      %4732 = vmatprep.mubr.bf16.mxu0 0
      %4733 = vmatmul.mubr.bf16.gmra.mrb[0].mxu0 %v4492
      %v4734 = vpop.f32.mrb[0].mxu0
      %v4735 = vadd.f32 0.0, %v4734
      %v4736 = vpop.f32.mrb[0].mxu0
      %v4737 = vpop.f32.mrb[0].mxu0
      %v4738 = vadd.f32 0.0, %v4737
      %v4739 = vpop.f32.mrb[0].mxu0
      %4740 = vmatprep.mubr.bf16.mxu0 0
      %4741 = vmatmul.mubr.bf16.gmra.mrb[0].mxu0 %v4501
      %v4742 = vpop.f32.mrb[0].mxu0
      %v4743 = vadd.f32 0.0, %v4742
      %v4744 = vpop.f32.mrb[0].mxu0
      %v4745 = vpop.f32.mrb[0].mxu0
      %v4746 = vadd.f32 0.0, %v4745
      %v4747 = vpop.f32.mrb[0].mxu0
      %4748 = vmatprep.mubr.bf16.mxu0 0
      %4749 = vmatmul.mubr.bf16.gmra.mrb[0].mxu0 %v4510
      %v4750 = vpop.f32.mrb[0].mxu0
      %v4751 = vadd.f32 0.0, %v4750
      %v4752 = vpop.f32.mrb[0].mxu0
      %v4753 = vpop.f32.mrb[0].mxu0
      %v4754 = vadd.f32 0.0, %v4753
      %v4755 = vpop.f32.mrb[0].mxu0
      %4756 = vmatprep.mubr.bf16.mxu0 0
      %4757 = vmatmul.mubr.bf16.gmra.mrb[0].mxu0 %v4519
      %v4758 = vpop.f32.mrb[0].mxu0
      %v4759 = vadd.f32 0.0, %v4758
      %v4760 = vpop.f32.mrb[0].mxu0
      %v4761 = vpop.f32.mrb[0].mxu0
      %v4762 = vadd.f32 0.0, %v4761
      %v4763 = vpop.f32.mrb[0].mxu0
      %4764 = vmatprep.mubr.bf16.mxu0 0
      %4765 = vmatmul.mubr.bf16.gmra.mrb[0].mxu0 %v4528
      %v4766 = vpop.f32.mrb[0].mxu0
      %v4767 = vadd.f32 0.0, %v4766
      %v4768 = vpop.f32.mrb[0].mxu0
      %v4769 = vpop.f32.mrb[0].mxu0
      %v4770 = vadd.f32 0.0, %v4769
      %v4771 = vpop.f32.mrb[0].mxu0
      %4772 = vmatprep.mubr.bf16.mxu0 0
      %4773 = vmatmul.mubr.bf16.gmra.mrb[0].mxu0 %v4537
      %v4774 = vpop.f32.mrb[0].mxu0
      %v4775 = vadd.f32 0.0, %v4774
      %v4776 = vpop.f32.mrb[0].mxu0
      %v4777 = vpop.f32.mrb[0].mxu0
      %v4778 = vadd.f32 0.0, %v4777
      %v4779 = vpop.f32.mrb[0].mxu0
      %4780 = vdwg.mxu0
      %v4781 = vld [vmem:[#allocation2] sm:$0xff]
      %v4782 = vld [vmem:[#allocation2 + $0x8] sm:$0xff]
      %v4783 = vld [vmem:[#allocation2 + $0x10] sm:$0xff]
      %v4784 = vld [vmem:[#allocation2 + $0x18] sm:$0xff]
      %v4785 = vld [vmem:[#allocation2 + $0x20] sm:$0xff]
      %v4786 = vld [vmem:[#allocation2 + $0x28] sm:$0xff]
      %v4787 = vld [vmem:[#allocation2 + $0x30] sm:$0xff]
      %v4788 = vld [vmem:[#allocation2 + $0x38] sm:$0xff]
      %v4789 = vld [vmem:[#allocation2 + $0x40] sm:$0xff]
      %v4790 = vld [vmem:[#allocation2 + $0x48] sm:$0xff]
      %v4791 = vld [vmem:[#allocation2 + $0x50] sm:$0xff]
      %v4792 = vld [vmem:[#allocation2 + $0x58] sm:$0xff]
      %v4793 = vld [vmem:[#allocation2 + $0x60] sm:$0xff]
      %v4794 = vld [vmem:[#allocation2 + $0x68] sm:$0xff]
      %v4795 = vld [vmem:[#allocation2 + $0x70] sm:$0xff]
      %v4796 = vld [vmem:[#allocation2 + $0x78] sm:$0xff]
      %v4797 = vld [vmem:[#allocation2 + $0x80] sm:$0xff]
      %v4798 = vld [vmem:[#allocation2 + $0x88] sm:$0xff]
      %v4799 = vld [vmem:[#allocation2 + $0x90] sm:$0xff]
      %v4800 = vld [vmem:[#allocation2 + $0x98] sm:$0xff]
      %v4801 = vld [vmem:[#allocation2 + $0xa0] sm:$0xff]
      %v4802 = vld [vmem:[#allocation2 + $0xa8] sm:$0xff]
      %v4803 = vld [vmem:[#allocation2 + $0xb0] sm:$0xff]
      %v4804 = vld [vmem:[#allocation2 + $0xb8] sm:$0xff]
      %v4805 = vld [vmem:[#allocation2 + $0xc0] sm:$0xff]
      %v4806 = vld [vmem:[#allocation2 + $0xc8] sm:$0xff]
      %v4807 = vld [vmem:[#allocation2 + $0xd0] sm:$0xff]
      %v4808 = vld [vmem:[#allocation2 + $0xd8] sm:$0xff]
      %v4809 = vld [vmem:[#allocation2 + $0xe0] sm:$0xff]
      %v4810 = vld [vmem:[#allocation2 + $0xe8] sm:$0xff]
      %v4811 = vld [vmem:[#allocation2 + $0xf0] sm:$0xff]
      %v4812 = vld [vmem:[#allocation2 + $0xf8] sm:$0xff]
      %v4813 = vld [vmem:[#allocation2 + $0x100] sm:$0xff]
      %v4814 = vld [vmem:[#allocation2 + $0x108] sm:$0xff]
      %v4815 = vld [vmem:[#allocation2 + $0x110] sm:$0xff]
      %v4816 = vld [vmem:[#allocation2 + $0x118] sm:$0xff]
      %v4817 = vadd.f32 %v4781, %v4639
      %v4818 = vadd.f32 %v4782, %v4642
      %v4819 = vadd.f32 %v4783, %v4647
      %v4820 = vadd.f32 %v4784, %v4650
      %v4821 = vadd.f32 %v4785, %v4655
      %v4822 = vadd.f32 %v4786, %v4658
      %v4823 = vadd.f32 %v4787, %v4663
      %v4824 = vadd.f32 %v4788, %v4666
      %v4825 = vadd.f32 %v4789, %v4671
      %v4826 = vadd.f32 %v4790, %v4674
      %v4827 = vadd.f32 %v4791, %v4679
      %v4828 = vadd.f32 %v4792, %v4682
      %v4829 = vadd.f32 %v4793, %v4687
      %v4830 = vadd.f32 %v4794, %v4690
      %v4831 = vadd.f32 %v4795, %v4695
      %v4832 = vadd.f32 %v4796, %v4698
      %v4833 = vadd.f32 %v4797, %v4703
      %v4834 = vadd.f32 %v4798, %v4706
      %v4835 = vadd.f32 %v4799, %v4711
      %v4836 = vadd.f32 %v4800, %v4714
      %v4837 = vadd.f32 %v4801, %v4719
      %v4838 = vadd.f32 %v4802, %v4722
      %v4839 = vadd.f32 %v4803, %v4727
      %v4840 = vadd.f32 %v4804, %v4730
      %v4841 = vadd.f32 %v4805, %v4735
      %v4842 = vadd.f32 %v4806, %v4738
      %v4843 = vadd.f32 %v4807, %v4743
      %v4844 = vadd.f32 %v4808, %v4746
      %v4845 = vadd.f32 %v4809, %v4751
      %v4846 = vadd.f32 %v4810, %v4754
      %v4847 = vadd.f32 %v4811, %v4759
      %v4848 = vadd.f32 %v4812, %v4762
      %v4849 = vadd.f32 %v4813, %v4767
      %v4850 = vadd.f32 %v4814, %v4770
      %v4851 = vadd.f32 %v4815, %v4775
      %v4852 = vadd.f32 %v4816, %v4778
      %4853 = vst [vmem:[#allocation2] sm:$0xff] %v4817
      %4854 = vst [vmem:[#allocation2 + $0x8] sm:$0xff] %v4818
      %4855 = vst [vmem:[#allocation2 + $0x10] sm:$0xff] %v4819
      %4856 = vst [vmem:[#allocation2 + $0x18] sm:$0xff] %v4820
      %4857 = vst [vmem:[#allocation2 + $0x20] sm:$0xff] %v4821
      %4858 = vst [vmem:[#allocation2 + $0x28] sm:$0xff] %v4822
      %4859 = vst [vmem:[#allocation2 + $0x30] sm:$0xff] %v4823
      %4860 = vst [vmem:[#allocation2 + $0x38] sm:$0xff] %v4824
      %4861 = vst [vmem:[#allocation2 + $0x40] sm:$0xff] %v4825
      %4862 = vst [vmem:[#allocation2 + $0x48] sm:$0xff] %v4826
      %4863 = vst [vmem:[#allocation2 + $0x50] sm:$0xff] %v4827
      %4864 = vst [vmem:[#allocation2 + $0x58] sm:$0xff] %v4828
      %4865 = vst [vmem:[#allocation2 + $0x60] sm:$0xff] %v4829
      %4866 = vst [vmem:[#allocation2 + $0x68] sm:$0xff] %v4830
      %4867 = vst [vmem:[#allocation2 + $0x70] sm:$0xff] %v4831
      %4868 = vst [vmem:[#allocation2 + $0x78] sm:$0xff] %v4832
      %4869 = vst [vmem:[#allocation2 + $0x80] sm:$0xff] %v4833
      %4870 = vst [vmem:[#allocation2 + $0x88] sm:$0xff] %v4834
      %4871 = vst [vmem:[#allocation2 + $0x90] sm:$0xff] %v4835
      %4872 = vst [vmem:[#allocation2 + $0x98] sm:$0xff] %v4836
      %4873 = vst [vmem:[#allocation2 + $0xa0] sm:$0xff] %v4837
      %4874 = vst [vmem:[#allocation2 + $0xa8] sm:$0xff] %v4838
      %4875 = vst [vmem:[#allocation2 + $0xb0] sm:$0xff] %v4839
      %4876 = vst [vmem:[#allocation2 + $0xb8] sm:$0xff] %v4840
      %4877 = vst [vmem:[#allocation2 + $0xc0] sm:$0xff] %v4841
      %4878 = vst [vmem:[#allocation2 + $0xc8] sm:$0xff] %v4842
      %4879 = vst [vmem:[#allocation2 + $0xd0] sm:$0xff] %v4843
      %4880 = vst [vmem:[#allocation2 + $0xd8] sm:$0xff] %v4844
      %4881 = vst [vmem:[#allocation2 + $0xe0] sm:$0xff] %v4845
      %4882 = vst [vmem:[#allocation2 + $0xe8] sm:$0xff] %v4846
      %4883 = vst [vmem:[#allocation2 + $0xf0] sm:$0xff] %v4847
      %4884 = vst [vmem:[#allocation2 + $0xf8] sm:$0xff] %v4848
      %4885 = vst [vmem:[#allocation2 + $0x100] sm:$0xff] %v4849
      %4886 = vst [vmem:[#allocation2 + $0x108] sm:$0xff] %v4850
      %4887 = vst [vmem:[#allocation2 + $0x110] sm:$0xff] %v4851
      %4888 = vst [vmem:[#allocation2 + $0x118] sm:$0xff] %v4852
      %v4889 = vld [vmem:[%s304 + $0x10] sm:$0x8]
      %v4890 = vld [vmem:[%s304 + $0x14] sm:$0xf]
      %v4891 = vld [vmem:[%s304 + $0x18] sm:$0xf]
      %v4892 = vld [vmem:[%s304 + $0x1c] sm:$0xf]
      %v4893 = vld [vmem:[%s304 + $0x20] sm:$0xf]
      %v4894 = vld [vmem:[%s304 + $0x24] sm:$0xf]
      %v4895 = vld [vmem:[%s304 + $0x28] sm:$0xf]
      %v4896 = vld [vmem:[%s304 + $0x2c] sm:$0xf]
      %v4897 = vld [vmem:[%s304 + $0x30] sm:$0xf]
      %v4898 = vld [vmem:[%s304 + $0x34] sm:$0xf]
      %v4899 = vld [vmem:[%s304 + $0x38] sm:$0xf]
      %v4900 = vld [vmem:[%s304 + $0x3c] sm:$0xf]
      %v4901 = vld [vmem:[%s304 + $0x40] sm:$0xf]
      %v4902 = vld [vmem:[%s304 + $0x44] sm:$0xf]
      %v4903 = vld [vmem:[%s304 + $0x48] sm:$0xf]
      %v4904 = vld [vmem:[%s304 + $0x4c] sm:$0xf]
      %v4905 = vld [vmem:[%s304 + $0x50] sm:$0xf]
      %v4906 = vld [vmem:[%s304 + $0x54] sm:$0xf]
      %v4907 = vld [vmem:[%s304 + $0x58] sm:$0xf]
      %v4908 = vld [vmem:[%s304 + $0x5c] sm:$0xf]
      %v4909 = vld [vmem:[%s304 + $0x60] sm:$0xf]
      %v4910 = vld [vmem:[%s304 + $0x64] sm:$0xf]
      %v4911 = vld [vmem:[%s304 + $0x68] sm:$0xf]
      %v4912 = vld [vmem:[%s304 + $0x6c] sm:$0xf]
      %v4913 = vld [vmem:[%s304 + $0x70] sm:$0xf]
      %v4914 = vld [vmem:[%s304 + $0x74] sm:$0xf]
      %v4915 = vld [vmem:[%s304 + $0x78] sm:$0xf]
      %v4916 = vld [vmem:[%s304 + $0x7c] sm:$0xf]
      %v4917 = vld [vmem:[%s304 + $0x80] sm:$0xf]
      %v4918 = vld [vmem:[%s304 + $0x84] sm:$0xf]
      %v4919 = vld [vmem:[%s304 + $0x88] sm:$0xf]
      %v4920 = vld [vmem:[%s304 + $0x8c] sm:$0xf]
      %v4921 = vld [vmem:[%s304 + $0x90] sm:$0xf]
      %v4922 = vld [vmem:[%s304 + $0x94] sm:$0xf]
      %v4923 = vld [vmem:[%s304 + $0x98] sm:$0xf]
      %v4924 = vld [vmem:[%s304 + $0x9c] sm:$0xf]
      %v4925 = vld [vmem:[%s304 + $0xa0] sm:$0x7]
      %s4926 = scalar_lea.vmem %s308, 512
      %v4927 = vld [vmem:[%s4926] sm:$0xf]
      %v4928 = vld [vmem:[%s4926 + $0x4] sm:$0xf]
      %v4929 = vld [vmem:[%s4926 + $0x8] sm:$0xf]
      %v4930 = vld [vmem:[%s4926 + $0xc] sm:$0xf]
      %v4931 = vld [vmem:[%s4926 + $0x10] sm:$0xf]
      %v4932 = vld [vmem:[%s4926 + $0x14] sm:$0xf]
      %v4933 = vld [vmem:[%s4926 + $0x18] sm:$0xf]
      %v4934 = vld [vmem:[%s4926 + $0x1c] sm:$0xf]
      %v4935 = vld [vmem:[%s4926 + $0x20] sm:$0xf]
      %v4936 = vld [vmem:[%s4926 + $0x24] sm:$0xf]
      %v4937 = vld [vmem:[%s4926 + $0x28] sm:$0xf]
      %v4938 = vld [vmem:[%s4926 + $0x2c] sm:$0xf]
      %v4939 = vld [vmem:[%s4926 + $0x30] sm:$0xf]
      %v4940 = vld [vmem:[%s4926 + $0x34] sm:$0xf]
      %v4941 = vld [vmem:[%s4926 + $0x38] sm:$0xf]
      %v4942 = vld [vmem:[%s4926 + $0x3c] sm:$0xf]
      %v4980 = vunpack.c.l.b16 %v4889
      %v4981 = vunpack.c.l.b16 %v4890
      %v4982 = vunpack.c.l.b16 %v4891
      %v4983 = vunpack.c.l.b16 %v4892
      %v4984 = vunpack.c.l.b16 %v4893
      %v4985 = vunpack.c.l.b16 %v4894
      %v4986 = vunpack.c.l.b16 %v4895
      %v4987 = vunpack.c.l.b16 %v4896
      %v4988 = vunpack.c.l.b16 %v4897
      %v4989 = vunpack.c.l.b16 %v4898
      %v4990 = vunpack.c.l.b16 %v4899
      %v4991 = vunpack.c.l.b16 %v4900
      %v4992 = vunpack.c.l.b16 %v4901
      %v4993 = vunpack.c.l.b16 %v4902
      %v4994 = vunpack.c.l.b16 %v4903
      %v4995 = vunpack.c.l.b16 %v4904
      %v4996 = vunpack.c.l.b16 %v4905
      %v4997 = vunpack.c.l.b16 %v4906
      %v4998 = vunpack.c.l.b16 %v4907
      %v4999 = vunpack.c.l.b16 %v4908
      %v5000 = vunpack.c.l.b16 %v4909
      %v5001 = vunpack.c.l.b16 %v4910
      %v5002 = vunpack.c.l.b16 %v4911
      %v5003 = vunpack.c.l.b16 %v4912
      %v5004 = vunpack.c.l.b16 %v4913
      %v5005 = vunpack.c.l.b16 %v4914
      %v5006 = vunpack.c.l.b16 %v4915
      %v5007 = vunpack.c.l.b16 %v4916
      %v5008 = vunpack.c.l.b16 %v4917
      %v5009 = vunpack.c.l.b16 %v4918
      %v5010 = vunpack.c.l.b16 %v4919
      %v5011 = vunpack.c.l.b16 %v4920
      %v5012 = vunpack.c.l.b16 %v4921
      %v5013 = vunpack.c.l.b16 %v4922
      %v5014 = vunpack.c.l.b16 %v4923
      %v5015 = vunpack.c.l.b16 %v4924
      %v5016 = vunpack.c.l.b16 %v4925
      %v5017 = vpack.c.b16 %v4981, %v4980
      %v5018 = vpack.c.b16 %v4983, %v4982
      %v5019 = vpack.c.b16 %v4985, %v4984
      %v5020 = vpack.c.b16 %v4987, %v4986
      %v5021 = vpack.c.b16 %v4989, %v4988
      %v5022 = vpack.c.b16 %v4991, %v4990
      %v5023 = vpack.c.b16 %v4993, %v4992
      %v5024 = vpack.c.b16 %v4995, %v4994
      %v5025 = vpack.c.b16 %v4997, %v4996
      %v5026 = vpack.c.b16 %v4999, %v4998
      %v5027 = vpack.c.b16 %v5001, %v5000
      %v5028 = vpack.c.b16 %v5003, %v5002
      %v5029 = vpack.c.b16 %v5005, %v5004
      %v5030 = vpack.c.b16 %v5007, %v5006
      %v5031 = vpack.c.b16 %v5009, %v5008
      %v5032 = vpack.c.b16 %v5011, %v5010
      %v5033 = vpack.c.b16 %v5013, %v5012
      %v5034 = vpack.c.b16 %v5015, %v5014
      %v5035 = vpack.c.b16 %v5016, %v5016
      %vm5036 = vcmask 1044480
      %v5037 = vrot.slane %v5017, 3
      %v5038 = vrot.slane %v5018, 3
      %v5039 = vsel %vm5036, %v5037, %v5038
      %v5040 = vrot.slane %v5019, 3
      %v5041 = vsel %vm5036, %v5038, %v5040
      %v5042 = vrot.slane %v5020, 3
      %v5043 = vsel %vm5036, %v5040, %v5042
      %v5044 = vrot.slane %v5021, 3
      %v5045 = vsel %vm5036, %v5042, %v5044
      %v5046 = vrot.slane %v5022, 3
      %v5047 = vsel %vm5036, %v5044, %v5046
      %v5048 = vrot.slane %v5023, 3
      %v5049 = vsel %vm5036, %v5046, %v5048
      %v5050 = vrot.slane %v5024, 3
      %v5051 = vsel %vm5036, %v5048, %v5050
      %v5052 = vrot.slane %v5025, 3
      %v5053 = vsel %vm5036, %v5050, %v5052
      %v5054 = vrot.slane %v5026, 3
      %v5055 = vsel %vm5036, %v5052, %v5054
      %v5056 = vrot.slane %v5027, 3
      %v5057 = vsel %vm5036, %v5054, %v5056
      %v5058 = vrot.slane %v5028, 3
      %v5059 = vsel %vm5036, %v5056, %v5058
      %v5060 = vrot.slane %v5029, 3
      %v5061 = vsel %vm5036, %v5058, %v5060
      %v5062 = vrot.slane %v5030, 3
      %v5063 = vsel %vm5036, %v5060, %v5062
      %v5064 = vrot.slane %v5031, 3
      %v5065 = vsel %vm5036, %v5062, %v5064
      %v5066 = vrot.slane %v5032, 3
      %v5067 = vsel %vm5036, %v5064, %v5066
      %v5068 = vrot.slane %v5033, 3
      %v5069 = vsel %vm5036, %v5066, %v5068
      %v5070 = vrot.slane %v5034, 3
      %v5071 = vsel %vm5036, %v5068, %v5070
      %v5072 = vrot.slane %v5035, 3
      %v5073 = vsel %vm5036, %v5070, %v5072
      %v5108 = vunpack.c.l.b16 %v4927
      %v5109 = vunpack.c.l.b16 %v4928
      %v5110 = vunpack.c.l.b16 %v4929
      %v5111 = vunpack.c.l.b16 %v4930
      %v5112 = vunpack.c.l.b16 %v4931
      %v5113 = vunpack.c.l.b16 %v4932
      %v5114 = vunpack.c.l.b16 %v4933
      %v5115 = vunpack.c.l.b16 %v4934
      %v5116 = vunpack.c.l.b16 %v4935
      %v5117 = vunpack.c.l.b16 %v4936
      %v5118 = vunpack.c.l.b16 %v4937
      %v5119 = vunpack.c.l.b16 %v4938
      %v5120 = vunpack.c.l.b16 %v4939
      %v5121 = vunpack.c.l.b16 %v4940
      %v5122 = vunpack.c.l.b16 %v4941
      %v5123 = vunpack.c.l.b16 %v4942
      %v5124 = vpack.c.b16 %v5109, %v5108
      %v5125 = vpack.c.b16 %v5111, %v5110
      %v5126 = vpack.c.b16 %v5113, %v5112
      %v5127 = vpack.c.b16 %v5115, %v5114
      %v5128 = vpack.c.b16 %v5117, %v5116
      %v5129 = vpack.c.b16 %v5119, %v5118
      %v5130 = vpack.c.b16 %v5121, %v5120
      %v5131 = vpack.c.b16 %v5123, %v5122
      %5140 = vmatprep.subr.bf16.mxu0 0
      %5141 = vmatpush1.bf16.msra.mxu0 %v5124
      %5142 = vmatprep.subr.bf16.mxu0 0
      %5143 = vmatpush1.bf16.msra.mxu0 %v5125
      %5144 = vmatprep.subr.bf16.mxu0 0
      %5145 = vmatpush1.bf16.msra.mxu0 %v5126
      %5146 = vmatprep.subr.bf16.mxu0 0
      %5147 = vmatpush1.bf16.msra.mxu0 %v5127
      %5148 = vmatprep.subr.bf16.mxu0 0
      %5149 = vmatpush1.bf16.msra.mxu0 %v5128
      %5150 = vmatprep.subr.bf16.mxu0 0
      %5151 = vmatpush1.bf16.msra.mxu0 %v5129
      %5152 = vmatprep.subr.bf16.mxu0 0
      %5153 = vmatpush1.bf16.msra.mxu0 %v5130
      %5154 = vmatprep.subr.bf16.mxu0 0
      %5155 = vmatpush1.bf16.msra.mxu0 %v5131
      %5156 = vmatprep.subr.bf16.mxu0 0
      %5157 = vmatpush1.bf16.msra.mxu0 0
      %5158 = vmatprep.subr.bf16.mxu0 0
      %5159 = vmatpush1.bf16.msra.mxu0 0
      %5160 = vmatprep.subr.bf16.mxu0 0
      %5161 = vmatpush1.bf16.msra.mxu0 0
      %5162 = vmatprep.subr.bf16.mxu0 0
      %5163 = vmatpush1.bf16.msra.mxu0 0
      %5164 = vmatprep.subr.bf16.mxu0 0
      %5165 = vmatpush1.bf16.msra.mxu0 0
      %5166 = vmatprep.subr.bf16.mxu0 0
      %5167 = vmatpush1.bf16.msra.mxu0 0
      %5168 = vmatprep.subr.bf16.mxu0 0
      %5169 = vmatpush1.bf16.msra.mxu0 0
      %5170 = vmatprep.subr.bf16.mxu0 0
      %5171 = vmatpush1.bf16.msra.mxu0 0
      %5172 = vmatprep.mubr.bf16.mxu0 0
      %5173 = vmatmul.mubr.bf16.gmra.mrb[0].mxu0 %v5039
      %v5174 = vpop.f32.mrb[0].mxu0
      %v5175 = vadd.f32 0.0, %v5174
      %v5176 = vpop.f32.mrb[0].mxu0
      %v5177 = vpop.f32.mrb[0].mxu0
      %v5178 = vadd.f32 0.0, %v5177
      %v5179 = vpop.f32.mrb[0].mxu0
      %5180 = vmatprep.mubr.bf16.mxu0 0
      %5181 = vmatmul.mubr.bf16.gmra.mrb[0].mxu0 %v5041
      %v5182 = vpop.f32.mrb[0].mxu0
      %v5183 = vadd.f32 0.0, %v5182
      %v5184 = vpop.f32.mrb[0].mxu0
      %v5185 = vpop.f32.mrb[0].mxu0
      %v5186 = vadd.f32 0.0, %v5185
      %v5187 = vpop.f32.mrb[0].mxu0
      %5188 = vmatprep.mubr.bf16.mxu0 0
      %5189 = vmatmul.mubr.bf16.gmra.mrb[0].mxu0 %v5043
      %v5190 = vpop.f32.mrb[0].mxu0
      %v5191 = vadd.f32 0.0, %v5190
      %v5192 = vpop.f32.mrb[0].mxu0
      %v5193 = vpop.f32.mrb[0].mxu0
      %v5194 = vadd.f32 0.0, %v5193
      %v5195 = vpop.f32.mrb[0].mxu0
      %5196 = vmatprep.mubr.bf16.mxu0 0
      %5197 = vmatmul.mubr.bf16.gmra.mrb[0].mxu0 %v5045
      %v5198 = vpop.f32.mrb[0].mxu0
      %v5199 = vadd.f32 0.0, %v5198
      %v5200 = vpop.f32.mrb[0].mxu0
      %v5201 = vpop.f32.mrb[0].mxu0
      %v5202 = vadd.f32 0.0, %v5201
      %v5203 = vpop.f32.mrb[0].mxu0
      %5204 = vmatprep.mubr.bf16.mxu0 0
      %5205 = vmatmul.mubr.bf16.gmra.mrb[0].mxu0 %v5047
      %v5206 = vpop.f32.mrb[0].mxu0
      %v5207 = vadd.f32 0.0, %v5206
      %v5208 = vpop.f32.mrb[0].mxu0
      %v5209 = vpop.f32.mrb[0].mxu0
      %v5210 = vadd.f32 0.0, %v5209
      %v5211 = vpop.f32.mrb[0].mxu0
      %5212 = vmatprep.mubr.bf16.mxu0 0
      %5213 = vmatmul.mubr.bf16.gmra.mrb[0].mxu0 %v5049
      %v5214 = vpop.f32.mrb[0].mxu0
      %v5215 = vadd.f32 0.0, %v5214
      %v5216 = vpop.f32.mrb[0].mxu0
      %v5217 = vpop.f32.mrb[0].mxu0
      %v5218 = vadd.f32 0.0, %v5217
      %v5219 = vpop.f32.mrb[0].mxu0
      %5220 = vmatprep.mubr.bf16.mxu0 0
      %5221 = vmatmul.mubr.bf16.gmra.mrb[0].mxu0 %v5051
      %v5222 = vpop.f32.mrb[0].mxu0
      %v5223 = vadd.f32 0.0, %v5222
      %v5224 = vpop.f32.mrb[0].mxu0
      %v5225 = vpop.f32.mrb[0].mxu0
      %v5226 = vadd.f32 0.0, %v5225
      %v5227 = vpop.f32.mrb[0].mxu0
      %5228 = vmatprep.mubr.bf16.mxu0 0
      %5229 = vmatmul.mubr.bf16.gmra.mrb[0].mxu0 %v5053
      %v5230 = vpop.f32.mrb[0].mxu0
      %v5231 = vadd.f32 0.0, %v5230
      %v5232 = vpop.f32.mrb[0].mxu0
      %v5233 = vpop.f32.mrb[0].mxu0
      %v5234 = vadd.f32 0.0, %v5233
      %v5235 = vpop.f32.mrb[0].mxu0
      %5236 = vmatprep.mubr.bf16.mxu0 0
      %5237 = vmatmul.mubr.bf16.gmra.mrb[0].mxu0 %v5055
      %v5238 = vpop.f32.mrb[0].mxu0
      %v5239 = vadd.f32 0.0, %v5238
      %v5240 = vpop.f32.mrb[0].mxu0
      %v5241 = vpop.f32.mrb[0].mxu0
      %v5242 = vadd.f32 0.0, %v5241
      %v5243 = vpop.f32.mrb[0].mxu0
      %5244 = vmatprep.mubr.bf16.mxu0 0
      %5245 = vmatmul.mubr.bf16.gmra.mrb[0].mxu0 %v5057
      %v5246 = vpop.f32.mrb[0].mxu0
      %v5247 = vadd.f32 0.0, %v5246
      %v5248 = vpop.f32.mrb[0].mxu0
      %v5249 = vpop.f32.mrb[0].mxu0
      %v5250 = vadd.f32 0.0, %v5249
      %v5251 = vpop.f32.mrb[0].mxu0
      %5252 = vmatprep.mubr.bf16.mxu0 0
      %5253 = vmatmul.mubr.bf16.gmra.mrb[0].mxu0 %v5059
      %v5254 = vpop.f32.mrb[0].mxu0
      %v5255 = vadd.f32 0.0, %v5254
      %v5256 = vpop.f32.mrb[0].mxu0
      %v5257 = vpop.f32.mrb[0].mxu0
      %v5258 = vadd.f32 0.0, %v5257
      %v5259 = vpop.f32.mrb[0].mxu0
      %5260 = vmatprep.mubr.bf16.mxu0 0
      %5261 = vmatmul.mubr.bf16.gmra.mrb[0].mxu0 %v5061
      %v5262 = vpop.f32.mrb[0].mxu0
      %v5263 = vadd.f32 0.0, %v5262
      %v5264 = vpop.f32.mrb[0].mxu0
      %v5265 = vpop.f32.mrb[0].mxu0
      %v5266 = vadd.f32 0.0, %v5265
      %v5267 = vpop.f32.mrb[0].mxu0
      %5268 = vmatprep.mubr.bf16.mxu0 0
      %5269 = vmatmul.mubr.bf16.gmra.mrb[0].mxu0 %v5063
      %v5270 = vpop.f32.mrb[0].mxu0
      %v5271 = vadd.f32 0.0, %v5270
      %v5272 = vpop.f32.mrb[0].mxu0
      %v5273 = vpop.f32.mrb[0].mxu0
      %v5274 = vadd.f32 0.0, %v5273
      %v5275 = vpop.f32.mrb[0].mxu0
      %5276 = vmatprep.mubr.bf16.mxu0 0
      %5277 = vmatmul.mubr.bf16.gmra.mrb[0].mxu0 %v5065
      %v5278 = vpop.f32.mrb[0].mxu0
      %v5279 = vadd.f32 0.0, %v5278
      %v5280 = vpop.f32.mrb[0].mxu0
      %v5281 = vpop.f32.mrb[0].mxu0
      %v5282 = vadd.f32 0.0, %v5281
      %v5283 = vpop.f32.mrb[0].mxu0
      %5284 = vmatprep.mubr.bf16.mxu0 0
      %5285 = vmatmul.mubr.bf16.gmra.mrb[0].mxu0 %v5067
      %v5286 = vpop.f32.mrb[0].mxu0
      %v5287 = vadd.f32 0.0, %v5286
      %v5288 = vpop.f32.mrb[0].mxu0
      %v5289 = vpop.f32.mrb[0].mxu0
      %v5290 = vadd.f32 0.0, %v5289
      %v5291 = vpop.f32.mrb[0].mxu0
      %5292 = vmatprep.mubr.bf16.mxu0 0
      %5293 = vmatmul.mubr.bf16.gmra.mrb[0].mxu0 %v5069
      %v5294 = vpop.f32.mrb[0].mxu0
      %v5295 = vadd.f32 0.0, %v5294
      %v5296 = vpop.f32.mrb[0].mxu0
      %v5297 = vpop.f32.mrb[0].mxu0
      %v5298 = vadd.f32 0.0, %v5297
      %v5299 = vpop.f32.mrb[0].mxu0
      %5300 = vmatprep.mubr.bf16.mxu0 0
      %5301 = vmatmul.mubr.bf16.gmra.mrb[0].mxu0 %v5071
      %v5302 = vpop.f32.mrb[0].mxu0
      %v5303 = vadd.f32 0.0, %v5302
      %v5304 = vpop.f32.mrb[0].mxu0
      %v5305 = vpop.f32.mrb[0].mxu0
      %v5306 = vadd.f32 0.0, %v5305
      %v5307 = vpop.f32.mrb[0].mxu0
      %5308 = vmatprep.mubr.bf16.mxu0 0
      %5309 = vmatmul.mubr.bf16.gmra.mrb[0].mxu0 %v5073
      %v5310 = vpop.f32.mrb[0].mxu0
      %v5311 = vadd.f32 0.0, %v5310
      %v5312 = vpop.f32.mrb[0].mxu0
      %v5313 = vpop.f32.mrb[0].mxu0
      %v5314 = vadd.f32 0.0, %v5313
      %v5315 = vpop.f32.mrb[0].mxu0
      %5316 = vdwg.mxu0
      %v5317 = vld [vmem:[#allocation2] sm:$0xff]
      %v5318 = vld [vmem:[#allocation2 + $0x8] sm:$0xff]
      %v5319 = vld [vmem:[#allocation2 + $0x10] sm:$0xff]
      %v5320 = vld [vmem:[#allocation2 + $0x18] sm:$0xff]
      %v5321 = vld [vmem:[#allocation2 + $0x20] sm:$0xff]
      %v5322 = vld [vmem:[#allocation2 + $0x28] sm:$0xff]
      %v5323 = vld [vmem:[#allocation2 + $0x30] sm:$0xff]
      %v5324 = vld [vmem:[#allocation2 + $0x38] sm:$0xff]
      %v5325 = vld [vmem:[#allocation2 + $0x40] sm:$0xff]
      %v5326 = vld [vmem:[#allocation2 + $0x48] sm:$0xff]
      %v5327 = vld [vmem:[#allocation2 + $0x50] sm:$0xff]
      %v5328 = vld [vmem:[#allocation2 + $0x58] sm:$0xff]
      %v5329 = vld [vmem:[#allocation2 + $0x60] sm:$0xff]
      %v5330 = vld [vmem:[#allocation2 + $0x68] sm:$0xff]
      %v5331 = vld [vmem:[#allocation2 + $0x70] sm:$0xff]
      %v5332 = vld [vmem:[#allocation2 + $0x78] sm:$0xff]
      %v5333 = vld [vmem:[#allocation2 + $0x80] sm:$0xff]
      %v5334 = vld [vmem:[#allocation2 + $0x88] sm:$0xff]
      %v5335 = vld [vmem:[#allocation2 + $0x90] sm:$0xff]
      %v5336 = vld [vmem:[#allocation2 + $0x98] sm:$0xff]
      %v5337 = vld [vmem:[#allocation2 + $0xa0] sm:$0xff]
      %v5338 = vld [vmem:[#allocation2 + $0xa8] sm:$0xff]
      %v5339 = vld [vmem:[#allocation2 + $0xb0] sm:$0xff]
      %v5340 = vld [vmem:[#allocation2 + $0xb8] sm:$0xff]
      %v5341 = vld [vmem:[#allocation2 + $0xc0] sm:$0xff]
      %v5342 = vld [vmem:[#allocation2 + $0xc8] sm:$0xff]
      %v5343 = vld [vmem:[#allocation2 + $0xd0] sm:$0xff]
      %v5344 = vld [vmem:[#allocation2 + $0xd8] sm:$0xff]
      %v5345 = vld [vmem:[#allocation2 + $0xe0] sm:$0xff]
      %v5346 = vld [vmem:[#allocation2 + $0xe8] sm:$0xff]
      %v5347 = vld [vmem:[#allocation2 + $0xf0] sm:$0xff]
      %v5348 = vld [vmem:[#allocation2 + $0xf8] sm:$0xff]
      %v5349 = vld [vmem:[#allocation2 + $0x100] sm:$0xff]
      %v5350 = vld [vmem:[#allocation2 + $0x108] sm:$0xff]
      %v5351 = vld [vmem:[#allocation2 + $0x110] sm:$0xff]
      %v5352 = vld [vmem:[#allocation2 + $0x118] sm:$0xff]
      %v5353 = vadd.f32 %v5317, %v5175
      %v5354 = vadd.f32 %v5318, %v5178
      %v5355 = vadd.f32 %v5319, %v5183
      %v5356 = vadd.f32 %v5320, %v5186
      %v5357 = vadd.f32 %v5321, %v5191
      %v5358 = vadd.f32 %v5322, %v5194
      %v5359 = vadd.f32 %v5323, %v5199
      %v5360 = vadd.f32 %v5324, %v5202
      %v5361 = vadd.f32 %v5325, %v5207
      %v5362 = vadd.f32 %v5326, %v5210
      %v5363 = vadd.f32 %v5327, %v5215
      %v5364 = vadd.f32 %v5328, %v5218
      %v5365 = vadd.f32 %v5329, %v5223
      %v5366 = vadd.f32 %v5330, %v5226
      %v5367 = vadd.f32 %v5331, %v5231
      %v5368 = vadd.f32 %v5332, %v5234
      %v5369 = vadd.f32 %v5333, %v5239
      %v5370 = vadd.f32 %v5334, %v5242
      %v5371 = vadd.f32 %v5335, %v5247
      %v5372 = vadd.f32 %v5336, %v5250
      %v5373 = vadd.f32 %v5337, %v5255
      %v5374 = vadd.f32 %v5338, %v5258
      %v5375 = vadd.f32 %v5339, %v5263
      %v5376 = vadd.f32 %v5340, %v5266
      %v5377 = vadd.f32 %v5341, %v5271
      %v5378 = vadd.f32 %v5342, %v5274
      %v5379 = vadd.f32 %v5343, %v5279
      %v5380 = vadd.f32 %v5344, %v5282
      %v5381 = vadd.f32 %v5345, %v5287
      %v5382 = vadd.f32 %v5346, %v5290
      %v5383 = vadd.f32 %v5347, %v5295
      %v5384 = vadd.f32 %v5348, %v5298
      %v5385 = vadd.f32 %v5349, %v5303
      %v5386 = vadd.f32 %v5350, %v5306
      %v5387 = vadd.f32 %v5351, %v5311
      %v5388 = vadd.f32 %v5352, %v5314
      %5389 = vst [vmem:[#allocation2] sm:$0xff] %v5353
      %5390 = vst [vmem:[#allocation2 + $0x8] sm:$0xff] %v5354
      %5391 = vst [vmem:[#allocation2 + $0x10] sm:$0xff] %v5355
      %5392 = vst [vmem:[#allocation2 + $0x18] sm:$0xff] %v5356
      %5393 = vst [vmem:[#allocation2 + $0x20] sm:$0xff] %v5357
      %5394 = vst [vmem:[#allocation2 + $0x28] sm:$0xff] %v5358
      %5395 = vst [vmem:[#allocation2 + $0x30] sm:$0xff] %v5359
      %5396 = vst [vmem:[#allocation2 + $0x38] sm:$0xff] %v5360
      %5397 = vst [vmem:[#allocation2 + $0x40] sm:$0xff] %v5361
      %5398 = vst [vmem:[#allocation2 + $0x48] sm:$0xff] %v5362
      %5399 = vst [vmem:[#allocation2 + $0x50] sm:$0xff] %v5363
      %5400 = vst [vmem:[#allocation2 + $0x58] sm:$0xff] %v5364
      %5401 = vst [vmem:[#allocation2 + $0x60] sm:$0xff] %v5365
      %5402 = vst [vmem:[#allocation2 + $0x68] sm:$0xff] %v5366
      %5403 = vst [vmem:[#allocation2 + $0x70] sm:$0xff] %v5367
      %5404 = vst [vmem:[#allocation2 + $0x78] sm:$0xff] %v5368
      %5405 = vst [vmem:[#allocation2 + $0x80] sm:$0xff] %v5369
      %5406 = vst [vmem:[#allocation2 + $0x88] sm:$0xff] %v5370
      %5407 = vst [vmem:[#allocation2 + $0x90] sm:$0xff] %v5371
      %5408 = vst [vmem:[#allocation2 + $0x98] sm:$0xff] %v5372
      %5409 = vst [vmem:[#allocation2 + $0xa0] sm:$0xff] %v5373
      %5410 = vst [vmem:[#allocation2 + $0xa8] sm:$0xff] %v5374
      %5411 = vst [vmem:[#allocation2 + $0xb0] sm:$0xff] %v5375
      %5412 = vst [vmem:[#allocation2 + $0xb8] sm:$0xff] %v5376
      %5413 = vst [vmem:[#allocation2 + $0xc0] sm:$0xff] %v5377
      %5414 = vst [vmem:[#allocation2 + $0xc8] sm:$0xff] %v5378
      %5415 = vst [vmem:[#allocation2 + $0xd0] sm:$0xff] %v5379
      %5416 = vst [vmem:[#allocation2 + $0xd8] sm:$0xff] %v5380
      %5417 = vst [vmem:[#allocation2 + $0xe0] sm:$0xff] %v5381
      %5418 = vst [vmem:[#allocation2 + $0xe8] sm:$0xff] %v5382
      %5419 = vst [vmem:[#allocation2 + $0xf0] sm:$0xff] %v5383
      %5420 = vst [vmem:[#allocation2 + $0xf8] sm:$0xff] %v5384
      %5421 = vst [vmem:[#allocation2 + $0x100] sm:$0xff] %v5385
      %5422 = vst [vmem:[#allocation2 + $0x108] sm:$0xff] %v5386
      %5423 = vst [vmem:[#allocation2 + $0x110] sm:$0xff] %v5387
      %5424 = vst [vmem:[#allocation2 + $0x118] sm:$0xff] %v5388
      %v5425 = vld [vmem:[#allocation2] sm:$0xff]
      %v5426 = vld [vmem:[#allocation2 + $0x8] sm:$0xff]
      %v5427 = vld [vmem:[#allocation2 + $0x10] sm:$0xff]
      %v5428 = vld [vmem:[#allocation2 + $0x18] sm:$0xff]
      %v5429 = vld [vmem:[#allocation2 + $0x20] sm:$0xff]
      %v5430 = vld [vmem:[#allocation2 + $0x28] sm:$0xff]
      %v5431 = vld [vmem:[#allocation2 + $0x30] sm:$0xff]
      %v5432 = vld [vmem:[#allocation2 + $0x38] sm:$0xff]
      %v5433 = vld [vmem:[#allocation2 + $0x40] sm:$0xff]
      %v5434 = vld [vmem:[#allocation2 + $0x48] sm:$0xff]
      %v5435 = vld [vmem:[#allocation2 + $0x50] sm:$0xff]
      %v5436 = vld [vmem:[#allocation2 + $0x58] sm:$0xff]
      %v5437 = vld [vmem:[#allocation2 + $0x60] sm:$0xff]
      %v5438 = vld [vmem:[#allocation2 + $0x68] sm:$0xff]
      %v5439 = vld [vmem:[#allocation2 + $0x70] sm:$0xff]
      %v5440 = vld [vmem:[#allocation2 + $0x78] sm:$0xff]
      %v5441 = vld [vmem:[#allocation2 + $0x80] sm:$0xff]
      %v5442 = vld [vmem:[#allocation2 + $0x88] sm:$0xff]
      %v5443 = vld [vmem:[#allocation2 + $0x90] sm:$0xff]
      %v5444 = vld [vmem:[#allocation2 + $0x98] sm:$0xff]
      %v5445 = vld [vmem:[#allocation2 + $0xa0] sm:$0xff]
      %v5446 = vld [vmem:[#allocation2 + $0xa8] sm:$0xff]
      %v5447 = vld [vmem:[#allocation2 + $0xb0] sm:$0xff]
      %v5448 = vld [vmem:[#allocation2 + $0xb8] sm:$0xff]
      %v5449 = vld [vmem:[#allocation2 + $0xc0] sm:$0xff]
      %v5450 = vld [vmem:[#allocation2 + $0xc8] sm:$0xff]
      %v5451 = vld [vmem:[#allocation2 + $0xd0] sm:$0xff]
      %v5452 = vld [vmem:[#allocation2 + $0xd8] sm:$0xff]
      %v5453 = vld [vmem:[#allocation2 + $0xe0] sm:$0xff]
      %v5454 = vld [vmem:[#allocation2 + $0xe8] sm:$0xff]
      %v5455 = vld [vmem:[#allocation2 + $0xf0] sm:$0xff]
      %v5456 = vld [vmem:[#allocation2 + $0xf8] sm:$0xff]
      %v5457 = vld [vmem:[#allocation2 + $0x100] sm:$0xff]
      %v5458 = vld [vmem:[#allocation2 + $0x108] sm:$0xff]
      %v5459 = vld [vmem:[#allocation2 + $0x110] sm:$0xff]
      %v5460 = vld [vmem:[#allocation2 + $0x118] sm:$0xff]
      %v5461 = vld [vmem:[%s311] sm:$0x1]
      %v5463 = vlaneseq
      %v5464 = vshrl.u32 %v5463, 7
      %v5465 = vsub.s32 0, %v5464
      %v5466 = vrot.slane %v5461, %v5465
      %v5468 = vadd.f32 %v5425, %v5466
      %v5469 = vadd.f32 %v5426, %v5466
      %v5470 = vadd.f32 %v5427, %v5466
      %v5471 = vadd.f32 %v5428, %v5466
      %v5472 = vadd.f32 %v5429, %v5466
      %v5473 = vadd.f32 %v5430, %v5466
      %v5474 = vadd.f32 %v5431, %v5466
      %v5475 = vadd.f32 %v5432, %v5466
      %v5476 = vadd.f32 %v5433, %v5466
      %v5477 = vadd.f32 %v5434, %v5466
      %v5478 = vadd.f32 %v5435, %v5466
      %v5479 = vadd.f32 %v5436, %v5466
      %v5480 = vadd.f32 %v5437, %v5466
      %v5481 = vadd.f32 %v5438, %v5466
      %v5482 = vadd.f32 %v5439, %v5466
      %v5483 = vadd.f32 %v5440, %v5466
      %v5484 = vadd.f32 %v5441, %v5466
      %v5485 = vadd.f32 %v5442, %v5466
      %v5486 = vadd.f32 %v5443, %v5466
      %v5487 = vadd.f32 %v5444, %v5466
      %v5488 = vadd.f32 %v5445, %v5466
      %v5489 = vadd.f32 %v5446, %v5466
      %v5490 = vadd.f32 %v5447, %v5466
      %v5491 = vadd.f32 %v5448, %v5466
      %v5492 = vadd.f32 %v5449, %v5466
      %v5493 = vadd.f32 %v5450, %v5466
      %v5494 = vadd.f32 %v5451, %v5466
      %v5495 = vadd.f32 %v5452, %v5466
      %v5496 = vadd.f32 %v5453, %v5466
      %v5497 = vadd.f32 %v5454, %v5466
      %v5498 = vadd.f32 %v5455, %v5466
      %v5499 = vadd.f32 %v5456, %v5466
      %v5500 = vadd.f32 %v5457, %v5466
      %v5501 = vadd.f32 %v5458, %v5466
      %v5502 = vadd.f32 %v5459, %v5466
      %v5503 = vadd.f32 %v5460, %v5466
      %v5504 = vpack.c.bf16 %v5469, %v5468
      %v5505 = vpack.c.bf16 %v5471, %v5470
      %v5506 = vpack.c.bf16 %v5473, %v5472
      %v5507 = vpack.c.bf16 %v5475, %v5474
      %v5508 = vpack.c.bf16 %v5477, %v5476
      %v5509 = vpack.c.bf16 %v5479, %v5478
      %v5510 = vpack.c.bf16 %v5481, %v5480
      %v5511 = vpack.c.bf16 %v5483, %v5482
      %v5512 = vpack.c.bf16 %v5485, %v5484
      %v5513 = vpack.c.bf16 %v5487, %v5486
      %v5514 = vpack.c.bf16 %v5489, %v5488
      %v5515 = vpack.c.bf16 %v5491, %v5490
      %v5516 = vpack.c.bf16 %v5493, %v5492
      %v5517 = vpack.c.bf16 %v5495, %v5494
      %v5518 = vpack.c.bf16 %v5497, %v5496
      %v5519 = vpack.c.bf16 %v5499, %v5498
      %v5520 = vpack.c.bf16 %v5501, %v5500
      %v5521 = vpack.c.bf16 %v5503, %v5502
      %v5540 = vunpack.c.l.b16 %v5504
      %v5541 = vunpack.c.h.b16 %v5504
      %v5542 = vunpack.c.l.b16 %v5505
      %v5543 = vunpack.c.h.b16 %v5505
      %v5544 = vunpack.c.l.b16 %v5506
      %v5545 = vunpack.c.h.b16 %v5506
      %v5546 = vunpack.c.l.b16 %v5507
      %v5547 = vunpack.c.h.b16 %v5507
      %v5548 = vunpack.c.l.b16 %v5508
      %v5549 = vunpack.c.h.b16 %v5508
      %v5550 = vunpack.c.l.b16 %v5509
      %v5551 = vunpack.c.h.b16 %v5509
      %v5552 = vunpack.c.l.b16 %v5510
      %v5553 = vunpack.c.h.b16 %v5510
      %v5554 = vunpack.c.l.b16 %v5511
      %v5555 = vunpack.c.h.b16 %v5511
      %v5556 = vunpack.c.l.b16 %v5512
      %v5557 = vunpack.c.h.b16 %v5512
      %v5558 = vunpack.c.l.b16 %v5513
      %v5559 = vunpack.c.h.b16 %v5513
      %v5560 = vunpack.c.l.b16 %v5514
      %v5561 = vunpack.c.h.b16 %v5514
      %v5562 = vunpack.c.l.b16 %v5515
      %v5563 = vunpack.c.h.b16 %v5515
      %v5564 = vunpack.c.l.b16 %v5516
      %v5565 = vunpack.c.h.b16 %v5516
      %v5566 = vunpack.c.l.b16 %v5517
      %v5567 = vunpack.c.h.b16 %v5517
      %v5568 = vunpack.c.l.b16 %v5518
      %v5569 = vunpack.c.h.b16 %v5518
      %v5570 = vunpack.c.l.b16 %v5519
      %v5571 = vunpack.c.h.b16 %v5519
      %v5572 = vunpack.c.l.b16 %v5520
      %v5573 = vunpack.c.h.b16 %v5520
      %v5574 = vunpack.c.l.b16 %v5521
      %v5575 = vunpack.c.h.b16 %v5521
      %v5576 = vpack.c.b16 %v5540, %v5540
      %v5577 = vpack.c.b16 %v5541, %v5541
      %v5578 = vpack.c.b16 %v5542, %v5542
      %v5579 = vpack.c.b16 %v5543, %v5543
      %v5580 = vpack.c.b16 %v5544, %v5544
      %v5581 = vpack.c.b16 %v5545, %v5545
      %v5582 = vpack.c.b16 %v5546, %v5546
      %v5583 = vpack.c.b16 %v5547, %v5547
      %v5584 = vpack.c.b16 %v5548, %v5548
      %v5585 = vpack.c.b16 %v5549, %v5549
      %v5586 = vpack.c.b16 %v5550, %v5550
      %v5587 = vpack.c.b16 %v5551, %v5551
      %v5588 = vpack.c.b16 %v5552, %v5552
      %v5589 = vpack.c.b16 %v5553, %v5553
      %v5590 = vpack.c.b16 %v5554, %v5554
      %v5591 = vpack.c.b16 %v5555, %v5555
      %v5592 = vpack.c.b16 %v5556, %v5556
      %v5593 = vpack.c.b16 %v5557, %v5557
      %v5594 = vpack.c.b16 %v5558, %v5558
      %v5595 = vpack.c.b16 %v5559, %v5559
      %v5596 = vpack.c.b16 %v5560, %v5560
      %v5597 = vpack.c.b16 %v5561, %v5561
      %v5598 = vpack.c.b16 %v5562, %v5562
      %v5599 = vpack.c.b16 %v5563, %v5563
      %v5600 = vpack.c.b16 %v5564, %v5564
      %v5601 = vpack.c.b16 %v5565, %v5565
      %v5602 = vpack.c.b16 %v5566, %v5566
      %v5603 = vpack.c.b16 %v5567, %v5567
      %v5604 = vpack.c.b16 %v5568, %v5568
      %v5605 = vpack.c.b16 %v5569, %v5569
      %v5606 = vpack.c.b16 %v5570, %v5570
      %v5607 = vpack.c.b16 %v5571, %v5571
      %v5608 = vpack.c.b16 %v5572, %v5572
      %v5609 = vpack.c.b16 %v5573, %v5573
      %v5610 = vpack.c.b16 %v5574, %v5574
      %v5611 = vpack.c.b16 %v5575, %v5575
      %5648 = vst [vmem:[%s329] sm:$0xf] %v5576
      %5649 = vst [vmem:[%s329 + $0x4] sm:$0xf] %v5577
      %5650 = vst [vmem:[%s329 + $0x8] sm:$0xf] %v5578
      %5651 = vst [vmem:[%s329 + $0xc] sm:$0xf] %v5579
      %5652 = vst [vmem:[%s329 + $0x10] sm:$0xf] %v5580
      %5653 = vst [vmem:[%s329 + $0x14] sm:$0xf] %v5581
      %5654 = vst [vmem:[%s329 + $0x18] sm:$0xf] %v5582
      %5655 = vst [vmem:[%s329 + $0x1c] sm:$0xf] %v5583
      %5656 = vst [vmem:[%s329 + $0x20] sm:$0xf] %v5584
      %5657 = vst [vmem:[%s329 + $0x24] sm:$0xf] %v5585
      %5658 = vst [vmem:[%s329 + $0x28] sm:$0xf] %v5586
      %5659 = vst [vmem:[%s329 + $0x2c] sm:$0xf] %v5587
      %5660 = vst [vmem:[%s329 + $0x30] sm:$0xf] %v5588
      %5661 = vst [vmem:[%s329 + $0x34] sm:$0xf] %v5589
      %5662 = vst [vmem:[%s329 + $0x38] sm:$0xf] %v5590
      %5663 = vst [vmem:[%s329 + $0x3c] sm:$0xf] %v5591
      %5664 = vst [vmem:[%s329 + $0x40] sm:$0xf] %v5592
      %5665 = vst [vmem:[%s329 + $0x44] sm:$0xf] %v5593
      %5666 = vst [vmem:[%s329 + $0x48] sm:$0xf] %v5594
      %5667 = vst [vmem:[%s329 + $0x4c] sm:$0xf] %v5595
      %5668 = vst [vmem:[%s329 + $0x50] sm:$0xf] %v5596
      %5669 = vst [vmem:[%s329 + $0x54] sm:$0xf] %v5597
      %5670 = vst [vmem:[%s329 + $0x58] sm:$0xf] %v5598
      %5671 = vst [vmem:[%s329 + $0x5c] sm:$0xf] %v5599
      %5672 = vst [vmem:[%s329 + $0x60] sm:$0xf] %v5600
      %5673 = vst [vmem:[%s329 + $0x64] sm:$0xf] %v5601
      %5674 = vst [vmem:[%s329 + $0x68] sm:$0xf] %v5602
      %5675 = vst [vmem:[%s329 + $0x6c] sm:$0xf] %v5603
      %5676 = vst [vmem:[%s329 + $0x70] sm:$0xf] %v5604
      %5677 = vst [vmem:[%s329 + $0x74] sm:$0xf] %v5605
      %5678 = vst [vmem:[%s329 + $0x78] sm:$0xf] %v5606
      %5679 = vst [vmem:[%s329 + $0x7c] sm:$0xf] %v5607
      %5680 = vst [vmem:[%s329 + $0x80] sm:$0xf] %v5608
      %5681 = vst [vmem:[%s329 + $0x84] sm:$0xf] %v5609
      %5682 = vst [vmem:[%s329 + $0x88] sm:$0xf] %v5610
      %5683 = vst [vmem:[%s329 + $0x8c] sm:$0xf] %v5611
      %v5684 = vand.u32 2147483647, %v5468
      %v5685 = vand.u32 2147483647, %v5469
      %v5686 = vand.u32 2147483647, %v5470
      %v5687 = vand.u32 2147483647, %v5471
      %v5688 = vand.u32 2147483647, %v5472
      %v5689 = vand.u32 2147483647, %v5473
      %v5690 = vand.u32 2147483647, %v5474
      %v5691 = vand.u32 2147483647, %v5475
      %v5692 = vand.u32 2147483647, %v5476
      %v5693 = vand.u32 2147483647, %v5477
      %v5694 = vand.u32 2147483647, %v5478
      %v5695 = vand.u32 2147483647, %v5479
      %v5696 = vand.u32 2147483647, %v5480
      %v5697 = vand.u32 2147483647, %v5481
      %v5698 = vand.u32 2147483647, %v5482
      %v5699 = vand.u32 2147483647, %v5483
      %v5700 = vand.u32 2147483647, %v5484
      %v5701 = vand.u32 2147483647, %v5485
      %v5702 = vand.u32 2147483647, %v5486
      %v5703 = vand.u32 2147483647, %v5487
      %v5704 = vand.u32 2147483647, %v5488
      %v5705 = vand.u32 2147483647, %v5489
      %v5706 = vand.u32 2147483647, %v5490
      %v5707 = vand.u32 2147483647, %v5491
      %v5708 = vand.u32 2147483647, %v5492
      %v5709 = vand.u32 2147483647, %v5493
      %v5710 = vand.u32 2147483647, %v5494
      %v5711 = vand.u32 2147483647, %v5495
      %v5712 = vand.u32 2147483647, %v5496
      %v5713 = vand.u32 2147483647, %v5497
      %v5714 = vand.u32 2147483647, %v5498
      %v5715 = vand.u32 2147483647, %v5499
      %v5716 = vand.u32 2147483647, %v5500
      %v5717 = vand.u32 2147483647, %v5501
      %v5718 = vand.u32 2147483647, %v5502
      %v5719 = vand.u32 2147483647, %v5503
      %v5720 = vld [vmem:[%s316] sm:$0xff]
      %v5721 = vld [vmem:[%s316 + $0x8] sm:$0xff]
      %v5722 = vld [vmem:[%s316 + $0x10] sm:$0xff]
      %v5723 = vld [vmem:[%s316 + $0x18] sm:$0xff]
      %v5724 = vld [vmem:[%s316 + $0x20] sm:$0xff]
      %v5725 = vld [vmem:[%s316 + $0x28] sm:$0xff]
      %v5726 = vld [vmem:[%s316 + $0x30] sm:$0xff]
      %v5727 = vld [vmem:[%s316 + $0x38] sm:$0xff]
      %v5728 = vld [vmem:[%s316 + $0x40] sm:$0xff]
      %v5729 = vld [vmem:[%s316 + $0x48] sm:$0xff]
      %v5730 = vld [vmem:[%s316 + $0x50] sm:$0xff]
      %v5731 = vld [vmem:[%s316 + $0x58] sm:$0xff]
      %v5732 = vld [vmem:[%s316 + $0x60] sm:$0xff]
      %v5733 = vld [vmem:[%s316 + $0x68] sm:$0xff]
      %v5734 = vld [vmem:[%s316 + $0x70] sm:$0xff]
      %v5735 = vld [vmem:[%s316 + $0x78] sm:$0xff]
      %v5736 = vld [vmem:[%s316 + $0x80] sm:$0xff]
      %v5737 = vld [vmem:[%s316 + $0x88] sm:$0xff]
      %v5738 = vld [vmem:[%s316 + $0x90] sm:$0xff]
      %v5739 = vld [vmem:[%s316 + $0x98] sm:$0xff]
      %v5740 = vld [vmem:[%s316 + $0xa0] sm:$0xff]
      %v5741 = vld [vmem:[%s316 + $0xa8] sm:$0xff]
      %v5742 = vld [vmem:[%s316 + $0xb0] sm:$0xff]
      %v5743 = vld [vmem:[%s316 + $0xb8] sm:$0xff]
      %v5744 = vld [vmem:[%s316 + $0xc0] sm:$0xff]
      %v5745 = vld [vmem:[%s316 + $0xc8] sm:$0xff]
      %v5746 = vld [vmem:[%s316 + $0xd0] sm:$0xff]
      %v5747 = vld [vmem:[%s316 + $0xd8] sm:$0xff]
      %v5748 = vld [vmem:[%s316 + $0xe0] sm:$0xff]
      %v5749 = vld [vmem:[%s316 + $0xe8] sm:$0xff]
      %v5750 = vld [vmem:[%s316 + $0xf0] sm:$0xff]
      %v5751 = vld [vmem:[%s316 + $0xf8] sm:$0xff]
      %v5752 = vld [vmem:[%s316 + $0x100] sm:$0xff]
      %v5753 = vld [vmem:[%s316 + $0x108] sm:$0xff]
      %v5754 = vld [vmem:[%s316 + $0x110] sm:$0xff]
      %v5755 = vld [vmem:[%s316 + $0x118] sm:$0xff]
      %5757 = vset.pattern.permute.xlu0 0
      %5758 = vperm.xlu0 %5757, %v5720
      %v5759 = vpop.permute.xlu0 %5758
      %5762 = vset.pattern.permute.xlu0 0
      %5763 = vperm.xlu0 %5762, %v5721
      %v5764 = vpop.permute.xlu0 %5763
      %5767 = vset.pattern.permute.xlu0 0
      %5768 = vperm.xlu0 %5767, %v5722
      %v5769 = vpop.permute.xlu0 %5768
      %5772 = vset.pattern.permute.xlu0 0
      %5773 = vperm.xlu0 %5772, %v5723
      %v5774 = vpop.permute.xlu0 %5773
      %5777 = vset.pattern.permute.xlu0 0
      %5778 = vperm.xlu0 %5777, %v5724
      %v5779 = vpop.permute.xlu0 %5778
      %5782 = vset.pattern.permute.xlu0 0
      %5783 = vperm.xlu0 %5782, %v5725
      %v5784 = vpop.permute.xlu0 %5783
      %5787 = vset.pattern.permute.xlu0 0
      %5788 = vperm.xlu0 %5787, %v5726
      %v5789 = vpop.permute.xlu0 %5788
      %5792 = vset.pattern.permute.xlu0 0
      %5793 = vperm.xlu0 %5792, %v5727
      %v5794 = vpop.permute.xlu0 %5793
      %5797 = vset.pattern.permute.xlu0 0
      %5798 = vperm.xlu0 %5797, %v5728
      %v5799 = vpop.permute.xlu0 %5798
      %5802 = vset.pattern.permute.xlu0 0
      %5803 = vperm.xlu0 %5802, %v5729
      %v5804 = vpop.permute.xlu0 %5803
      %5807 = vset.pattern.permute.xlu0 0
      %5808 = vperm.xlu0 %5807, %v5730
      %v5809 = vpop.permute.xlu0 %5808
      %5812 = vset.pattern.permute.xlu0 0
      %5813 = vperm.xlu0 %5812, %v5731
      %v5814 = vpop.permute.xlu0 %5813
      %5817 = vset.pattern.permute.xlu0 0
      %5818 = vperm.xlu0 %5817, %v5732
      %v5819 = vpop.permute.xlu0 %5818
      %5822 = vset.pattern.permute.xlu0 0
      %5823 = vperm.xlu0 %5822, %v5733
      %v5824 = vpop.permute.xlu0 %5823
      %5827 = vset.pattern.permute.xlu0 0
      %5828 = vperm.xlu0 %5827, %v5734
      %v5829 = vpop.permute.xlu0 %5828
      %5832 = vset.pattern.permute.xlu0 0
      %5833 = vperm.xlu0 %5832, %v5735
      %v5834 = vpop.permute.xlu0 %5833
      %5837 = vset.pattern.permute.xlu0 0
      %5838 = vperm.xlu0 %5837, %v5736
      %v5839 = vpop.permute.xlu0 %5838
      %5842 = vset.pattern.permute.xlu0 0
      %5843 = vperm.xlu0 %5842, %v5737
      %v5844 = vpop.permute.xlu0 %5843
      %5847 = vset.pattern.permute.xlu0 0
      %5848 = vperm.xlu0 %5847, %v5738
      %v5849 = vpop.permute.xlu0 %5848
      %5852 = vset.pattern.permute.xlu0 0
      %5853 = vperm.xlu0 %5852, %v5739
      %v5854 = vpop.permute.xlu0 %5853
      %5857 = vset.pattern.permute.xlu0 0
      %5858 = vperm.xlu0 %5857, %v5740
      %v5859 = vpop.permute.xlu0 %5858
      %5862 = vset.pattern.permute.xlu0 0
      %5863 = vperm.xlu0 %5862, %v5741
      %v5864 = vpop.permute.xlu0 %5863
      %5867 = vset.pattern.permute.xlu0 0
      %5868 = vperm.xlu0 %5867, %v5742
      %v5869 = vpop.permute.xlu0 %5868
      %5872 = vset.pattern.permute.xlu0 0
      %5873 = vperm.xlu0 %5872, %v5743
      %v5874 = vpop.permute.xlu0 %5873
      %5877 = vset.pattern.permute.xlu0 0
      %5878 = vperm.xlu0 %5877, %v5744
      %v5879 = vpop.permute.xlu0 %5878
      %5882 = vset.pattern.permute.xlu0 0
      %5883 = vperm.xlu0 %5882, %v5745
      %v5884 = vpop.permute.xlu0 %5883
      %5887 = vset.pattern.permute.xlu0 0
      %5888 = vperm.xlu0 %5887, %v5746
      %v5889 = vpop.permute.xlu0 %5888
      %5892 = vset.pattern.permute.xlu0 0
      %5893 = vperm.xlu0 %5892, %v5747
      %v5894 = vpop.permute.xlu0 %5893
      %5897 = vset.pattern.permute.xlu0 0
      %5898 = vperm.xlu0 %5897, %v5748
      %v5899 = vpop.permute.xlu0 %5898
      %5902 = vset.pattern.permute.xlu0 0
      %5903 = vperm.xlu0 %5902, %v5749
      %v5904 = vpop.permute.xlu0 %5903
      %5907 = vset.pattern.permute.xlu0 0
      %5908 = vperm.xlu0 %5907, %v5750
      %v5909 = vpop.permute.xlu0 %5908
      %5912 = vset.pattern.permute.xlu0 0
      %5913 = vperm.xlu0 %5912, %v5751
      %v5914 = vpop.permute.xlu0 %5913
      %5917 = vset.pattern.permute.xlu0 0
      %5918 = vperm.xlu0 %5917, %v5752
      %v5919 = vpop.permute.xlu0 %5918
      %5922 = vset.pattern.permute.xlu0 0
      %5923 = vperm.xlu0 %5922, %v5753
      %v5924 = vpop.permute.xlu0 %5923
      %5927 = vset.pattern.permute.xlu0 0
      %5928 = vperm.xlu0 %5927, %v5754
      %v5929 = vpop.permute.xlu0 %5928
      %5932 = vset.pattern.permute.xlu0 0
      %5933 = vperm.xlu0 %5932, %v5755
      %v5934 = vpop.permute.xlu0 %5933
      %v5936 = vmul.f32 %v5684, %v5759
      %v5937 = vmul.f32 %v5685, %v5764
      %v5938 = vmul.f32 %v5686, %v5769
      %v5939 = vmul.f32 %v5687, %v5774
      %v5940 = vmul.f32 %v5688, %v5779
      %v5941 = vmul.f32 %v5689, %v5784
      %v5942 = vmul.f32 %v5690, %v5789
      %v5943 = vmul.f32 %v5691, %v5794
      %v5944 = vmul.f32 %v5692, %v5799
      %v5945 = vmul.f32 %v5693, %v5804
      %v5946 = vmul.f32 %v5694, %v5809
      %v5947 = vmul.f32 %v5695, %v5814
      %v5948 = vmul.f32 %v5696, %v5819
      %v5949 = vmul.f32 %v5697, %v5824
      %v5950 = vmul.f32 %v5698, %v5829
      %v5951 = vmul.f32 %v5699, %v5834
      %v5952 = vmul.f32 %v5700, %v5839
      %v5953 = vmul.f32 %v5701, %v5844
      %v5954 = vmul.f32 %v5702, %v5849
      %v5955 = vmul.f32 %v5703, %v5854
      %v5956 = vmul.f32 %v5704, %v5859
      %v5957 = vmul.f32 %v5705, %v5864
      %v5958 = vmul.f32 %v5706, %v5869
      %v5959 = vmul.f32 %v5707, %v5874
      %v5960 = vmul.f32 %v5708, %v5879
      %v5961 = vmul.f32 %v5709, %v5884
      %v5962 = vmul.f32 %v5710, %v5889
      %v5963 = vmul.f32 %v5711, %v5894
      %v5964 = vmul.f32 %v5712, %v5899
      %v5965 = vmul.f32 %v5713, %v5904
      %v5966 = vmul.f32 %v5714, %v5909
      %v5967 = vmul.f32 %v5715, %v5914
      %v5968 = vmul.f32 %v5716, %v5919
      %v5969 = vmul.f32 %v5717, %v5924
      %v5970 = vmul.f32 %v5718, %v5929
      %v5971 = vmul.f32 %v5719, %v5934
      %v5972 = vmax.f32 %v5936, %v5940
      %v5973 = vmax.f32 %v5937, %v5941
      %v5974 = vmax.f32 %v5938, %v5942
      %v5975 = vmax.f32 %v5939, %v5943
      %v5976 = vmax.f32 %v5972, %v5944
      %v5977 = vmax.f32 %v5973, %v5945
      %v5978 = vmax.f32 %v5974, %v5946
      %v5979 = vmax.f32 %v5975, %v5947
      %v5980 = vmax.f32 %v5976, %v5948
      %v5981 = vmax.f32 %v5977, %v5949
      %v5982 = vmax.f32 %v5978, %v5950
      %v5983 = vmax.f32 %v5979, %v5951
      %v5984 = vmax.f32 %v5980, %v5952
      %v5985 = vmax.f32 %v5981, %v5953
      %v5986 = vmax.f32 %v5982, %v5954
      %v5987 = vmax.f32 %v5983, %v5955
      %v5988 = vmax.f32 %v5984, %v5956
      %v5989 = vmax.f32 %v5985, %v5957
      %v5990 = vmax.f32 %v5986, %v5958
      %v5991 = vmax.f32 %v5987, %v5959
      %v5992 = vmax.f32 %v5988, %v5960
      %v5993 = vmax.f32 %v5989, %v5961
      %v5994 = vmax.f32 %v5990, %v5962
      %v5995 = vmax.f32 %v5991, %v5963
      %v5996 = vmax.f32 %v5992, %v5964
      %v5997 = vmax.f32 %v5993, %v5965
      %v5998 = vmax.f32 %v5994, %v5966
      %v5999 = vmax.f32 %v5995, %v5967
      %v6000 = vmax.f32 %v5996, %v5968
      %v6001 = vmax.f32 %v5997, %v5969
      %v6002 = vmax.f32 %v5998, %v5970
      %v6003 = vmax.f32 %v5999, %v5971
      %v6004 = vmax.f32 %v6000, %v6001
      %v6005 = vmax.f32 %v6002, %v6003
      %v6006 = vmax.f32 %v6004, %v6005
      %v6007 = vrot.slane %v6006, 4
      %v6008 = vmax.f32 %v6006, %v6007
      %v6009 = vrot.slane %v6008, 2
      %v6010 = vmax.f32 %v6008, %v6009
      %v6011 = vrot.slane %v6010, 1
      %v6012 = vmax.f32 %v6010, %v6011
      %6013 = vst [vmem:[%s338] sm:$0xff] %v6012
      %s6014 = smul.u32 36, %s24
      %p6015 = scmp.lt.s32.totalorder %s22, 1
      %s6016 = scalar_select %p6015, %s22, 1
      %p6017 = scmp.lt.s32.totalorder %s6014, 35
      %s6018 = scalar_select %p6017, %s6014, 35
      %p6019 = scmp.lt.s32.totalorder %s23, 0
      %s6020 = scalar_select %p6019, %s23, 0
      %s6021 = sadd.s32 %s6020, %s6018
      %s6022 = smul.addr %s6016, 36
      %s6023 = sadd.s32 %s6021, %s6022
      %s6024 = smul.addr %s6023, 4
      %s6025 = scalar_lea.vmem %s4, %s6024
      %s6026 = sadd.s32 %s22, %s24
      %p6027 = scmp.lt.s32.totalorder %s6026, 1
      %s6028 = scalar_select %p6027, %s6026, 1
      %p6029 = scmp.lt.s32.totalorder %s23, 0
      %s6030 = scalar_select %p6029, %s23, 0
      %s6031 = sadd.s32 %s6030, %s6028
      %s6032 = smul.addr %s6031, 8
      %s6033 = scalar_lea.vmem %s5, %s6032
      // Predicated region
      $region37: #{quantized_conv2d_forward.2} parent=35 // pred_check
        %p6034 = pneg %p162
      $region38: #{quantized_conv2d_forward.2} parent=35 // pred_check_branch
        %6036 = sbr.rel (%p6034) target = $region40
      $region39: #{quantized_conv2d_forward.2} parent=35 // pred_region
        %s6037 = smul.u32 36, %s24
      $region40: #{quantized_conv2d_forward.2} parent=35 // pred_fallthru
        _
      // Predicated region
      $region41: #{quantized_conv2d_forward.2} parent=35 // pred_check
        %p6038 = pneg %p192
      $region42: #{quantized_conv2d_forward.2} parent=35 // pred_check_branch
        %6040 = sbr.rel (%p6038) target = $region44
      $region43: #{quantized_conv2d_forward.2} parent=35 // pred_region
        %s6041 = sadd.s32 %s22, %s24
      $region44: #{quantized_conv2d_forward.2} parent=35 // pred_fallthru
        _
    $region36: #{quantized_conv2d_forward.2} parent=5 // pred_fallthru
      _
    %p6042 = scmp.le.s32.totalorder 2, %s12
    // Predicated region
    $region45: #{quantized_conv2d_forward.2} parent=5 // pred_check
      %p6043 = pneg %p6042
    $region46: #{quantized_conv2d_forward.2} parent=5 // pred_check_branch
      %6045 = sbr.rel (%p6043) target = $region48
    $region47: #{quantized_conv2d_forward.2} parent=5 // pred_region
      %s6046 = ssub.s32 %s12, 2
      // Predicated region
      $region49: #{quantized_conv2d_forward.2} parent=47 // pred_check
        %p6047 = pneg %p168
      $region50: #{quantized_conv2d_forward.2} parent=47 // pred_check_branch
        %6049 = sbr.rel (%p6047) target = $region52
      $region51: #{quantized_conv2d_forward.2} parent=47 // pred_region
        %s6050 = smul.u32 36, %s27
        %p6051 = scmp.lt.s32.totalorder %s25, 1
        %s6052 = scalar_select %p6051, %s25, 1
        %p6053 = scmp.lt.s32.totalorder %s6050, 35
        %s6054 = scalar_select %p6053, %s6050, 35
        %p6055 = scmp.lt.s32.totalorder %s26, 0
        %s6056 = scalar_select %p6055, %s26, 0
        %s6057 = sadd.s32 %s6056, %s6054
        %s6058 = smul.addr %s6052, 36
        %s6059 = sadd.s32 %s6057, %s6058
        %s6060 = smul.addr %s6059, 4
        %s6061 = scalar_lea.vmem %s4, %s6060
      $region52: #{quantized_conv2d_forward.2} parent=47 // pred_fallthru
        _
      // Predicated region
      $region53: #{quantized_conv2d_forward.2} parent=47 // pred_check
        %p6062 = pneg %p198
      $region54: #{quantized_conv2d_forward.2} parent=47 // pred_check_branch
        %6064 = sbr.rel (%p6062) target = $region56
      $region55: #{quantized_conv2d_forward.2} parent=47 // pred_region
        %s6065 = sadd.s32 %s25, %s27
        %p6066 = scmp.lt.s32.totalorder %s6065, 1
        %s6067 = scalar_select %p6066, %s6065, 1
        %p6068 = scmp.lt.s32.totalorder %s26, 0
        %s6069 = scalar_select %p6068, %s26, 0
        %s6070 = sadd.s32 %s6069, %s6067
        %s6071 = smul.addr %s6070, 8
        %s6072 = scalar_lea.vmem %s5, %s6071
      $region56: #{quantized_conv2d_forward.2} parent=47 // pred_fallthru
        _
    $region48: #{quantized_conv2d_forward.2} parent=5 // pred_fallthru
      _
  $region6: #{quantized_conv2d_forward.2} parent=0 // loop_footer
    %s16 = sadd.s32 1, %s12
  $region7: #{quantized_conv2d_forward.2} parent=0 // loop_footer_branch
    %11 = sbr.rel target = $region3
  $region8: #{quantized_conv2d_forward.2} parent=0 // loop_exit
    _

</llo_original>
